<compile_context>
chip_gen: v7x
topology: tpu7x:2x2x1
jax: 0.10.0
libtpu: 0.0.40
codegen_flags: <defaults>
</compile_context>

<pallas_src>
import jax
import jax.numpy as jnp
from jax.experimental import pallas as pl
from jax.experimental.pallas import tpu as pltpu


def _attn_gated_kernel(x_ref, wab_ref, bab_ref, wc_ref, bc_ref, out_ref):
    D = wc_ref.shape[0]

    # One fused, lane-dense matmul for both gating branches: [tn, L] @ [L, 2D].
    # Keep x in its native dtype; accumulate in f32 on the MXU.
    ab = jnp.dot(x_ref[...], wab_ref[...],
                 preferred_element_type=jnp.float32) + bab_ref[...]

    # Split the fused result: first D lanes -> tanh branch, last D -> sigmoid.
    a = jnp.tanh(ab[:, :D])
    b = jax.nn.sigmoid(ab[:, D:])
    gated = (a * b).astype(wc_ref.dtype)

    # attention_c: Linear(D, C_pad) with zero-padded columns (lane-dense out).
    out_ref[...] = (
        jnp.dot(gated, wc_ref[...], preferred_element_type=jnp.float32)
        + bc_ref[...]).astype(out_ref.dtype)


def attn_net_gated(x, wa, ba, wb, bb, wc, bc, *, tile_n=512):
    """x: [N, L]; wa/wb: [L, D]; ba/bb: [D]; wc: [D, C]; bc: [C].
    Returns (A, x) matching the PyTorch forward (dropout disabled)."""
    N, L = x.shape
    D = wa.shape[1]
    C = wc.shape[1]

    # --- wrapper-side weight prep (done once per call, outside the kernel) ---
    # Fuse the two gating projections into one [L, 2D] weight / [1, 2D] bias.
    w_ab = jnp.concatenate([wa, wb], axis=1)                   # [L, 2D]
    b_ab = jnp.concatenate([ba, bb], axis=0).reshape(1, 2 * D)  # [1, 2D]

    # Pad the tiny class axis up to a lane-dense multiple of 128.
    C_pad = max(128, pl.cdiv(C, 128) * 128)
    wc_p = jnp.pad(wc, ((0, 0), (0, C_pad - C)))               # [D, C_pad]
    bc_p = jnp.pad(bc, (0, C_pad - C)).reshape(1, C_pad)       # [1, C_pad]

    # Tile the instance axis; pad N instead of requiring divisibility.
    # (Padded rows are independent garbage and are sliced off afterwards.)
    tile_n = int(min(tile_n, pl.cdiv(N, 8) * 8))
    tile_n = max(8, (tile_n // 8) * 8)
    n_tiles = pl.cdiv(N, tile_n)
    N_pad = n_tiles * tile_n
    x_p = jnp.pad(x, ((0, N_pad - N), (0, 0))) if N_pad != N else x

    A_pad = pl.pallas_call(
        _attn_gated_kernel,
        out_shape=jax.ShapeDtypeStruct((N_pad, C_pad), x.dtype),
        grid=(n_tiles,),
        in_specs=[
            pl.BlockSpec((tile_n, L), lambda i: (i, 0)),   # x tile (streamed)
            pl.BlockSpec((L, 2 * D), lambda i: (0, 0)),    # fused Wa|Wb
            pl.BlockSpec((1, 2 * D), lambda i: (0, 0)),    # fused ba|bb
            pl.BlockSpec((D, C_pad), lambda i: (0, 0)),    # Wc (lane-padded)
            pl.BlockSpec((1, C_pad), lambda i: (0, 0)),    # bc (lane-padded)
        ],
        out_specs=pl.BlockSpec((tile_n, C_pad), lambda i: (i, 0)),
        compiler_params=pltpu.CompilerParams(
            dimension_semantics=("parallel",)),
    )(x_p, w_ab, b_ab, wc_p, bc_p)

    A = A_pad[:N, :C]
    return A, x


def _reference(x, wa, ba, wb, bb, wc, bc):
    a = jnp.tanh(x @ wa + ba)
    b = jax.nn.sigmoid(x @ wb + bb)
    return (a * b) @ wc + bc


if __name__ == "__main__":
    # Module-default feature sizes (L=1024, D=256, num_classes=1) with a
    # modest, non-tile-aligned bag size N to exercise the padding path.
    N, L, D, C = 1000, 1024, 256, 1

    key = jax.random.PRNGKey(0)
    kx, kwa, kba, kwb, kbb, kwc, kbc = jax.random.split(key, 7)

    x = jax.random.normal(kx, (N, L), dtype=jnp.float32)

    # Deterministic synthetic params (nn.Linear-style uniform init), stored
    # pre-transposed as [in, out].
    def linear_init(kw, kb, fan_in, fan_out):
        bound = 1.0 / jnp.sqrt(fan_in)
        w = jax.random.uniform(kw, (fan_in, fan_out), jnp.float32, -bound, bound)
        b = jax.random.uniform(kb, (fan_out,), jnp.float32, -bound, bound)
        return w, b

    wa, ba = linear_init(kwa, kba, L, D)
    wb, bb = linear_init(kwb, kbb, L, D)
    wc, bc = linear_init(kwc, kbc, D, C)

    A, x_out = attn_net_gated(x, wa, ba, wb, bb, wc, bc)
    jax.block_until_ready((A, x_out))

    A_ref = _reference(x, wa, ba, wb, bb, wc, bc)
    assert A.shape == (N, C)
    assert x_out.shape == (N, L)
    assert jnp.allclose(A, A_ref, atol=2e-4, rtol=2e-4), (
        float(jnp.max(jnp.abs(A - A_ref))))
    assert jnp.array_equal(x_out, x)

    # TODO(synk): dropout(p=0.25) branch not implemented (module default is
    # dropout=False; would need pltpu.prng_* if enabled).
    print("KERNEL_OK")
</pallas_src>

<mosaic_0001>
module attributes {stable_mosaic.version = 11 : i64} {
  func.func @_attn_gated_kernel(%arg0: i32, %arg1: memref<512x1024xf32, #tpu.memory_space<vmem>>, %arg2: memref<1024x512xf32, #tpu.memory_space<vmem>>, %arg3: memref<1x512xf32, #tpu.memory_space<vmem>>, %arg4: memref<256x128xf32, #tpu.memory_space<vmem>>, %arg5: memref<1x128xf32, #tpu.memory_space<vmem>>, %arg6: memref<512x128xf32, #tpu.memory_space<vmem>>) attributes {dimension_semantics = [#tpu.dimension_semantics<parallel>], iteration_bounds = array<i64: 2>, scalar_prefetch = 0 : i64, scratch_operands = 0 : i64, tpu.core_type = #tpu.core_type<tc>, window_params = [{transform_indices = @transform_0, window_bounds = array<i64: 512, 1024>}, {pipeline_mode = #tpu.pipeline_mode<synchronous>, transform_indices = @transform_1, window_bounds = array<i64: 1024, 512>}, {pipeline_mode = #tpu.pipeline_mode<synchronous>, transform_indices = @transform_2, window_bounds = array<i64: 1, 512>}, {pipeline_mode = #tpu.pipeline_mode<synchronous>, transform_indices = @transform_3, window_bounds = array<i64: 256, 128>}, {pipeline_mode = #tpu.pipeline_mode<synchronous>, transform_indices = @transform_4, window_bounds = array<i64: 1, 128>}, {transform_indices = @transform_5, window_bounds = array<i64: 512, 128>}]} {
    %c0 = arith.constant 0 : index
    %c0_0 = arith.constant 0 : index
    %0 = vector.load %arg1[%c0, %c0_0] : memref<512x1024xf32, #tpu.memory_space<vmem>>, vector<512x1024xf32>
    %c0_1 = arith.constant 0 : index
    %c0_2 = arith.constant 0 : index
    %1 = vector.load %arg2[%c0_1, %c0_2] : memref<1024x512xf32, #tpu.memory_space<vmem>>, vector<1024x512xf32>
    %cst = arith.constant dense<0.000000e+00> : vector<512x512xf32>
    %2 = tpu.matmul %0, %1, %cst {dimension_numbers = #tpu.dot_dimension_numbers<[1], [0], [0], [1], [0, 0, 1, 1], [], []>} : vector<512x1024xf32>, vector<1024x512xf32>, vector<512x512xf32> -> vector<512x512xf32>
    %c0_3 = arith.constant 0 : index
    %c0_4 = arith.constant 0 : index
    %3 = vector.load %arg3[%c0_3, %c0_4] : memref<1x512xf32, #tpu.memory_space<vmem>>, vector<1x512xf32>
    %4 = vector.broadcast %3 : vector<1x512xf32> to vector<512x512xf32>
    %5 = arith.addf %2, %4 : vector<512x512xf32>
    %6 = vector.extract_strided_slice %5 {offsets = [0, 0], sizes = [512, 256], strides = [1, 1]} : vector<512x512xf32> to vector<512x256xf32>
    %7 = math.tanh %6 : vector<512x256xf32>
    %8 = vector.extract_strided_slice %5 {offsets = [0, 256], sizes = [512, 256], strides = [1, 1]} : vector<512x512xf32> to vector<512x256xf32>
    %9 = arith.negf %8 : vector<512x256xf32>
    %10 = math.exp %9 : vector<512x256xf32>
    %cst_5 = arith.constant 1.000000e+00 : f32
    %11 = vector.broadcast %cst_5 : f32 to vector<512x256xf32>
    %12 = arith.addf %11, %10 : vector<512x256xf32>
    %13 = arith.divf %11, %12 : vector<512x256xf32>
    %14 = arith.mulf %7, %13 : vector<512x256xf32>
    %c0_6 = arith.constant 0 : index
    %c0_7 = arith.constant 0 : index
    %15 = vector.load %arg4[%c0_6, %c0_7] : memref<256x128xf32, #tpu.memory_space<vmem>>, vector<256x128xf32>
    %cst_8 = arith.constant dense<0.000000e+00> : vector<512x128xf32>
    %16 = tpu.matmul %14, %15, %cst_8 {dimension_numbers = #tpu.dot_dimension_numbers<[1], [0], [0], [1], [0, 0, 1, 1], [], []>} : vector<512x256xf32>, vector<256x128xf32>, vector<512x128xf32> -> vector<512x128xf32>
    %c0_9 = arith.constant 0 : index
    %c0_10 = arith.constant 0 : index
    %17 = vector.load %arg5[%c0_9, %c0_10] : memref<1x128xf32, #tpu.memory_space<vmem>>, vector<1x128xf32>
    %18 = vector.broadcast %17 : vector<1x128xf32> to vector<512x128xf32>
    %19 = arith.addf %16, %18 : vector<512x128xf32>
    %c0_11 = arith.constant 0 : index
    %c0_12 = arith.constant 0 : index
    %20 = vector.load %arg6[%c0_11, %c0_12] : memref<512x128xf32, #tpu.memory_space<vmem>>, vector<512x128xf32>
    tpu.vector_store %arg6[%c0_11, %c0_12], %19 {strides = array<i32>} : memref<512x128xf32, #tpu.memory_space<vmem>>, vector<512x128xf32>,
    return
  }
  func.func @transform_0(%arg0: i32) -> (i32, i32) {
    %c0_i32 = arith.constant 0 : i32
    %c0_i32_0 = arith.constant 0 : i32
    return %arg0, %c0_i32 : i32, i32
  }
  func.func @transform_1(%arg0: i32) -> (i32, i32) {
    %c0_i32 = arith.constant 0 : i32
    %c0_i32_0 = arith.constant 0 : i32
    %c0_i32_1 = arith.constant 0 : i32
    return %c0_i32, %c0_i32_0 : i32, i32
  }
  func.func @transform_2(%arg0: i32) -> (i32, i32) {
    %c0_i32 = arith.constant 0 : i32
    %c0_i32_0 = arith.constant 0 : i32
    %c0_i32_1 = arith.constant 0 : i32
    return %c0_i32, %c0_i32_0 : i32, i32
  }
  func.func @transform_3(%arg0: i32) -> (i32, i32) {
    %c0_i32 = arith.constant 0 : i32
    %c0_i32_0 = arith.constant 0 : i32
    %c0_i32_1 = arith.constant 0 : i32
    return %c0_i32, %c0_i32_0 : i32, i32
  }
  func.func @transform_4(%arg0: i32) -> (i32, i32) {
    %c0_i32 = arith.constant 0 : i32
    %c0_i32_0 = arith.constant 0 : i32
    %c0_i32_1 = arith.constant 0 : i32
    return %c0_i32, %c0_i32_0 : i32, i32
  }
  func.func @transform_5(%arg0: i32) -> (i32, i32) {
    %c0_i32 = arith.constant 0 : i32
    %c0_i32_0 = arith.constant 0 : i32
    return %arg0, %c0_i32 : i32, i32
  }
}

</mosaic_0001>

<llo_original>
// kernel: tpu_custom_call.1
$region0: #{tpu_custom_call.1}
  #allocation0 [shape = 'u32[]', space=smem, size = 0x4, offset = 0x4, fixed_abs, tag = 'smem constant byte address 0x4 - core index']
  #allocation1 [shape = 'u32[144,128]{1,0:T(1,128)}', space=vmem, size = 0x12000, scoped, tag = 'internal scratch']
  %s0 = inlined_call_operand.hbm [shape: f32[1024,1024], index: 0, kind: input, shape index: {}]
  %s1 = inlined_call_operand.hbm [shape: f32[1024,512], index: 1, kind: input, shape index: {}]
  %s2 = inlined_call_operand.hbm [shape: f32[1,512], index: 2, kind: input, shape index: {}]
  %s3 = inlined_call_operand.hbm [shape: f32[256,128], index: 3, kind: input, shape index: {}]
  %s4 = inlined_call_operand.hbm [shape: f32[1,128], index: 4, kind: input, shape index: {}]
  %s5 = inlined_call_operand.hbm [shape: f32[1024,128], index: 5, kind: output, shape index: {}]
  %s6 = sld [smem:[#allocation0]]
  $region73: #{tpu_custom_call.1} parent=0
    _
  %s8 = ssub.s32 1, %s6
  %s9 = scalar_select 0, %s8, %s6
  $region1: #{tpu_custom_call.1} parent=0
    #allocation2 [shape = 'u8[4194304]{0}', space=vmem, size = 0x400000, scoped, tag = 'input window, operand 0']
    #allocation3 [shape = 's32[2]{0}', space=sflag, size = 0x8, scoped, tag = 'scoped memory for tpu_custom_call.1']
    #allocation4 [shape = 's32[2]{0}', space=sflag, size = 0x8, scoped, tag = 'scoped memory for tpu_custom_call.1']
    #allocation5 [shape = 'u8[2097152]{0}', space=vmem, size = 0x200000, scoped, tag = 'input window, operand 1, single buffered']
    #allocation6 [shape = 's32[1]{0}', space=sflag, size = 0x4, scoped, tag = 'scoped memory for tpu_custom_call.1']
    #allocation7 [shape = 'u8[2048]{0}', space=vmem, size = 0x800, scoped, tag = 'input window, operand 2, single buffered']
    #allocation8 [shape = 'u8[131072]{0}', space=vmem, size = 0x20000, scoped, tag = 'input window, operand 3, single buffered']
    #allocation9 [shape = 's32[1]{0}', space=sflag, size = 0x4, scoped, tag = 'scoped memory for tpu_custom_call.1']
    #allocation10 [shape = 'u8[512]{0}', space=vmem, size = 0x400, scoped, tag = 'input window, operand 4, single buffered']
    #allocation11 [shape = 'u8[524288]{0}', space=vmem, size = 0x80000, scoped, tag = 'output window, operand 0']
    %10 = vsyncpa [#allocation3], 0
    %s11 = scalar_lea.sflag [#allocation3], 1
    %12 = vsyncpa %s11, 0
    %13 = vsyncpa [#allocation6], 0
    %14 = vsyncpa [#allocation9], 0
    %15 = vsyncpa [#allocation4], 0
    %s16 = scalar_lea.sflag [#allocation4], 1
    %17 = vsyncpa %s16, 0
    loop: start=0, step=1, limit=4
    $region2: #{tpu_custom_call.1} parent=1 // loop_pre_header
      _
    $region3: #{tpu_custom_call.1} parent=1 // loop_header
      %s19 = sphi 0, %s23
      %p20 = scmp.ge.s32.totalorder %s19, 4
      %s29 = sphi 0, %s31
      %s32 = sphi 0, %s29
      %s33 = sphi 0, %s32
      %s49 = sphi 0, %s33
      %s53 = sphi 0, %s53
      %s55 = sphi 0, %s53
      %s56 = sphi 0, %s55
      %s70 = sphi 0, %s56
      %s74 = sphi 0, %s74
      %s76 = sphi 0, %s74
      %s77 = sphi 0, %s76
      %s91 = sphi 0, %s77
      %s95 = sphi 0, %s95
      %s97 = sphi 0, %s95
      %s98 = sphi 0, %s97
      %s112 = sphi 0, %s98
      %s116 = sphi 0, %s116
      %s118 = sphi 0, %s116
      %s119 = sphi 0, %s118
      %s133 = sphi 0, %s119
      %s139 = sphi 0, %s141
      %s142 = sphi 0, %s139
      %s143 = sphi 0, %s142
      %s159 = sphi 0, %s143
    $region4: #{tpu_custom_call.1} parent=1 // loop_header_branch
      %22 = sbr.rel (%p20) target = $region8
    $region5: #{tpu_custom_call.1} parent=1 // loop_body
      %s24 = ssub.s32 %s19, 1
      %s25 = ssub.s32 %s19, 2
      %s26 = sadd.s32 %s19, 1
      %s27 = ssub.s32 %s19, %s26
      %p28 = scmp.eq.s32.totalorder %s27, 0
      %s30 = sadd.s32 %s29, 1
      %s31 = scalar_select %p28, %s29, %s30
      %p34 = pneg %p28
      %p35 = scmp.eq.s32.totalorder %s19, 1
      %p36 = por %p34, %p35
      %p37 = scmp.ne.s32.totalorder %s29, %s32
      %p38 = scmp.eq.s32.totalorder %s19, 0
      %p39 = por %p37, %p38
      %p40 = scmp.ne.s32.totalorder %s29, %s32
      %p41 = scmp.eq.s32.totalorder %s24, 1
      %p42 = por %p40, %p41
      %p43 = scmp.ne.s32.totalorder %s32, %s33
      %p44 = scmp.eq.s32.totalorder %s24, 0
      %p45 = por %p43, %p44
      %p46 = scmp.ne.s32.totalorder %s32, %s33
      %p47 = scmp.eq.s32.totalorder %s25, 1
      %p48 = por %p46, %p47
      %p50 = scmp.ne.s32.totalorder %s33, %s49
      %p51 = scmp.eq.s32.totalorder %s25, 0
      %p52 = por %p50, %p51
      %s54 = sadd.s32 %s53, 1
      %p57 = scmp.eq.s32.totalorder %s19, 1
      %p58 = scmp.ne.s32.totalorder %s53, %s55
      %p59 = scmp.eq.s32.totalorder %s19, 0
      %p60 = por %p58, %p59
      %p61 = scmp.ne.s32.totalorder %s53, %s55
      %p62 = scmp.eq.s32.totalorder %s24, 1
      %p63 = por %p61, %p62
      %p64 = scmp.ne.s32.totalorder %s55, %s56
      %p65 = scmp.eq.s32.totalorder %s24, 0
      %p66 = por %p64, %p65
      %p67 = scmp.ne.s32.totalorder %s55, %s56
      %p68 = scmp.eq.s32.totalorder %s25, 1
      %p69 = por %p67, %p68
      %p71 = scmp.ne.s32.totalorder %s56, %s70
      %p72 = scmp.eq.s32.totalorder %s25, 0
      %p73 = por %p71, %p72
      %s75 = sadd.s32 %s74, 1
      %p78 = scmp.eq.s32.totalorder %s19, 1
      %p79 = scmp.ne.s32.totalorder %s74, %s76
      %p80 = scmp.eq.s32.totalorder %s19, 0
      %p81 = por %p79, %p80
      %p82 = scmp.ne.s32.totalorder %s74, %s76
      %p83 = scmp.eq.s32.totalorder %s24, 1
      %p84 = por %p82, %p83
      %p85 = scmp.ne.s32.totalorder %s76, %s77
      %p86 = scmp.eq.s32.totalorder %s24, 0
      %p87 = por %p85, %p86
      %p88 = scmp.ne.s32.totalorder %s76, %s77
      %p89 = scmp.eq.s32.totalorder %s25, 1
      %p90 = por %p88, %p89
      %p92 = scmp.ne.s32.totalorder %s77, %s91
      %p93 = scmp.eq.s32.totalorder %s25, 0
      %p94 = por %p92, %p93
      %s96 = sadd.s32 %s95, 1
      %p99 = scmp.eq.s32.totalorder %s19, 1
      %p100 = scmp.ne.s32.totalorder %s95, %s97
      %p101 = scmp.eq.s32.totalorder %s19, 0
      %p102 = por %p100, %p101
      %p103 = scmp.ne.s32.totalorder %s95, %s97
      %p104 = scmp.eq.s32.totalorder %s24, 1
      %p105 = por %p103, %p104
      %p106 = scmp.ne.s32.totalorder %s97, %s98
      %p107 = scmp.eq.s32.totalorder %s24, 0
      %p108 = por %p106, %p107
      %p109 = scmp.ne.s32.totalorder %s97, %s98
      %p110 = scmp.eq.s32.totalorder %s25, 1
      %p111 = por %p109, %p110
      %p113 = scmp.ne.s32.totalorder %s98, %s112
      %p114 = scmp.eq.s32.totalorder %s25, 0
      %p115 = por %p113, %p114
      %s117 = sadd.s32 %s116, 1
      %p120 = scmp.eq.s32.totalorder %s19, 1
      %p121 = scmp.ne.s32.totalorder %s116, %s118
      %p122 = scmp.eq.s32.totalorder %s19, 0
      %p123 = por %p121, %p122
      %p124 = scmp.ne.s32.totalorder %s116, %s118
      %p125 = scmp.eq.s32.totalorder %s24, 1
      %p126 = por %p124, %p125
      %p127 = scmp.ne.s32.totalorder %s118, %s119
      %p128 = scmp.eq.s32.totalorder %s24, 0
      %p129 = por %p127, %p128
      %p130 = scmp.ne.s32.totalorder %s118, %s119
      %p131 = scmp.eq.s32.totalorder %s25, 1
      %p132 = por %p130, %p131
      %p134 = scmp.ne.s32.totalorder %s119, %s133
      %p135 = scmp.eq.s32.totalorder %s25, 0
      %p136 = por %p134, %p135
      %s137 = ssub.s32 %s19, %s26
      %p138 = scmp.eq.s32.totalorder %s137, 0
      %s140 = sadd.s32 %s139, 1
      %s141 = scalar_select %p138, %s139, %s140
      %p144 = pneg %p138
      %p145 = scmp.eq.s32.totalorder %s19, 1
      %p146 = por %p144, %p145
      %p147 = scmp.ne.s32.totalorder %s139, %s142
      %p148 = scmp.eq.s32.totalorder %s19, 0
      %p149 = por %p147, %p148
      %p150 = scmp.ne.s32.totalorder %s139, %s142
      %p151 = scmp.eq.s32.totalorder %s24, 1
      %p152 = por %p150, %p151
      %p153 = scmp.ne.s32.totalorder %s142, %s143
      %p154 = scmp.eq.s32.totalorder %s24, 0
      %p155 = por %p153, %p154
      %p156 = scmp.ne.s32.totalorder %s142, %s143
      %p157 = scmp.eq.s32.totalorder %s25, 1
      %p158 = por %p156, %p157
      %p160 = scmp.ne.s32.totalorder %s143, %s159
      %p161 = scmp.eq.s32.totalorder %s25, 0
      %p162 = por %p160, %p161
      %p163 = scmp.le.s32.totalorder 1, %s19
      %p164 = scmp.lt.s32.totalorder %s19, 3
      %p165 = pnand %p163, %p164
      %p166 = pneg %p165
      // Predicated region
      $region9: #{tpu_custom_call.1} parent=5 // pred_check
        _
      $region10: #{tpu_custom_call.1} parent=5 // pred_check_branch
        %168 = sbr.rel (%p165) target = $region12
      $region11: #{tpu_custom_call.1} parent=5 // pred_region
        %s169 = ssub.s32 %s19, 1
        // Predicated region
        $region13: #{tpu_custom_call.1} parent=11 // pred_check
          %p170 = pneg %p66
        $region14: #{tpu_custom_call.1} parent=11 // pred_check_branch
          %172 = sbr.rel (%p170) target = $region16
        $region15: #{tpu_custom_call.1} parent=11 // pred_region
          %s174 = ssub.s32 65536, 65536
          %175 = vsyncadd [#allocation6], %s174
          %s176 = sshll.u32 [#allocation5], 4
          %s177 = int_to_ptr.vmem [resolvable:$true] %s176
          %182 = dma.hbm_to_vmem [thread:$0]  %s1, 65536, %s177, [#allocation6], 512, 512, 32
        $region16: #{tpu_custom_call.1} parent=11 // pred_fallthru
          _
        // Predicated region
        $region17: #{tpu_custom_call.1} parent=11 // pred_check
          %p183 = pneg %p87
        $region18: #{tpu_custom_call.1} parent=11 // pred_check_branch
          %185 = sbr.rel (%p183) target = $region20
        $region19: #{tpu_custom_call.1} parent=11 // pred_region
          %s187 = ssub.s32 64, 64
          %188 = vsyncadd [#allocation6], %s187
          %s190 = sshll.u32 [#allocation7], 4
          %s191 = int_to_ptr.vmem [resolvable:$true] %s190
          %193 = dma.hbm_to_vmem [thread:$0]  %s2, 64, %s191, [#allocation6]
        $region20: #{tpu_custom_call.1} parent=11 // pred_fallthru
          _
        // Predicated region
        $region21: #{tpu_custom_call.1} parent=11 // pred_check
          %p194 = pneg %p108
        $region22: #{tpu_custom_call.1} parent=11 // pred_check_branch
          %196 = sbr.rel (%p194) target = $region24
        $region23: #{tpu_custom_call.1} parent=11 // pred_region
          %s198 = ssub.s32 4096, 4096
          %199 = vsyncadd [#allocation9], %s198
          %s200 = sshll.u32 [#allocation8], 4
          %s201 = int_to_ptr.vmem [resolvable:$true] %s200
          %206 = dma.hbm_to_vmem [thread:$0]  %s3, 4096, %s201, [#allocation9], 128, 128, 8
        $region24: #{tpu_custom_call.1} parent=11 // pred_fallthru
          _
        // Predicated region
        $region25: #{tpu_custom_call.1} parent=11 // pred_check
          %p207 = pneg %p129
        $region26: #{tpu_custom_call.1} parent=11 // pred_check_branch
          %209 = sbr.rel (%p207) target = $region28
        $region27: #{tpu_custom_call.1} parent=11 // pred_region
          %s211 = ssub.s32 16, 16
          %212 = vsyncadd [#allocation9], %s211
          %s214 = sshll.u32 [#allocation10], 4
          %s215 = int_to_ptr.vmem [resolvable:$true] %s214
          %217 = dma.hbm_to_vmem [thread:$0]  %s4, 16, %s215, [#allocation9]
        $region28: #{tpu_custom_call.1} parent=11 // pred_fallthru
          _
      $region12: #{tpu_custom_call.1} parent=5 // pred_fallthru
        _
      %p218 = scmp.lt.s32.totalorder %s19, 2
      // Predicated region
      $region29: #{tpu_custom_call.1} parent=5 // pred_check
        %p219 = pneg %p218
      $region30: #{tpu_custom_call.1} parent=5 // pred_check_branch
        %221 = sbr.rel (%p219) target = $region32
      $region31: #{tpu_custom_call.1} parent=5 // pred_region
        // Predicated region
        $region33: #{tpu_custom_call.1} parent=31 // pred_check
          %p222 = pneg %p39
        $region34: #{tpu_custom_call.1} parent=31 // pred_check_branch
          %224 = sbr.rel (%p222) target = $region36
        $region35: #{tpu_custom_call.1} parent=31 // pred_region
          %s225 = sand.u32 %s29, 1
          %s226 = scalar_lea.sflag [#allocation3], %s225
          %s227 = sand.u32 %s29, 1
          %s228 = smul.addr %s227, 4096
          %s229 = scalar_lea.vmem [#allocation2], %s228
          %s230 = smul.u32 64, %s19
          %s232 = ssub.s32 65536, 65536
          %233 = vsyncadd %s226, %s232
          %s234 = smul.addr %s230, 8
          %s235 = smul.addr %s234, 128
          %s236 = scalar_lea.hbm %s0, %s235
          %s237 = sshll.u32 %s229, 4
          %s238 = int_to_ptr.vmem [resolvable:$true] %s237
          %243 = dma.hbm_to_vmem [thread:$0]  %s236, 65536, %s238, %s226, 1024, 1024, 64
        $region36: #{tpu_custom_call.1} parent=31 // pred_fallthru
          _
      $region32: #{tpu_custom_call.1} parent=5 // pred_fallthru
        _
      %p244 = scmp.le.s32.totalorder 1, %s19
      %p245 = scmp.lt.s32.totalorder %s19, 3
      %p246 = pnand %p244, %p245
      %p247 = pneg %p246
      // Predicated region
      $region37: #{tpu_custom_call.1} parent=5 // pred_check
        _
      $region38: #{tpu_custom_call.1} parent=5 // pred_check_branch
        %249 = sbr.rel (%p246) target = $region40
      $region39: #{tpu_custom_call.1} parent=5 // pred_region
        %s250 = ssub.s32 %s19, 1
        %s251 = sand.u32 %s32, 1
        %s252 = scalar_lea.sflag [#allocation3], %s251
        %s253 = sand.u32 %s32, 1
        %s254 = smul.addr %s253, 4096
        %s255 = scalar_lea.vmem [#allocation2], %s254
        // Predicated region
        $region41: #{tpu_custom_call.1} parent=39 // pred_check
          %p256 = pneg %p45
        $region42: #{tpu_custom_call.1} parent=39 // pred_check_branch
          %258 = sbr.rel (%p256) target = $region44
        $region43: #{tpu_custom_call.1} parent=39 // pred_region
          %259 = dma.done %s252, 65536
        $region44: #{tpu_custom_call.1} parent=39 // pred_fallthru
          _
        // Predicated region
        $region45: #{tpu_custom_call.1} parent=39 // pred_check
          %p260 = pneg %p66
        $region46: #{tpu_custom_call.1} parent=39 // pred_check_branch
          %262 = sbr.rel (%p260) target = $region48
        $region47: #{tpu_custom_call.1} parent=39 // pred_region
          %263 = dma.done [#allocation6], 65536
        $region48: #{tpu_custom_call.1} parent=39 // pred_fallthru
          _
        // Predicated region
        $region49: #{tpu_custom_call.1} parent=39 // pred_check
          %p264 = pneg %p87
        $region50: #{tpu_custom_call.1} parent=39 // pred_check_branch
          %266 = sbr.rel (%p264) target = $region52
        $region51: #{tpu_custom_call.1} parent=39 // pred_region
          %267 = dma.done [#allocation6], 64
        $region52: #{tpu_custom_call.1} parent=39 // pred_fallthru
          _
        // Predicated region
        $region53: #{tpu_custom_call.1} parent=39 // pred_check
          %p268 = pneg %p108
        $region54: #{tpu_custom_call.1} parent=39 // pred_check_branch
          %270 = sbr.rel (%p268) target = $region56
        $region55: #{tpu_custom_call.1} parent=39 // pred_region
          %271 = dma.done [#allocation9], 4096
        $region56: #{tpu_custom_call.1} parent=39 // pred_fallthru
          _
        // Predicated region
        $region57: #{tpu_custom_call.1} parent=39 // pred_check
          %p272 = pneg %p129
        $region58: #{tpu_custom_call.1} parent=39 // pred_check_branch
          %274 = sbr.rel (%p272) target = $region60
        $region59: #{tpu_custom_call.1} parent=39 // pred_region
          %275 = dma.done [#allocation9], 16
        $region60: #{tpu_custom_call.1} parent=39 // pred_fallthru
          _
        %s276 = sand.u32 %s32, 1
        %s277 = scalar_lea.sflag [#allocation3], %s276
        %s278 = sand.u32 %s32, 1
        %s279 = smul.addr %s278, 4096
        %s280 = scalar_lea.vmem [#allocation2], %s279
        %p281 = pneg %p45
        %p282 = pneg %p42
        %p283 = pneg %p66
        %p284 = pneg %p63
        %p285 = pneg %p87
        %p286 = pneg %p84
        %p287 = pneg %p108
        %p288 = pneg %p105
        %p289 = pneg %p129
        %p290 = pneg %p126
        %p291 = pneg %p155
        %p292 = pneg %p152
        %s293 = sand.u32 %s142, 1
        %s294 = scalar_lea.sflag [#allocation4], %s293
        %s295 = sand.u32 %s142, 1
        %s296 = smul.addr %s295, 512
        %s297 = scalar_lea.vmem [#allocation11], %s296
        %s298 = smul.u32 64, %s24
        %s299 = smul.u32 64, %s24
        %v300 = vld [vmem:[%s255] sm:$0xff]
        %v301 = vld [vmem:[%s255 + $0x8] sm:$0xff]
        %v302 = vld [vmem:[%s255 + $0x10] sm:$0xff]
        %v303 = vld [vmem:[%s255 + $0x18] sm:$0xff]
        %v304 = vld [vmem:[%s255 + $0x20] sm:$0xff]
        %v305 = vld [vmem:[%s255 + $0x28] sm:$0xff]
        %v306 = vld [vmem:[%s255 + $0x30] sm:$0xff]
        %v307 = vld [vmem:[%s255 + $0x38] sm:$0xff]
        %v308 = vld [vmem:[%s255 + $0x40] sm:$0xff]
        %v309 = vld [vmem:[%s255 + $0x48] sm:$0xff]
        %v310 = vld [vmem:[%s255 + $0x50] sm:$0xff]
        %v311 = vld [vmem:[%s255 + $0x58] sm:$0xff]
        %v312 = vld [vmem:[%s255 + $0x60] sm:$0xff]
        %v313 = vld [vmem:[%s255 + $0x68] sm:$0xff]
        %v314 = vld [vmem:[%s255 + $0x70] sm:$0xff]
        %v315 = vld [vmem:[%s255 + $0x78] sm:$0xff]
        %v316 = vld [vmem:[%s255 + $0x80] sm:$0xff]
        %v317 = vld [vmem:[%s255 + $0x88] sm:$0xff]
        %v318 = vld [vmem:[%s255 + $0x90] sm:$0xff]
        %v319 = vld [vmem:[%s255 + $0x98] sm:$0xff]
        %v320 = vld [vmem:[%s255 + $0xa0] sm:$0xff]
        %v321 = vld [vmem:[%s255 + $0xa8] sm:$0xff]
        %v322 = vld [vmem:[%s255 + $0xb0] sm:$0xff]
        %v323 = vld [vmem:[%s255 + $0xb8] sm:$0xff]
        %v324 = vld [vmem:[%s255 + $0xc0] sm:$0xff]
        %v325 = vld [vmem:[%s255 + $0xc8] sm:$0xff]
        %v326 = vld [vmem:[%s255 + $0xd0] sm:$0xff]
        %v327 = vld [vmem:[%s255 + $0xd8] sm:$0xff]
        %v328 = vld [vmem:[%s255 + $0xe0] sm:$0xff]
        %v329 = vld [vmem:[%s255 + $0xe8] sm:$0xff]
        %v330 = vld [vmem:[%s255 + $0xf0] sm:$0xff]
        %v331 = vld [vmem:[%s255 + $0xf8] sm:$0xff]
        %v332 = vld [vmem:[%s255 + $0x100] sm:$0xff]
        %v333 = vld [vmem:[%s255 + $0x108] sm:$0xff]
        %v334 = vld [vmem:[%s255 + $0x110] sm:$0xff]
        %v335 = vld [vmem:[%s255 + $0x118] sm:$0xff]
        %v336 = vld [vmem:[%s255 + $0x120] sm:$0xff]
        %v337 = vld [vmem:[%s255 + $0x128] sm:$0xff]
        %v338 = vld [vmem:[%s255 + $0x130] sm:$0xff]
        %v339 = vld [vmem:[%s255 + $0x138] sm:$0xff]
        %v340 = vld [vmem:[%s255 + $0x140] sm:$0xff]
        %v341 = vld [vmem:[%s255 + $0x148] sm:$0xff]
        %v342 = vld [vmem:[%s255 + $0x150] sm:$0xff]
        %v343 = vld [vmem:[%s255 + $0x158] sm:$0xff]
        %v344 = vld [vmem:[%s255 + $0x160] sm:$0xff]
        %v345 = vld [vmem:[%s255 + $0x168] sm:$0xff]
        %v346 = vld [vmem:[%s255 + $0x170] sm:$0xff]
        %v347 = vld [vmem:[%s255 + $0x178] sm:$0xff]
        %v348 = vld [vmem:[%s255 + $0x180] sm:$0xff]
        %v349 = vld [vmem:[%s255 + $0x188] sm:$0xff]
        %v350 = vld [vmem:[%s255 + $0x190] sm:$0xff]
        %v351 = vld [vmem:[%s255 + $0x198] sm:$0xff]
        %v352 = vld [vmem:[%s255 + $0x1a0] sm:$0xff]
        %v353 = vld [vmem:[%s255 + $0x1a8] sm:$0xff]
        %v354 = vld [vmem:[%s255 + $0x1b0] sm:$0xff]
        %v355 = vld [vmem:[%s255 + $0x1b8] sm:$0xff]
        %v356 = vld [vmem:[%s255 + $0x1c0] sm:$0xff]
        %v357 = vld [vmem:[%s255 + $0x1c8] sm:$0xff]
        %v358 = vld [vmem:[%s255 + $0x1d0] sm:$0xff]
        %v359 = vld [vmem:[%s255 + $0x1d8] sm:$0xff]
        %v360 = vld [vmem:[%s255 + $0x1e0] sm:$0xff]
        %v361 = vld [vmem:[%s255 + $0x1e8] sm:$0xff]
        %v362 = vld [vmem:[%s255 + $0x1f0] sm:$0xff]
        %v363 = vld [vmem:[%s255 + $0x1f8] sm:$0xff]
        %v364 = vld [vmem:[%s255 + $0x200] sm:$0xff]
        %v365 = vld [vmem:[%s255 + $0x208] sm:$0xff]
        %v366 = vld [vmem:[%s255 + $0x210] sm:$0xff]
        %v367 = vld [vmem:[%s255 + $0x218] sm:$0xff]
        %v368 = vld [vmem:[%s255 + $0x220] sm:$0xff]
        %v369 = vld [vmem:[%s255 + $0x228] sm:$0xff]
        %v370 = vld [vmem:[%s255 + $0x230] sm:$0xff]
        %v371 = vld [vmem:[%s255 + $0x238] sm:$0xff]
        %v372 = vld [vmem:[%s255 + $0x240] sm:$0xff]
        %v373 = vld [vmem:[%s255 + $0x248] sm:$0xff]
        %v374 = vld [vmem:[%s255 + $0x250] sm:$0xff]
        %v375 = vld [vmem:[%s255 + $0x258] sm:$0xff]
        %v376 = vld [vmem:[%s255 + $0x260] sm:$0xff]
        %v377 = vld [vmem:[%s255 + $0x268] sm:$0xff]
        %v378 = vld [vmem:[%s255 + $0x270] sm:$0xff]
        %v379 = vld [vmem:[%s255 + $0x278] sm:$0xff]
        %v380 = vld [vmem:[%s255 + $0x280] sm:$0xff]
        %v381 = vld [vmem:[%s255 + $0x288] sm:$0xff]
        %v382 = vld [vmem:[%s255 + $0x290] sm:$0xff]
        %v383 = vld [vmem:[%s255 + $0x298] sm:$0xff]
        %v384 = vld [vmem:[%s255 + $0x2a0] sm:$0xff]
        %v385 = vld [vmem:[%s255 + $0x2a8] sm:$0xff]
        %v386 = vld [vmem:[%s255 + $0x2b0] sm:$0xff]
        %v387 = vld [vmem:[%s255 + $0x2b8] sm:$0xff]
        %v388 = vld [vmem:[%s255 + $0x2c0] sm:$0xff]
        %v389 = vld [vmem:[%s255 + $0x2c8] sm:$0xff]
        %v390 = vld [vmem:[%s255 + $0x2d0] sm:$0xff]
        %v391 = vld [vmem:[%s255 + $0x2d8] sm:$0xff]
        %v392 = vld [vmem:[%s255 + $0x2e0] sm:$0xff]
        %v393 = vld [vmem:[%s255 + $0x2e8] sm:$0xff]
        %v394 = vld [vmem:[%s255 + $0x2f0] sm:$0xff]
        %v395 = vld [vmem:[%s255 + $0x2f8] sm:$0xff]
        %v396 = vld [vmem:[%s255 + $0x300] sm:$0xff]
        %v397 = vld [vmem:[%s255 + $0x308] sm:$0xff]
        %v398 = vld [vmem:[%s255 + $0x310] sm:$0xff]
        %v399 = vld [vmem:[%s255 + $0x318] sm:$0xff]
        %v400 = vld [vmem:[%s255 + $0x320] sm:$0xff]
        %v401 = vld [vmem:[%s255 + $0x328] sm:$0xff]
        %v402 = vld [vmem:[%s255 + $0x330] sm:$0xff]
        %v403 = vld [vmem:[%s255 + $0x338] sm:$0xff]
        %v404 = vld [vmem:[%s255 + $0x340] sm:$0xff]
        %v405 = vld [vmem:[%s255 + $0x348] sm:$0xff]
        %v406 = vld [vmem:[%s255 + $0x350] sm:$0xff]
        %v407 = vld [vmem:[%s255 + $0x358] sm:$0xff]
        %v408 = vld [vmem:[%s255 + $0x360] sm:$0xff]
        %v409 = vld [vmem:[%s255 + $0x368] sm:$0xff]
        %v410 = vld [vmem:[%s255 + $0x370] sm:$0xff]
        %v411 = vld [vmem:[%s255 + $0x378] sm:$0xff]
        %v412 = vld [vmem:[%s255 + $0x380] sm:$0xff]
        %v413 = vld [vmem:[%s255 + $0x388] sm:$0xff]
        %v414 = vld [vmem:[%s255 + $0x390] sm:$0xff]
        %v415 = vld [vmem:[%s255 + $0x398] sm:$0xff]
        %v416 = vld [vmem:[%s255 + $0x3a0] sm:$0xff]
        %v417 = vld [vmem:[%s255 + $0x3a8] sm:$0xff]
        %v418 = vld [vmem:[%s255 + $0x3b0] sm:$0xff]
        %v419 = vld [vmem:[%s255 + $0x3b8] sm:$0xff]
        %v420 = vld [vmem:[%s255 + $0x3c0] sm:$0xff]
        %v421 = vld [vmem:[%s255 + $0x3c8] sm:$0xff]
        %v422 = vld [vmem:[%s255 + $0x3d0] sm:$0xff]
        %v423 = vld [vmem:[%s255 + $0x3d8] sm:$0xff]
        %v424 = vld [vmem:[%s255 + $0x3e0] sm:$0xff]
        %v425 = vld [vmem:[%s255 + $0x3e8] sm:$0xff]
        %v426 = vld [vmem:[%s255 + $0x3f0] sm:$0xff]
        %v427 = vld [vmem:[%s255 + $0x3f8] sm:$0xff]
        %v428 = vld [vmem:[%s255 + $0x400] sm:$0xff]
        %v429 = vld [vmem:[%s255 + $0x408] sm:$0xff]
        %v430 = vld [vmem:[%s255 + $0x410] sm:$0xff]
        %v431 = vld [vmem:[%s255 + $0x418] sm:$0xff]
        %v432 = vld [vmem:[%s255 + $0x420] sm:$0xff]
        %v433 = vld [vmem:[%s255 + $0x428] sm:$0xff]
        %v434 = vld [vmem:[%s255 + $0x430] sm:$0xff]
        %v435 = vld [vmem:[%s255 + $0x438] sm:$0xff]
        %v436 = vld [vmem:[%s255 + $0x440] sm:$0xff]
        %v437 = vld [vmem:[%s255 + $0x448] sm:$0xff]
        %v438 = vld [vmem:[%s255 + $0x450] sm:$0xff]
        %v439 = vld [vmem:[%s255 + $0x458] sm:$0xff]
        %v440 = vld [vmem:[%s255 + $0x460] sm:$0xff]
        %v441 = vld [vmem:[%s255 + $0x468] sm:$0xff]
        %v442 = vld [vmem:[%s255 + $0x470] sm:$0xff]
        %v443 = vld [vmem:[%s255 + $0x478] sm:$0xff]
        %v444 = vld [vmem:[%s255 + $0x480] sm:$0xff]
        %v445 = vld [vmem:[%s255 + $0x488] sm:$0xff]
        %v446 = vld [vmem:[%s255 + $0x490] sm:$0xff]
        %v447 = vld [vmem:[%s255 + $0x498] sm:$0xff]
        %v448 = vld [vmem:[%s255 + $0x4a0] sm:$0xff]
        %v449 = vld [vmem:[%s255 + $0x4a8] sm:$0xff]
        %v450 = vld [vmem:[%s255 + $0x4b0] sm:$0xff]
        %v451 = vld [vmem:[%s255 + $0x4b8] sm:$0xff]
        %v452 = vld [vmem:[%s255 + $0x4c0] sm:$0xff]
        %v453 = vld [vmem:[%s255 + $0x4c8] sm:$0xff]
        %v454 = vld [vmem:[%s255 + $0x4d0] sm:$0xff]
        %v455 = vld [vmem:[%s255 + $0x4d8] sm:$0xff]
        %v456 = vld [vmem:[%s255 + $0x4e0] sm:$0xff]
        %v457 = vld [vmem:[%s255 + $0x4e8] sm:$0xff]
        %v458 = vld [vmem:[%s255 + $0x4f0] sm:$0xff]
        %v459 = vld [vmem:[%s255 + $0x4f8] sm:$0xff]
        %v460 = vld [vmem:[%s255 + $0x500] sm:$0xff]
        %v461 = vld [vmem:[%s255 + $0x508] sm:$0xff]
        %v462 = vld [vmem:[%s255 + $0x510] sm:$0xff]
        %v463 = vld [vmem:[%s255 + $0x518] sm:$0xff]
        %v464 = vld [vmem:[%s255 + $0x520] sm:$0xff]
        %v465 = vld [vmem:[%s255 + $0x528] sm:$0xff]
        %v466 = vld [vmem:[%s255 + $0x530] sm:$0xff]
        %v467 = vld [vmem:[%s255 + $0x538] sm:$0xff]
        %v468 = vld [vmem:[%s255 + $0x540] sm:$0xff]
        %v469 = vld [vmem:[%s255 + $0x548] sm:$0xff]
        %v470 = vld [vmem:[%s255 + $0x550] sm:$0xff]
        %v471 = vld [vmem:[%s255 + $0x558] sm:$0xff]
        %v472 = vld [vmem:[%s255 + $0x560] sm:$0xff]
        %v473 = vld [vmem:[%s255 + $0x568] sm:$0xff]
        %v474 = vld [vmem:[%s255 + $0x570] sm:$0xff]
        %v475 = vld [vmem:[%s255 + $0x578] sm:$0xff]
        %v476 = vld [vmem:[%s255 + $0x580] sm:$0xff]
        %v477 = vld [vmem:[%s255 + $0x588] sm:$0xff]
        %v478 = vld [vmem:[%s255 + $0x590] sm:$0xff]
        %v479 = vld [vmem:[%s255 + $0x598] sm:$0xff]
        %v480 = vld [vmem:[%s255 + $0x5a0] sm:$0xff]
        %v481 = vld [vmem:[%s255 + $0x5a8] sm:$0xff]
        %v482 = vld [vmem:[%s255 + $0x5b0] sm:$0xff]
        %v483 = vld [vmem:[%s255 + $0x5b8] sm:$0xff]
        %v484 = vld [vmem:[%s255 + $0x5c0] sm:$0xff]
        %v485 = vld [vmem:[%s255 + $0x5c8] sm:$0xff]
        %v486 = vld [vmem:[%s255 + $0x5d0] sm:$0xff]
        %v487 = vld [vmem:[%s255 + $0x5d8] sm:$0xff]
        %v488 = vld [vmem:[%s255 + $0x5e0] sm:$0xff]
        %v489 = vld [vmem:[%s255 + $0x5e8] sm:$0xff]
        %v490 = vld [vmem:[%s255 + $0x5f0] sm:$0xff]
        %v491 = vld [vmem:[%s255 + $0x5f8] sm:$0xff]
        %v492 = vld [vmem:[%s255 + $0x600] sm:$0xff]
        %v493 = vld [vmem:[%s255 + $0x608] sm:$0xff]
        %v494 = vld [vmem:[%s255 + $0x610] sm:$0xff]
        %v495 = vld [vmem:[%s255 + $0x618] sm:$0xff]
        %v496 = vld [vmem:[%s255 + $0x620] sm:$0xff]
        %v497 = vld [vmem:[%s255 + $0x628] sm:$0xff]
        %v498 = vld [vmem:[%s255 + $0x630] sm:$0xff]
        %v499 = vld [vmem:[%s255 + $0x638] sm:$0xff]
        %v500 = vld [vmem:[%s255 + $0x640] sm:$0xff]
        %v501 = vld [vmem:[%s255 + $0x648] sm:$0xff]
        %v502 = vld [vmem:[%s255 + $0x650] sm:$0xff]
        %v503 = vld [vmem:[%s255 + $0x658] sm:$0xff]
        %v504 = vld [vmem:[%s255 + $0x660] sm:$0xff]
        %v505 = vld [vmem:[%s255 + $0x668] sm:$0xff]
        %v506 = vld [vmem:[%s255 + $0x670] sm:$0xff]
        %v507 = vld [vmem:[%s255 + $0x678] sm:$0xff]
        %v508 = vld [vmem:[%s255 + $0x680] sm:$0xff]
        %v509 = vld [vmem:[%s255 + $0x688] sm:$0xff]
        %v510 = vld [vmem:[%s255 + $0x690] sm:$0xff]
        %v511 = vld [vmem:[%s255 + $0x698] sm:$0xff]
        %v512 = vld [vmem:[%s255 + $0x6a0] sm:$0xff]
        %v513 = vld [vmem:[%s255 + $0x6a8] sm:$0xff]
        %v514 = vld [vmem:[%s255 + $0x6b0] sm:$0xff]
        %v515 = vld [vmem:[%s255 + $0x6b8] sm:$0xff]
        %v516 = vld [vmem:[%s255 + $0x6c0] sm:$0xff]
        %v517 = vld [vmem:[%s255 + $0x6c8] sm:$0xff]
        %v518 = vld [vmem:[%s255 + $0x6d0] sm:$0xff]
        %v519 = vld [vmem:[%s255 + $0x6d8] sm:$0xff]
        %v520 = vld [vmem:[%s255 + $0x6e0] sm:$0xff]
        %v521 = vld [vmem:[%s255 + $0x6e8] sm:$0xff]
        %v522 = vld [vmem:[%s255 + $0x6f0] sm:$0xff]
        %v523 = vld [vmem:[%s255 + $0x6f8] sm:$0xff]
        %v524 = vld [vmem:[%s255 + $0x700] sm:$0xff]
        %v525 = vld [vmem:[%s255 + $0x708] sm:$0xff]
        %v526 = vld [vmem:[%s255 + $0x710] sm:$0xff]
        %v527 = vld [vmem:[%s255 + $0x718] sm:$0xff]
        %v528 = vld [vmem:[%s255 + $0x720] sm:$0xff]
        %v529 = vld [vmem:[%s255 + $0x728] sm:$0xff]
        %v530 = vld [vmem:[%s255 + $0x730] sm:$0xff]
        %v531 = vld [vmem:[%s255 + $0x738] sm:$0xff]
        %v532 = vld [vmem:[%s255 + $0x740] sm:$0xff]
        %v533 = vld [vmem:[%s255 + $0x748] sm:$0xff]
        %v534 = vld [vmem:[%s255 + $0x750] sm:$0xff]
        %v535 = vld [vmem:[%s255 + $0x758] sm:$0xff]
        %v536 = vld [vmem:[%s255 + $0x760] sm:$0xff]
        %v537 = vld [vmem:[%s255 + $0x768] sm:$0xff]
        %v538 = vld [vmem:[%s255 + $0x770] sm:$0xff]
        %v539 = vld [vmem:[%s255 + $0x778] sm:$0xff]
        %v540 = vld [vmem:[%s255 + $0x780] sm:$0xff]
        %v541 = vld [vmem:[%s255 + $0x788] sm:$0xff]
        %v542 = vld [vmem:[%s255 + $0x790] sm:$0xff]
        %v543 = vld [vmem:[%s255 + $0x798] sm:$0xff]
        %v544 = vld [vmem:[%s255 + $0x7a0] sm:$0xff]
        %v545 = vld [vmem:[%s255 + $0x7a8] sm:$0xff]
        %v546 = vld [vmem:[%s255 + $0x7b0] sm:$0xff]
        %v547 = vld [vmem:[%s255 + $0x7b8] sm:$0xff]
        %v548 = vld [vmem:[%s255 + $0x7c0] sm:$0xff]
        %v549 = vld [vmem:[%s255 + $0x7c8] sm:$0xff]
        %v550 = vld [vmem:[%s255 + $0x7d0] sm:$0xff]
        %v551 = vld [vmem:[%s255 + $0x7d8] sm:$0xff]
        %v552 = vld [vmem:[%s255 + $0x7e0] sm:$0xff]
        %v553 = vld [vmem:[%s255 + $0x7e8] sm:$0xff]
        %v554 = vld [vmem:[%s255 + $0x7f0] sm:$0xff]
        %v555 = vld [vmem:[%s255 + $0x7f8] sm:$0xff]
        %v556 = vld [vmem:[%s255 + $0x800] sm:$0xff]
        %v557 = vld [vmem:[%s255 + $0x808] sm:$0xff]
        %v558 = vld [vmem:[%s255 + $0x810] sm:$0xff]
        %v559 = vld [vmem:[%s255 + $0x818] sm:$0xff]
        %v560 = vld [vmem:[%s255 + $0x820] sm:$0xff]
        %v561 = vld [vmem:[%s255 + $0x828] sm:$0xff]
        %v562 = vld [vmem:[%s255 + $0x830] sm:$0xff]
        %v563 = vld [vmem:[%s255 + $0x838] sm:$0xff]
        %v564 = vld [vmem:[%s255 + $0x840] sm:$0xff]
        %v565 = vld [vmem:[%s255 + $0x848] sm:$0xff]
        %v566 = vld [vmem:[%s255 + $0x850] sm:$0xff]
        %v567 = vld [vmem:[%s255 + $0x858] sm:$0xff]
        %v568 = vld [vmem:[%s255 + $0x860] sm:$0xff]
        %v569 = vld [vmem:[%s255 + $0x868] sm:$0xff]
        %v570 = vld [vmem:[%s255 + $0x870] sm:$0xff]
        %v571 = vld [vmem:[%s255 + $0x878] sm:$0xff]
        %v572 = vld [vmem:[%s255 + $0x880] sm:$0xff]
        %v573 = vld [vmem:[%s255 + $0x888] sm:$0xff]
        %v574 = vld [vmem:[%s255 + $0x890] sm:$0xff]
        %v575 = vld [vmem:[%s255 + $0x898] sm:$0xff]
        %v576 = vld [vmem:[%s255 + $0x8a0] sm:$0xff]
        %v577 = vld [vmem:[%s255 + $0x8a8] sm:$0xff]
        %v578 = vld [vmem:[%s255 + $0x8b0] sm:$0xff]
        %v579 = vld [vmem:[%s255 + $0x8b8] sm:$0xff]
        %v580 = vld [vmem:[%s255 + $0x8c0] sm:$0xff]
        %v581 = vld [vmem:[%s255 + $0x8c8] sm:$0xff]
        %v582 = vld [vmem:[%s255 + $0x8d0] sm:$0xff]
        %v583 = vld [vmem:[%s255 + $0x8d8] sm:$0xff]
        %v584 = vld [vmem:[%s255 + $0x8e0] sm:$0xff]
        %v585 = vld [vmem:[%s255 + $0x8e8] sm:$0xff]
        %v586 = vld [vmem:[%s255 + $0x8f0] sm:$0xff]
        %v587 = vld [vmem:[%s255 + $0x8f8] sm:$0xff]
        %v588 = vld [vmem:[%s255 + $0x900] sm:$0xff]
        %v589 = vld [vmem:[%s255 + $0x908] sm:$0xff]
        %v590 = vld [vmem:[%s255 + $0x910] sm:$0xff]
        %v591 = vld [vmem:[%s255 + $0x918] sm:$0xff]
        %v592 = vld [vmem:[%s255 + $0x920] sm:$0xff]
        %v593 = vld [vmem:[%s255 + $0x928] sm:$0xff]
        %v594 = vld [vmem:[%s255 + $0x930] sm:$0xff]
        %v595 = vld [vmem:[%s255 + $0x938] sm:$0xff]
        %v596 = vld [vmem:[%s255 + $0x940] sm:$0xff]
        %v597 = vld [vmem:[%s255 + $0x948] sm:$0xff]
        %v598 = vld [vmem:[%s255 + $0x950] sm:$0xff]
        %v599 = vld [vmem:[%s255 + $0x958] sm:$0xff]
        %v600 = vld [vmem:[%s255 + $0x960] sm:$0xff]
        %v601 = vld [vmem:[%s255 + $0x968] sm:$0xff]
        %v602 = vld [vmem:[%s255 + $0x970] sm:$0xff]
        %v603 = vld [vmem:[%s255 + $0x978] sm:$0xff]
        %v604 = vld [vmem:[%s255 + $0x980] sm:$0xff]
        %v605 = vld [vmem:[%s255 + $0x988] sm:$0xff]
        %v606 = vld [vmem:[%s255 + $0x990] sm:$0xff]
        %v607 = vld [vmem:[%s255 + $0x998] sm:$0xff]
        %v608 = vld [vmem:[%s255 + $0x9a0] sm:$0xff]
        %v609 = vld [vmem:[%s255 + $0x9a8] sm:$0xff]
        %v610 = vld [vmem:[%s255 + $0x9b0] sm:$0xff]
        %v611 = vld [vmem:[%s255 + $0x9b8] sm:$0xff]
        %v612 = vld [vmem:[%s255 + $0x9c0] sm:$0xff]
        %v613 = vld [vmem:[%s255 + $0x9c8] sm:$0xff]
        %v614 = vld [vmem:[%s255 + $0x9d0] sm:$0xff]
        %v615 = vld [vmem:[%s255 + $0x9d8] sm:$0xff]
        %v616 = vld [vmem:[%s255 + $0x9e0] sm:$0xff]
        %v617 = vld [vmem:[%s255 + $0x9e8] sm:$0xff]
        %v618 = vld [vmem:[%s255 + $0x9f0] sm:$0xff]
        %v619 = vld [vmem:[%s255 + $0x9f8] sm:$0xff]
        %v620 = vld [vmem:[%s255 + $0xa00] sm:$0xff]
        %v621 = vld [vmem:[%s255 + $0xa08] sm:$0xff]
        %v622 = vld [vmem:[%s255 + $0xa10] sm:$0xff]
        %v623 = vld [vmem:[%s255 + $0xa18] sm:$0xff]
        %v624 = vld [vmem:[%s255 + $0xa20] sm:$0xff]
        %v625 = vld [vmem:[%s255 + $0xa28] sm:$0xff]
        %v626 = vld [vmem:[%s255 + $0xa30] sm:$0xff]
        %v627 = vld [vmem:[%s255 + $0xa38] sm:$0xff]
        %v628 = vld [vmem:[%s255 + $0xa40] sm:$0xff]
        %v629 = vld [vmem:[%s255 + $0xa48] sm:$0xff]
        %v630 = vld [vmem:[%s255 + $0xa50] sm:$0xff]
        %v631 = vld [vmem:[%s255 + $0xa58] sm:$0xff]
        %v632 = vld [vmem:[%s255 + $0xa60] sm:$0xff]
        %v633 = vld [vmem:[%s255 + $0xa68] sm:$0xff]
        %v634 = vld [vmem:[%s255 + $0xa70] sm:$0xff]
        %v635 = vld [vmem:[%s255 + $0xa78] sm:$0xff]
        %v636 = vld [vmem:[%s255 + $0xa80] sm:$0xff]
        %v637 = vld [vmem:[%s255 + $0xa88] sm:$0xff]
        %v638 = vld [vmem:[%s255 + $0xa90] sm:$0xff]
        %v639 = vld [vmem:[%s255 + $0xa98] sm:$0xff]
        %v640 = vld [vmem:[%s255 + $0xaa0] sm:$0xff]
        %v641 = vld [vmem:[%s255 + $0xaa8] sm:$0xff]
        %v642 = vld [vmem:[%s255 + $0xab0] sm:$0xff]
        %v643 = vld [vmem:[%s255 + $0xab8] sm:$0xff]
        %v644 = vld [vmem:[%s255 + $0xac0] sm:$0xff]
        %v645 = vld [vmem:[%s255 + $0xac8] sm:$0xff]
        %v646 = vld [vmem:[%s255 + $0xad0] sm:$0xff]
        %v647 = vld [vmem:[%s255 + $0xad8] sm:$0xff]
        %v648 = vld [vmem:[%s255 + $0xae0] sm:$0xff]
        %v649 = vld [vmem:[%s255 + $0xae8] sm:$0xff]
        %v650 = vld [vmem:[%s255 + $0xaf0] sm:$0xff]
        %v651 = vld [vmem:[%s255 + $0xaf8] sm:$0xff]
        %v652 = vld [vmem:[%s255 + $0xb00] sm:$0xff]
        %v653 = vld [vmem:[%s255 + $0xb08] sm:$0xff]
        %v654 = vld [vmem:[%s255 + $0xb10] sm:$0xff]
        %v655 = vld [vmem:[%s255 + $0xb18] sm:$0xff]
        %v656 = vld [vmem:[%s255 + $0xb20] sm:$0xff]
        %v657 = vld [vmem:[%s255 + $0xb28] sm:$0xff]
        %v658 = vld [vmem:[%s255 + $0xb30] sm:$0xff]
        %v659 = vld [vmem:[%s255 + $0xb38] sm:$0xff]
        %v660 = vld [vmem:[%s255 + $0xb40] sm:$0xff]
        %v661 = vld [vmem:[%s255 + $0xb48] sm:$0xff]
        %v662 = vld [vmem:[%s255 + $0xb50] sm:$0xff]
        %v663 = vld [vmem:[%s255 + $0xb58] sm:$0xff]
        %v664 = vld [vmem:[%s255 + $0xb60] sm:$0xff]
        %v665 = vld [vmem:[%s255 + $0xb68] sm:$0xff]
        %v666 = vld [vmem:[%s255 + $0xb70] sm:$0xff]
        %v667 = vld [vmem:[%s255 + $0xb78] sm:$0xff]
        %v668 = vld [vmem:[%s255 + $0xb80] sm:$0xff]
        %v669 = vld [vmem:[%s255 + $0xb88] sm:$0xff]
        %v670 = vld [vmem:[%s255 + $0xb90] sm:$0xff]
        %v671 = vld [vmem:[%s255 + $0xb98] sm:$0xff]
        %v672 = vld [vmem:[%s255 + $0xba0] sm:$0xff]
        %v673 = vld [vmem:[%s255 + $0xba8] sm:$0xff]
        %v674 = vld [vmem:[%s255 + $0xbb0] sm:$0xff]
        %v675 = vld [vmem:[%s255 + $0xbb8] sm:$0xff]
        %v676 = vld [vmem:[%s255 + $0xbc0] sm:$0xff]
        %v677 = vld [vmem:[%s255 + $0xbc8] sm:$0xff]
        %v678 = vld [vmem:[%s255 + $0xbd0] sm:$0xff]
        %v679 = vld [vmem:[%s255 + $0xbd8] sm:$0xff]
        %v680 = vld [vmem:[%s255 + $0xbe0] sm:$0xff]
        %v681 = vld [vmem:[%s255 + $0xbe8] sm:$0xff]
        %v682 = vld [vmem:[%s255 + $0xbf0] sm:$0xff]
        %v683 = vld [vmem:[%s255 + $0xbf8] sm:$0xff]
        %v684 = vld [vmem:[%s255 + $0xc00] sm:$0xff]
        %v685 = vld [vmem:[%s255 + $0xc08] sm:$0xff]
        %v686 = vld [vmem:[%s255 + $0xc10] sm:$0xff]
        %v687 = vld [vmem:[%s255 + $0xc18] sm:$0xff]
        %v688 = vld [vmem:[%s255 + $0xc20] sm:$0xff]
        %v689 = vld [vmem:[%s255 + $0xc28] sm:$0xff]
        %v690 = vld [vmem:[%s255 + $0xc30] sm:$0xff]
        %v691 = vld [vmem:[%s255 + $0xc38] sm:$0xff]
        %v692 = vld [vmem:[%s255 + $0xc40] sm:$0xff]
        %v693 = vld [vmem:[%s255 + $0xc48] sm:$0xff]
        %v694 = vld [vmem:[%s255 + $0xc50] sm:$0xff]
        %v695 = vld [vmem:[%s255 + $0xc58] sm:$0xff]
        %v696 = vld [vmem:[%s255 + $0xc60] sm:$0xff]
        %v697 = vld [vmem:[%s255 + $0xc68] sm:$0xff]
        %v698 = vld [vmem:[%s255 + $0xc70] sm:$0xff]
        %v699 = vld [vmem:[%s255 + $0xc78] sm:$0xff]
        %v700 = vld [vmem:[%s255 + $0xc80] sm:$0xff]
        %v701 = vld [vmem:[%s255 + $0xc88] sm:$0xff]
        %v702 = vld [vmem:[%s255 + $0xc90] sm:$0xff]
        %v703 = vld [vmem:[%s255 + $0xc98] sm:$0xff]
        %v704 = vld [vmem:[%s255 + $0xca0] sm:$0xff]
        %v705 = vld [vmem:[%s255 + $0xca8] sm:$0xff]
        %v706 = vld [vmem:[%s255 + $0xcb0] sm:$0xff]
        %v707 = vld [vmem:[%s255 + $0xcb8] sm:$0xff]
        %v708 = vld [vmem:[%s255 + $0xcc0] sm:$0xff]
        %v709 = vld [vmem:[%s255 + $0xcc8] sm:$0xff]
        %v710 = vld [vmem:[%s255 + $0xcd0] sm:$0xff]
        %v711 = vld [vmem:[%s255 + $0xcd8] sm:$0xff]
        %v712 = vld [vmem:[%s255 + $0xce0] sm:$0xff]
        %v713 = vld [vmem:[%s255 + $0xce8] sm:$0xff]
        %v714 = vld [vmem:[%s255 + $0xcf0] sm:$0xff]
        %v715 = vld [vmem:[%s255 + $0xcf8] sm:$0xff]
        %v716 = vld [vmem:[%s255 + $0xd00] sm:$0xff]
        %v717 = vld [vmem:[%s255 + $0xd08] sm:$0xff]
        %v718 = vld [vmem:[%s255 + $0xd10] sm:$0xff]
        %v719 = vld [vmem:[%s255 + $0xd18] sm:$0xff]
        %v720 = vld [vmem:[%s255 + $0xd20] sm:$0xff]
        %v721 = vld [vmem:[%s255 + $0xd28] sm:$0xff]
        %v722 = vld [vmem:[%s255 + $0xd30] sm:$0xff]
        %v723 = vld [vmem:[%s255 + $0xd38] sm:$0xff]
        %v724 = vld [vmem:[%s255 + $0xd40] sm:$0xff]
        %v725 = vld [vmem:[%s255 + $0xd48] sm:$0xff]
        %v726 = vld [vmem:[%s255 + $0xd50] sm:$0xff]
        %v727 = vld [vmem:[%s255 + $0xd58] sm:$0xff]
        %v728 = vld [vmem:[%s255 + $0xd60] sm:$0xff]
        %v729 = vld [vmem:[%s255 + $0xd68] sm:$0xff]
        %v730 = vld [vmem:[%s255 + $0xd70] sm:$0xff]
        %v731 = vld [vmem:[%s255 + $0xd78] sm:$0xff]
        %v732 = vld [vmem:[%s255 + $0xd80] sm:$0xff]
        %v733 = vld [vmem:[%s255 + $0xd88] sm:$0xff]
        %v734 = vld [vmem:[%s255 + $0xd90] sm:$0xff]
        %v735 = vld [vmem:[%s255 + $0xd98] sm:$0xff]
        %v736 = vld [vmem:[%s255 + $0xda0] sm:$0xff]
        %v737 = vld [vmem:[%s255 + $0xda8] sm:$0xff]
        %v738 = vld [vmem:[%s255 + $0xdb0] sm:$0xff]
        %v739 = vld [vmem:[%s255 + $0xdb8] sm:$0xff]
        %v740 = vld [vmem:[%s255 + $0xdc0] sm:$0xff]
        %v741 = vld [vmem:[%s255 + $0xdc8] sm:$0xff]
        %v742 = vld [vmem:[%s255 + $0xdd0] sm:$0xff]
        %v743 = vld [vmem:[%s255 + $0xdd8] sm:$0xff]
        %v744 = vld [vmem:[%s255 + $0xde0] sm:$0xff]
        %v745 = vld [vmem:[%s255 + $0xde8] sm:$0xff]
        %v746 = vld [vmem:[%s255 + $0xdf0] sm:$0xff]
        %v747 = vld [vmem:[%s255 + $0xdf8] sm:$0xff]
        %v748 = vld [vmem:[%s255 + $0xe00] sm:$0xff]
        %v749 = vld [vmem:[%s255 + $0xe08] sm:$0xff]
        %v750 = vld [vmem:[%s255 + $0xe10] sm:$0xff]
        %v751 = vld [vmem:[%s255 + $0xe18] sm:$0xff]
        %v752 = vld [vmem:[%s255 + $0xe20] sm:$0xff]
        %v753 = vld [vmem:[%s255 + $0xe28] sm:$0xff]
        %v754 = vld [vmem:[%s255 + $0xe30] sm:$0xff]
        %v755 = vld [vmem:[%s255 + $0xe38] sm:$0xff]
        %v756 = vld [vmem:[%s255 + $0xe40] sm:$0xff]
        %v757 = vld [vmem:[%s255 + $0xe48] sm:$0xff]
        %v758 = vld [vmem:[%s255 + $0xe50] sm:$0xff]
        %v759 = vld [vmem:[%s255 + $0xe58] sm:$0xff]
        %v760 = vld [vmem:[%s255 + $0xe60] sm:$0xff]
        %v761 = vld [vmem:[%s255 + $0xe68] sm:$0xff]
        %v762 = vld [vmem:[%s255 + $0xe70] sm:$0xff]
        %v763 = vld [vmem:[%s255 + $0xe78] sm:$0xff]
        %v764 = vld [vmem:[%s255 + $0xe80] sm:$0xff]
        %v765 = vld [vmem:[%s255 + $0xe88] sm:$0xff]
        %v766 = vld [vmem:[%s255 + $0xe90] sm:$0xff]
        %v767 = vld [vmem:[%s255 + $0xe98] sm:$0xff]
        %v768 = vld [vmem:[%s255 + $0xea0] sm:$0xff]
        %v769 = vld [vmem:[%s255 + $0xea8] sm:$0xff]
        %v770 = vld [vmem:[%s255 + $0xeb0] sm:$0xff]
        %v771 = vld [vmem:[%s255 + $0xeb8] sm:$0xff]
        %v772 = vld [vmem:[%s255 + $0xec0] sm:$0xff]
        %v773 = vld [vmem:[%s255 + $0xec8] sm:$0xff]
        %v774 = vld [vmem:[%s255 + $0xed0] sm:$0xff]
        %v775 = vld [vmem:[%s255 + $0xed8] sm:$0xff]
        %v776 = vld [vmem:[%s255 + $0xee0] sm:$0xff]
        %v777 = vld [vmem:[%s255 + $0xee8] sm:$0xff]
        %v778 = vld [vmem:[%s255 + $0xef0] sm:$0xff]
        %v779 = vld [vmem:[%s255 + $0xef8] sm:$0xff]
        %v780 = vld [vmem:[%s255 + $0xf00] sm:$0xff]
        %v781 = vld [vmem:[%s255 + $0xf08] sm:$0xff]
        %v782 = vld [vmem:[%s255 + $0xf10] sm:$0xff]
        %v783 = vld [vmem:[%s255 + $0xf18] sm:$0xff]
        %v784 = vld [vmem:[%s255 + $0xf20] sm:$0xff]
        %v785 = vld [vmem:[%s255 + $0xf28] sm:$0xff]
        %v786 = vld [vmem:[%s255 + $0xf30] sm:$0xff]
        %v787 = vld [vmem:[%s255 + $0xf38] sm:$0xff]
        %v788 = vld [vmem:[%s255 + $0xf40] sm:$0xff]
        %v789 = vld [vmem:[%s255 + $0xf48] sm:$0xff]
        %v790 = vld [vmem:[%s255 + $0xf50] sm:$0xff]
        %v791 = vld [vmem:[%s255 + $0xf58] sm:$0xff]
        %v792 = vld [vmem:[%s255 + $0xf60] sm:$0xff]
        %v793 = vld [vmem:[%s255 + $0xf68] sm:$0xff]
        %v794 = vld [vmem:[%s255 + $0xf70] sm:$0xff]
        %v795 = vld [vmem:[%s255 + $0xf78] sm:$0xff]
        %v796 = vld [vmem:[%s255 + $0xf80] sm:$0xff]
        %v797 = vld [vmem:[%s255 + $0xf88] sm:$0xff]
        %v798 = vld [vmem:[%s255 + $0xf90] sm:$0xff]
        %v799 = vld [vmem:[%s255 + $0xf98] sm:$0xff]
        %v800 = vld [vmem:[%s255 + $0xfa0] sm:$0xff]
        %v801 = vld [vmem:[%s255 + $0xfa8] sm:$0xff]
        %v802 = vld [vmem:[%s255 + $0xfb0] sm:$0xff]
        %v803 = vld [vmem:[%s255 + $0xfb8] sm:$0xff]
        %v804 = vld [vmem:[%s255 + $0xfc0] sm:$0xff]
        %v805 = vld [vmem:[%s255 + $0xfc8] sm:$0xff]
        %v806 = vld [vmem:[%s255 + $0xfd0] sm:$0xff]
        %v807 = vld [vmem:[%s255 + $0xfd8] sm:$0xff]
        %v808 = vld [vmem:[%s255 + $0xfe0] sm:$0xff]
        %v809 = vld [vmem:[%s255 + $0xfe8] sm:$0xff]
        %v810 = vld [vmem:[%s255 + $0xff0] sm:$0xff]
        %v811 = vld [vmem:[%s255 + $0xff8] sm:$0xff]
        %v812 = vld [vmem:[#allocation5] sm:$0xff]
        %v813 = vld [vmem:[#allocation5 + $0x8] sm:$0xff]
        %v814 = vld [vmem:[#allocation5 + $0x10] sm:$0xff]
        %v815 = vld [vmem:[#allocation5 + $0x18] sm:$0xff]
        %v816 = vld [vmem:[#allocation5 + $0x20] sm:$0xff]
        %v817 = vld [vmem:[#allocation5 + $0x28] sm:$0xff]
        %v818 = vld [vmem:[#allocation5 + $0x30] sm:$0xff]
        %v819 = vld [vmem:[#allocation5 + $0x38] sm:$0xff]
        %v820 = vld [vmem:[#allocation5 + $0x40] sm:$0xff]
        %v821 = vld [vmem:[#allocation5 + $0x48] sm:$0xff]
        %v822 = vld [vmem:[#allocation5 + $0x50] sm:$0xff]
        %v823 = vld [vmem:[#allocation5 + $0x58] sm:$0xff]
        %v824 = vld [vmem:[#allocation5 + $0x60] sm:$0xff]
        %v825 = vld [vmem:[#allocation5 + $0x68] sm:$0xff]
        %v826 = vld [vmem:[#allocation5 + $0x70] sm:$0xff]
        %v827 = vld [vmem:[#allocation5 + $0x78] sm:$0xff]
        %v828 = vld [vmem:[#allocation5 + $0x80] sm:$0xff]
        %v829 = vld [vmem:[#allocation5 + $0x88] sm:$0xff]
        %v830 = vld [vmem:[#allocation5 + $0x90] sm:$0xff]
        %v831 = vld [vmem:[#allocation5 + $0x98] sm:$0xff]
        %v832 = vld [vmem:[#allocation5 + $0xa0] sm:$0xff]
        %v833 = vld [vmem:[#allocation5 + $0xa8] sm:$0xff]
        %v834 = vld [vmem:[#allocation5 + $0xb0] sm:$0xff]
        %v835 = vld [vmem:[#allocation5 + $0xb8] sm:$0xff]
        %v836 = vld [vmem:[#allocation5 + $0xc0] sm:$0xff]
        %v837 = vld [vmem:[#allocation5 + $0xc8] sm:$0xff]
        %v838 = vld [vmem:[#allocation5 + $0xd0] sm:$0xff]
        %v839 = vld [vmem:[#allocation5 + $0xd8] sm:$0xff]
        %v840 = vld [vmem:[#allocation5 + $0xe0] sm:$0xff]
        %v841 = vld [vmem:[#allocation5 + $0xe8] sm:$0xff]
        %v842 = vld [vmem:[#allocation5 + $0xf0] sm:$0xff]
        %v843 = vld [vmem:[#allocation5 + $0xf8] sm:$0xff]
        %v844 = vld [vmem:[#allocation5 + $0x100] sm:$0xff]
        %v845 = vld [vmem:[#allocation5 + $0x108] sm:$0xff]
        %v846 = vld [vmem:[#allocation5 + $0x110] sm:$0xff]
        %v847 = vld [vmem:[#allocation5 + $0x118] sm:$0xff]
        %v848 = vld [vmem:[#allocation5 + $0x120] sm:$0xff]
        %v849 = vld [vmem:[#allocation5 + $0x128] sm:$0xff]
        %v850 = vld [vmem:[#allocation5 + $0x130] sm:$0xff]
        %v851 = vld [vmem:[#allocation5 + $0x138] sm:$0xff]
        %v852 = vld [vmem:[#allocation5 + $0x140] sm:$0xff]
        %v853 = vld [vmem:[#allocation5 + $0x148] sm:$0xff]
        %v854 = vld [vmem:[#allocation5 + $0x150] sm:$0xff]
        %v855 = vld [vmem:[#allocation5 + $0x158] sm:$0xff]
        %v856 = vld [vmem:[#allocation5 + $0x160] sm:$0xff]
        %v857 = vld [vmem:[#allocation5 + $0x168] sm:$0xff]
        %v858 = vld [vmem:[#allocation5 + $0x170] sm:$0xff]
        %v859 = vld [vmem:[#allocation5 + $0x178] sm:$0xff]
        %v860 = vld [vmem:[#allocation5 + $0x180] sm:$0xff]
        %v861 = vld [vmem:[#allocation5 + $0x188] sm:$0xff]
        %v862 = vld [vmem:[#allocation5 + $0x190] sm:$0xff]
        %v863 = vld [vmem:[#allocation5 + $0x198] sm:$0xff]
        %v864 = vld [vmem:[#allocation5 + $0x1a0] sm:$0xff]
        %v865 = vld [vmem:[#allocation5 + $0x1a8] sm:$0xff]
        %v866 = vld [vmem:[#allocation5 + $0x1b0] sm:$0xff]
        %v867 = vld [vmem:[#allocation5 + $0x1b8] sm:$0xff]
        %v868 = vld [vmem:[#allocation5 + $0x1c0] sm:$0xff]
        %v869 = vld [vmem:[#allocation5 + $0x1c8] sm:$0xff]
        %v870 = vld [vmem:[#allocation5 + $0x1d0] sm:$0xff]
        %v871 = vld [vmem:[#allocation5 + $0x1d8] sm:$0xff]
        %v872 = vld [vmem:[#allocation5 + $0x1e0] sm:$0xff]
        %v873 = vld [vmem:[#allocation5 + $0x1e8] sm:$0xff]
        %v874 = vld [vmem:[#allocation5 + $0x1f0] sm:$0xff]
        %v875 = vld [vmem:[#allocation5 + $0x1f8] sm:$0xff]
        %v876 = vld [vmem:[#allocation5 + $0x200] sm:$0xff]
        %v877 = vld [vmem:[#allocation5 + $0x208] sm:$0xff]
        %v878 = vld [vmem:[#allocation5 + $0x210] sm:$0xff]
        %v879 = vld [vmem:[#allocation5 + $0x218] sm:$0xff]
        %v880 = vld [vmem:[#allocation5 + $0x220] sm:$0xff]
        %v881 = vld [vmem:[#allocation5 + $0x228] sm:$0xff]
        %v882 = vld [vmem:[#allocation5 + $0x230] sm:$0xff]
        %v883 = vld [vmem:[#allocation5 + $0x238] sm:$0xff]
        %v884 = vld [vmem:[#allocation5 + $0x240] sm:$0xff]
        %v885 = vld [vmem:[#allocation5 + $0x248] sm:$0xff]
        %v886 = vld [vmem:[#allocation5 + $0x250] sm:$0xff]
        %v887 = vld [vmem:[#allocation5 + $0x258] sm:$0xff]
        %v888 = vld [vmem:[#allocation5 + $0x260] sm:$0xff]
        %v889 = vld [vmem:[#allocation5 + $0x268] sm:$0xff]
        %v890 = vld [vmem:[#allocation5 + $0x270] sm:$0xff]
        %v891 = vld [vmem:[#allocation5 + $0x278] sm:$0xff]
        %v892 = vld [vmem:[#allocation5 + $0x280] sm:$0xff]
        %v893 = vld [vmem:[#allocation5 + $0x288] sm:$0xff]
        %v894 = vld [vmem:[#allocation5 + $0x290] sm:$0xff]
        %v895 = vld [vmem:[#allocation5 + $0x298] sm:$0xff]
        %v896 = vld [vmem:[#allocation5 + $0x2a0] sm:$0xff]
        %v897 = vld [vmem:[#allocation5 + $0x2a8] sm:$0xff]
        %v898 = vld [vmem:[#allocation5 + $0x2b0] sm:$0xff]
        %v899 = vld [vmem:[#allocation5 + $0x2b8] sm:$0xff]
        %v900 = vld [vmem:[#allocation5 + $0x2c0] sm:$0xff]
        %v901 = vld [vmem:[#allocation5 + $0x2c8] sm:$0xff]
        %v902 = vld [vmem:[#allocation5 + $0x2d0] sm:$0xff]
        %v903 = vld [vmem:[#allocation5 + $0x2d8] sm:$0xff]
        %v904 = vld [vmem:[#allocation5 + $0x2e0] sm:$0xff]
        %v905 = vld [vmem:[#allocation5 + $0x2e8] sm:$0xff]
        %v906 = vld [vmem:[#allocation5 + $0x2f0] sm:$0xff]
        %v907 = vld [vmem:[#allocation5 + $0x2f8] sm:$0xff]
        %v908 = vld [vmem:[#allocation5 + $0x300] sm:$0xff]
        %v909 = vld [vmem:[#allocation5 + $0x308] sm:$0xff]
        %v910 = vld [vmem:[#allocation5 + $0x310] sm:$0xff]
        %v911 = vld [vmem:[#allocation5 + $0x318] sm:$0xff]
        %v912 = vld [vmem:[#allocation5 + $0x320] sm:$0xff]
        %v913 = vld [vmem:[#allocation5 + $0x328] sm:$0xff]
        %v914 = vld [vmem:[#allocation5 + $0x330] sm:$0xff]
        %v915 = vld [vmem:[#allocation5 + $0x338] sm:$0xff]
        %v916 = vld [vmem:[#allocation5 + $0x340] sm:$0xff]
        %v917 = vld [vmem:[#allocation5 + $0x348] sm:$0xff]
        %v918 = vld [vmem:[#allocation5 + $0x350] sm:$0xff]
        %v919 = vld [vmem:[#allocation5 + $0x358] sm:$0xff]
        %v920 = vld [vmem:[#allocation5 + $0x360] sm:$0xff]
        %v921 = vld [vmem:[#allocation5 + $0x368] sm:$0xff]
        %v922 = vld [vmem:[#allocation5 + $0x370] sm:$0xff]
        %v923 = vld [vmem:[#allocation5 + $0x378] sm:$0xff]
        %v924 = vld [vmem:[#allocation5 + $0x380] sm:$0xff]
        %v925 = vld [vmem:[#allocation5 + $0x388] sm:$0xff]
        %v926 = vld [vmem:[#allocation5 + $0x390] sm:$0xff]
        %v927 = vld [vmem:[#allocation5 + $0x398] sm:$0xff]
        %v928 = vld [vmem:[#allocation5 + $0x3a0] sm:$0xff]
        %v929 = vld [vmem:[#allocation5 + $0x3a8] sm:$0xff]
        %v930 = vld [vmem:[#allocation5 + $0x3b0] sm:$0xff]
        %v931 = vld [vmem:[#allocation5 + $0x3b8] sm:$0xff]
        %v932 = vld [vmem:[#allocation5 + $0x3c0] sm:$0xff]
        %v933 = vld [vmem:[#allocation5 + $0x3c8] sm:$0xff]
        %v934 = vld [vmem:[#allocation5 + $0x3d0] sm:$0xff]
        %v935 = vld [vmem:[#allocation5 + $0x3d8] sm:$0xff]
        %v936 = vld [vmem:[#allocation5 + $0x3e0] sm:$0xff]
        %v937 = vld [vmem:[#allocation5 + $0x3e8] sm:$0xff]
        %v938 = vld [vmem:[#allocation5 + $0x3f0] sm:$0xff]
        %v939 = vld [vmem:[#allocation5 + $0x3f8] sm:$0xff]
        %v940 = vld [vmem:[#allocation5 + $0x400] sm:$0xff]
        %v941 = vld [vmem:[#allocation5 + $0x408] sm:$0xff]
        %v942 = vld [vmem:[#allocation5 + $0x410] sm:$0xff]
        %v943 = vld [vmem:[#allocation5 + $0x418] sm:$0xff]
        %v944 = vld [vmem:[#allocation5 + $0x420] sm:$0xff]
        %v945 = vld [vmem:[#allocation5 + $0x428] sm:$0xff]
        %v946 = vld [vmem:[#allocation5 + $0x430] sm:$0xff]
        %v947 = vld [vmem:[#allocation5 + $0x438] sm:$0xff]
        %v948 = vld [vmem:[#allocation5 + $0x440] sm:$0xff]
        %v949 = vld [vmem:[#allocation5 + $0x448] sm:$0xff]
        %v950 = vld [vmem:[#allocation5 + $0x450] sm:$0xff]
        %v951 = vld [vmem:[#allocation5 + $0x458] sm:$0xff]
        %v952 = vld [vmem:[#allocation5 + $0x460] sm:$0xff]
        %v953 = vld [vmem:[#allocation5 + $0x468] sm:$0xff]
        %v954 = vld [vmem:[#allocation5 + $0x470] sm:$0xff]
        %v955 = vld [vmem:[#allocation5 + $0x478] sm:$0xff]
        %v956 = vld [vmem:[#allocation5 + $0x480] sm:$0xff]
        %v957 = vld [vmem:[#allocation5 + $0x488] sm:$0xff]
        %v958 = vld [vmem:[#allocation5 + $0x490] sm:$0xff]
        %v959 = vld [vmem:[#allocation5 + $0x498] sm:$0xff]
        %v960 = vld [vmem:[#allocation5 + $0x4a0] sm:$0xff]
        %v961 = vld [vmem:[#allocation5 + $0x4a8] sm:$0xff]
        %v962 = vld [vmem:[#allocation5 + $0x4b0] sm:$0xff]
        %v963 = vld [vmem:[#allocation5 + $0x4b8] sm:$0xff]
        %v964 = vld [vmem:[#allocation5 + $0x4c0] sm:$0xff]
        %v965 = vld [vmem:[#allocation5 + $0x4c8] sm:$0xff]
        %v966 = vld [vmem:[#allocation5 + $0x4d0] sm:$0xff]
        %v967 = vld [vmem:[#allocation5 + $0x4d8] sm:$0xff]
        %v968 = vld [vmem:[#allocation5 + $0x4e0] sm:$0xff]
        %v969 = vld [vmem:[#allocation5 + $0x4e8] sm:$0xff]
        %v970 = vld [vmem:[#allocation5 + $0x4f0] sm:$0xff]
        %v971 = vld [vmem:[#allocation5 + $0x4f8] sm:$0xff]
        %v972 = vld [vmem:[#allocation5 + $0x500] sm:$0xff]
        %v973 = vld [vmem:[#allocation5 + $0x508] sm:$0xff]
        %v974 = vld [vmem:[#allocation5 + $0x510] sm:$0xff]
        %v975 = vld [vmem:[#allocation5 + $0x518] sm:$0xff]
        %v976 = vld [vmem:[#allocation5 + $0x520] sm:$0xff]
        %v977 = vld [vmem:[#allocation5 + $0x528] sm:$0xff]
        %v978 = vld [vmem:[#allocation5 + $0x530] sm:$0xff]
        %v979 = vld [vmem:[#allocation5 + $0x538] sm:$0xff]
        %v980 = vld [vmem:[#allocation5 + $0x540] sm:$0xff]
        %v981 = vld [vmem:[#allocation5 + $0x548] sm:$0xff]
        %v982 = vld [vmem:[#allocation5 + $0x550] sm:$0xff]
        %v983 = vld [vmem:[#allocation5 + $0x558] sm:$0xff]
        %v984 = vld [vmem:[#allocation5 + $0x560] sm:$0xff]
        %v985 = vld [vmem:[#allocation5 + $0x568] sm:$0xff]
        %v986 = vld [vmem:[#allocation5 + $0x570] sm:$0xff]
        %v987 = vld [vmem:[#allocation5 + $0x578] sm:$0xff]
        %v988 = vld [vmem:[#allocation5 + $0x580] sm:$0xff]
        %v989 = vld [vmem:[#allocation5 + $0x588] sm:$0xff]
        %v990 = vld [vmem:[#allocation5 + $0x590] sm:$0xff]
        %v991 = vld [vmem:[#allocation5 + $0x598] sm:$0xff]
        %v992 = vld [vmem:[#allocation5 + $0x5a0] sm:$0xff]
        %v993 = vld [vmem:[#allocation5 + $0x5a8] sm:$0xff]
        %v994 = vld [vmem:[#allocation5 + $0x5b0] sm:$0xff]
        %v995 = vld [vmem:[#allocation5 + $0x5b8] sm:$0xff]
        %v996 = vld [vmem:[#allocation5 + $0x5c0] sm:$0xff]
        %v997 = vld [vmem:[#allocation5 + $0x5c8] sm:$0xff]
        %v998 = vld [vmem:[#allocation5 + $0x5d0] sm:$0xff]
        %v999 = vld [vmem:[#allocation5 + $0x5d8] sm:$0xff]
        %v1000 = vld [vmem:[#allocation5 + $0x5e0] sm:$0xff]
        %v1001 = vld [vmem:[#allocation5 + $0x5e8] sm:$0xff]
        %v1002 = vld [vmem:[#allocation5 + $0x5f0] sm:$0xff]
        %v1003 = vld [vmem:[#allocation5 + $0x5f8] sm:$0xff]
        %v1004 = vld [vmem:[#allocation5 + $0x600] sm:$0xff]
        %v1005 = vld [vmem:[#allocation5 + $0x608] sm:$0xff]
        %v1006 = vld [vmem:[#allocation5 + $0x610] sm:$0xff]
        %v1007 = vld [vmem:[#allocation5 + $0x618] sm:$0xff]
        %v1008 = vld [vmem:[#allocation5 + $0x620] sm:$0xff]
        %v1009 = vld [vmem:[#allocation5 + $0x628] sm:$0xff]
        %v1010 = vld [vmem:[#allocation5 + $0x630] sm:$0xff]
        %v1011 = vld [vmem:[#allocation5 + $0x638] sm:$0xff]
        %v1012 = vld [vmem:[#allocation5 + $0x640] sm:$0xff]
        %v1013 = vld [vmem:[#allocation5 + $0x648] sm:$0xff]
        %v1014 = vld [vmem:[#allocation5 + $0x650] sm:$0xff]
        %v1015 = vld [vmem:[#allocation5 + $0x658] sm:$0xff]
        %v1016 = vld [vmem:[#allocation5 + $0x660] sm:$0xff]
        %v1017 = vld [vmem:[#allocation5 + $0x668] sm:$0xff]
        %v1018 = vld [vmem:[#allocation5 + $0x670] sm:$0xff]
        %v1019 = vld [vmem:[#allocation5 + $0x678] sm:$0xff]
        %v1020 = vld [vmem:[#allocation5 + $0x680] sm:$0xff]
        %v1021 = vld [vmem:[#allocation5 + $0x688] sm:$0xff]
        %v1022 = vld [vmem:[#allocation5 + $0x690] sm:$0xff]
        %v1023 = vld [vmem:[#allocation5 + $0x698] sm:$0xff]
        %v1024 = vld [vmem:[#allocation5 + $0x6a0] sm:$0xff]
        %v1025 = vld [vmem:[#allocation5 + $0x6a8] sm:$0xff]
        %v1026 = vld [vmem:[#allocation5 + $0x6b0] sm:$0xff]
        %v1027 = vld [vmem:[#allocation5 + $0x6b8] sm:$0xff]
        %v1028 = vld [vmem:[#allocation5 + $0x6c0] sm:$0xff]
        %v1029 = vld [vmem:[#allocation5 + $0x6c8] sm:$0xff]
        %v1030 = vld [vmem:[#allocation5 + $0x6d0] sm:$0xff]
        %v1031 = vld [vmem:[#allocation5 + $0x6d8] sm:$0xff]
        %v1032 = vld [vmem:[#allocation5 + $0x6e0] sm:$0xff]
        %v1033 = vld [vmem:[#allocation5 + $0x6e8] sm:$0xff]
        %v1034 = vld [vmem:[#allocation5 + $0x6f0] sm:$0xff]
        %v1035 = vld [vmem:[#allocation5 + $0x6f8] sm:$0xff]
        %v1036 = vld [vmem:[#allocation5 + $0x700] sm:$0xff]
        %v1037 = vld [vmem:[#allocation5 + $0x708] sm:$0xff]
        %v1038 = vld [vmem:[#allocation5 + $0x710] sm:$0xff]
        %v1039 = vld [vmem:[#allocation5 + $0x718] sm:$0xff]
        %v1040 = vld [vmem:[#allocation5 + $0x720] sm:$0xff]
        %v1041 = vld [vmem:[#allocation5 + $0x728] sm:$0xff]
        %v1042 = vld [vmem:[#allocation5 + $0x730] sm:$0xff]
        %v1043 = vld [vmem:[#allocation5 + $0x738] sm:$0xff]
        %v1044 = vld [vmem:[#allocation5 + $0x740] sm:$0xff]
        %v1045 = vld [vmem:[#allocation5 + $0x748] sm:$0xff]
        %v1046 = vld [vmem:[#allocation5 + $0x750] sm:$0xff]
        %v1047 = vld [vmem:[#allocation5 + $0x758] sm:$0xff]
        %v1048 = vld [vmem:[#allocation5 + $0x760] sm:$0xff]
        %v1049 = vld [vmem:[#allocation5 + $0x768] sm:$0xff]
        %v1050 = vld [vmem:[#allocation5 + $0x770] sm:$0xff]
        %v1051 = vld [vmem:[#allocation5 + $0x778] sm:$0xff]
        %v1052 = vld [vmem:[#allocation5 + $0x780] sm:$0xff]
        %v1053 = vld [vmem:[#allocation5 + $0x788] sm:$0xff]
        %v1054 = vld [vmem:[#allocation5 + $0x790] sm:$0xff]
        %v1055 = vld [vmem:[#allocation5 + $0x798] sm:$0xff]
        %v1056 = vld [vmem:[#allocation5 + $0x7a0] sm:$0xff]
        %v1057 = vld [vmem:[#allocation5 + $0x7a8] sm:$0xff]
        %v1058 = vld [vmem:[#allocation5 + $0x7b0] sm:$0xff]
        %v1059 = vld [vmem:[#allocation5 + $0x7b8] sm:$0xff]
        %v1060 = vld [vmem:[#allocation5 + $0x7c0] sm:$0xff]
        %v1061 = vld [vmem:[#allocation5 + $0x7c8] sm:$0xff]
        %v1062 = vld [vmem:[#allocation5 + $0x7d0] sm:$0xff]
        %v1063 = vld [vmem:[#allocation5 + $0x7d8] sm:$0xff]
        %v1064 = vld [vmem:[#allocation5 + $0x7e0] sm:$0xff]
        %v1065 = vld [vmem:[#allocation5 + $0x7e8] sm:$0xff]
        %v1066 = vld [vmem:[#allocation5 + $0x7f0] sm:$0xff]
        %v1067 = vld [vmem:[#allocation5 + $0x7f8] sm:$0xff]
        %v1068 = vld [vmem:[#allocation5 + $0x800] sm:$0xff]
        %v1069 = vld [vmem:[#allocation5 + $0x808] sm:$0xff]
        %v1070 = vld [vmem:[#allocation5 + $0x810] sm:$0xff]
        %v1071 = vld [vmem:[#allocation5 + $0x818] sm:$0xff]
        %v1072 = vld [vmem:[#allocation5 + $0x820] sm:$0xff]
        %v1073 = vld [vmem:[#allocation5 + $0x828] sm:$0xff]
        %v1074 = vld [vmem:[#allocation5 + $0x830] sm:$0xff]
        %v1075 = vld [vmem:[#allocation5 + $0x838] sm:$0xff]
        %v1076 = vld [vmem:[#allocation5 + $0x840] sm:$0xff]
        %v1077 = vld [vmem:[#allocation5 + $0x848] sm:$0xff]
        %v1078 = vld [vmem:[#allocation5 + $0x850] sm:$0xff]
        %v1079 = vld [vmem:[#allocation5 + $0x858] sm:$0xff]
        %v1080 = vld [vmem:[#allocation5 + $0x860] sm:$0xff]
        %v1081 = vld [vmem:[#allocation5 + $0x868] sm:$0xff]
        %v1082 = vld [vmem:[#allocation5 + $0x870] sm:$0xff]
        %v1083 = vld [vmem:[#allocation5 + $0x878] sm:$0xff]
        %v1084 = vld [vmem:[#allocation5 + $0x880] sm:$0xff]
        %v1085 = vld [vmem:[#allocation5 + $0x888] sm:$0xff]
        %v1086 = vld [vmem:[#allocation5 + $0x890] sm:$0xff]
        %v1087 = vld [vmem:[#allocation5 + $0x898] sm:$0xff]
        %v1088 = vld [vmem:[#allocation5 + $0x8a0] sm:$0xff]
        %v1089 = vld [vmem:[#allocation5 + $0x8a8] sm:$0xff]
        %v1090 = vld [vmem:[#allocation5 + $0x8b0] sm:$0xff]
        %v1091 = vld [vmem:[#allocation5 + $0x8b8] sm:$0xff]
        %v1092 = vld [vmem:[#allocation5 + $0x8c0] sm:$0xff]
        %v1093 = vld [vmem:[#allocation5 + $0x8c8] sm:$0xff]
        %v1094 = vld [vmem:[#allocation5 + $0x8d0] sm:$0xff]
        %v1095 = vld [vmem:[#allocation5 + $0x8d8] sm:$0xff]
        %v1096 = vld [vmem:[#allocation5 + $0x8e0] sm:$0xff]
        %v1097 = vld [vmem:[#allocation5 + $0x8e8] sm:$0xff]
        %v1098 = vld [vmem:[#allocation5 + $0x8f0] sm:$0xff]
        %v1099 = vld [vmem:[#allocation5 + $0x8f8] sm:$0xff]
        %v1100 = vld [vmem:[#allocation5 + $0x900] sm:$0xff]
        %v1101 = vld [vmem:[#allocation5 + $0x908] sm:$0xff]
        %v1102 = vld [vmem:[#allocation5 + $0x910] sm:$0xff]
        %v1103 = vld [vmem:[#allocation5 + $0x918] sm:$0xff]
        %v1104 = vld [vmem:[#allocation5 + $0x920] sm:$0xff]
        %v1105 = vld [vmem:[#allocation5 + $0x928] sm:$0xff]
        %v1106 = vld [vmem:[#allocation5 + $0x930] sm:$0xff]
        %v1107 = vld [vmem:[#allocation5 + $0x938] sm:$0xff]
        %v1108 = vld [vmem:[#allocation5 + $0x940] sm:$0xff]
        %v1109 = vld [vmem:[#allocation5 + $0x948] sm:$0xff]
        %v1110 = vld [vmem:[#allocation5 + $0x950] sm:$0xff]
        %v1111 = vld [vmem:[#allocation5 + $0x958] sm:$0xff]
        %v1112 = vld [vmem:[#allocation5 + $0x960] sm:$0xff]
        %v1113 = vld [vmem:[#allocation5 + $0x968] sm:$0xff]
        %v1114 = vld [vmem:[#allocation5 + $0x970] sm:$0xff]
        %v1115 = vld [vmem:[#allocation5 + $0x978] sm:$0xff]
        %v1116 = vld [vmem:[#allocation5 + $0x980] sm:$0xff]
        %v1117 = vld [vmem:[#allocation5 + $0x988] sm:$0xff]
        %v1118 = vld [vmem:[#allocation5 + $0x990] sm:$0xff]
        %v1119 = vld [vmem:[#allocation5 + $0x998] sm:$0xff]
        %v1120 = vld [vmem:[#allocation5 + $0x9a0] sm:$0xff]
        %v1121 = vld [vmem:[#allocation5 + $0x9a8] sm:$0xff]
        %v1122 = vld [vmem:[#allocation5 + $0x9b0] sm:$0xff]
        %v1123 = vld [vmem:[#allocation5 + $0x9b8] sm:$0xff]
        %v1124 = vld [vmem:[#allocation5 + $0x9c0] sm:$0xff]
        %v1125 = vld [vmem:[#allocation5 + $0x9c8] sm:$0xff]
        %v1126 = vld [vmem:[#allocation5 + $0x9d0] sm:$0xff]
        %v1127 = vld [vmem:[#allocation5 + $0x9d8] sm:$0xff]
        %v1128 = vld [vmem:[#allocation5 + $0x9e0] sm:$0xff]
        %v1129 = vld [vmem:[#allocation5 + $0x9e8] sm:$0xff]
        %v1130 = vld [vmem:[#allocation5 + $0x9f0] sm:$0xff]
        %v1131 = vld [vmem:[#allocation5 + $0x9f8] sm:$0xff]
        %v1132 = vld [vmem:[#allocation5 + $0xa00] sm:$0xff]
        %v1133 = vld [vmem:[#allocation5 + $0xa08] sm:$0xff]
        %v1134 = vld [vmem:[#allocation5 + $0xa10] sm:$0xff]
        %v1135 = vld [vmem:[#allocation5 + $0xa18] sm:$0xff]
        %v1136 = vld [vmem:[#allocation5 + $0xa20] sm:$0xff]
        %v1137 = vld [vmem:[#allocation5 + $0xa28] sm:$0xff]
        %v1138 = vld [vmem:[#allocation5 + $0xa30] sm:$0xff]
        %v1139 = vld [vmem:[#allocation5 + $0xa38] sm:$0xff]
        %v1140 = vld [vmem:[#allocation5 + $0xa40] sm:$0xff]
        %v1141 = vld [vmem:[#allocation5 + $0xa48] sm:$0xff]
        %v1142 = vld [vmem:[#allocation5 + $0xa50] sm:$0xff]
        %v1143 = vld [vmem:[#allocation5 + $0xa58] sm:$0xff]
        %v1144 = vld [vmem:[#allocation5 + $0xa60] sm:$0xff]
        %v1145 = vld [vmem:[#allocation5 + $0xa68] sm:$0xff]
        %v1146 = vld [vmem:[#allocation5 + $0xa70] sm:$0xff]
        %v1147 = vld [vmem:[#allocation5 + $0xa78] sm:$0xff]
        %v1148 = vld [vmem:[#allocation5 + $0xa80] sm:$0xff]
        %v1149 = vld [vmem:[#allocation5 + $0xa88] sm:$0xff]
        %v1150 = vld [vmem:[#allocation5 + $0xa90] sm:$0xff]
        %v1151 = vld [vmem:[#allocation5 + $0xa98] sm:$0xff]
        %v1152 = vld [vmem:[#allocation5 + $0xaa0] sm:$0xff]
        %v1153 = vld [vmem:[#allocation5 + $0xaa8] sm:$0xff]
        %v1154 = vld [vmem:[#allocation5 + $0xab0] sm:$0xff]
        %v1155 = vld [vmem:[#allocation5 + $0xab8] sm:$0xff]
        %v1156 = vld [vmem:[#allocation5 + $0xac0] sm:$0xff]
        %v1157 = vld [vmem:[#allocation5 + $0xac8] sm:$0xff]
        %v1158 = vld [vmem:[#allocation5 + $0xad0] sm:$0xff]
        %v1159 = vld [vmem:[#allocation5 + $0xad8] sm:$0xff]
        %v1160 = vld [vmem:[#allocation5 + $0xae0] sm:$0xff]
        %v1161 = vld [vmem:[#allocation5 + $0xae8] sm:$0xff]
        %v1162 = vld [vmem:[#allocation5 + $0xaf0] sm:$0xff]
        %v1163 = vld [vmem:[#allocation5 + $0xaf8] sm:$0xff]
        %v1164 = vld [vmem:[#allocation5 + $0xb00] sm:$0xff]
        %v1165 = vld [vmem:[#allocation5 + $0xb08] sm:$0xff]
        %v1166 = vld [vmem:[#allocation5 + $0xb10] sm:$0xff]
        %v1167 = vld [vmem:[#allocation5 + $0xb18] sm:$0xff]
        %v1168 = vld [vmem:[#allocation5 + $0xb20] sm:$0xff]
        %v1169 = vld [vmem:[#allocation5 + $0xb28] sm:$0xff]
        %v1170 = vld [vmem:[#allocation5 + $0xb30] sm:$0xff]
        %v1171 = vld [vmem:[#allocation5 + $0xb38] sm:$0xff]
        %v1172 = vld [vmem:[#allocation5 + $0xb40] sm:$0xff]
        %v1173 = vld [vmem:[#allocation5 + $0xb48] sm:$0xff]
        %v1174 = vld [vmem:[#allocation5 + $0xb50] sm:$0xff]
        %v1175 = vld [vmem:[#allocation5 + $0xb58] sm:$0xff]
        %v1176 = vld [vmem:[#allocation5 + $0xb60] sm:$0xff]
        %v1177 = vld [vmem:[#allocation5 + $0xb68] sm:$0xff]
        %v1178 = vld [vmem:[#allocation5 + $0xb70] sm:$0xff]
        %v1179 = vld [vmem:[#allocation5 + $0xb78] sm:$0xff]
        %v1180 = vld [vmem:[#allocation5 + $0xb80] sm:$0xff]
        %v1181 = vld [vmem:[#allocation5 + $0xb88] sm:$0xff]
        %v1182 = vld [vmem:[#allocation5 + $0xb90] sm:$0xff]
        %v1183 = vld [vmem:[#allocation5 + $0xb98] sm:$0xff]
        %v1184 = vld [vmem:[#allocation5 + $0xba0] sm:$0xff]
        %v1185 = vld [vmem:[#allocation5 + $0xba8] sm:$0xff]
        %v1186 = vld [vmem:[#allocation5 + $0xbb0] sm:$0xff]
        %v1187 = vld [vmem:[#allocation5 + $0xbb8] sm:$0xff]
        %v1188 = vld [vmem:[#allocation5 + $0xbc0] sm:$0xff]
        %v1189 = vld [vmem:[#allocation5 + $0xbc8] sm:$0xff]
        %v1190 = vld [vmem:[#allocation5 + $0xbd0] sm:$0xff]
        %v1191 = vld [vmem:[#allocation5 + $0xbd8] sm:$0xff]
        %v1192 = vld [vmem:[#allocation5 + $0xbe0] sm:$0xff]
        %v1193 = vld [vmem:[#allocation5 + $0xbe8] sm:$0xff]
        %v1194 = vld [vmem:[#allocation5 + $0xbf0] sm:$0xff]
        %v1195 = vld [vmem:[#allocation5 + $0xbf8] sm:$0xff]
        %v1196 = vld [vmem:[#allocation5 + $0xc00] sm:$0xff]
        %v1197 = vld [vmem:[#allocation5 + $0xc08] sm:$0xff]
        %v1198 = vld [vmem:[#allocation5 + $0xc10] sm:$0xff]
        %v1199 = vld [vmem:[#allocation5 + $0xc18] sm:$0xff]
        %v1200 = vld [vmem:[#allocation5 + $0xc20] sm:$0xff]
        %v1201 = vld [vmem:[#allocation5 + $0xc28] sm:$0xff]
        %v1202 = vld [vmem:[#allocation5 + $0xc30] sm:$0xff]
        %v1203 = vld [vmem:[#allocation5 + $0xc38] sm:$0xff]
        %v1204 = vld [vmem:[#allocation5 + $0xc40] sm:$0xff]
        %v1205 = vld [vmem:[#allocation5 + $0xc48] sm:$0xff]
        %v1206 = vld [vmem:[#allocation5 + $0xc50] sm:$0xff]
        %v1207 = vld [vmem:[#allocation5 + $0xc58] sm:$0xff]
        %v1208 = vld [vmem:[#allocation5 + $0xc60] sm:$0xff]
        %v1209 = vld [vmem:[#allocation5 + $0xc68] sm:$0xff]
        %v1210 = vld [vmem:[#allocation5 + $0xc70] sm:$0xff]
        %v1211 = vld [vmem:[#allocation5 + $0xc78] sm:$0xff]
        %v1212 = vld [vmem:[#allocation5 + $0xc80] sm:$0xff]
        %v1213 = vld [vmem:[#allocation5 + $0xc88] sm:$0xff]
        %v1214 = vld [vmem:[#allocation5 + $0xc90] sm:$0xff]
        %v1215 = vld [vmem:[#allocation5 + $0xc98] sm:$0xff]
        %v1216 = vld [vmem:[#allocation5 + $0xca0] sm:$0xff]
        %v1217 = vld [vmem:[#allocation5 + $0xca8] sm:$0xff]
        %v1218 = vld [vmem:[#allocation5 + $0xcb0] sm:$0xff]
        %v1219 = vld [vmem:[#allocation5 + $0xcb8] sm:$0xff]
        %v1220 = vld [vmem:[#allocation5 + $0xcc0] sm:$0xff]
        %v1221 = vld [vmem:[#allocation5 + $0xcc8] sm:$0xff]
        %v1222 = vld [vmem:[#allocation5 + $0xcd0] sm:$0xff]
        %v1223 = vld [vmem:[#allocation5 + $0xcd8] sm:$0xff]
        %v1224 = vld [vmem:[#allocation5 + $0xce0] sm:$0xff]
        %v1225 = vld [vmem:[#allocation5 + $0xce8] sm:$0xff]
        %v1226 = vld [vmem:[#allocation5 + $0xcf0] sm:$0xff]
        %v1227 = vld [vmem:[#allocation5 + $0xcf8] sm:$0xff]
        %v1228 = vld [vmem:[#allocation5 + $0xd00] sm:$0xff]
        %v1229 = vld [vmem:[#allocation5 + $0xd08] sm:$0xff]
        %v1230 = vld [vmem:[#allocation5 + $0xd10] sm:$0xff]
        %v1231 = vld [vmem:[#allocation5 + $0xd18] sm:$0xff]
        %v1232 = vld [vmem:[#allocation5 + $0xd20] sm:$0xff]
        %v1233 = vld [vmem:[#allocation5 + $0xd28] sm:$0xff]
        %v1234 = vld [vmem:[#allocation5 + $0xd30] sm:$0xff]
        %v1235 = vld [vmem:[#allocation5 + $0xd38] sm:$0xff]
        %v1236 = vld [vmem:[#allocation5 + $0xd40] sm:$0xff]
        %v1237 = vld [vmem:[#allocation5 + $0xd48] sm:$0xff]
        %v1238 = vld [vmem:[#allocation5 + $0xd50] sm:$0xff]
        %v1239 = vld [vmem:[#allocation5 + $0xd58] sm:$0xff]
        %v1240 = vld [vmem:[#allocation5 + $0xd60] sm:$0xff]
        %v1241 = vld [vmem:[#allocation5 + $0xd68] sm:$0xff]
        %v1242 = vld [vmem:[#allocation5 + $0xd70] sm:$0xff]
        %v1243 = vld [vmem:[#allocation5 + $0xd78] sm:$0xff]
        %v1244 = vld [vmem:[#allocation5 + $0xd80] sm:$0xff]
        %v1245 = vld [vmem:[#allocation5 + $0xd88] sm:$0xff]
        %v1246 = vld [vmem:[#allocation5 + $0xd90] sm:$0xff]
        %v1247 = vld [vmem:[#allocation5 + $0xd98] sm:$0xff]
        %v1248 = vld [vmem:[#allocation5 + $0xda0] sm:$0xff]
        %v1249 = vld [vmem:[#allocation5 + $0xda8] sm:$0xff]
        %v1250 = vld [vmem:[#allocation5 + $0xdb0] sm:$0xff]
        %v1251 = vld [vmem:[#allocation5 + $0xdb8] sm:$0xff]
        %v1252 = vld [vmem:[#allocation5 + $0xdc0] sm:$0xff]
        %v1253 = vld [vmem:[#allocation5 + $0xdc8] sm:$0xff]
        %v1254 = vld [vmem:[#allocation5 + $0xdd0] sm:$0xff]
        %v1255 = vld [vmem:[#allocation5 + $0xdd8] sm:$0xff]
        %v1256 = vld [vmem:[#allocation5 + $0xde0] sm:$0xff]
        %v1257 = vld [vmem:[#allocation5 + $0xde8] sm:$0xff]
        %v1258 = vld [vmem:[#allocation5 + $0xdf0] sm:$0xff]
        %v1259 = vld [vmem:[#allocation5 + $0xdf8] sm:$0xff]
        %v1260 = vld [vmem:[#allocation5 + $0xe00] sm:$0xff]
        %v1261 = vld [vmem:[#allocation5 + $0xe08] sm:$0xff]
        %v1262 = vld [vmem:[#allocation5 + $0xe10] sm:$0xff]
        %v1263 = vld [vmem:[#allocation5 + $0xe18] sm:$0xff]
        %v1264 = vld [vmem:[#allocation5 + $0xe20] sm:$0xff]
        %v1265 = vld [vmem:[#allocation5 + $0xe28] sm:$0xff]
        %v1266 = vld [vmem:[#allocation5 + $0xe30] sm:$0xff]
        %v1267 = vld [vmem:[#allocation5 + $0xe38] sm:$0xff]
        %v1268 = vld [vmem:[#allocation5 + $0xe40] sm:$0xff]
        %v1269 = vld [vmem:[#allocation5 + $0xe48] sm:$0xff]
        %v1270 = vld [vmem:[#allocation5 + $0xe50] sm:$0xff]
        %v1271 = vld [vmem:[#allocation5 + $0xe58] sm:$0xff]
        %v1272 = vld [vmem:[#allocation5 + $0xe60] sm:$0xff]
        %v1273 = vld [vmem:[#allocation5 + $0xe68] sm:$0xff]
        %v1274 = vld [vmem:[#allocation5 + $0xe70] sm:$0xff]
        %v1275 = vld [vmem:[#allocation5 + $0xe78] sm:$0xff]
        %v1276 = vld [vmem:[#allocation5 + $0xe80] sm:$0xff]
        %v1277 = vld [vmem:[#allocation5 + $0xe88] sm:$0xff]
        %v1278 = vld [vmem:[#allocation5 + $0xe90] sm:$0xff]
        %v1279 = vld [vmem:[#allocation5 + $0xe98] sm:$0xff]
        %v1280 = vld [vmem:[#allocation5 + $0xea0] sm:$0xff]
        %v1281 = vld [vmem:[#allocation5 + $0xea8] sm:$0xff]
        %v1282 = vld [vmem:[#allocation5 + $0xeb0] sm:$0xff]
        %v1283 = vld [vmem:[#allocation5 + $0xeb8] sm:$0xff]
        %v1284 = vld [vmem:[#allocation5 + $0xec0] sm:$0xff]
        %v1285 = vld [vmem:[#allocation5 + $0xec8] sm:$0xff]
        %v1286 = vld [vmem:[#allocation5 + $0xed0] sm:$0xff]
        %v1287 = vld [vmem:[#allocation5 + $0xed8] sm:$0xff]
        %v1288 = vld [vmem:[#allocation5 + $0xee0] sm:$0xff]
        %v1289 = vld [vmem:[#allocation5 + $0xee8] sm:$0xff]
        %v1290 = vld [vmem:[#allocation5 + $0xef0] sm:$0xff]
        %v1291 = vld [vmem:[#allocation5 + $0xef8] sm:$0xff]
        %v1292 = vld [vmem:[#allocation5 + $0xf00] sm:$0xff]
        %v1293 = vld [vmem:[#allocation5 + $0xf08] sm:$0xff]
        %v1294 = vld [vmem:[#allocation5 + $0xf10] sm:$0xff]
        %v1295 = vld [vmem:[#allocation5 + $0xf18] sm:$0xff]
        %v1296 = vld [vmem:[#allocation5 + $0xf20] sm:$0xff]
        %v1297 = vld [vmem:[#allocation5 + $0xf28] sm:$0xff]
        %v1298 = vld [vmem:[#allocation5 + $0xf30] sm:$0xff]
        %v1299 = vld [vmem:[#allocation5 + $0xf38] sm:$0xff]
        %v1300 = vld [vmem:[#allocation5 + $0xf40] sm:$0xff]
        %v1301 = vld [vmem:[#allocation5 + $0xf48] sm:$0xff]
        %v1302 = vld [vmem:[#allocation5 + $0xf50] sm:$0xff]
        %v1303 = vld [vmem:[#allocation5 + $0xf58] sm:$0xff]
        %v1304 = vld [vmem:[#allocation5 + $0xf60] sm:$0xff]
        %v1305 = vld [vmem:[#allocation5 + $0xf68] sm:$0xff]
        %v1306 = vld [vmem:[#allocation5 + $0xf70] sm:$0xff]
        %v1307 = vld [vmem:[#allocation5 + $0xf78] sm:$0xff]
        %v1308 = vld [vmem:[#allocation5 + $0xf80] sm:$0xff]
        %v1309 = vld [vmem:[#allocation5 + $0xf88] sm:$0xff]
        %v1310 = vld [vmem:[#allocation5 + $0xf90] sm:$0xff]
        %v1311 = vld [vmem:[#allocation5 + $0xf98] sm:$0xff]
        %v1312 = vld [vmem:[#allocation5 + $0xfa0] sm:$0xff]
        %v1313 = vld [vmem:[#allocation5 + $0xfa8] sm:$0xff]
        %v1314 = vld [vmem:[#allocation5 + $0xfb0] sm:$0xff]
        %v1315 = vld [vmem:[#allocation5 + $0xfb8] sm:$0xff]
        %v1316 = vld [vmem:[#allocation5 + $0xfc0] sm:$0xff]
        %v1317 = vld [vmem:[#allocation5 + $0xfc8] sm:$0xff]
        %v1318 = vld [vmem:[#allocation5 + $0xfd0] sm:$0xff]
        %v1319 = vld [vmem:[#allocation5 + $0xfd8] sm:$0xff]
        %v1320 = vld [vmem:[#allocation5 + $0xfe0] sm:$0xff]
        %v1321 = vld [vmem:[#allocation5 + $0xfe8] sm:$0xff]
        %v1322 = vld [vmem:[#allocation5 + $0xff0] sm:$0xff]
        %v1323 = vld [vmem:[#allocation5 + $0xff8] sm:$0xff]
        %v1324 = vld [vmem:[#allocation7] sm:$0xf]
        %v1326 = vlaneseq
        %v1327 = vshrl.u32 %v1326, 7
        %v1328 = vsub.s32 0, %v1327
        %v1329 = vrot.slane %v1324, %v1328
        %v1330 = vlaneseq
        %v1331 = vshrl.u32 %v1330, 7
        %v1332 = vsub.s32 1, %v1331
        %v1333 = vrot.slane %v1324, %v1332
        %v1334 = vlaneseq
        %v1335 = vshrl.u32 %v1334, 7
        %v1336 = vsub.s32 2, %v1335
        %v1337 = vrot.slane %v1324, %v1336
        %v1338 = vlaneseq
        %v1339 = vshrl.u32 %v1338, 7
        %v1340 = vsub.s32 3, %v1339
        %v1341 = vrot.slane %v1324, %v1340
        %1346 = vmatprep.subr.mxu0 %v813
        %1347 = vmatpush1.msra.mxu0 %v812
        %1348 = vmatprep.subr.mxu0 %v817
        %1349 = vmatpush1.msra.mxu0 %v816
        %1350 = vmatprep.subr.mxu0 %v821
        %1351 = vmatpush1.msra.mxu0 %v820
        %1352 = vmatprep.subr.mxu0 %v825
        %1353 = vmatpush1.msra.mxu0 %v824
        %1354 = vmatprep.subr.mxu0 %v829
        %1355 = vmatpush1.msra.mxu0 %v828
        %1356 = vmatprep.subr.mxu0 %v833
        %1357 = vmatpush1.msra.mxu0 %v832
        %1358 = vmatprep.subr.mxu0 %v837
        %1359 = vmatpush1.msra.mxu0 %v836
        %1360 = vmatprep.subr.mxu0 %v841
        %1361 = vmatpush1.msra.mxu0 %v840
        %1362 = vmatprep.subr.mxu0 %v845
        %1363 = vmatpush1.msra.mxu0 %v844
        %1364 = vmatprep.subr.mxu0 %v849
        %1365 = vmatpush1.msra.mxu0 %v848
        %1366 = vmatprep.subr.mxu0 %v853
        %1367 = vmatpush1.msra.mxu0 %v852
        %1368 = vmatprep.subr.mxu0 %v857
        %1369 = vmatpush1.msra.mxu0 %v856
        %1370 = vmatprep.subr.mxu0 %v861
        %1371 = vmatpush1.msra.mxu0 %v860
        %1372 = vmatprep.subr.mxu0 %v865
        %1373 = vmatpush1.msra.mxu0 %v864
        %1374 = vmatprep.subr.mxu0 %v869
        %1375 = vmatpush1.msra.mxu0 %v868
        %1376 = vmatprep.subr.mxu0 %v873
        %1377 = vmatpush1.msra.mxu0 %v872
        %1378 = vmatprep.subr.mxu0 %v877
        %1379 = vmatpush1.msra.mxu0 %v876
        %1380 = vmatprep.subr.mxu0 %v881
        %1381 = vmatpush1.msra.mxu0 %v880
        %1382 = vmatprep.subr.mxu0 %v885
        %1383 = vmatpush1.msra.mxu0 %v884
        %1384 = vmatprep.subr.mxu0 %v889
        %1385 = vmatpush1.msra.mxu0 %v888
        %1386 = vmatprep.subr.mxu0 %v893
        %1387 = vmatpush1.msra.mxu0 %v892
        %1388 = vmatprep.subr.mxu0 %v897
        %1389 = vmatpush1.msra.mxu0 %v896
        %1390 = vmatprep.subr.mxu0 %v901
        %1391 = vmatpush1.msra.mxu0 %v900
        %1392 = vmatprep.subr.mxu0 %v905
        %1393 = vmatpush1.msra.mxu0 %v904
        %1394 = vmatprep.subr.mxu0 %v909
        %1395 = vmatpush1.msra.mxu0 %v908
        %1396 = vmatprep.subr.mxu0 %v913
        %1397 = vmatpush1.msra.mxu0 %v912
        %1398 = vmatprep.subr.mxu0 %v917
        %1399 = vmatpush1.msra.mxu0 %v916
        %1400 = vmatprep.subr.mxu0 %v921
        %1401 = vmatpush1.msra.mxu0 %v920
        %1402 = vmatprep.subr.mxu0 %v925
        %1403 = vmatpush1.msra.mxu0 %v924
        %1404 = vmatprep.subr.mxu0 %v929
        %1405 = vmatpush1.msra.mxu0 %v928
        %1406 = vmatprep.subr.mxu0 %v933
        %1407 = vmatpush1.msra.mxu0 %v932
        %1408 = vmatprep.subr.mxu0 %v937
        %1409 = vmatpush1.msra.mxu0 %v936
        %1410 = vmatprep.mubr.f32.mxu0 %v301
        %1411 = vmatmul.mubr.f32.gmra.mrb[0].mxu0 %v300
        %v1412 = vpop.f32.mrb[0].mxu0
        %v1413 = vadd.f32 %v1329, %v1412
        %v1414 = vpop.f32.mrb[0].mxu0
        %v1415 = vadd.f32 %v1333, %v1414
        %1416 = vmatprep.mubr.f32.mxu0 %v309
        %1417 = vmatmul.mubr.f32.gmra.mrb[0].mxu0 %v308
        %v1418 = vpop.f32.mrb[0].mxu0
        %v1419 = vadd.f32 %v1329, %v1418
        %v1420 = vpop.f32.mrb[0].mxu0
        %v1421 = vadd.f32 %v1333, %v1420
        %1422 = vmatprep.mubr.f32.mxu0 %v317
        %1423 = vmatmul.mubr.f32.gmra.mrb[0].mxu0 %v316
        %v1424 = vpop.f32.mrb[0].mxu0
        %v1425 = vadd.f32 %v1329, %v1424
        %v1426 = vpop.f32.mrb[0].mxu0
        %v1427 = vadd.f32 %v1333, %v1426
        %1428 = vmatprep.mubr.f32.mxu0 %v325
        %1429 = vmatmul.mubr.f32.gmra.mrb[0].mxu0 %v324
        %v1430 = vpop.f32.mrb[0].mxu0
        %v1431 = vadd.f32 %v1329, %v1430
        %v1432 = vpop.f32.mrb[0].mxu0
        %v1433 = vadd.f32 %v1333, %v1432
        %1434 = vmatprep.mubr.f32.mxu0 %v333
        %1435 = vmatmul.mubr.f32.gmra.mrb[0].mxu0 %v332
        %v1436 = vpop.f32.mrb[0].mxu0
        %v1437 = vadd.f32 %v1329, %v1436
        %v1438 = vpop.f32.mrb[0].mxu0
        %v1439 = vadd.f32 %v1333, %v1438
        %1440 = vmatprep.mubr.f32.mxu0 %v341
        %1441 = vmatmul.mubr.f32.gmra.mrb[0].mxu0 %v340
        %v1442 = vpop.f32.mrb[0].mxu0
        %v1443 = vadd.f32 %v1329, %v1442
        %v1444 = vpop.f32.mrb[0].mxu0
        %v1445 = vadd.f32 %v1333, %v1444
        %1446 = vmatprep.mubr.f32.mxu0 %v349
        %1447 = vmatmul.mubr.f32.gmra.mrb[0].mxu0 %v348
        %v1448 = vpop.f32.mrb[0].mxu0
        %v1449 = vadd.f32 %v1329, %v1448
        %v1450 = vpop.f32.mrb[0].mxu0
        %v1451 = vadd.f32 %v1333, %v1450
        %1452 = vmatprep.mubr.f32.mxu0 %v357
        %1453 = vmatmul.mubr.f32.gmra.mrb[0].mxu0 %v356
        %v1454 = vpop.f32.mrb[0].mxu0
        %v1455 = vadd.f32 %v1329, %v1454
        %v1456 = vpop.f32.mrb[0].mxu0
        %v1457 = vadd.f32 %v1333, %v1456
        %1458 = vmatprep.mubr.f32.mxu0 %v365
        %1459 = vmatmul.mubr.f32.gmra.mrb[0].mxu0 %v364
        %v1460 = vpop.f32.mrb[0].mxu0
        %v1461 = vadd.f32 %v1329, %v1460
        %v1462 = vpop.f32.mrb[0].mxu0
        %v1463 = vadd.f32 %v1333, %v1462
        %1464 = vmatprep.mubr.f32.mxu0 %v373
        %1465 = vmatmul.mubr.f32.gmra.mrb[0].mxu0 %v372
        %v1466 = vpop.f32.mrb[0].mxu0
        %v1467 = vadd.f32 %v1329, %v1466
        %v1468 = vpop.f32.mrb[0].mxu0
        %v1469 = vadd.f32 %v1333, %v1468
        %1470 = vmatprep.mubr.f32.mxu0 %v381
        %1471 = vmatmul.mubr.f32.gmra.mrb[0].mxu0 %v380
        %v1472 = vpop.f32.mrb[0].mxu0
        %v1473 = vadd.f32 %v1329, %v1472
        %v1474 = vpop.f32.mrb[0].mxu0
        %v1475 = vadd.f32 %v1333, %v1474
        %1476 = vmatprep.mubr.f32.mxu0 %v389
        %1477 = vmatmul.mubr.f32.gmra.mrb[0].mxu0 %v388
        %v1478 = vpop.f32.mrb[0].mxu0
        %v1479 = vadd.f32 %v1329, %v1478
        %v1480 = vpop.f32.mrb[0].mxu0
        %v1481 = vadd.f32 %v1333, %v1480
        %1482 = vmatprep.mubr.f32.mxu0 %v397
        %1483 = vmatmul.mubr.f32.gmra.mrb[0].mxu0 %v396
        %v1484 = vpop.f32.mrb[0].mxu0
        %v1485 = vadd.f32 %v1329, %v1484
        %v1486 = vpop.f32.mrb[0].mxu0
        %v1487 = vadd.f32 %v1333, %v1486
        %1488 = vmatprep.mubr.f32.mxu0 %v405
        %1489 = vmatmul.mubr.f32.gmra.mrb[0].mxu0 %v404
        %v1490 = vpop.f32.mrb[0].mxu0
        %v1491 = vadd.f32 %v1329, %v1490
        %v1492 = vpop.f32.mrb[0].mxu0
        %v1493 = vadd.f32 %v1333, %v1492
        %1494 = vmatprep.mubr.f32.mxu0 %v413
        %1495 = vmatmul.mubr.f32.gmra.mrb[0].mxu0 %v412
        %v1496 = vpop.f32.mrb[0].mxu0
        %v1497 = vadd.f32 %v1329, %v1496
        %v1498 = vpop.f32.mrb[0].mxu0
        %v1499 = vadd.f32 %v1333, %v1498
        %1500 = vmatprep.mubr.f32.mxu0 %v421
        %1501 = vmatmul.mubr.f32.gmra.mrb[0].mxu0 %v420
        %v1502 = vpop.f32.mrb[0].mxu0
        %v1503 = vadd.f32 %v1329, %v1502
        %v1504 = vpop.f32.mrb[0].mxu0
        %v1505 = vadd.f32 %v1333, %v1504
        %1506 = vmatprep.mubr.f32.mxu0 %v429
        %1507 = vmatmul.mubr.f32.gmra.mrb[0].mxu0 %v428
        %v1508 = vpop.f32.mrb[0].mxu0
        %v1509 = vadd.f32 %v1329, %v1508
        %v1510 = vpop.f32.mrb[0].mxu0
        %v1511 = vadd.f32 %v1333, %v1510
        %1512 = vmatprep.mubr.f32.mxu0 %v437
        %1513 = vmatmul.mubr.f32.gmra.mrb[0].mxu0 %v436
        %v1514 = vpop.f32.mrb[0].mxu0
        %v1515 = vadd.f32 %v1329, %v1514
        %v1516 = vpop.f32.mrb[0].mxu0
        %v1517 = vadd.f32 %v1333, %v1516
        %1518 = vmatprep.mubr.f32.mxu0 %v445
        %1519 = vmatmul.mubr.f32.gmra.mrb[0].mxu0 %v444
        %v1520 = vpop.f32.mrb[0].mxu0
        %v1521 = vadd.f32 %v1329, %v1520
        %v1522 = vpop.f32.mrb[0].mxu0
        %v1523 = vadd.f32 %v1333, %v1522
        %1524 = vmatprep.mubr.f32.mxu0 %v453
        %1525 = vmatmul.mubr.f32.gmra.mrb[0].mxu0 %v452
        %v1526 = vpop.f32.mrb[0].mxu0
        %v1527 = vadd.f32 %v1329, %v1526
        %v1528 = vpop.f32.mrb[0].mxu0
        %v1529 = vadd.f32 %v1333, %v1528
        %1530 = vmatprep.mubr.f32.mxu0 %v461
        %1531 = vmatmul.mubr.f32.gmra.mrb[0].mxu0 %v460
        %v1532 = vpop.f32.mrb[0].mxu0
        %v1533 = vadd.f32 %v1329, %v1532
        %v1534 = vpop.f32.mrb[0].mxu0
        %v1535 = vadd.f32 %v1333, %v1534
        %1536 = vmatprep.mubr.f32.mxu0 %v469
        %1537 = vmatmul.mubr.f32.gmra.mrb[0].mxu0 %v468
        %v1538 = vpop.f32.mrb[0].mxu0
        %v1539 = vadd.f32 %v1329, %v1538
        %v1540 = vpop.f32.mrb[0].mxu0
        %v1541 = vadd.f32 %v1333, %v1540
        %1542 = vmatprep.mubr.f32.mxu0 %v477
        %1543 = vmatmul.mubr.f32.gmra.mrb[0].mxu0 %v476
        %v1544 = vpop.f32.mrb[0].mxu0
        %v1545 = vadd.f32 %v1329, %v1544
        %v1546 = vpop.f32.mrb[0].mxu0
        %v1547 = vadd.f32 %v1333, %v1546
        %1548 = vmatprep.mubr.f32.mxu0 %v485
        %1549 = vmatmul.mubr.f32.gmra.mrb[0].mxu0 %v484
        %v1550 = vpop.f32.mrb[0].mxu0
        %v1551 = vadd.f32 %v1329, %v1550
        %v1552 = vpop.f32.mrb[0].mxu0
        %v1553 = vadd.f32 %v1333, %v1552
        %1554 = vmatprep.mubr.f32.mxu0 %v493
        %1555 = vmatmul.mubr.f32.gmra.mrb[0].mxu0 %v492
        %v1556 = vpop.f32.mrb[0].mxu0
        %v1557 = vadd.f32 %v1329, %v1556
        %v1558 = vpop.f32.mrb[0].mxu0
        %v1559 = vadd.f32 %v1333, %v1558
        %1560 = vmatprep.mubr.f32.mxu0 %v501
        %1561 = vmatmul.mubr.f32.gmra.mrb[0].mxu0 %v500
        %v1562 = vpop.f32.mrb[0].mxu0
        %v1563 = vadd.f32 %v1329, %v1562
        %v1564 = vpop.f32.mrb[0].mxu0
        %v1565 = vadd.f32 %v1333, %v1564
        %1566 = vmatprep.mubr.f32.mxu0 %v509
        %1567 = vmatmul.mubr.f32.gmra.mrb[0].mxu0 %v508
        %v1568 = vpop.f32.mrb[0].mxu0
        %v1569 = vadd.f32 %v1329, %v1568
        %v1570 = vpop.f32.mrb[0].mxu0
        %v1571 = vadd.f32 %v1333, %v1570
        %1572 = vmatprep.mubr.f32.mxu0 %v517
        %1573 = vmatmul.mubr.f32.gmra.mrb[0].mxu0 %v516
        %v1574 = vpop.f32.mrb[0].mxu0
        %v1575 = vadd.f32 %v1329, %v1574
        %v1576 = vpop.f32.mrb[0].mxu0
        %v1577 = vadd.f32 %v1333, %v1576
        %1578 = vmatprep.mubr.f32.mxu0 %v525
        %1579 = vmatmul.mubr.f32.gmra.mrb[0].mxu0 %v524
        %v1580 = vpop.f32.mrb[0].mxu0
        %v1581 = vadd.f32 %v1329, %v1580
        %v1582 = vpop.f32.mrb[0].mxu0
        %v1583 = vadd.f32 %v1333, %v1582
        %1584 = vmatprep.mubr.f32.mxu0 %v533
        %1585 = vmatmul.mubr.f32.gmra.mrb[0].mxu0 %v532
        %v1586 = vpop.f32.mrb[0].mxu0
        %v1587 = vadd.f32 %v1329, %v1586
        %v1588 = vpop.f32.mrb[0].mxu0
        %v1589 = vadd.f32 %v1333, %v1588
        %1590 = vmatprep.mubr.f32.mxu0 %v541
        %1591 = vmatmul.mubr.f32.gmra.mrb[0].mxu0 %v540
        %v1592 = vpop.f32.mrb[0].mxu0
        %v1593 = vadd.f32 %v1329, %v1592
        %v1594 = vpop.f32.mrb[0].mxu0
        %v1595 = vadd.f32 %v1333, %v1594
        %1596 = vmatprep.mubr.f32.mxu0 %v549
        %1597 = vmatmul.mubr.f32.gmra.mrb[0].mxu0 %v548
        %v1598 = vpop.f32.mrb[0].mxu0
        %v1599 = vadd.f32 %v1329, %v1598
        %v1600 = vpop.f32.mrb[0].mxu0
        %v1601 = vadd.f32 %v1333, %v1600
        %1602 = vmatprep.mubr.f32.mxu0 %v557
        %1603 = vmatmul.mubr.f32.gmra.mrb[0].mxu0 %v556
        %v1604 = vpop.f32.mrb[0].mxu0
        %v1605 = vadd.f32 %v1329, %v1604
        %v1606 = vpop.f32.mrb[0].mxu0
        %v1607 = vadd.f32 %v1333, %v1606
        %1608 = vmatprep.mubr.f32.mxu0 %v565
        %1609 = vmatmul.mubr.f32.gmra.mrb[0].mxu0 %v564
        %v1610 = vpop.f32.mrb[0].mxu0
        %v1611 = vadd.f32 %v1329, %v1610
        %v1612 = vpop.f32.mrb[0].mxu0
        %v1613 = vadd.f32 %v1333, %v1612
        %1614 = vmatprep.mubr.f32.mxu0 %v573
        %1615 = vmatmul.mubr.f32.gmra.mrb[0].mxu0 %v572
        %v1616 = vpop.f32.mrb[0].mxu0
        %v1617 = vadd.f32 %v1329, %v1616
        %v1618 = vpop.f32.mrb[0].mxu0
        %v1619 = vadd.f32 %v1333, %v1618
        %1620 = vmatprep.mubr.f32.mxu0 %v581
        %1621 = vmatmul.mubr.f32.gmra.mrb[0].mxu0 %v580
        %v1622 = vpop.f32.mrb[0].mxu0
        %v1623 = vadd.f32 %v1329, %v1622
        %v1624 = vpop.f32.mrb[0].mxu0
        %v1625 = vadd.f32 %v1333, %v1624
        %1626 = vmatprep.mubr.f32.mxu0 %v589
        %1627 = vmatmul.mubr.f32.gmra.mrb[0].mxu0 %v588
        %v1628 = vpop.f32.mrb[0].mxu0
        %v1629 = vadd.f32 %v1329, %v1628
        %v1630 = vpop.f32.mrb[0].mxu0
        %v1631 = vadd.f32 %v1333, %v1630
        %1632 = vmatprep.mubr.f32.mxu0 %v597
        %1633 = vmatmul.mubr.f32.gmra.mrb[0].mxu0 %v596
        %v1634 = vpop.f32.mrb[0].mxu0
        %v1635 = vadd.f32 %v1329, %v1634
        %v1636 = vpop.f32.mrb[0].mxu0
        %v1637 = vadd.f32 %v1333, %v1636
        %1638 = vmatprep.mubr.f32.mxu0 %v605
        %1639 = vmatmul.mubr.f32.gmra.mrb[0].mxu0 %v604
        %v1640 = vpop.f32.mrb[0].mxu0
        %v1641 = vadd.f32 %v1329, %v1640
        %v1642 = vpop.f32.mrb[0].mxu0
        %v1643 = vadd.f32 %v1333, %v1642
        %1644 = vmatprep.mubr.f32.mxu0 %v613
        %1645 = vmatmul.mubr.f32.gmra.mrb[0].mxu0 %v612
        %v1646 = vpop.f32.mrb[0].mxu0
        %v1647 = vadd.f32 %v1329, %v1646
        %v1648 = vpop.f32.mrb[0].mxu0
        %v1649 = vadd.f32 %v1333, %v1648
        %1650 = vmatprep.mubr.f32.mxu0 %v621
        %1651 = vmatmul.mubr.f32.gmra.mrb[0].mxu0 %v620
        %v1652 = vpop.f32.mrb[0].mxu0
        %v1653 = vadd.f32 %v1329, %v1652
        %v1654 = vpop.f32.mrb[0].mxu0
        %v1655 = vadd.f32 %v1333, %v1654
        %1656 = vmatprep.mubr.f32.mxu0 %v629
        %1657 = vmatmul.mubr.f32.gmra.mrb[0].mxu0 %v628
        %v1658 = vpop.f32.mrb[0].mxu0
        %v1659 = vadd.f32 %v1329, %v1658
        %v1660 = vpop.f32.mrb[0].mxu0
        %v1661 = vadd.f32 %v1333, %v1660
        %1662 = vmatprep.mubr.f32.mxu0 %v637
        %1663 = vmatmul.mubr.f32.gmra.mrb[0].mxu0 %v636
        %v1664 = vpop.f32.mrb[0].mxu0
        %v1665 = vadd.f32 %v1329, %v1664
        %v1666 = vpop.f32.mrb[0].mxu0
        %v1667 = vadd.f32 %v1333, %v1666
        %1668 = vmatprep.mubr.f32.mxu0 %v645
        %1669 = vmatmul.mubr.f32.gmra.mrb[0].mxu0 %v644
        %v1670 = vpop.f32.mrb[0].mxu0
        %v1671 = vadd.f32 %v1329, %v1670
        %v1672 = vpop.f32.mrb[0].mxu0
        %v1673 = vadd.f32 %v1333, %v1672
        %1674 = vmatprep.mubr.f32.mxu0 %v653
        %1675 = vmatmul.mubr.f32.gmra.mrb[0].mxu0 %v652
        %v1676 = vpop.f32.mrb[0].mxu0
        %v1677 = vadd.f32 %v1329, %v1676
        %v1678 = vpop.f32.mrb[0].mxu0
        %v1679 = vadd.f32 %v1333, %v1678
        %1680 = vmatprep.mubr.f32.mxu0 %v661
        %1681 = vmatmul.mubr.f32.gmra.mrb[0].mxu0 %v660
        %v1682 = vpop.f32.mrb[0].mxu0
        %v1683 = vadd.f32 %v1329, %v1682
        %v1684 = vpop.f32.mrb[0].mxu0
        %v1685 = vadd.f32 %v1333, %v1684
        %1686 = vmatprep.mubr.f32.mxu0 %v669
        %1687 = vmatmul.mubr.f32.gmra.mrb[0].mxu0 %v668
        %v1688 = vpop.f32.mrb[0].mxu0
        %v1689 = vadd.f32 %v1329, %v1688
        %v1690 = vpop.f32.mrb[0].mxu0
        %v1691 = vadd.f32 %v1333, %v1690
        %1692 = vmatprep.mubr.f32.mxu0 %v677
        %1693 = vmatmul.mubr.f32.gmra.mrb[0].mxu0 %v676
        %v1694 = vpop.f32.mrb[0].mxu0
        %v1695 = vadd.f32 %v1329, %v1694
        %v1696 = vpop.f32.mrb[0].mxu0
        %v1697 = vadd.f32 %v1333, %v1696
        %1698 = vmatprep.mubr.f32.mxu0 %v685
        %1699 = vmatmul.mubr.f32.gmra.mrb[0].mxu0 %v684
        %v1700 = vpop.f32.mrb[0].mxu0
        %v1701 = vadd.f32 %v1329, %v1700
        %v1702 = vpop.f32.mrb[0].mxu0
        %v1703 = vadd.f32 %v1333, %v1702
        %1704 = vmatprep.mubr.f32.mxu0 %v693
        %1705 = vmatmul.mubr.f32.gmra.mrb[0].mxu0 %v692
        %v1706 = vpop.f32.mrb[0].mxu0
        %v1707 = vadd.f32 %v1329, %v1706
        %v1708 = vpop.f32.mrb[0].mxu0
        %v1709 = vadd.f32 %v1333, %v1708
        %1710 = vmatprep.mubr.f32.mxu0 %v701
        %1711 = vmatmul.mubr.f32.gmra.mrb[0].mxu0 %v700
        %v1712 = vpop.f32.mrb[0].mxu0
        %v1713 = vadd.f32 %v1329, %v1712
        %v1714 = vpop.f32.mrb[0].mxu0
        %v1715 = vadd.f32 %v1333, %v1714
        %1716 = vmatprep.mubr.f32.mxu0 %v709
        %1717 = vmatmul.mubr.f32.gmra.mrb[0].mxu0 %v708
        %v1718 = vpop.f32.mrb[0].mxu0
        %v1719 = vadd.f32 %v1329, %v1718
        %v1720 = vpop.f32.mrb[0].mxu0
        %v1721 = vadd.f32 %v1333, %v1720
        %1722 = vmatprep.mubr.f32.mxu0 %v717
        %1723 = vmatmul.mubr.f32.gmra.mrb[0].mxu0 %v716
        %v1724 = vpop.f32.mrb[0].mxu0
        %v1725 = vadd.f32 %v1329, %v1724
        %v1726 = vpop.f32.mrb[0].mxu0
        %v1727 = vadd.f32 %v1333, %v1726
        %1728 = vmatprep.mubr.f32.mxu0 %v725
        %1729 = vmatmul.mubr.f32.gmra.mrb[0].mxu0 %v724
        %v1730 = vpop.f32.mrb[0].mxu0
        %v1731 = vadd.f32 %v1329, %v1730
        %v1732 = vpop.f32.mrb[0].mxu0
        %v1733 = vadd.f32 %v1333, %v1732
        %1734 = vmatprep.mubr.f32.mxu0 %v733
        %1735 = vmatmul.mubr.f32.gmra.mrb[0].mxu0 %v732
        %v1736 = vpop.f32.mrb[0].mxu0
        %v1737 = vadd.f32 %v1329, %v1736
        %v1738 = vpop.f32.mrb[0].mxu0
        %v1739 = vadd.f32 %v1333, %v1738
        %1740 = vmatprep.mubr.f32.mxu0 %v741
        %1741 = vmatmul.mubr.f32.gmra.mrb[0].mxu0 %v740
        %v1742 = vpop.f32.mrb[0].mxu0
        %v1743 = vadd.f32 %v1329, %v1742
        %v1744 = vpop.f32.mrb[0].mxu0
        %v1745 = vadd.f32 %v1333, %v1744
        %1746 = vmatprep.mubr.f32.mxu0 %v749
        %1747 = vmatmul.mubr.f32.gmra.mrb[0].mxu0 %v748
        %v1748 = vpop.f32.mrb[0].mxu0
        %v1749 = vadd.f32 %v1329, %v1748
        %v1750 = vpop.f32.mrb[0].mxu0
        %v1751 = vadd.f32 %v1333, %v1750
        %1752 = vmatprep.mubr.f32.mxu0 %v757
        %1753 = vmatmul.mubr.f32.gmra.mrb[0].mxu0 %v756
        %v1754 = vpop.f32.mrb[0].mxu0
        %v1755 = vadd.f32 %v1329, %v1754
        %v1756 = vpop.f32.mrb[0].mxu0
        %v1757 = vadd.f32 %v1333, %v1756
        %1758 = vmatprep.mubr.f32.mxu0 %v765
        %1759 = vmatmul.mubr.f32.gmra.mrb[0].mxu0 %v764
        %v1760 = vpop.f32.mrb[0].mxu0
        %v1761 = vadd.f32 %v1329, %v1760
        %v1762 = vpop.f32.mrb[0].mxu0
        %v1763 = vadd.f32 %v1333, %v1762
        %1764 = vmatprep.mubr.f32.mxu0 %v773
        %1765 = vmatmul.mubr.f32.gmra.mrb[0].mxu0 %v772
        %v1766 = vpop.f32.mrb[0].mxu0
        %v1767 = vadd.f32 %v1329, %v1766
        %v1768 = vpop.f32.mrb[0].mxu0
        %v1769 = vadd.f32 %v1333, %v1768
        %1770 = vmatprep.mubr.f32.mxu0 %v781
        %1771 = vmatmul.mubr.f32.gmra.mrb[0].mxu0 %v780
        %v1772 = vpop.f32.mrb[0].mxu0
        %v1773 = vadd.f32 %v1329, %v1772
        %v1774 = vpop.f32.mrb[0].mxu0
        %v1775 = vadd.f32 %v1333, %v1774
        %1776 = vmatprep.mubr.f32.mxu0 %v789
        %1777 = vmatmul.mubr.f32.gmra.mrb[0].mxu0 %v788
        %v1778 = vpop.f32.mrb[0].mxu0
        %v1779 = vadd.f32 %v1329, %v1778
        %v1780 = vpop.f32.mrb[0].mxu0
        %v1781 = vadd.f32 %v1333, %v1780
        %1782 = vmatprep.mubr.f32.mxu0 %v797
        %1783 = vmatmul.mubr.f32.gmra.mrb[0].mxu0 %v796
        %v1784 = vpop.f32.mrb[0].mxu0
        %v1785 = vadd.f32 %v1329, %v1784
        %v1786 = vpop.f32.mrb[0].mxu0
        %v1787 = vadd.f32 %v1333, %v1786
        %1788 = vmatprep.mubr.f32.mxu0 %v805
        %1789 = vmatmul.mubr.f32.gmra.mrb[0].mxu0 %v804
        %v1790 = vpop.f32.mrb[0].mxu0
        %v1791 = vadd.f32 %v1329, %v1790
        %v1792 = vpop.f32.mrb[0].mxu0
        %v1793 = vadd.f32 %v1333, %v1792
        %1794 = vdwg.mxu0
        %1795 = vmatprep.subr.mxu0 %v941
        %1796 = vmatpush1.msra.mxu0 %v940
        %1797 = vmatprep.subr.mxu0 %v945
        %1798 = vmatpush1.msra.mxu0 %v944
        %1799 = vmatprep.subr.mxu0 %v949
        %1800 = vmatpush1.msra.mxu0 %v948
        %1801 = vmatprep.subr.mxu0 %v953
        %1802 = vmatpush1.msra.mxu0 %v952
        %1803 = vmatprep.subr.mxu0 %v957
        %1804 = vmatpush1.msra.mxu0 %v956
        %1805 = vmatprep.subr.mxu0 %v961
        %1806 = vmatpush1.msra.mxu0 %v960
        %1807 = vmatprep.subr.mxu0 %v965
        %1808 = vmatpush1.msra.mxu0 %v964
        %1809 = vmatprep.subr.mxu0 %v969
        %1810 = vmatpush1.msra.mxu0 %v968
        %1811 = vmatprep.subr.mxu0 %v973
        %1812 = vmatpush1.msra.mxu0 %v972
        %1813 = vmatprep.subr.mxu0 %v977
        %1814 = vmatpush1.msra.mxu0 %v976
        %1815 = vmatprep.subr.mxu0 %v981
        %1816 = vmatpush1.msra.mxu0 %v980
        %1817 = vmatprep.subr.mxu0 %v985
        %1818 = vmatpush1.msra.mxu0 %v984
        %1819 = vmatprep.subr.mxu0 %v989
        %1820 = vmatpush1.msra.mxu0 %v988
        %1821 = vmatprep.subr.mxu0 %v993
        %1822 = vmatpush1.msra.mxu0 %v992
        %1823 = vmatprep.subr.mxu0 %v997
        %1824 = vmatpush1.msra.mxu0 %v996
        %1825 = vmatprep.subr.mxu0 %v1001
        %1826 = vmatpush1.msra.mxu0 %v1000
        %1827 = vmatprep.subr.mxu0 %v1005
        %1828 = vmatpush1.msra.mxu0 %v1004
        %1829 = vmatprep.subr.mxu0 %v1009
        %1830 = vmatpush1.msra.mxu0 %v1008
        %1831 = vmatprep.subr.mxu0 %v1013
        %1832 = vmatpush1.msra.mxu0 %v1012
        %1833 = vmatprep.subr.mxu0 %v1017
        %1834 = vmatpush1.msra.mxu0 %v1016
        %1835 = vmatprep.subr.mxu0 %v1021
        %1836 = vmatpush1.msra.mxu0 %v1020
        %1837 = vmatprep.subr.mxu0 %v1025
        %1838 = vmatpush1.msra.mxu0 %v1024
        %1839 = vmatprep.subr.mxu0 %v1029
        %1840 = vmatpush1.msra.mxu0 %v1028
        %1841 = vmatprep.subr.mxu0 %v1033
        %1842 = vmatpush1.msra.mxu0 %v1032
        %1843 = vmatprep.subr.mxu0 %v1037
        %1844 = vmatpush1.msra.mxu0 %v1036
        %1845 = vmatprep.subr.mxu0 %v1041
        %1846 = vmatpush1.msra.mxu0 %v1040
        %1847 = vmatprep.subr.mxu0 %v1045
        %1848 = vmatpush1.msra.mxu0 %v1044
        %1849 = vmatprep.subr.mxu0 %v1049
        %1850 = vmatpush1.msra.mxu0 %v1048
        %1851 = vmatprep.subr.mxu0 %v1053
        %1852 = vmatpush1.msra.mxu0 %v1052
        %1853 = vmatprep.subr.mxu0 %v1057
        %1854 = vmatpush1.msra.mxu0 %v1056
        %1855 = vmatprep.subr.mxu0 %v1061
        %1856 = vmatpush1.msra.mxu0 %v1060
        %1857 = vmatprep.subr.mxu0 %v1065
        %1858 = vmatpush1.msra.mxu0 %v1064
        %1859 = vmatprep.mubr.f32.mxu0 %v303
        %1860 = vmatmul.mubr.f32.gmra.mrb[0].mxu0 %v302
        %v1861 = vpop.f32.mrb[0].mxu0
        %v1862 = vadd.f32 %v1413, %v1861
        %v1863 = vpop.f32.mrb[0].mxu0
        %v1864 = vadd.f32 %v1415, %v1863
        %1865 = vmatprep.mubr.f32.mxu0 %v311
        %1866 = vmatmul.mubr.f32.gmra.mrb[0].mxu0 %v310
        %v1867 = vpop.f32.mrb[0].mxu0
        %v1868 = vadd.f32 %v1419, %v1867
        %v1869 = vpop.f32.mrb[0].mxu0
        %v1870 = vadd.f32 %v1421, %v1869
        %1871 = vmatprep.mubr.f32.mxu0 %v319
        %1872 = vmatmul.mubr.f32.gmra.mrb[0].mxu0 %v318
        %v1873 = vpop.f32.mrb[0].mxu0
        %v1874 = vadd.f32 %v1425, %v1873
        %v1875 = vpop.f32.mrb[0].mxu0
        %v1876 = vadd.f32 %v1427, %v1875
        %1877 = vmatprep.mubr.f32.mxu0 %v327
        %1878 = vmatmul.mubr.f32.gmra.mrb[0].mxu0 %v326
        %v1879 = vpop.f32.mrb[0].mxu0
        %v1880 = vadd.f32 %v1431, %v1879
        %v1881 = vpop.f32.mrb[0].mxu0
        %v1882 = vadd.f32 %v1433, %v1881
        %1883 = vmatprep.mubr.f32.mxu0 %v335
        %1884 = vmatmul.mubr.f32.gmra.mrb[0].mxu0 %v334
        %v1885 = vpop.f32.mrb[0].mxu0
        %v1886 = vadd.f32 %v1437, %v1885
        %v1887 = vpop.f32.mrb[0].mxu0
        %v1888 = vadd.f32 %v1439, %v1887
        %1889 = vmatprep.mubr.f32.mxu0 %v343
        %1890 = vmatmul.mubr.f32.gmra.mrb[0].mxu0 %v342
        %v1891 = vpop.f32.mrb[0].mxu0
        %v1892 = vadd.f32 %v1443, %v1891
        %v1893 = vpop.f32.mrb[0].mxu0
        %v1894 = vadd.f32 %v1445, %v1893
        %1895 = vmatprep.mubr.f32.mxu0 %v351
        %1896 = vmatmul.mubr.f32.gmra.mrb[0].mxu0 %v350
        %v1897 = vpop.f32.mrb[0].mxu0
        %v1898 = vadd.f32 %v1449, %v1897
        %v1899 = vpop.f32.mrb[0].mxu0
        %v1900 = vadd.f32 %v1451, %v1899
        %1901 = vmatprep.mubr.f32.mxu0 %v359
        %1902 = vmatmul.mubr.f32.gmra.mrb[0].mxu0 %v358
        %v1903 = vpop.f32.mrb[0].mxu0
        %v1904 = vadd.f32 %v1455, %v1903
        %v1905 = vpop.f32.mrb[0].mxu0
        %v1906 = vadd.f32 %v1457, %v1905
        %1907 = vmatprep.mubr.f32.mxu0 %v367
        %1908 = vmatmul.mubr.f32.gmra.mrb[0].mxu0 %v366
        %v1909 = vpop.f32.mrb[0].mxu0
        %v1910 = vadd.f32 %v1461, %v1909
        %v1911 = vpop.f32.mrb[0].mxu0
        %v1912 = vadd.f32 %v1463, %v1911
        %1913 = vmatprep.mubr.f32.mxu0 %v375
        %1914 = vmatmul.mubr.f32.gmra.mrb[0].mxu0 %v374
        %v1915 = vpop.f32.mrb[0].mxu0
        %v1916 = vadd.f32 %v1467, %v1915
        %v1917 = vpop.f32.mrb[0].mxu0
        %v1918 = vadd.f32 %v1469, %v1917
        %1919 = vmatprep.mubr.f32.mxu0 %v383
        %1920 = vmatmul.mubr.f32.gmra.mrb[0].mxu0 %v382
        %v1921 = vpop.f32.mrb[0].mxu0
        %v1922 = vadd.f32 %v1473, %v1921
        %v1923 = vpop.f32.mrb[0].mxu0
        %v1924 = vadd.f32 %v1475, %v1923
        %1925 = vmatprep.mubr.f32.mxu0 %v391
        %1926 = vmatmul.mubr.f32.gmra.mrb[0].mxu0 %v390
        %v1927 = vpop.f32.mrb[0].mxu0
        %v1928 = vadd.f32 %v1479, %v1927
        %v1929 = vpop.f32.mrb[0].mxu0
        %v1930 = vadd.f32 %v1481, %v1929
        %1931 = vmatprep.mubr.f32.mxu0 %v399
        %1932 = vmatmul.mubr.f32.gmra.mrb[0].mxu0 %v398
        %v1933 = vpop.f32.mrb[0].mxu0
        %v1934 = vadd.f32 %v1485, %v1933
        %v1935 = vpop.f32.mrb[0].mxu0
        %v1936 = vadd.f32 %v1487, %v1935
        %1937 = vmatprep.mubr.f32.mxu0 %v407
        %1938 = vmatmul.mubr.f32.gmra.mrb[0].mxu0 %v406
        %v1939 = vpop.f32.mrb[0].mxu0
        %v1940 = vadd.f32 %v1491, %v1939
        %v1941 = vpop.f32.mrb[0].mxu0
        %v1942 = vadd.f32 %v1493, %v1941
        %1943 = vmatprep.mubr.f32.mxu0 %v415
        %1944 = vmatmul.mubr.f32.gmra.mrb[0].mxu0 %v414
        %v1945 = vpop.f32.mrb[0].mxu0
        %v1946 = vadd.f32 %v1497, %v1945
        %v1947 = vpop.f32.mrb[0].mxu0
        %v1948 = vadd.f32 %v1499, %v1947
        %1949 = vmatprep.mubr.f32.mxu0 %v423
        %1950 = vmatmul.mubr.f32.gmra.mrb[0].mxu0 %v422
        %v1951 = vpop.f32.mrb[0].mxu0
        %v1952 = vadd.f32 %v1503, %v1951
        %v1953 = vpop.f32.mrb[0].mxu0
        %v1954 = vadd.f32 %v1505, %v1953
        %1955 = vmatprep.mubr.f32.mxu0 %v431
        %1956 = vmatmul.mubr.f32.gmra.mrb[0].mxu0 %v430
        %v1957 = vpop.f32.mrb[0].mxu0
        %v1958 = vadd.f32 %v1509, %v1957
        %v1959 = vpop.f32.mrb[0].mxu0
        %v1960 = vadd.f32 %v1511, %v1959
        %1961 = vmatprep.mubr.f32.mxu0 %v439
        %1962 = vmatmul.mubr.f32.gmra.mrb[0].mxu0 %v438
        %v1963 = vpop.f32.mrb[0].mxu0
        %v1964 = vadd.f32 %v1515, %v1963
        %v1965 = vpop.f32.mrb[0].mxu0
        %v1966 = vadd.f32 %v1517, %v1965
        %1967 = vmatprep.mubr.f32.mxu0 %v447
        %1968 = vmatmul.mubr.f32.gmra.mrb[0].mxu0 %v446
        %v1969 = vpop.f32.mrb[0].mxu0
        %v1970 = vadd.f32 %v1521, %v1969
        %v1971 = vpop.f32.mrb[0].mxu0
        %v1972 = vadd.f32 %v1523, %v1971
        %1973 = vmatprep.mubr.f32.mxu0 %v455
        %1974 = vmatmul.mubr.f32.gmra.mrb[0].mxu0 %v454
        %v1975 = vpop.f32.mrb[0].mxu0
        %v1976 = vadd.f32 %v1527, %v1975
        %v1977 = vpop.f32.mrb[0].mxu0
        %v1978 = vadd.f32 %v1529, %v1977
        %1979 = vmatprep.mubr.f32.mxu0 %v463
        %1980 = vmatmul.mubr.f32.gmra.mrb[0].mxu0 %v462
        %v1981 = vpop.f32.mrb[0].mxu0
        %v1982 = vadd.f32 %v1533, %v1981
        %v1983 = vpop.f32.mrb[0].mxu0
        %v1984 = vadd.f32 %v1535, %v1983
        %1985 = vmatprep.mubr.f32.mxu0 %v471
        %1986 = vmatmul.mubr.f32.gmra.mrb[0].mxu0 %v470
        %v1987 = vpop.f32.mrb[0].mxu0
        %v1988 = vadd.f32 %v1539, %v1987
        %v1989 = vpop.f32.mrb[0].mxu0
        %v1990 = vadd.f32 %v1541, %v1989
        %1991 = vmatprep.mubr.f32.mxu0 %v479
        %1992 = vmatmul.mubr.f32.gmra.mrb[0].mxu0 %v478
        %v1993 = vpop.f32.mrb[0].mxu0
        %v1994 = vadd.f32 %v1545, %v1993
        %v1995 = vpop.f32.mrb[0].mxu0
        %v1996 = vadd.f32 %v1547, %v1995
        %1997 = vmatprep.mubr.f32.mxu0 %v487
        %1998 = vmatmul.mubr.f32.gmra.mrb[0].mxu0 %v486
        %v1999 = vpop.f32.mrb[0].mxu0
        %v2000 = vadd.f32 %v1551, %v1999
        %v2001 = vpop.f32.mrb[0].mxu0
        %v2002 = vadd.f32 %v1553, %v2001
        %2003 = vmatprep.mubr.f32.mxu0 %v495
        %2004 = vmatmul.mubr.f32.gmra.mrb[0].mxu0 %v494
        %v2005 = vpop.f32.mrb[0].mxu0
        %v2006 = vadd.f32 %v1557, %v2005
        %v2007 = vpop.f32.mrb[0].mxu0
        %v2008 = vadd.f32 %v1559, %v2007
        %2009 = vmatprep.mubr.f32.mxu0 %v503
        %2010 = vmatmul.mubr.f32.gmra.mrb[0].mxu0 %v502
        %v2011 = vpop.f32.mrb[0].mxu0
        %v2012 = vadd.f32 %v1563, %v2011
        %v2013 = vpop.f32.mrb[0].mxu0
        %v2014 = vadd.f32 %v1565, %v2013
        %2015 = vmatprep.mubr.f32.mxu0 %v511
        %2016 = vmatmul.mubr.f32.gmra.mrb[0].mxu0 %v510
        %v2017 = vpop.f32.mrb[0].mxu0
        %v2018 = vadd.f32 %v1569, %v2017
        %v2019 = vpop.f32.mrb[0].mxu0
        %v2020 = vadd.f32 %v1571, %v2019
        %2021 = vmatprep.mubr.f32.mxu0 %v519
        %2022 = vmatmul.mubr.f32.gmra.mrb[0].mxu0 %v518
        %v2023 = vpop.f32.mrb[0].mxu0
        %v2024 = vadd.f32 %v1575, %v2023
        %v2025 = vpop.f32.mrb[0].mxu0
        %v2026 = vadd.f32 %v1577, %v2025
        %2027 = vmatprep.mubr.f32.mxu0 %v527
        %2028 = vmatmul.mubr.f32.gmra.mrb[0].mxu0 %v526
        %v2029 = vpop.f32.mrb[0].mxu0
        %v2030 = vadd.f32 %v1581, %v2029
        %v2031 = vpop.f32.mrb[0].mxu0
        %v2032 = vadd.f32 %v1583, %v2031
        %2033 = vmatprep.mubr.f32.mxu0 %v535
        %2034 = vmatmul.mubr.f32.gmra.mrb[0].mxu0 %v534
        %v2035 = vpop.f32.mrb[0].mxu0
        %v2036 = vadd.f32 %v1587, %v2035
        %v2037 = vpop.f32.mrb[0].mxu0
        %v2038 = vadd.f32 %v1589, %v2037
        %2039 = vmatprep.mubr.f32.mxu0 %v543
        %2040 = vmatmul.mubr.f32.gmra.mrb[0].mxu0 %v542
        %v2041 = vpop.f32.mrb[0].mxu0
        %v2042 = vadd.f32 %v1593, %v2041
        %v2043 = vpop.f32.mrb[0].mxu0
        %v2044 = vadd.f32 %v1595, %v2043
        %2045 = vmatprep.mubr.f32.mxu0 %v551
        %2046 = vmatmul.mubr.f32.gmra.mrb[0].mxu0 %v550
        %v2047 = vpop.f32.mrb[0].mxu0
        %v2048 = vadd.f32 %v1599, %v2047
        %v2049 = vpop.f32.mrb[0].mxu0
        %v2050 = vadd.f32 %v1601, %v2049
        %2051 = vmatprep.mubr.f32.mxu0 %v559
        %2052 = vmatmul.mubr.f32.gmra.mrb[0].mxu0 %v558
        %v2053 = vpop.f32.mrb[0].mxu0
        %v2054 = vadd.f32 %v1605, %v2053
        %v2055 = vpop.f32.mrb[0].mxu0
        %v2056 = vadd.f32 %v1607, %v2055
        %2057 = vmatprep.mubr.f32.mxu0 %v567
        %2058 = vmatmul.mubr.f32.gmra.mrb[0].mxu0 %v566
        %v2059 = vpop.f32.mrb[0].mxu0
        %v2060 = vadd.f32 %v1611, %v2059
        %v2061 = vpop.f32.mrb[0].mxu0
        %v2062 = vadd.f32 %v1613, %v2061
        %2063 = vmatprep.mubr.f32.mxu0 %v575
        %2064 = vmatmul.mubr.f32.gmra.mrb[0].mxu0 %v574
        %v2065 = vpop.f32.mrb[0].mxu0
        %v2066 = vadd.f32 %v1617, %v2065
        %v2067 = vpop.f32.mrb[0].mxu0
        %v2068 = vadd.f32 %v1619, %v2067
        %2069 = vmatprep.mubr.f32.mxu0 %v583
        %2070 = vmatmul.mubr.f32.gmra.mrb[0].mxu0 %v582
        %v2071 = vpop.f32.mrb[0].mxu0
        %v2072 = vadd.f32 %v1623, %v2071
        %v2073 = vpop.f32.mrb[0].mxu0
        %v2074 = vadd.f32 %v1625, %v2073
        %2075 = vmatprep.mubr.f32.mxu0 %v591
        %2076 = vmatmul.mubr.f32.gmra.mrb[0].mxu0 %v590
        %v2077 = vpop.f32.mrb[0].mxu0
        %v2078 = vadd.f32 %v1629, %v2077
        %v2079 = vpop.f32.mrb[0].mxu0
        %v2080 = vadd.f32 %v1631, %v2079
        %2081 = vmatprep.mubr.f32.mxu0 %v599
        %2082 = vmatmul.mubr.f32.gmra.mrb[0].mxu0 %v598
        %v2083 = vpop.f32.mrb[0].mxu0
        %v2084 = vadd.f32 %v1635, %v2083
        %v2085 = vpop.f32.mrb[0].mxu0
        %v2086 = vadd.f32 %v1637, %v2085
        %2087 = vmatprep.mubr.f32.mxu0 %v607
        %2088 = vmatmul.mubr.f32.gmra.mrb[0].mxu0 %v606
        %v2089 = vpop.f32.mrb[0].mxu0
        %v2090 = vadd.f32 %v1641, %v2089
        %v2091 = vpop.f32.mrb[0].mxu0
        %v2092 = vadd.f32 %v1643, %v2091
        %2093 = vmatprep.mubr.f32.mxu0 %v615
        %2094 = vmatmul.mubr.f32.gmra.mrb[0].mxu0 %v614
        %v2095 = vpop.f32.mrb[0].mxu0
        %v2096 = vadd.f32 %v1647, %v2095
        %v2097 = vpop.f32.mrb[0].mxu0
        %v2098 = vadd.f32 %v1649, %v2097
        %2099 = vmatprep.mubr.f32.mxu0 %v623
        %2100 = vmatmul.mubr.f32.gmra.mrb[0].mxu0 %v622
        %v2101 = vpop.f32.mrb[0].mxu0
        %v2102 = vadd.f32 %v1653, %v2101
        %v2103 = vpop.f32.mrb[0].mxu0
        %v2104 = vadd.f32 %v1655, %v2103
        %2105 = vmatprep.mubr.f32.mxu0 %v631
        %2106 = vmatmul.mubr.f32.gmra.mrb[0].mxu0 %v630
        %v2107 = vpop.f32.mrb[0].mxu0
        %v2108 = vadd.f32 %v1659, %v2107
        %v2109 = vpop.f32.mrb[0].mxu0
        %v2110 = vadd.f32 %v1661, %v2109
        %2111 = vmatprep.mubr.f32.mxu0 %v639
        %2112 = vmatmul.mubr.f32.gmra.mrb[0].mxu0 %v638
        %v2113 = vpop.f32.mrb[0].mxu0
        %v2114 = vadd.f32 %v1665, %v2113
        %v2115 = vpop.f32.mrb[0].mxu0
        %v2116 = vadd.f32 %v1667, %v2115
        %2117 = vmatprep.mubr.f32.mxu0 %v647
        %2118 = vmatmul.mubr.f32.gmra.mrb[0].mxu0 %v646
        %v2119 = vpop.f32.mrb[0].mxu0
        %v2120 = vadd.f32 %v1671, %v2119
        %v2121 = vpop.f32.mrb[0].mxu0
        %v2122 = vadd.f32 %v1673, %v2121
        %2123 = vmatprep.mubr.f32.mxu0 %v655
        %2124 = vmatmul.mubr.f32.gmra.mrb[0].mxu0 %v654
        %v2125 = vpop.f32.mrb[0].mxu0
        %v2126 = vadd.f32 %v1677, %v2125
        %v2127 = vpop.f32.mrb[0].mxu0
        %v2128 = vadd.f32 %v1679, %v2127
        %2129 = vmatprep.mubr.f32.mxu0 %v663
        %2130 = vmatmul.mubr.f32.gmra.mrb[0].mxu0 %v662
        %v2131 = vpop.f32.mrb[0].mxu0
        %v2132 = vadd.f32 %v1683, %v2131
        %v2133 = vpop.f32.mrb[0].mxu0
        %v2134 = vadd.f32 %v1685, %v2133
        %2135 = vmatprep.mubr.f32.mxu0 %v671
        %2136 = vmatmul.mubr.f32.gmra.mrb[0].mxu0 %v670
        %v2137 = vpop.f32.mrb[0].mxu0
        %v2138 = vadd.f32 %v1689, %v2137
        %v2139 = vpop.f32.mrb[0].mxu0
        %v2140 = vadd.f32 %v1691, %v2139
        %2141 = vmatprep.mubr.f32.mxu0 %v679
        %2142 = vmatmul.mubr.f32.gmra.mrb[0].mxu0 %v678
        %v2143 = vpop.f32.mrb[0].mxu0
        %v2144 = vadd.f32 %v1695, %v2143
        %v2145 = vpop.f32.mrb[0].mxu0
        %v2146 = vadd.f32 %v1697, %v2145
        %2147 = vmatprep.mubr.f32.mxu0 %v687
        %2148 = vmatmul.mubr.f32.gmra.mrb[0].mxu0 %v686
        %v2149 = vpop.f32.mrb[0].mxu0
        %v2150 = vadd.f32 %v1701, %v2149
        %v2151 = vpop.f32.mrb[0].mxu0
        %v2152 = vadd.f32 %v1703, %v2151
        %2153 = vmatprep.mubr.f32.mxu0 %v695
        %2154 = vmatmul.mubr.f32.gmra.mrb[0].mxu0 %v694
        %v2155 = vpop.f32.mrb[0].mxu0
        %v2156 = vadd.f32 %v1707, %v2155
        %v2157 = vpop.f32.mrb[0].mxu0
        %v2158 = vadd.f32 %v1709, %v2157
        %2159 = vmatprep.mubr.f32.mxu0 %v703
        %2160 = vmatmul.mubr.f32.gmra.mrb[0].mxu0 %v702
        %v2161 = vpop.f32.mrb[0].mxu0
        %v2162 = vadd.f32 %v1713, %v2161
        %v2163 = vpop.f32.mrb[0].mxu0
        %v2164 = vadd.f32 %v1715, %v2163
        %2165 = vmatprep.mubr.f32.mxu0 %v711
        %2166 = vmatmul.mubr.f32.gmra.mrb[0].mxu0 %v710
        %v2167 = vpop.f32.mrb[0].mxu0
        %v2168 = vadd.f32 %v1719, %v2167
        %v2169 = vpop.f32.mrb[0].mxu0
        %v2170 = vadd.f32 %v1721, %v2169
        %2171 = vmatprep.mubr.f32.mxu0 %v719
        %2172 = vmatmul.mubr.f32.gmra.mrb[0].mxu0 %v718
        %v2173 = vpop.f32.mrb[0].mxu0
        %v2174 = vadd.f32 %v1725, %v2173
        %v2175 = vpop.f32.mrb[0].mxu0
        %v2176 = vadd.f32 %v1727, %v2175
        %2177 = vmatprep.mubr.f32.mxu0 %v727
        %2178 = vmatmul.mubr.f32.gmra.mrb[0].mxu0 %v726
        %v2179 = vpop.f32.mrb[0].mxu0
        %v2180 = vadd.f32 %v1731, %v2179
        %v2181 = vpop.f32.mrb[0].mxu0
        %v2182 = vadd.f32 %v1733, %v2181
        %2183 = vmatprep.mubr.f32.mxu0 %v735
        %2184 = vmatmul.mubr.f32.gmra.mrb[0].mxu0 %v734
        %v2185 = vpop.f32.mrb[0].mxu0
        %v2186 = vadd.f32 %v1737, %v2185
        %v2187 = vpop.f32.mrb[0].mxu0
        %v2188 = vadd.f32 %v1739, %v2187
        %2189 = vmatprep.mubr.f32.mxu0 %v743
        %2190 = vmatmul.mubr.f32.gmra.mrb[0].mxu0 %v742
        %v2191 = vpop.f32.mrb[0].mxu0
        %v2192 = vadd.f32 %v1743, %v2191
        %v2193 = vpop.f32.mrb[0].mxu0
        %v2194 = vadd.f32 %v1745, %v2193
        %2195 = vmatprep.mubr.f32.mxu0 %v751
        %2196 = vmatmul.mubr.f32.gmra.mrb[0].mxu0 %v750
        %v2197 = vpop.f32.mrb[0].mxu0
        %v2198 = vadd.f32 %v1749, %v2197
        %v2199 = vpop.f32.mrb[0].mxu0
        %v2200 = vadd.f32 %v1751, %v2199
        %2201 = vmatprep.mubr.f32.mxu0 %v759
        %2202 = vmatmul.mubr.f32.gmra.mrb[0].mxu0 %v758
        %v2203 = vpop.f32.mrb[0].mxu0
        %v2204 = vadd.f32 %v1755, %v2203
        %v2205 = vpop.f32.mrb[0].mxu0
        %v2206 = vadd.f32 %v1757, %v2205
        %2207 = vmatprep.mubr.f32.mxu0 %v767
        %2208 = vmatmul.mubr.f32.gmra.mrb[0].mxu0 %v766
        %v2209 = vpop.f32.mrb[0].mxu0
        %v2210 = vadd.f32 %v1761, %v2209
        %v2211 = vpop.f32.mrb[0].mxu0
        %v2212 = vadd.f32 %v1763, %v2211
        %2213 = vmatprep.mubr.f32.mxu0 %v775
        %2214 = vmatmul.mubr.f32.gmra.mrb[0].mxu0 %v774
        %v2215 = vpop.f32.mrb[0].mxu0
        %v2216 = vadd.f32 %v1767, %v2215
        %v2217 = vpop.f32.mrb[0].mxu0
        %v2218 = vadd.f32 %v1769, %v2217
        %2219 = vmatprep.mubr.f32.mxu0 %v783
        %2220 = vmatmul.mubr.f32.gmra.mrb[0].mxu0 %v782
        %v2221 = vpop.f32.mrb[0].mxu0
        %v2222 = vadd.f32 %v1773, %v2221
        %v2223 = vpop.f32.mrb[0].mxu0
        %v2224 = vadd.f32 %v1775, %v2223
        %2225 = vmatprep.mubr.f32.mxu0 %v791
        %2226 = vmatmul.mubr.f32.gmra.mrb[0].mxu0 %v790
        %v2227 = vpop.f32.mrb[0].mxu0
        %v2228 = vadd.f32 %v1779, %v2227
        %v2229 = vpop.f32.mrb[0].mxu0
        %v2230 = vadd.f32 %v1781, %v2229
        %2231 = vmatprep.mubr.f32.mxu0 %v799
        %2232 = vmatmul.mubr.f32.gmra.mrb[0].mxu0 %v798
        %v2233 = vpop.f32.mrb[0].mxu0
        %v2234 = vadd.f32 %v1785, %v2233
        %v2235 = vpop.f32.mrb[0].mxu0
        %v2236 = vadd.f32 %v1787, %v2235
        %2237 = vmatprep.mubr.f32.mxu0 %v807
        %2238 = vmatmul.mubr.f32.gmra.mrb[0].mxu0 %v806
        %v2239 = vpop.f32.mrb[0].mxu0
        %v2240 = vadd.f32 %v1791, %v2239
        %v2241 = vpop.f32.mrb[0].mxu0
        %v2242 = vadd.f32 %v1793, %v2241
        %2243 = vdwg.mxu0
        %2244 = vmatprep.subr.mxu0 %v1069
        %2245 = vmatpush1.msra.mxu0 %v1068
        %2246 = vmatprep.subr.mxu0 %v1073
        %2247 = vmatpush1.msra.mxu0 %v1072
        %2248 = vmatprep.subr.mxu0 %v1077
        %2249 = vmatpush1.msra.mxu0 %v1076
        %2250 = vmatprep.subr.mxu0 %v1081
        %2251 = vmatpush1.msra.mxu0 %v1080
        %2252 = vmatprep.subr.mxu0 %v1085
        %2253 = vmatpush1.msra.mxu0 %v1084
        %2254 = vmatprep.subr.mxu0 %v1089
        %2255 = vmatpush1.msra.mxu0 %v1088
        %2256 = vmatprep.subr.mxu0 %v1093
        %2257 = vmatpush1.msra.mxu0 %v1092
        %2258 = vmatprep.subr.mxu0 %v1097
        %2259 = vmatpush1.msra.mxu0 %v1096
        %2260 = vmatprep.subr.mxu0 %v1101
        %2261 = vmatpush1.msra.mxu0 %v1100
        %2262 = vmatprep.subr.mxu0 %v1105
        %2263 = vmatpush1.msra.mxu0 %v1104
        %2264 = vmatprep.subr.mxu0 %v1109
        %2265 = vmatpush1.msra.mxu0 %v1108
        %2266 = vmatprep.subr.mxu0 %v1113
        %2267 = vmatpush1.msra.mxu0 %v1112
        %2268 = vmatprep.subr.mxu0 %v1117
        %2269 = vmatpush1.msra.mxu0 %v1116
        %2270 = vmatprep.subr.mxu0 %v1121
        %2271 = vmatpush1.msra.mxu0 %v1120
        %2272 = vmatprep.subr.mxu0 %v1125
        %2273 = vmatpush1.msra.mxu0 %v1124
        %2274 = vmatprep.subr.mxu0 %v1129
        %2275 = vmatpush1.msra.mxu0 %v1128
        %2276 = vmatprep.subr.mxu0 %v1133
        %2277 = vmatpush1.msra.mxu0 %v1132
        %2278 = vmatprep.subr.mxu0 %v1137
        %2279 = vmatpush1.msra.mxu0 %v1136
        %2280 = vmatprep.subr.mxu0 %v1141
        %2281 = vmatpush1.msra.mxu0 %v1140
        %2282 = vmatprep.subr.mxu0 %v1145
        %2283 = vmatpush1.msra.mxu0 %v1144
        %2284 = vmatprep.subr.mxu0 %v1149
        %2285 = vmatpush1.msra.mxu0 %v1148
        %2286 = vmatprep.subr.mxu0 %v1153
        %2287 = vmatpush1.msra.mxu0 %v1152
        %2288 = vmatprep.subr.mxu0 %v1157
        %2289 = vmatpush1.msra.mxu0 %v1156
        %2290 = vmatprep.subr.mxu0 %v1161
        %2291 = vmatpush1.msra.mxu0 %v1160
        %2292 = vmatprep.subr.mxu0 %v1165
        %2293 = vmatpush1.msra.mxu0 %v1164
        %2294 = vmatprep.subr.mxu0 %v1169
        %2295 = vmatpush1.msra.mxu0 %v1168
        %2296 = vmatprep.subr.mxu0 %v1173
        %2297 = vmatpush1.msra.mxu0 %v1172
        %2298 = vmatprep.subr.mxu0 %v1177
        %2299 = vmatpush1.msra.mxu0 %v1176
        %2300 = vmatprep.subr.mxu0 %v1181
        %2301 = vmatpush1.msra.mxu0 %v1180
        %2302 = vmatprep.subr.mxu0 %v1185
        %2303 = vmatpush1.msra.mxu0 %v1184
        %2304 = vmatprep.subr.mxu0 %v1189
        %2305 = vmatpush1.msra.mxu0 %v1188
        %2306 = vmatprep.subr.mxu0 %v1193
        %2307 = vmatpush1.msra.mxu0 %v1192
        %2308 = vmatprep.mubr.f32.mxu0 %v305
        %2309 = vmatmul.mubr.f32.gmra.mrb[0].mxu0 %v304
        %v2310 = vpop.f32.mrb[0].mxu0
        %v2311 = vadd.f32 %v1862, %v2310
        %v2312 = vpop.f32.mrb[0].mxu0
        %v2313 = vadd.f32 %v1864, %v2312
        %2314 = vmatprep.mubr.f32.mxu0 %v313
        %2315 = vmatmul.mubr.f32.gmra.mrb[0].mxu0 %v312
        %v2316 = vpop.f32.mrb[0].mxu0
        %v2317 = vadd.f32 %v1868, %v2316
        %v2318 = vpop.f32.mrb[0].mxu0
        %v2319 = vadd.f32 %v1870, %v2318
        %2320 = vmatprep.mubr.f32.mxu0 %v321
        %2321 = vmatmul.mubr.f32.gmra.mrb[0].mxu0 %v320
        %v2322 = vpop.f32.mrb[0].mxu0
        %v2323 = vadd.f32 %v1874, %v2322
        %v2324 = vpop.f32.mrb[0].mxu0
        %v2325 = vadd.f32 %v1876, %v2324
        %2326 = vmatprep.mubr.f32.mxu0 %v329
        %2327 = vmatmul.mubr.f32.gmra.mrb[0].mxu0 %v328
        %v2328 = vpop.f32.mrb[0].mxu0
        %v2329 = vadd.f32 %v1880, %v2328
        %v2330 = vpop.f32.mrb[0].mxu0
        %v2331 = vadd.f32 %v1882, %v2330
        %2332 = vmatprep.mubr.f32.mxu0 %v337
        %2333 = vmatmul.mubr.f32.gmra.mrb[0].mxu0 %v336
        %v2334 = vpop.f32.mrb[0].mxu0
        %v2335 = vadd.f32 %v1886, %v2334
        %v2336 = vpop.f32.mrb[0].mxu0
        %v2337 = vadd.f32 %v1888, %v2336
        %2338 = vmatprep.mubr.f32.mxu0 %v345
        %2339 = vmatmul.mubr.f32.gmra.mrb[0].mxu0 %v344
        %v2340 = vpop.f32.mrb[0].mxu0
        %v2341 = vadd.f32 %v1892, %v2340
        %v2342 = vpop.f32.mrb[0].mxu0
        %v2343 = vadd.f32 %v1894, %v2342
        %2344 = vmatprep.mubr.f32.mxu0 %v353
        %2345 = vmatmul.mubr.f32.gmra.mrb[0].mxu0 %v352
        %v2346 = vpop.f32.mrb[0].mxu0
        %v2347 = vadd.f32 %v1898, %v2346
        %v2348 = vpop.f32.mrb[0].mxu0
        %v2349 = vadd.f32 %v1900, %v2348
        %2350 = vmatprep.mubr.f32.mxu0 %v361
        %2351 = vmatmul.mubr.f32.gmra.mrb[0].mxu0 %v360
        %v2352 = vpop.f32.mrb[0].mxu0
        %v2353 = vadd.f32 %v1904, %v2352
        %v2354 = vpop.f32.mrb[0].mxu0
        %v2355 = vadd.f32 %v1906, %v2354
        %2356 = vmatprep.mubr.f32.mxu0 %v369
        %2357 = vmatmul.mubr.f32.gmra.mrb[0].mxu0 %v368
        %v2358 = vpop.f32.mrb[0].mxu0
        %v2359 = vadd.f32 %v1910, %v2358
        %v2360 = vpop.f32.mrb[0].mxu0
        %v2361 = vadd.f32 %v1912, %v2360
        %2362 = vmatprep.mubr.f32.mxu0 %v377
        %2363 = vmatmul.mubr.f32.gmra.mrb[0].mxu0 %v376
        %v2364 = vpop.f32.mrb[0].mxu0
        %v2365 = vadd.f32 %v1916, %v2364
        %v2366 = vpop.f32.mrb[0].mxu0
        %v2367 = vadd.f32 %v1918, %v2366
        %2368 = vmatprep.mubr.f32.mxu0 %v385
        %2369 = vmatmul.mubr.f32.gmra.mrb[0].mxu0 %v384
        %v2370 = vpop.f32.mrb[0].mxu0
        %v2371 = vadd.f32 %v1922, %v2370
        %v2372 = vpop.f32.mrb[0].mxu0
        %v2373 = vadd.f32 %v1924, %v2372
        %2374 = vmatprep.mubr.f32.mxu0 %v393
        %2375 = vmatmul.mubr.f32.gmra.mrb[0].mxu0 %v392
        %v2376 = vpop.f32.mrb[0].mxu0
        %v2377 = vadd.f32 %v1928, %v2376
        %v2378 = vpop.f32.mrb[0].mxu0
        %v2379 = vadd.f32 %v1930, %v2378
        %2380 = vmatprep.mubr.f32.mxu0 %v401
        %2381 = vmatmul.mubr.f32.gmra.mrb[0].mxu0 %v400
        %v2382 = vpop.f32.mrb[0].mxu0
        %v2383 = vadd.f32 %v1934, %v2382
        %v2384 = vpop.f32.mrb[0].mxu0
        %v2385 = vadd.f32 %v1936, %v2384
        %2386 = vmatprep.mubr.f32.mxu0 %v409
        %2387 = vmatmul.mubr.f32.gmra.mrb[0].mxu0 %v408
        %v2388 = vpop.f32.mrb[0].mxu0
        %v2389 = vadd.f32 %v1940, %v2388
        %v2390 = vpop.f32.mrb[0].mxu0
        %v2391 = vadd.f32 %v1942, %v2390
        %2392 = vmatprep.mubr.f32.mxu0 %v417
        %2393 = vmatmul.mubr.f32.gmra.mrb[0].mxu0 %v416
        %v2394 = vpop.f32.mrb[0].mxu0
        %v2395 = vadd.f32 %v1946, %v2394
        %v2396 = vpop.f32.mrb[0].mxu0
        %v2397 = vadd.f32 %v1948, %v2396
        %2398 = vmatprep.mubr.f32.mxu0 %v425
        %2399 = vmatmul.mubr.f32.gmra.mrb[0].mxu0 %v424
        %v2400 = vpop.f32.mrb[0].mxu0
        %v2401 = vadd.f32 %v1952, %v2400
        %v2402 = vpop.f32.mrb[0].mxu0
        %v2403 = vadd.f32 %v1954, %v2402
        %2404 = vmatprep.mubr.f32.mxu0 %v433
        %2405 = vmatmul.mubr.f32.gmra.mrb[0].mxu0 %v432
        %v2406 = vpop.f32.mrb[0].mxu0
        %v2407 = vadd.f32 %v1958, %v2406
        %v2408 = vpop.f32.mrb[0].mxu0
        %v2409 = vadd.f32 %v1960, %v2408
        %2410 = vmatprep.mubr.f32.mxu0 %v441
        %2411 = vmatmul.mubr.f32.gmra.mrb[0].mxu0 %v440
        %v2412 = vpop.f32.mrb[0].mxu0
        %v2413 = vadd.f32 %v1964, %v2412
        %v2414 = vpop.f32.mrb[0].mxu0
        %v2415 = vadd.f32 %v1966, %v2414
        %2416 = vmatprep.mubr.f32.mxu0 %v449
        %2417 = vmatmul.mubr.f32.gmra.mrb[0].mxu0 %v448
        %v2418 = vpop.f32.mrb[0].mxu0
        %v2419 = vadd.f32 %v1970, %v2418
        %v2420 = vpop.f32.mrb[0].mxu0
        %v2421 = vadd.f32 %v1972, %v2420
        %2422 = vmatprep.mubr.f32.mxu0 %v457
        %2423 = vmatmul.mubr.f32.gmra.mrb[0].mxu0 %v456
        %v2424 = vpop.f32.mrb[0].mxu0
        %v2425 = vadd.f32 %v1976, %v2424
        %v2426 = vpop.f32.mrb[0].mxu0
        %v2427 = vadd.f32 %v1978, %v2426
        %2428 = vmatprep.mubr.f32.mxu0 %v465
        %2429 = vmatmul.mubr.f32.gmra.mrb[0].mxu0 %v464
        %v2430 = vpop.f32.mrb[0].mxu0
        %v2431 = vadd.f32 %v1982, %v2430
        %v2432 = vpop.f32.mrb[0].mxu0
        %v2433 = vadd.f32 %v1984, %v2432
        %2434 = vmatprep.mubr.f32.mxu0 %v473
        %2435 = vmatmul.mubr.f32.gmra.mrb[0].mxu0 %v472
        %v2436 = vpop.f32.mrb[0].mxu0
        %v2437 = vadd.f32 %v1988, %v2436
        %v2438 = vpop.f32.mrb[0].mxu0
        %v2439 = vadd.f32 %v1990, %v2438
        %2440 = vmatprep.mubr.f32.mxu0 %v481
        %2441 = vmatmul.mubr.f32.gmra.mrb[0].mxu0 %v480
        %v2442 = vpop.f32.mrb[0].mxu0
        %v2443 = vadd.f32 %v1994, %v2442
        %v2444 = vpop.f32.mrb[0].mxu0
        %v2445 = vadd.f32 %v1996, %v2444
        %2446 = vmatprep.mubr.f32.mxu0 %v489
        %2447 = vmatmul.mubr.f32.gmra.mrb[0].mxu0 %v488
        %v2448 = vpop.f32.mrb[0].mxu0
        %v2449 = vadd.f32 %v2000, %v2448
        %v2450 = vpop.f32.mrb[0].mxu0
        %v2451 = vadd.f32 %v2002, %v2450
        %2452 = vmatprep.mubr.f32.mxu0 %v497
        %2453 = vmatmul.mubr.f32.gmra.mrb[0].mxu0 %v496
        %v2454 = vpop.f32.mrb[0].mxu0
        %v2455 = vadd.f32 %v2006, %v2454
        %v2456 = vpop.f32.mrb[0].mxu0
        %v2457 = vadd.f32 %v2008, %v2456
        %2458 = vmatprep.mubr.f32.mxu0 %v505
        %2459 = vmatmul.mubr.f32.gmra.mrb[0].mxu0 %v504
        %v2460 = vpop.f32.mrb[0].mxu0
        %v2461 = vadd.f32 %v2012, %v2460
        %v2462 = vpop.f32.mrb[0].mxu0
        %v2463 = vadd.f32 %v2014, %v2462
        %2464 = vmatprep.mubr.f32.mxu0 %v513
        %2465 = vmatmul.mubr.f32.gmra.mrb[0].mxu0 %v512
        %v2466 = vpop.f32.mrb[0].mxu0
        %v2467 = vadd.f32 %v2018, %v2466
        %v2468 = vpop.f32.mrb[0].mxu0
        %v2469 = vadd.f32 %v2020, %v2468
        %2470 = vmatprep.mubr.f32.mxu0 %v521
        %2471 = vmatmul.mubr.f32.gmra.mrb[0].mxu0 %v520
        %v2472 = vpop.f32.mrb[0].mxu0
        %v2473 = vadd.f32 %v2024, %v2472
        %v2474 = vpop.f32.mrb[0].mxu0
        %v2475 = vadd.f32 %v2026, %v2474
        %2476 = vmatprep.mubr.f32.mxu0 %v529
        %2477 = vmatmul.mubr.f32.gmra.mrb[0].mxu0 %v528
        %v2478 = vpop.f32.mrb[0].mxu0
        %v2479 = vadd.f32 %v2030, %v2478
        %v2480 = vpop.f32.mrb[0].mxu0
        %v2481 = vadd.f32 %v2032, %v2480
        %2482 = vmatprep.mubr.f32.mxu0 %v537
        %2483 = vmatmul.mubr.f32.gmra.mrb[0].mxu0 %v536
        %v2484 = vpop.f32.mrb[0].mxu0
        %v2485 = vadd.f32 %v2036, %v2484
        %v2486 = vpop.f32.mrb[0].mxu0
        %v2487 = vadd.f32 %v2038, %v2486
        %2488 = vmatprep.mubr.f32.mxu0 %v545
        %2489 = vmatmul.mubr.f32.gmra.mrb[0].mxu0 %v544
        %v2490 = vpop.f32.mrb[0].mxu0
        %v2491 = vadd.f32 %v2042, %v2490
        %v2492 = vpop.f32.mrb[0].mxu0
        %v2493 = vadd.f32 %v2044, %v2492
        %2494 = vmatprep.mubr.f32.mxu0 %v553
        %2495 = vmatmul.mubr.f32.gmra.mrb[0].mxu0 %v552
        %v2496 = vpop.f32.mrb[0].mxu0
        %v2497 = vadd.f32 %v2048, %v2496
        %v2498 = vpop.f32.mrb[0].mxu0
        %v2499 = vadd.f32 %v2050, %v2498
        %2500 = vmatprep.mubr.f32.mxu0 %v561
        %2501 = vmatmul.mubr.f32.gmra.mrb[0].mxu0 %v560
        %v2502 = vpop.f32.mrb[0].mxu0
        %v2503 = vadd.f32 %v2054, %v2502
        %v2504 = vpop.f32.mrb[0].mxu0
        %v2505 = vadd.f32 %v2056, %v2504
        %2506 = vmatprep.mubr.f32.mxu0 %v569
        %2507 = vmatmul.mubr.f32.gmra.mrb[0].mxu0 %v568
        %v2508 = vpop.f32.mrb[0].mxu0
        %v2509 = vadd.f32 %v2060, %v2508
        %v2510 = vpop.f32.mrb[0].mxu0
        %v2511 = vadd.f32 %v2062, %v2510
        %2512 = vmatprep.mubr.f32.mxu0 %v577
        %2513 = vmatmul.mubr.f32.gmra.mrb[0].mxu0 %v576
        %v2514 = vpop.f32.mrb[0].mxu0
        %v2515 = vadd.f32 %v2066, %v2514
        %v2516 = vpop.f32.mrb[0].mxu0
        %v2517 = vadd.f32 %v2068, %v2516
        %2518 = vmatprep.mubr.f32.mxu0 %v585
        %2519 = vmatmul.mubr.f32.gmra.mrb[0].mxu0 %v584
        %v2520 = vpop.f32.mrb[0].mxu0
        %v2521 = vadd.f32 %v2072, %v2520
        %v2522 = vpop.f32.mrb[0].mxu0
        %v2523 = vadd.f32 %v2074, %v2522
        %2524 = vmatprep.mubr.f32.mxu0 %v593
        %2525 = vmatmul.mubr.f32.gmra.mrb[0].mxu0 %v592
        %v2526 = vpop.f32.mrb[0].mxu0
        %v2527 = vadd.f32 %v2078, %v2526
        %v2528 = vpop.f32.mrb[0].mxu0
        %v2529 = vadd.f32 %v2080, %v2528
        %2530 = vmatprep.mubr.f32.mxu0 %v601
        %2531 = vmatmul.mubr.f32.gmra.mrb[0].mxu0 %v600
        %v2532 = vpop.f32.mrb[0].mxu0
        %v2533 = vadd.f32 %v2084, %v2532
        %v2534 = vpop.f32.mrb[0].mxu0
        %v2535 = vadd.f32 %v2086, %v2534
        %2536 = vmatprep.mubr.f32.mxu0 %v609
        %2537 = vmatmul.mubr.f32.gmra.mrb[0].mxu0 %v608
        %v2538 = vpop.f32.mrb[0].mxu0
        %v2539 = vadd.f32 %v2090, %v2538
        %v2540 = vpop.f32.mrb[0].mxu0
        %v2541 = vadd.f32 %v2092, %v2540
        %2542 = vmatprep.mubr.f32.mxu0 %v617
        %2543 = vmatmul.mubr.f32.gmra.mrb[0].mxu0 %v616
        %v2544 = vpop.f32.mrb[0].mxu0
        %v2545 = vadd.f32 %v2096, %v2544
        %v2546 = vpop.f32.mrb[0].mxu0
        %v2547 = vadd.f32 %v2098, %v2546
        %2548 = vmatprep.mubr.f32.mxu0 %v625
        %2549 = vmatmul.mubr.f32.gmra.mrb[0].mxu0 %v624
        %v2550 = vpop.f32.mrb[0].mxu0
        %v2551 = vadd.f32 %v2102, %v2550
        %v2552 = vpop.f32.mrb[0].mxu0
        %v2553 = vadd.f32 %v2104, %v2552
        %2554 = vmatprep.mubr.f32.mxu0 %v633
        %2555 = vmatmul.mubr.f32.gmra.mrb[0].mxu0 %v632
        %v2556 = vpop.f32.mrb[0].mxu0
        %v2557 = vadd.f32 %v2108, %v2556
        %v2558 = vpop.f32.mrb[0].mxu0
        %v2559 = vadd.f32 %v2110, %v2558
        %2560 = vmatprep.mubr.f32.mxu0 %v641
        %2561 = vmatmul.mubr.f32.gmra.mrb[0].mxu0 %v640
        %v2562 = vpop.f32.mrb[0].mxu0
        %v2563 = vadd.f32 %v2114, %v2562
        %v2564 = vpop.f32.mrb[0].mxu0
        %v2565 = vadd.f32 %v2116, %v2564
        %2566 = vmatprep.mubr.f32.mxu0 %v649
        %2567 = vmatmul.mubr.f32.gmra.mrb[0].mxu0 %v648
        %v2568 = vpop.f32.mrb[0].mxu0
        %v2569 = vadd.f32 %v2120, %v2568
        %v2570 = vpop.f32.mrb[0].mxu0
        %v2571 = vadd.f32 %v2122, %v2570
        %2572 = vmatprep.mubr.f32.mxu0 %v657
        %2573 = vmatmul.mubr.f32.gmra.mrb[0].mxu0 %v656
        %v2574 = vpop.f32.mrb[0].mxu0
        %v2575 = vadd.f32 %v2126, %v2574
        %v2576 = vpop.f32.mrb[0].mxu0
        %v2577 = vadd.f32 %v2128, %v2576
        %2578 = vmatprep.mubr.f32.mxu0 %v665
        %2579 = vmatmul.mubr.f32.gmra.mrb[0].mxu0 %v664
        %v2580 = vpop.f32.mrb[0].mxu0
        %v2581 = vadd.f32 %v2132, %v2580
        %v2582 = vpop.f32.mrb[0].mxu0
        %v2583 = vadd.f32 %v2134, %v2582
        %2584 = vmatprep.mubr.f32.mxu0 %v673
        %2585 = vmatmul.mubr.f32.gmra.mrb[0].mxu0 %v672
        %v2586 = vpop.f32.mrb[0].mxu0
        %v2587 = vadd.f32 %v2138, %v2586
        %v2588 = vpop.f32.mrb[0].mxu0
        %v2589 = vadd.f32 %v2140, %v2588
        %2590 = vmatprep.mubr.f32.mxu0 %v681
        %2591 = vmatmul.mubr.f32.gmra.mrb[0].mxu0 %v680
        %v2592 = vpop.f32.mrb[0].mxu0
        %v2593 = vadd.f32 %v2144, %v2592
        %v2594 = vpop.f32.mrb[0].mxu0
        %v2595 = vadd.f32 %v2146, %v2594
        %2596 = vmatprep.mubr.f32.mxu0 %v689
        %2597 = vmatmul.mubr.f32.gmra.mrb[0].mxu0 %v688
        %v2598 = vpop.f32.mrb[0].mxu0
        %v2599 = vadd.f32 %v2150, %v2598
        %v2600 = vpop.f32.mrb[0].mxu0
        %v2601 = vadd.f32 %v2152, %v2600
        %2602 = vmatprep.mubr.f32.mxu0 %v697
        %2603 = vmatmul.mubr.f32.gmra.mrb[0].mxu0 %v696
        %v2604 = vpop.f32.mrb[0].mxu0
        %v2605 = vadd.f32 %v2156, %v2604
        %v2606 = vpop.f32.mrb[0].mxu0
        %v2607 = vadd.f32 %v2158, %v2606
        %2608 = vmatprep.mubr.f32.mxu0 %v705
        %2609 = vmatmul.mubr.f32.gmra.mrb[0].mxu0 %v704
        %v2610 = vpop.f32.mrb[0].mxu0
        %v2611 = vadd.f32 %v2162, %v2610
        %v2612 = vpop.f32.mrb[0].mxu0
        %v2613 = vadd.f32 %v2164, %v2612
        %2614 = vmatprep.mubr.f32.mxu0 %v713
        %2615 = vmatmul.mubr.f32.gmra.mrb[0].mxu0 %v712
        %v2616 = vpop.f32.mrb[0].mxu0
        %v2617 = vadd.f32 %v2168, %v2616
        %v2618 = vpop.f32.mrb[0].mxu0
        %v2619 = vadd.f32 %v2170, %v2618
        %2620 = vmatprep.mubr.f32.mxu0 %v721
        %2621 = vmatmul.mubr.f32.gmra.mrb[0].mxu0 %v720
        %v2622 = vpop.f32.mrb[0].mxu0
        %v2623 = vadd.f32 %v2174, %v2622
        %v2624 = vpop.f32.mrb[0].mxu0
        %v2625 = vadd.f32 %v2176, %v2624
        %2626 = vmatprep.mubr.f32.mxu0 %v729
        %2627 = vmatmul.mubr.f32.gmra.mrb[0].mxu0 %v728
        %v2628 = vpop.f32.mrb[0].mxu0
        %v2629 = vadd.f32 %v2180, %v2628
        %v2630 = vpop.f32.mrb[0].mxu0
        %v2631 = vadd.f32 %v2182, %v2630
        %2632 = vmatprep.mubr.f32.mxu0 %v737
        %2633 = vmatmul.mubr.f32.gmra.mrb[0].mxu0 %v736
        %v2634 = vpop.f32.mrb[0].mxu0
        %v2635 = vadd.f32 %v2186, %v2634
        %v2636 = vpop.f32.mrb[0].mxu0
        %v2637 = vadd.f32 %v2188, %v2636
        %2638 = vmatprep.mubr.f32.mxu0 %v745
        %2639 = vmatmul.mubr.f32.gmra.mrb[0].mxu0 %v744
        %v2640 = vpop.f32.mrb[0].mxu0
        %v2641 = vadd.f32 %v2192, %v2640
        %v2642 = vpop.f32.mrb[0].mxu0
        %v2643 = vadd.f32 %v2194, %v2642
        %2644 = vmatprep.mubr.f32.mxu0 %v753
        %2645 = vmatmul.mubr.f32.gmra.mrb[0].mxu0 %v752
        %v2646 = vpop.f32.mrb[0].mxu0
        %v2647 = vadd.f32 %v2198, %v2646
        %v2648 = vpop.f32.mrb[0].mxu0
        %v2649 = vadd.f32 %v2200, %v2648
        %2650 = vmatprep.mubr.f32.mxu0 %v761
        %2651 = vmatmul.mubr.f32.gmra.mrb[0].mxu0 %v760
        %v2652 = vpop.f32.mrb[0].mxu0
        %v2653 = vadd.f32 %v2204, %v2652
        %v2654 = vpop.f32.mrb[0].mxu0
        %v2655 = vadd.f32 %v2206, %v2654
        %2656 = vmatprep.mubr.f32.mxu0 %v769
        %2657 = vmatmul.mubr.f32.gmra.mrb[0].mxu0 %v768
        %v2658 = vpop.f32.mrb[0].mxu0
        %v2659 = vadd.f32 %v2210, %v2658
        %v2660 = vpop.f32.mrb[0].mxu0
        %v2661 = vadd.f32 %v2212, %v2660
        %2662 = vmatprep.mubr.f32.mxu0 %v777
        %2663 = vmatmul.mubr.f32.gmra.mrb[0].mxu0 %v776
        %v2664 = vpop.f32.mrb[0].mxu0
        %v2665 = vadd.f32 %v2216, %v2664
        %v2666 = vpop.f32.mrb[0].mxu0
        %v2667 = vadd.f32 %v2218, %v2666
        %2668 = vmatprep.mubr.f32.mxu0 %v785
        %2669 = vmatmul.mubr.f32.gmra.mrb[0].mxu0 %v784
        %v2670 = vpop.f32.mrb[0].mxu0
        %v2671 = vadd.f32 %v2222, %v2670
        %v2672 = vpop.f32.mrb[0].mxu0
        %v2673 = vadd.f32 %v2224, %v2672
        %2674 = vmatprep.mubr.f32.mxu0 %v793
        %2675 = vmatmul.mubr.f32.gmra.mrb[0].mxu0 %v792
        %v2676 = vpop.f32.mrb[0].mxu0
        %v2677 = vadd.f32 %v2228, %v2676
        %v2678 = vpop.f32.mrb[0].mxu0
        %v2679 = vadd.f32 %v2230, %v2678
        %2680 = vmatprep.mubr.f32.mxu0 %v801
        %2681 = vmatmul.mubr.f32.gmra.mrb[0].mxu0 %v800
        %v2682 = vpop.f32.mrb[0].mxu0
        %v2683 = vadd.f32 %v2234, %v2682
        %v2684 = vpop.f32.mrb[0].mxu0
        %v2685 = vadd.f32 %v2236, %v2684
        %2686 = vmatprep.mubr.f32.mxu0 %v809
        %2687 = vmatmul.mubr.f32.gmra.mrb[0].mxu0 %v808
        %v2688 = vpop.f32.mrb[0].mxu0
        %v2689 = vadd.f32 %v2240, %v2688
        %v2690 = vpop.f32.mrb[0].mxu0
        %v2691 = vadd.f32 %v2242, %v2690
        %2692 = vdwg.mxu0
        %2693 = vmatprep.subr.mxu0 %v1197
        %2694 = vmatpush1.msra.mxu0 %v1196
        %2695 = vmatprep.subr.mxu0 %v1201
        %2696 = vmatpush1.msra.mxu0 %v1200
        %2697 = vmatprep.subr.mxu0 %v1205
        %2698 = vmatpush1.msra.mxu0 %v1204
        %2699 = vmatprep.subr.mxu0 %v1209
        %2700 = vmatpush1.msra.mxu0 %v1208
        %2701 = vmatprep.subr.mxu0 %v1213
        %2702 = vmatpush1.msra.mxu0 %v1212
        %2703 = vmatprep.subr.mxu0 %v1217
        %2704 = vmatpush1.msra.mxu0 %v1216
        %2705 = vmatprep.subr.mxu0 %v1221
        %2706 = vmatpush1.msra.mxu0 %v1220
        %2707 = vmatprep.subr.mxu0 %v1225
        %2708 = vmatpush1.msra.mxu0 %v1224
        %2709 = vmatprep.subr.mxu0 %v1229
        %2710 = vmatpush1.msra.mxu0 %v1228
        %2711 = vmatprep.subr.mxu0 %v1233
        %2712 = vmatpush1.msra.mxu0 %v1232
        %2713 = vmatprep.subr.mxu0 %v1237
        %2714 = vmatpush1.msra.mxu0 %v1236
        %2715 = vmatprep.subr.mxu0 %v1241
        %2716 = vmatpush1.msra.mxu0 %v1240
        %2717 = vmatprep.subr.mxu0 %v1245
        %2718 = vmatpush1.msra.mxu0 %v1244
        %2719 = vmatprep.subr.mxu0 %v1249
        %2720 = vmatpush1.msra.mxu0 %v1248
        %2721 = vmatprep.subr.mxu0 %v1253
        %2722 = vmatpush1.msra.mxu0 %v1252
        %2723 = vmatprep.subr.mxu0 %v1257
        %2724 = vmatpush1.msra.mxu0 %v1256
        %2725 = vmatprep.subr.mxu0 %v1261
        %2726 = vmatpush1.msra.mxu0 %v1260
        %2727 = vmatprep.subr.mxu0 %v1265
        %2728 = vmatpush1.msra.mxu0 %v1264
        %2729 = vmatprep.subr.mxu0 %v1269
        %2730 = vmatpush1.msra.mxu0 %v1268
        %2731 = vmatprep.subr.mxu0 %v1273
        %2732 = vmatpush1.msra.mxu0 %v1272
        %2733 = vmatprep.subr.mxu0 %v1277
        %2734 = vmatpush1.msra.mxu0 %v1276
        %2735 = vmatprep.subr.mxu0 %v1281
        %2736 = vmatpush1.msra.mxu0 %v1280
        %2737 = vmatprep.subr.mxu0 %v1285
        %2738 = vmatpush1.msra.mxu0 %v1284
        %2739 = vmatprep.subr.mxu0 %v1289
        %2740 = vmatpush1.msra.mxu0 %v1288
        %2741 = vmatprep.subr.mxu0 %v1293
        %2742 = vmatpush1.msra.mxu0 %v1292
        %2743 = vmatprep.subr.mxu0 %v1297
        %2744 = vmatpush1.msra.mxu0 %v1296
        %2745 = vmatprep.subr.mxu0 %v1301
        %2746 = vmatpush1.msra.mxu0 %v1300
        %2747 = vmatprep.subr.mxu0 %v1305
        %2748 = vmatpush1.msra.mxu0 %v1304
        %2749 = vmatprep.subr.mxu0 %v1309
        %2750 = vmatpush1.msra.mxu0 %v1308
        %2751 = vmatprep.subr.mxu0 %v1313
        %2752 = vmatpush1.msra.mxu0 %v1312
        %2753 = vmatprep.subr.mxu0 %v1317
        %2754 = vmatpush1.msra.mxu0 %v1316
        %2755 = vmatprep.subr.mxu0 %v1321
        %2756 = vmatpush1.msra.mxu0 %v1320
        %2757 = vmatprep.mubr.f32.mxu0 %v307
        %2758 = vmatmul.mubr.f32.gmra.mrb[0].mxu0 %v306
        %v2759 = vpop.f32.mrb[0].mxu0
        %v2760 = vadd.f32 %v2311, %v2759
        %v2761 = vpop.f32.mrb[0].mxu0
        %v2762 = vadd.f32 %v2313, %v2761
        %2763 = vmatprep.mubr.f32.mxu0 %v315
        %2764 = vmatmul.mubr.f32.gmra.mrb[0].mxu0 %v314
        %v2765 = vpop.f32.mrb[0].mxu0
        %v2766 = vadd.f32 %v2317, %v2765
        %v2767 = vpop.f32.mrb[0].mxu0
        %v2768 = vadd.f32 %v2319, %v2767
        %2769 = vmatprep.mubr.f32.mxu0 %v323
        %2770 = vmatmul.mubr.f32.gmra.mrb[0].mxu0 %v322
        %v2771 = vpop.f32.mrb[0].mxu0
        %v2772 = vadd.f32 %v2323, %v2771
        %v2773 = vpop.f32.mrb[0].mxu0
        %v2774 = vadd.f32 %v2325, %v2773
        %2775 = vmatprep.mubr.f32.mxu0 %v331
        %2776 = vmatmul.mubr.f32.gmra.mrb[0].mxu0 %v330
        %v2777 = vpop.f32.mrb[0].mxu0
        %v2778 = vadd.f32 %v2329, %v2777
        %v2779 = vpop.f32.mrb[0].mxu0
        %v2780 = vadd.f32 %v2331, %v2779
        %2781 = vmatprep.mubr.f32.mxu0 %v339
        %2782 = vmatmul.mubr.f32.gmra.mrb[0].mxu0 %v338
        %v2783 = vpop.f32.mrb[0].mxu0
        %v2784 = vadd.f32 %v2335, %v2783
        %v2785 = vpop.f32.mrb[0].mxu0
        %v2786 = vadd.f32 %v2337, %v2785
        %2787 = vmatprep.mubr.f32.mxu0 %v347
        %2788 = vmatmul.mubr.f32.gmra.mrb[0].mxu0 %v346
        %v2789 = vpop.f32.mrb[0].mxu0
        %v2790 = vadd.f32 %v2341, %v2789
        %v2791 = vpop.f32.mrb[0].mxu0
        %v2792 = vadd.f32 %v2343, %v2791
        %2793 = vmatprep.mubr.f32.mxu0 %v355
        %2794 = vmatmul.mubr.f32.gmra.mrb[0].mxu0 %v354
        %v2795 = vpop.f32.mrb[0].mxu0
        %v2796 = vadd.f32 %v2347, %v2795
        %v2797 = vpop.f32.mrb[0].mxu0
        %v2798 = vadd.f32 %v2349, %v2797
        %2799 = vmatprep.mubr.f32.mxu0 %v363
        %2800 = vmatmul.mubr.f32.gmra.mrb[0].mxu0 %v362
        %v2801 = vpop.f32.mrb[0].mxu0
        %v2802 = vadd.f32 %v2353, %v2801
        %v2803 = vpop.f32.mrb[0].mxu0
        %v2804 = vadd.f32 %v2355, %v2803
        %2805 = vmatprep.mubr.f32.mxu0 %v371
        %2806 = vmatmul.mubr.f32.gmra.mrb[0].mxu0 %v370
        %v2807 = vpop.f32.mrb[0].mxu0
        %v2808 = vadd.f32 %v2359, %v2807
        %v2809 = vpop.f32.mrb[0].mxu0
        %v2810 = vadd.f32 %v2361, %v2809
        %2811 = vmatprep.mubr.f32.mxu0 %v379
        %2812 = vmatmul.mubr.f32.gmra.mrb[0].mxu0 %v378
        %v2813 = vpop.f32.mrb[0].mxu0
        %v2814 = vadd.f32 %v2365, %v2813
        %v2815 = vpop.f32.mrb[0].mxu0
        %v2816 = vadd.f32 %v2367, %v2815
        %2817 = vmatprep.mubr.f32.mxu0 %v387
        %2818 = vmatmul.mubr.f32.gmra.mrb[0].mxu0 %v386
        %v2819 = vpop.f32.mrb[0].mxu0
        %v2820 = vadd.f32 %v2371, %v2819
        %v2821 = vpop.f32.mrb[0].mxu0
        %v2822 = vadd.f32 %v2373, %v2821
        %2823 = vmatprep.mubr.f32.mxu0 %v395
        %2824 = vmatmul.mubr.f32.gmra.mrb[0].mxu0 %v394
        %v2825 = vpop.f32.mrb[0].mxu0
        %v2826 = vadd.f32 %v2377, %v2825
        %v2827 = vpop.f32.mrb[0].mxu0
        %v2828 = vadd.f32 %v2379, %v2827
        %2829 = vmatprep.mubr.f32.mxu0 %v403
        %2830 = vmatmul.mubr.f32.gmra.mrb[0].mxu0 %v402
        %v2831 = vpop.f32.mrb[0].mxu0
        %v2832 = vadd.f32 %v2383, %v2831
        %v2833 = vpop.f32.mrb[0].mxu0
        %v2834 = vadd.f32 %v2385, %v2833
        %2835 = vmatprep.mubr.f32.mxu0 %v411
        %2836 = vmatmul.mubr.f32.gmra.mrb[0].mxu0 %v410
        %v2837 = vpop.f32.mrb[0].mxu0
        %v2838 = vadd.f32 %v2389, %v2837
        %v2839 = vpop.f32.mrb[0].mxu0
        %v2840 = vadd.f32 %v2391, %v2839
        %2841 = vmatprep.mubr.f32.mxu0 %v419
        %2842 = vmatmul.mubr.f32.gmra.mrb[0].mxu0 %v418
        %v2843 = vpop.f32.mrb[0].mxu0
        %v2844 = vadd.f32 %v2395, %v2843
        %v2845 = vpop.f32.mrb[0].mxu0
        %v2846 = vadd.f32 %v2397, %v2845
        %2847 = vmatprep.mubr.f32.mxu0 %v427
        %2848 = vmatmul.mubr.f32.gmra.mrb[0].mxu0 %v426
        %v2849 = vpop.f32.mrb[0].mxu0
        %v2850 = vadd.f32 %v2401, %v2849
        %v2851 = vpop.f32.mrb[0].mxu0
        %v2852 = vadd.f32 %v2403, %v2851
        %2853 = vmatprep.mubr.f32.mxu0 %v435
        %2854 = vmatmul.mubr.f32.gmra.mrb[0].mxu0 %v434
        %v2855 = vpop.f32.mrb[0].mxu0
        %v2856 = vadd.f32 %v2407, %v2855
        %v2857 = vpop.f32.mrb[0].mxu0
        %v2858 = vadd.f32 %v2409, %v2857
        %2859 = vmatprep.mubr.f32.mxu0 %v443
        %2860 = vmatmul.mubr.f32.gmra.mrb[0].mxu0 %v442
        %v2861 = vpop.f32.mrb[0].mxu0
        %v2862 = vadd.f32 %v2413, %v2861
        %v2863 = vpop.f32.mrb[0].mxu0
        %v2864 = vadd.f32 %v2415, %v2863
        %2865 = vmatprep.mubr.f32.mxu0 %v451
        %2866 = vmatmul.mubr.f32.gmra.mrb[0].mxu0 %v450
        %v2867 = vpop.f32.mrb[0].mxu0
        %v2868 = vadd.f32 %v2419, %v2867
        %v2869 = vpop.f32.mrb[0].mxu0
        %v2870 = vadd.f32 %v2421, %v2869
        %2871 = vmatprep.mubr.f32.mxu0 %v459
        %2872 = vmatmul.mubr.f32.gmra.mrb[0].mxu0 %v458
        %v2873 = vpop.f32.mrb[0].mxu0
        %v2874 = vadd.f32 %v2425, %v2873
        %v2875 = vpop.f32.mrb[0].mxu0
        %v2876 = vadd.f32 %v2427, %v2875
        %2877 = vmatprep.mubr.f32.mxu0 %v467
        %2878 = vmatmul.mubr.f32.gmra.mrb[0].mxu0 %v466
        %v2879 = vpop.f32.mrb[0].mxu0
        %v2880 = vadd.f32 %v2431, %v2879
        %v2881 = vpop.f32.mrb[0].mxu0
        %v2882 = vadd.f32 %v2433, %v2881
        %2883 = vmatprep.mubr.f32.mxu0 %v475
        %2884 = vmatmul.mubr.f32.gmra.mrb[0].mxu0 %v474
        %v2885 = vpop.f32.mrb[0].mxu0
        %v2886 = vadd.f32 %v2437, %v2885
        %v2887 = vpop.f32.mrb[0].mxu0
        %v2888 = vadd.f32 %v2439, %v2887
        %2889 = vmatprep.mubr.f32.mxu0 %v483
        %2890 = vmatmul.mubr.f32.gmra.mrb[0].mxu0 %v482
        %v2891 = vpop.f32.mrb[0].mxu0
        %v2892 = vadd.f32 %v2443, %v2891
        %v2893 = vpop.f32.mrb[0].mxu0
        %v2894 = vadd.f32 %v2445, %v2893
        %2895 = vmatprep.mubr.f32.mxu0 %v491
        %2896 = vmatmul.mubr.f32.gmra.mrb[0].mxu0 %v490
        %v2897 = vpop.f32.mrb[0].mxu0
        %v2898 = vadd.f32 %v2449, %v2897
        %v2899 = vpop.f32.mrb[0].mxu0
        %v2900 = vadd.f32 %v2451, %v2899
        %2901 = vmatprep.mubr.f32.mxu0 %v499
        %2902 = vmatmul.mubr.f32.gmra.mrb[0].mxu0 %v498
        %v2903 = vpop.f32.mrb[0].mxu0
        %v2904 = vadd.f32 %v2455, %v2903
        %v2905 = vpop.f32.mrb[0].mxu0
        %v2906 = vadd.f32 %v2457, %v2905
        %2907 = vmatprep.mubr.f32.mxu0 %v507
        %2908 = vmatmul.mubr.f32.gmra.mrb[0].mxu0 %v506
        %v2909 = vpop.f32.mrb[0].mxu0
        %v2910 = vadd.f32 %v2461, %v2909
        %v2911 = vpop.f32.mrb[0].mxu0
        %v2912 = vadd.f32 %v2463, %v2911
        %2913 = vmatprep.mubr.f32.mxu0 %v515
        %2914 = vmatmul.mubr.f32.gmra.mrb[0].mxu0 %v514
        %v2915 = vpop.f32.mrb[0].mxu0
        %v2916 = vadd.f32 %v2467, %v2915
        %v2917 = vpop.f32.mrb[0].mxu0
        %v2918 = vadd.f32 %v2469, %v2917
        %2919 = vmatprep.mubr.f32.mxu0 %v523
        %2920 = vmatmul.mubr.f32.gmra.mrb[0].mxu0 %v522
        %v2921 = vpop.f32.mrb[0].mxu0
        %v2922 = vadd.f32 %v2473, %v2921
        %v2923 = vpop.f32.mrb[0].mxu0
        %v2924 = vadd.f32 %v2475, %v2923
        %2925 = vmatprep.mubr.f32.mxu0 %v531
        %2926 = vmatmul.mubr.f32.gmra.mrb[0].mxu0 %v530
        %v2927 = vpop.f32.mrb[0].mxu0
        %v2928 = vadd.f32 %v2479, %v2927
        %v2929 = vpop.f32.mrb[0].mxu0
        %v2930 = vadd.f32 %v2481, %v2929
        %2931 = vmatprep.mubr.f32.mxu0 %v539
        %2932 = vmatmul.mubr.f32.gmra.mrb[0].mxu0 %v538
        %v2933 = vpop.f32.mrb[0].mxu0
        %v2934 = vadd.f32 %v2485, %v2933
        %v2935 = vpop.f32.mrb[0].mxu0
        %v2936 = vadd.f32 %v2487, %v2935
        %2937 = vmatprep.mubr.f32.mxu0 %v547
        %2938 = vmatmul.mubr.f32.gmra.mrb[0].mxu0 %v546
        %v2939 = vpop.f32.mrb[0].mxu0
        %v2940 = vadd.f32 %v2491, %v2939
        %v2941 = vpop.f32.mrb[0].mxu0
        %v2942 = vadd.f32 %v2493, %v2941
        %2943 = vmatprep.mubr.f32.mxu0 %v555
        %2944 = vmatmul.mubr.f32.gmra.mrb[0].mxu0 %v554
        %v2945 = vpop.f32.mrb[0].mxu0
        %v2946 = vadd.f32 %v2497, %v2945
        %v2947 = vpop.f32.mrb[0].mxu0
        %v2948 = vadd.f32 %v2499, %v2947
        %2949 = vmatprep.mubr.f32.mxu0 %v563
        %2950 = vmatmul.mubr.f32.gmra.mrb[0].mxu0 %v562
        %v2951 = vpop.f32.mrb[0].mxu0
        %v2952 = vadd.f32 %v2503, %v2951
        %v2953 = vpop.f32.mrb[0].mxu0
        %v2954 = vadd.f32 %v2505, %v2953
        %2955 = vmatprep.mubr.f32.mxu0 %v571
        %2956 = vmatmul.mubr.f32.gmra.mrb[0].mxu0 %v570
        %v2957 = vpop.f32.mrb[0].mxu0
        %v2958 = vadd.f32 %v2509, %v2957
        %v2959 = vpop.f32.mrb[0].mxu0
        %v2960 = vadd.f32 %v2511, %v2959
        %2961 = vmatprep.mubr.f32.mxu0 %v579
        %2962 = vmatmul.mubr.f32.gmra.mrb[0].mxu0 %v578
        %v2963 = vpop.f32.mrb[0].mxu0
        %v2964 = vadd.f32 %v2515, %v2963
        %v2965 = vpop.f32.mrb[0].mxu0
        %v2966 = vadd.f32 %v2517, %v2965
        %2967 = vmatprep.mubr.f32.mxu0 %v587
        %2968 = vmatmul.mubr.f32.gmra.mrb[0].mxu0 %v586
        %v2969 = vpop.f32.mrb[0].mxu0
        %v2970 = vadd.f32 %v2521, %v2969
        %v2971 = vpop.f32.mrb[0].mxu0
        %v2972 = vadd.f32 %v2523, %v2971
        %2973 = vmatprep.mubr.f32.mxu0 %v595
        %2974 = vmatmul.mubr.f32.gmra.mrb[0].mxu0 %v594
        %v2975 = vpop.f32.mrb[0].mxu0
        %v2976 = vadd.f32 %v2527, %v2975
        %v2977 = vpop.f32.mrb[0].mxu0
        %v2978 = vadd.f32 %v2529, %v2977
        %2979 = vmatprep.mubr.f32.mxu0 %v603
        %2980 = vmatmul.mubr.f32.gmra.mrb[0].mxu0 %v602
        %v2981 = vpop.f32.mrb[0].mxu0
        %v2982 = vadd.f32 %v2533, %v2981
        %v2983 = vpop.f32.mrb[0].mxu0
        %v2984 = vadd.f32 %v2535, %v2983
        %2985 = vmatprep.mubr.f32.mxu0 %v611
        %2986 = vmatmul.mubr.f32.gmra.mrb[0].mxu0 %v610
        %v2987 = vpop.f32.mrb[0].mxu0
        %v2988 = vadd.f32 %v2539, %v2987
        %v2989 = vpop.f32.mrb[0].mxu0
        %v2990 = vadd.f32 %v2541, %v2989
        %2991 = vmatprep.mubr.f32.mxu0 %v619
        %2992 = vmatmul.mubr.f32.gmra.mrb[0].mxu0 %v618
        %v2993 = vpop.f32.mrb[0].mxu0
        %v2994 = vadd.f32 %v2545, %v2993
        %v2995 = vpop.f32.mrb[0].mxu0
        %v2996 = vadd.f32 %v2547, %v2995
        %2997 = vmatprep.mubr.f32.mxu0 %v627
        %2998 = vmatmul.mubr.f32.gmra.mrb[0].mxu0 %v626
        %v2999 = vpop.f32.mrb[0].mxu0
        %v3000 = vadd.f32 %v2551, %v2999
        %v3001 = vpop.f32.mrb[0].mxu0
        %v3002 = vadd.f32 %v2553, %v3001
        %3003 = vmatprep.mubr.f32.mxu0 %v635
        %3004 = vmatmul.mubr.f32.gmra.mrb[0].mxu0 %v634
        %v3005 = vpop.f32.mrb[0].mxu0
        %v3006 = vadd.f32 %v2557, %v3005
        %v3007 = vpop.f32.mrb[0].mxu0
        %v3008 = vadd.f32 %v2559, %v3007
        %3009 = vmatprep.mubr.f32.mxu0 %v643
        %3010 = vmatmul.mubr.f32.gmra.mrb[0].mxu0 %v642
        %v3011 = vpop.f32.mrb[0].mxu0
        %v3012 = vadd.f32 %v2563, %v3011
        %v3013 = vpop.f32.mrb[0].mxu0
        %v3014 = vadd.f32 %v2565, %v3013
        %3015 = vmatprep.mubr.f32.mxu0 %v651
        %3016 = vmatmul.mubr.f32.gmra.mrb[0].mxu0 %v650
        %v3017 = vpop.f32.mrb[0].mxu0
        %v3018 = vadd.f32 %v2569, %v3017
        %v3019 = vpop.f32.mrb[0].mxu0
        %v3020 = vadd.f32 %v2571, %v3019
        %3021 = vmatprep.mubr.f32.mxu0 %v659
        %3022 = vmatmul.mubr.f32.gmra.mrb[0].mxu0 %v658
        %v3023 = vpop.f32.mrb[0].mxu0
        %v3024 = vadd.f32 %v2575, %v3023
        %v3025 = vpop.f32.mrb[0].mxu0
        %v3026 = vadd.f32 %v2577, %v3025
        %3027 = vmatprep.mubr.f32.mxu0 %v667
        %3028 = vmatmul.mubr.f32.gmra.mrb[0].mxu0 %v666
        %v3029 = vpop.f32.mrb[0].mxu0
        %v3030 = vadd.f32 %v2581, %v3029
        %v3031 = vpop.f32.mrb[0].mxu0
        %v3032 = vadd.f32 %v2583, %v3031
        %3033 = vmatprep.mubr.f32.mxu0 %v675
        %3034 = vmatmul.mubr.f32.gmra.mrb[0].mxu0 %v674
        %v3035 = vpop.f32.mrb[0].mxu0
        %v3036 = vadd.f32 %v2587, %v3035
        %v3037 = vpop.f32.mrb[0].mxu0
        %v3038 = vadd.f32 %v2589, %v3037
        %3039 = vmatprep.mubr.f32.mxu0 %v683
        %3040 = vmatmul.mubr.f32.gmra.mrb[0].mxu0 %v682
        %v3041 = vpop.f32.mrb[0].mxu0
        %v3042 = vadd.f32 %v2593, %v3041
        %v3043 = vpop.f32.mrb[0].mxu0
        %v3044 = vadd.f32 %v2595, %v3043
        %3045 = vmatprep.mubr.f32.mxu0 %v691
        %3046 = vmatmul.mubr.f32.gmra.mrb[0].mxu0 %v690
        %v3047 = vpop.f32.mrb[0].mxu0
        %v3048 = vadd.f32 %v2599, %v3047
        %v3049 = vpop.f32.mrb[0].mxu0
        %v3050 = vadd.f32 %v2601, %v3049
        %3051 = vmatprep.mubr.f32.mxu0 %v699
        %3052 = vmatmul.mubr.f32.gmra.mrb[0].mxu0 %v698
        %v3053 = vpop.f32.mrb[0].mxu0
        %v3054 = vadd.f32 %v2605, %v3053
        %v3055 = vpop.f32.mrb[0].mxu0
        %v3056 = vadd.f32 %v2607, %v3055
        %3057 = vmatprep.mubr.f32.mxu0 %v707
        %3058 = vmatmul.mubr.f32.gmra.mrb[0].mxu0 %v706
        %v3059 = vpop.f32.mrb[0].mxu0
        %v3060 = vadd.f32 %v2611, %v3059
        %v3061 = vpop.f32.mrb[0].mxu0
        %v3062 = vadd.f32 %v2613, %v3061
        %3063 = vmatprep.mubr.f32.mxu0 %v715
        %3064 = vmatmul.mubr.f32.gmra.mrb[0].mxu0 %v714
        %v3065 = vpop.f32.mrb[0].mxu0
        %v3066 = vadd.f32 %v2617, %v3065
        %v3067 = vpop.f32.mrb[0].mxu0
        %v3068 = vadd.f32 %v2619, %v3067
        %3069 = vmatprep.mubr.f32.mxu0 %v723
        %3070 = vmatmul.mubr.f32.gmra.mrb[0].mxu0 %v722
        %v3071 = vpop.f32.mrb[0].mxu0
        %v3072 = vadd.f32 %v2623, %v3071
        %v3073 = vpop.f32.mrb[0].mxu0
        %v3074 = vadd.f32 %v2625, %v3073
        %3075 = vmatprep.mubr.f32.mxu0 %v731
        %3076 = vmatmul.mubr.f32.gmra.mrb[0].mxu0 %v730
        %v3077 = vpop.f32.mrb[0].mxu0
        %v3078 = vadd.f32 %v2629, %v3077
        %v3079 = vpop.f32.mrb[0].mxu0
        %v3080 = vadd.f32 %v2631, %v3079
        %3081 = vmatprep.mubr.f32.mxu0 %v739
        %3082 = vmatmul.mubr.f32.gmra.mrb[0].mxu0 %v738
        %v3083 = vpop.f32.mrb[0].mxu0
        %v3084 = vadd.f32 %v2635, %v3083
        %v3085 = vpop.f32.mrb[0].mxu0
        %v3086 = vadd.f32 %v2637, %v3085
        %3087 = vmatprep.mubr.f32.mxu0 %v747
        %3088 = vmatmul.mubr.f32.gmra.mrb[0].mxu0 %v746
        %v3089 = vpop.f32.mrb[0].mxu0
        %v3090 = vadd.f32 %v2641, %v3089
        %v3091 = vpop.f32.mrb[0].mxu0
        %v3092 = vadd.f32 %v2643, %v3091
        %3093 = vmatprep.mubr.f32.mxu0 %v755
        %3094 = vmatmul.mubr.f32.gmra.mrb[0].mxu0 %v754
        %v3095 = vpop.f32.mrb[0].mxu0
        %v3096 = vadd.f32 %v2647, %v3095
        %v3097 = vpop.f32.mrb[0].mxu0
        %v3098 = vadd.f32 %v2649, %v3097
        %3099 = vmatprep.mubr.f32.mxu0 %v763
        %3100 = vmatmul.mubr.f32.gmra.mrb[0].mxu0 %v762
        %v3101 = vpop.f32.mrb[0].mxu0
        %v3102 = vadd.f32 %v2653, %v3101
        %v3103 = vpop.f32.mrb[0].mxu0
        %v3104 = vadd.f32 %v2655, %v3103
        %3105 = vmatprep.mubr.f32.mxu0 %v771
        %3106 = vmatmul.mubr.f32.gmra.mrb[0].mxu0 %v770
        %v3107 = vpop.f32.mrb[0].mxu0
        %v3108 = vadd.f32 %v2659, %v3107
        %v3109 = vpop.f32.mrb[0].mxu0
        %v3110 = vadd.f32 %v2661, %v3109
        %3111 = vmatprep.mubr.f32.mxu0 %v779
        %3112 = vmatmul.mubr.f32.gmra.mrb[0].mxu0 %v778
        %v3113 = vpop.f32.mrb[0].mxu0
        %v3114 = vadd.f32 %v2665, %v3113
        %v3115 = vpop.f32.mrb[0].mxu0
        %v3116 = vadd.f32 %v2667, %v3115
        %3117 = vmatprep.mubr.f32.mxu0 %v787
        %3118 = vmatmul.mubr.f32.gmra.mrb[0].mxu0 %v786
        %v3119 = vpop.f32.mrb[0].mxu0
        %v3120 = vadd.f32 %v2671, %v3119
        %v3121 = vpop.f32.mrb[0].mxu0
        %v3122 = vadd.f32 %v2673, %v3121
        %3123 = vmatprep.mubr.f32.mxu0 %v795
        %3124 = vmatmul.mubr.f32.gmra.mrb[0].mxu0 %v794
        %v3125 = vpop.f32.mrb[0].mxu0
        %v3126 = vadd.f32 %v2677, %v3125
        %v3127 = vpop.f32.mrb[0].mxu0
        %v3128 = vadd.f32 %v2679, %v3127
        %3129 = vmatprep.mubr.f32.mxu0 %v803
        %3130 = vmatmul.mubr.f32.gmra.mrb[0].mxu0 %v802
        %v3131 = vpop.f32.mrb[0].mxu0
        %v3132 = vadd.f32 %v2683, %v3131
        %v3133 = vpop.f32.mrb[0].mxu0
        %v3134 = vadd.f32 %v2685, %v3133
        %3135 = vmatprep.mubr.f32.mxu0 %v811
        %3136 = vmatmul.mubr.f32.gmra.mrb[0].mxu0 %v810
        %v3137 = vpop.f32.mrb[0].mxu0
        %v3138 = vadd.f32 %v2689, %v3137
        %v3139 = vpop.f32.mrb[0].mxu0
        %v3140 = vadd.f32 %v2691, %v3139
        %3141 = vdwg.mxu0
        %3142 = vmatprep.subr.mxu0 %v815
        %3143 = vmatpush1.msra.mxu0 %v814
        %3144 = vmatprep.subr.mxu0 %v819
        %3145 = vmatpush1.msra.mxu0 %v818
        %3146 = vmatprep.subr.mxu0 %v823
        %3147 = vmatpush1.msra.mxu0 %v822
        %3148 = vmatprep.subr.mxu0 %v827
        %3149 = vmatpush1.msra.mxu0 %v826
        %3150 = vmatprep.subr.mxu0 %v831
        %3151 = vmatpush1.msra.mxu0 %v830
        %3152 = vmatprep.subr.mxu0 %v835
        %3153 = vmatpush1.msra.mxu0 %v834
        %3154 = vmatprep.subr.mxu0 %v839
        %3155 = vmatpush1.msra.mxu0 %v838
        %3156 = vmatprep.subr.mxu0 %v843
        %3157 = vmatpush1.msra.mxu0 %v842
        %3158 = vmatprep.subr.mxu0 %v847
        %3159 = vmatpush1.msra.mxu0 %v846
        %3160 = vmatprep.subr.mxu0 %v851
        %3161 = vmatpush1.msra.mxu0 %v850
        %3162 = vmatprep.subr.mxu0 %v855
        %3163 = vmatpush1.msra.mxu0 %v854
        %3164 = vmatprep.subr.mxu0 %v859
        %3165 = vmatpush1.msra.mxu0 %v858
        %3166 = vmatprep.subr.mxu0 %v863
        %3167 = vmatpush1.msra.mxu0 %v862
        %3168 = vmatprep.subr.mxu0 %v867
        %3169 = vmatpush1.msra.mxu0 %v866
        %3170 = vmatprep.subr.mxu0 %v871
        %3171 = vmatpush1.msra.mxu0 %v870
        %3172 = vmatprep.subr.mxu0 %v875
        %3173 = vmatpush1.msra.mxu0 %v874
        %3174 = vmatprep.subr.mxu0 %v879
        %3175 = vmatpush1.msra.mxu0 %v878
        %3176 = vmatprep.subr.mxu0 %v883
        %3177 = vmatpush1.msra.mxu0 %v882
        %3178 = vmatprep.subr.mxu0 %v887
        %3179 = vmatpush1.msra.mxu0 %v886
        %3180 = vmatprep.subr.mxu0 %v891
        %3181 = vmatpush1.msra.mxu0 %v890
        %3182 = vmatprep.subr.mxu0 %v895
        %3183 = vmatpush1.msra.mxu0 %v894
        %3184 = vmatprep.subr.mxu0 %v899
        %3185 = vmatpush1.msra.mxu0 %v898
        %3186 = vmatprep.subr.mxu0 %v903
        %3187 = vmatpush1.msra.mxu0 %v902
        %3188 = vmatprep.subr.mxu0 %v907
        %3189 = vmatpush1.msra.mxu0 %v906
        %3190 = vmatprep.subr.mxu0 %v911
        %3191 = vmatpush1.msra.mxu0 %v910
        %3192 = vmatprep.subr.mxu0 %v915
        %3193 = vmatpush1.msra.mxu0 %v914
        %3194 = vmatprep.subr.mxu0 %v919
        %3195 = vmatpush1.msra.mxu0 %v918
        %3196 = vmatprep.subr.mxu0 %v923
        %3197 = vmatpush1.msra.mxu0 %v922
        %3198 = vmatprep.subr.mxu0 %v927
        %3199 = vmatpush1.msra.mxu0 %v926
        %3200 = vmatprep.subr.mxu0 %v931
        %3201 = vmatpush1.msra.mxu0 %v930
        %3202 = vmatprep.subr.mxu0 %v935
        %3203 = vmatpush1.msra.mxu0 %v934
        %3204 = vmatprep.subr.mxu0 %v939
        %3205 = vmatpush1.msra.mxu0 %v938
        %3206 = vmatprep.mubr.f32.mxu0 %v301
        %3207 = vmatmul.mubr.f32.gmra.mrb[0].mxu0 %v300
        %v3208 = vpop.f32.mrb[0].mxu0
        %v3209 = vadd.f32 %v1337, %v3208
        %v3210 = vpop.f32.mrb[0].mxu0
        %v3211 = vadd.f32 %v1341, %v3210
        %3212 = vmatprep.mubr.f32.mxu0 %v309
        %3213 = vmatmul.mubr.f32.gmra.mrb[0].mxu0 %v308
        %v3214 = vpop.f32.mrb[0].mxu0
        %v3215 = vadd.f32 %v1337, %v3214
        %v3216 = vpop.f32.mrb[0].mxu0
        %v3217 = vadd.f32 %v1341, %v3216
        %3218 = vmatprep.mubr.f32.mxu0 %v317
        %3219 = vmatmul.mubr.f32.gmra.mrb[0].mxu0 %v316
        %v3220 = vpop.f32.mrb[0].mxu0
        %v3221 = vadd.f32 %v1337, %v3220
        %v3222 = vpop.f32.mrb[0].mxu0
        %v3223 = vadd.f32 %v1341, %v3222
        %3224 = vmatprep.mubr.f32.mxu0 %v325
        %3225 = vmatmul.mubr.f32.gmra.mrb[0].mxu0 %v324
        %v3226 = vpop.f32.mrb[0].mxu0
        %v3227 = vadd.f32 %v1337, %v3226
        %v3228 = vpop.f32.mrb[0].mxu0
        %v3229 = vadd.f32 %v1341, %v3228
        %3230 = vmatprep.mubr.f32.mxu0 %v333
        %3231 = vmatmul.mubr.f32.gmra.mrb[0].mxu0 %v332
        %v3232 = vpop.f32.mrb[0].mxu0
        %v3233 = vadd.f32 %v1337, %v3232
        %v3234 = vpop.f32.mrb[0].mxu0
        %v3235 = vadd.f32 %v1341, %v3234
        %3236 = vmatprep.mubr.f32.mxu0 %v341
        %3237 = vmatmul.mubr.f32.gmra.mrb[0].mxu0 %v340
        %v3238 = vpop.f32.mrb[0].mxu0
        %v3239 = vadd.f32 %v1337, %v3238
        %v3240 = vpop.f32.mrb[0].mxu0
        %v3241 = vadd.f32 %v1341, %v3240
        %3242 = vmatprep.mubr.f32.mxu0 %v349
        %3243 = vmatmul.mubr.f32.gmra.mrb[0].mxu0 %v348
        %v3244 = vpop.f32.mrb[0].mxu0
        %v3245 = vadd.f32 %v1337, %v3244
        %v3246 = vpop.f32.mrb[0].mxu0
        %v3247 = vadd.f32 %v1341, %v3246
        %3248 = vmatprep.mubr.f32.mxu0 %v357
        %3249 = vmatmul.mubr.f32.gmra.mrb[0].mxu0 %v356
        %v3250 = vpop.f32.mrb[0].mxu0
        %v3251 = vadd.f32 %v1337, %v3250
        %v3252 = vpop.f32.mrb[0].mxu0
        %v3253 = vadd.f32 %v1341, %v3252
        %3254 = vmatprep.mubr.f32.mxu0 %v365
        %3255 = vmatmul.mubr.f32.gmra.mrb[0].mxu0 %v364
        %v3256 = vpop.f32.mrb[0].mxu0
        %v3257 = vadd.f32 %v1337, %v3256
        %v3258 = vpop.f32.mrb[0].mxu0
        %v3259 = vadd.f32 %v1341, %v3258
        %3260 = vmatprep.mubr.f32.mxu0 %v373
        %3261 = vmatmul.mubr.f32.gmra.mrb[0].mxu0 %v372
        %v3262 = vpop.f32.mrb[0].mxu0
        %v3263 = vadd.f32 %v1337, %v3262
        %v3264 = vpop.f32.mrb[0].mxu0
        %v3265 = vadd.f32 %v1341, %v3264
        %3266 = vmatprep.mubr.f32.mxu0 %v381
        %3267 = vmatmul.mubr.f32.gmra.mrb[0].mxu0 %v380
        %v3268 = vpop.f32.mrb[0].mxu0
        %v3269 = vadd.f32 %v1337, %v3268
        %v3270 = vpop.f32.mrb[0].mxu0
        %v3271 = vadd.f32 %v1341, %v3270
        %3272 = vmatprep.mubr.f32.mxu0 %v389
        %3273 = vmatmul.mubr.f32.gmra.mrb[0].mxu0 %v388
        %v3274 = vpop.f32.mrb[0].mxu0
        %v3275 = vadd.f32 %v1337, %v3274
        %v3276 = vpop.f32.mrb[0].mxu0
        %v3277 = vadd.f32 %v1341, %v3276
        %3278 = vmatprep.mubr.f32.mxu0 %v397
        %3279 = vmatmul.mubr.f32.gmra.mrb[0].mxu0 %v396
        %v3280 = vpop.f32.mrb[0].mxu0
        %v3281 = vadd.f32 %v1337, %v3280
        %v3282 = vpop.f32.mrb[0].mxu0
        %v3283 = vadd.f32 %v1341, %v3282
        %3284 = vmatprep.mubr.f32.mxu0 %v405
        %3285 = vmatmul.mubr.f32.gmra.mrb[0].mxu0 %v404
        %v3286 = vpop.f32.mrb[0].mxu0
        %v3287 = vadd.f32 %v1337, %v3286
        %v3288 = vpop.f32.mrb[0].mxu0
        %v3289 = vadd.f32 %v1341, %v3288
        %3290 = vmatprep.mubr.f32.mxu0 %v413
        %3291 = vmatmul.mubr.f32.gmra.mrb[0].mxu0 %v412
        %v3292 = vpop.f32.mrb[0].mxu0
        %v3293 = vadd.f32 %v1337, %v3292
        %v3294 = vpop.f32.mrb[0].mxu0
        %v3295 = vadd.f32 %v1341, %v3294
        %3296 = vmatprep.mubr.f32.mxu0 %v421
        %3297 = vmatmul.mubr.f32.gmra.mrb[0].mxu0 %v420
        %v3298 = vpop.f32.mrb[0].mxu0
        %v3299 = vadd.f32 %v1337, %v3298
        %v3300 = vpop.f32.mrb[0].mxu0
        %v3301 = vadd.f32 %v1341, %v3300
        %3302 = vmatprep.mubr.f32.mxu0 %v429
        %3303 = vmatmul.mubr.f32.gmra.mrb[0].mxu0 %v428
        %v3304 = vpop.f32.mrb[0].mxu0
        %v3305 = vadd.f32 %v1337, %v3304
        %v3306 = vpop.f32.mrb[0].mxu0
        %v3307 = vadd.f32 %v1341, %v3306
        %3308 = vmatprep.mubr.f32.mxu0 %v437
        %3309 = vmatmul.mubr.f32.gmra.mrb[0].mxu0 %v436
        %v3310 = vpop.f32.mrb[0].mxu0
        %v3311 = vadd.f32 %v1337, %v3310
        %v3312 = vpop.f32.mrb[0].mxu0
        %v3313 = vadd.f32 %v1341, %v3312
        %3314 = vmatprep.mubr.f32.mxu0 %v445
        %3315 = vmatmul.mubr.f32.gmra.mrb[0].mxu0 %v444
        %v3316 = vpop.f32.mrb[0].mxu0
        %v3317 = vadd.f32 %v1337, %v3316
        %v3318 = vpop.f32.mrb[0].mxu0
        %v3319 = vadd.f32 %v1341, %v3318
        %3320 = vmatprep.mubr.f32.mxu0 %v453
        %3321 = vmatmul.mubr.f32.gmra.mrb[0].mxu0 %v452
        %v3322 = vpop.f32.mrb[0].mxu0
        %v3323 = vadd.f32 %v1337, %v3322
        %v3324 = vpop.f32.mrb[0].mxu0
        %v3325 = vadd.f32 %v1341, %v3324
        %3326 = vmatprep.mubr.f32.mxu0 %v461
        %3327 = vmatmul.mubr.f32.gmra.mrb[0].mxu0 %v460
        %v3328 = vpop.f32.mrb[0].mxu0
        %v3329 = vadd.f32 %v1337, %v3328
        %v3330 = vpop.f32.mrb[0].mxu0
        %v3331 = vadd.f32 %v1341, %v3330
        %3332 = vmatprep.mubr.f32.mxu0 %v469
        %3333 = vmatmul.mubr.f32.gmra.mrb[0].mxu0 %v468
        %v3334 = vpop.f32.mrb[0].mxu0
        %v3335 = vadd.f32 %v1337, %v3334
        %v3336 = vpop.f32.mrb[0].mxu0
        %v3337 = vadd.f32 %v1341, %v3336
        %3338 = vmatprep.mubr.f32.mxu0 %v477
        %3339 = vmatmul.mubr.f32.gmra.mrb[0].mxu0 %v476
        %v3340 = vpop.f32.mrb[0].mxu0
        %v3341 = vadd.f32 %v1337, %v3340
        %v3342 = vpop.f32.mrb[0].mxu0
        %v3343 = vadd.f32 %v1341, %v3342
        %3344 = vmatprep.mubr.f32.mxu0 %v485
        %3345 = vmatmul.mubr.f32.gmra.mrb[0].mxu0 %v484
        %v3346 = vpop.f32.mrb[0].mxu0
        %v3347 = vadd.f32 %v1337, %v3346
        %v3348 = vpop.f32.mrb[0].mxu0
        %v3349 = vadd.f32 %v1341, %v3348
        %3350 = vmatprep.mubr.f32.mxu0 %v493
        %3351 = vmatmul.mubr.f32.gmra.mrb[0].mxu0 %v492
        %v3352 = vpop.f32.mrb[0].mxu0
        %v3353 = vadd.f32 %v1337, %v3352
        %v3354 = vpop.f32.mrb[0].mxu0
        %v3355 = vadd.f32 %v1341, %v3354
        %3356 = vmatprep.mubr.f32.mxu0 %v501
        %3357 = vmatmul.mubr.f32.gmra.mrb[0].mxu0 %v500
        %v3358 = vpop.f32.mrb[0].mxu0
        %v3359 = vadd.f32 %v1337, %v3358
        %v3360 = vpop.f32.mrb[0].mxu0
        %v3361 = vadd.f32 %v1341, %v3360
        %3362 = vmatprep.mubr.f32.mxu0 %v509
        %3363 = vmatmul.mubr.f32.gmra.mrb[0].mxu0 %v508
        %v3364 = vpop.f32.mrb[0].mxu0
        %v3365 = vadd.f32 %v1337, %v3364
        %v3366 = vpop.f32.mrb[0].mxu0
        %v3367 = vadd.f32 %v1341, %v3366
        %3368 = vmatprep.mubr.f32.mxu0 %v517
        %3369 = vmatmul.mubr.f32.gmra.mrb[0].mxu0 %v516
        %v3370 = vpop.f32.mrb[0].mxu0
        %v3371 = vadd.f32 %v1337, %v3370
        %v3372 = vpop.f32.mrb[0].mxu0
        %v3373 = vadd.f32 %v1341, %v3372
        %3374 = vmatprep.mubr.f32.mxu0 %v525
        %3375 = vmatmul.mubr.f32.gmra.mrb[0].mxu0 %v524
        %v3376 = vpop.f32.mrb[0].mxu0
        %v3377 = vadd.f32 %v1337, %v3376
        %v3378 = vpop.f32.mrb[0].mxu0
        %v3379 = vadd.f32 %v1341, %v3378
        %3380 = vmatprep.mubr.f32.mxu0 %v533
        %3381 = vmatmul.mubr.f32.gmra.mrb[0].mxu0 %v532
        %v3382 = vpop.f32.mrb[0].mxu0
        %v3383 = vadd.f32 %v1337, %v3382
        %v3384 = vpop.f32.mrb[0].mxu0
        %v3385 = vadd.f32 %v1341, %v3384
        %3386 = vmatprep.mubr.f32.mxu0 %v541
        %3387 = vmatmul.mubr.f32.gmra.mrb[0].mxu0 %v540
        %v3388 = vpop.f32.mrb[0].mxu0
        %v3389 = vadd.f32 %v1337, %v3388
        %v3390 = vpop.f32.mrb[0].mxu0
        %v3391 = vadd.f32 %v1341, %v3390
        %3392 = vmatprep.mubr.f32.mxu0 %v549
        %3393 = vmatmul.mubr.f32.gmra.mrb[0].mxu0 %v548
        %v3394 = vpop.f32.mrb[0].mxu0
        %v3395 = vadd.f32 %v1337, %v3394
        %v3396 = vpop.f32.mrb[0].mxu0
        %v3397 = vadd.f32 %v1341, %v3396
        %3398 = vmatprep.mubr.f32.mxu0 %v557
        %3399 = vmatmul.mubr.f32.gmra.mrb[0].mxu0 %v556
        %v3400 = vpop.f32.mrb[0].mxu0
        %v3401 = vadd.f32 %v1337, %v3400
        %v3402 = vpop.f32.mrb[0].mxu0
        %v3403 = vadd.f32 %v1341, %v3402
        %3404 = vmatprep.mubr.f32.mxu0 %v565
        %3405 = vmatmul.mubr.f32.gmra.mrb[0].mxu0 %v564
        %v3406 = vpop.f32.mrb[0].mxu0
        %v3407 = vadd.f32 %v1337, %v3406
        %v3408 = vpop.f32.mrb[0].mxu0
        %v3409 = vadd.f32 %v1341, %v3408
        %3410 = vmatprep.mubr.f32.mxu0 %v573
        %3411 = vmatmul.mubr.f32.gmra.mrb[0].mxu0 %v572
        %v3412 = vpop.f32.mrb[0].mxu0
        %v3413 = vadd.f32 %v1337, %v3412
        %v3414 = vpop.f32.mrb[0].mxu0
        %v3415 = vadd.f32 %v1341, %v3414
        %3416 = vmatprep.mubr.f32.mxu0 %v581
        %3417 = vmatmul.mubr.f32.gmra.mrb[0].mxu0 %v580
        %v3418 = vpop.f32.mrb[0].mxu0
        %v3419 = vadd.f32 %v1337, %v3418
        %v3420 = vpop.f32.mrb[0].mxu0
        %v3421 = vadd.f32 %v1341, %v3420
        %3422 = vmatprep.mubr.f32.mxu0 %v589
        %3423 = vmatmul.mubr.f32.gmra.mrb[0].mxu0 %v588
        %v3424 = vpop.f32.mrb[0].mxu0
        %v3425 = vadd.f32 %v1337, %v3424
        %v3426 = vpop.f32.mrb[0].mxu0
        %v3427 = vadd.f32 %v1341, %v3426
        %3428 = vmatprep.mubr.f32.mxu0 %v597
        %3429 = vmatmul.mubr.f32.gmra.mrb[0].mxu0 %v596
        %v3430 = vpop.f32.mrb[0].mxu0
        %v3431 = vadd.f32 %v1337, %v3430
        %v3432 = vpop.f32.mrb[0].mxu0
        %v3433 = vadd.f32 %v1341, %v3432
        %3434 = vmatprep.mubr.f32.mxu0 %v605
        %3435 = vmatmul.mubr.f32.gmra.mrb[0].mxu0 %v604
        %v3436 = vpop.f32.mrb[0].mxu0
        %v3437 = vadd.f32 %v1337, %v3436
        %v3438 = vpop.f32.mrb[0].mxu0
        %v3439 = vadd.f32 %v1341, %v3438
        %3440 = vmatprep.mubr.f32.mxu0 %v613
        %3441 = vmatmul.mubr.f32.gmra.mrb[0].mxu0 %v612
        %v3442 = vpop.f32.mrb[0].mxu0
        %v3443 = vadd.f32 %v1337, %v3442
        %v3444 = vpop.f32.mrb[0].mxu0
        %v3445 = vadd.f32 %v1341, %v3444
        %3446 = vmatprep.mubr.f32.mxu0 %v621
        %3447 = vmatmul.mubr.f32.gmra.mrb[0].mxu0 %v620
        %v3448 = vpop.f32.mrb[0].mxu0
        %v3449 = vadd.f32 %v1337, %v3448
        %v3450 = vpop.f32.mrb[0].mxu0
        %v3451 = vadd.f32 %v1341, %v3450
        %3452 = vmatprep.mubr.f32.mxu0 %v629
        %3453 = vmatmul.mubr.f32.gmra.mrb[0].mxu0 %v628
        %v3454 = vpop.f32.mrb[0].mxu0
        %v3455 = vadd.f32 %v1337, %v3454
        %v3456 = vpop.f32.mrb[0].mxu0
        %v3457 = vadd.f32 %v1341, %v3456
        %3458 = vmatprep.mubr.f32.mxu0 %v637
        %3459 = vmatmul.mubr.f32.gmra.mrb[0].mxu0 %v636
        %v3460 = vpop.f32.mrb[0].mxu0
        %v3461 = vadd.f32 %v1337, %v3460
        %v3462 = vpop.f32.mrb[0].mxu0
        %v3463 = vadd.f32 %v1341, %v3462
        %3464 = vmatprep.mubr.f32.mxu0 %v645
        %3465 = vmatmul.mubr.f32.gmra.mrb[0].mxu0 %v644
        %v3466 = vpop.f32.mrb[0].mxu0
        %v3467 = vadd.f32 %v1337, %v3466
        %v3468 = vpop.f32.mrb[0].mxu0
        %v3469 = vadd.f32 %v1341, %v3468
        %3470 = vmatprep.mubr.f32.mxu0 %v653
        %3471 = vmatmul.mubr.f32.gmra.mrb[0].mxu0 %v652
        %v3472 = vpop.f32.mrb[0].mxu0
        %v3473 = vadd.f32 %v1337, %v3472
        %v3474 = vpop.f32.mrb[0].mxu0
        %v3475 = vadd.f32 %v1341, %v3474
        %3476 = vmatprep.mubr.f32.mxu0 %v661
        %3477 = vmatmul.mubr.f32.gmra.mrb[0].mxu0 %v660
        %v3478 = vpop.f32.mrb[0].mxu0
        %v3479 = vadd.f32 %v1337, %v3478
        %v3480 = vpop.f32.mrb[0].mxu0
        %v3481 = vadd.f32 %v1341, %v3480
        %3482 = vmatprep.mubr.f32.mxu0 %v669
        %3483 = vmatmul.mubr.f32.gmra.mrb[0].mxu0 %v668
        %v3484 = vpop.f32.mrb[0].mxu0
        %v3485 = vadd.f32 %v1337, %v3484
        %v3486 = vpop.f32.mrb[0].mxu0
        %v3487 = vadd.f32 %v1341, %v3486
        %3488 = vmatprep.mubr.f32.mxu0 %v677
        %3489 = vmatmul.mubr.f32.gmra.mrb[0].mxu0 %v676
        %v3490 = vpop.f32.mrb[0].mxu0
        %v3491 = vadd.f32 %v1337, %v3490
        %v3492 = vpop.f32.mrb[0].mxu0
        %v3493 = vadd.f32 %v1341, %v3492
        %3494 = vmatprep.mubr.f32.mxu0 %v685
        %3495 = vmatmul.mubr.f32.gmra.mrb[0].mxu0 %v684
        %v3496 = vpop.f32.mrb[0].mxu0
        %v3497 = vadd.f32 %v1337, %v3496
        %v3498 = vpop.f32.mrb[0].mxu0
        %v3499 = vadd.f32 %v1341, %v3498
        %3500 = vmatprep.mubr.f32.mxu0 %v693
        %3501 = vmatmul.mubr.f32.gmra.mrb[0].mxu0 %v692
        %v3502 = vpop.f32.mrb[0].mxu0
        %v3503 = vadd.f32 %v1337, %v3502
        %v3504 = vpop.f32.mrb[0].mxu0
        %v3505 = vadd.f32 %v1341, %v3504
        %3506 = vmatprep.mubr.f32.mxu0 %v701
        %3507 = vmatmul.mubr.f32.gmra.mrb[0].mxu0 %v700
        %v3508 = vpop.f32.mrb[0].mxu0
        %v3509 = vadd.f32 %v1337, %v3508
        %v3510 = vpop.f32.mrb[0].mxu0
        %v3511 = vadd.f32 %v1341, %v3510
        %3512 = vmatprep.mubr.f32.mxu0 %v709
        %3513 = vmatmul.mubr.f32.gmra.mrb[0].mxu0 %v708
        %v3514 = vpop.f32.mrb[0].mxu0
        %v3515 = vadd.f32 %v1337, %v3514
        %v3516 = vpop.f32.mrb[0].mxu0
        %v3517 = vadd.f32 %v1341, %v3516
        %3518 = vmatprep.mubr.f32.mxu0 %v717
        %3519 = vmatmul.mubr.f32.gmra.mrb[0].mxu0 %v716
        %v3520 = vpop.f32.mrb[0].mxu0
        %v3521 = vadd.f32 %v1337, %v3520
        %v3522 = vpop.f32.mrb[0].mxu0
        %v3523 = vadd.f32 %v1341, %v3522
        %3524 = vmatprep.mubr.f32.mxu0 %v725
        %3525 = vmatmul.mubr.f32.gmra.mrb[0].mxu0 %v724
        %v3526 = vpop.f32.mrb[0].mxu0
        %v3527 = vadd.f32 %v1337, %v3526
        %v3528 = vpop.f32.mrb[0].mxu0
        %v3529 = vadd.f32 %v1341, %v3528
        %3530 = vmatprep.mubr.f32.mxu0 %v733
        %3531 = vmatmul.mubr.f32.gmra.mrb[0].mxu0 %v732
        %v3532 = vpop.f32.mrb[0].mxu0
        %v3533 = vadd.f32 %v1337, %v3532
        %v3534 = vpop.f32.mrb[0].mxu0
        %v3535 = vadd.f32 %v1341, %v3534
        %3536 = vmatprep.mubr.f32.mxu0 %v741
        %3537 = vmatmul.mubr.f32.gmra.mrb[0].mxu0 %v740
        %v3538 = vpop.f32.mrb[0].mxu0
        %v3539 = vadd.f32 %v1337, %v3538
        %v3540 = vpop.f32.mrb[0].mxu0
        %v3541 = vadd.f32 %v1341, %v3540
        %3542 = vmatprep.mubr.f32.mxu0 %v749
        %3543 = vmatmul.mubr.f32.gmra.mrb[0].mxu0 %v748
        %v3544 = vpop.f32.mrb[0].mxu0
        %v3545 = vadd.f32 %v1337, %v3544
        %v3546 = vpop.f32.mrb[0].mxu0
        %v3547 = vadd.f32 %v1341, %v3546
        %3548 = vmatprep.mubr.f32.mxu0 %v757
        %3549 = vmatmul.mubr.f32.gmra.mrb[0].mxu0 %v756
        %v3550 = vpop.f32.mrb[0].mxu0
        %v3551 = vadd.f32 %v1337, %v3550
        %v3552 = vpop.f32.mrb[0].mxu0
        %v3553 = vadd.f32 %v1341, %v3552
        %3554 = vmatprep.mubr.f32.mxu0 %v765
        %3555 = vmatmul.mubr.f32.gmra.mrb[0].mxu0 %v764
        %v3556 = vpop.f32.mrb[0].mxu0
        %v3557 = vadd.f32 %v1337, %v3556
        %v3558 = vpop.f32.mrb[0].mxu0
        %v3559 = vadd.f32 %v1341, %v3558
        %3560 = vmatprep.mubr.f32.mxu0 %v773
        %3561 = vmatmul.mubr.f32.gmra.mrb[0].mxu0 %v772
        %v3562 = vpop.f32.mrb[0].mxu0
        %v3563 = vadd.f32 %v1337, %v3562
        %v3564 = vpop.f32.mrb[0].mxu0
        %v3565 = vadd.f32 %v1341, %v3564
        %3566 = vmatprep.mubr.f32.mxu0 %v781
        %3567 = vmatmul.mubr.f32.gmra.mrb[0].mxu0 %v780
        %v3568 = vpop.f32.mrb[0].mxu0
        %v3569 = vadd.f32 %v1337, %v3568
        %v3570 = vpop.f32.mrb[0].mxu0
        %v3571 = vadd.f32 %v1341, %v3570
        %3572 = vmatprep.mubr.f32.mxu0 %v789
        %3573 = vmatmul.mubr.f32.gmra.mrb[0].mxu0 %v788
        %v3574 = vpop.f32.mrb[0].mxu0
        %v3575 = vadd.f32 %v1337, %v3574
        %v3576 = vpop.f32.mrb[0].mxu0
        %v3577 = vadd.f32 %v1341, %v3576
        %3578 = vmatprep.mubr.f32.mxu0 %v797
        %3579 = vmatmul.mubr.f32.gmra.mrb[0].mxu0 %v796
        %v3580 = vpop.f32.mrb[0].mxu0
        %v3581 = vadd.f32 %v1337, %v3580
        %v3582 = vpop.f32.mrb[0].mxu0
        %v3583 = vadd.f32 %v1341, %v3582
        %3584 = vmatprep.mubr.f32.mxu0 %v805
        %3585 = vmatmul.mubr.f32.gmra.mrb[0].mxu0 %v804
        %v3586 = vpop.f32.mrb[0].mxu0
        %v3587 = vadd.f32 %v1337, %v3586
        %v3588 = vpop.f32.mrb[0].mxu0
        %v3589 = vadd.f32 %v1341, %v3588
        %3590 = vdwg.mxu0
        %3591 = vmatprep.subr.mxu0 %v943
        %3592 = vmatpush1.msra.mxu0 %v942
        %3593 = vmatprep.subr.mxu0 %v947
        %3594 = vmatpush1.msra.mxu0 %v946
        %3595 = vmatprep.subr.mxu0 %v951
        %3596 = vmatpush1.msra.mxu0 %v950
        %3597 = vmatprep.subr.mxu0 %v955
        %3598 = vmatpush1.msra.mxu0 %v954
        %3599 = vmatprep.subr.mxu0 %v959
        %3600 = vmatpush1.msra.mxu0 %v958
        %3601 = vmatprep.subr.mxu0 %v963
        %3602 = vmatpush1.msra.mxu0 %v962
        %3603 = vmatprep.subr.mxu0 %v967
        %3604 = vmatpush1.msra.mxu0 %v966
        %3605 = vmatprep.subr.mxu0 %v971
        %3606 = vmatpush1.msra.mxu0 %v970
        %3607 = vmatprep.subr.mxu0 %v975
        %3608 = vmatpush1.msra.mxu0 %v974
        %3609 = vmatprep.subr.mxu0 %v979
        %3610 = vmatpush1.msra.mxu0 %v978
        %3611 = vmatprep.subr.mxu0 %v983
        %3612 = vmatpush1.msra.mxu0 %v982
        %3613 = vmatprep.subr.mxu0 %v987
        %3614 = vmatpush1.msra.mxu0 %v986
        %3615 = vmatprep.subr.mxu0 %v991
        %3616 = vmatpush1.msra.mxu0 %v990
        %3617 = vmatprep.subr.mxu0 %v995
        %3618 = vmatpush1.msra.mxu0 %v994
        %3619 = vmatprep.subr.mxu0 %v999
        %3620 = vmatpush1.msra.mxu0 %v998
        %3621 = vmatprep.subr.mxu0 %v1003
        %3622 = vmatpush1.msra.mxu0 %v1002
        %3623 = vmatprep.subr.mxu0 %v1007
        %3624 = vmatpush1.msra.mxu0 %v1006
        %3625 = vmatprep.subr.mxu0 %v1011
        %3626 = vmatpush1.msra.mxu0 %v1010
        %3627 = vmatprep.subr.mxu0 %v1015
        %3628 = vmatpush1.msra.mxu0 %v1014
        %3629 = vmatprep.subr.mxu0 %v1019
        %3630 = vmatpush1.msra.mxu0 %v1018
        %3631 = vmatprep.subr.mxu0 %v1023
        %3632 = vmatpush1.msra.mxu0 %v1022
        %3633 = vmatprep.subr.mxu0 %v1027
        %3634 = vmatpush1.msra.mxu0 %v1026
        %3635 = vmatprep.subr.mxu0 %v1031
        %3636 = vmatpush1.msra.mxu0 %v1030
        %3637 = vmatprep.subr.mxu0 %v1035
        %3638 = vmatpush1.msra.mxu0 %v1034
        %3639 = vmatprep.subr.mxu0 %v1039
        %3640 = vmatpush1.msra.mxu0 %v1038
        %3641 = vmatprep.subr.mxu0 %v1043
        %3642 = vmatpush1.msra.mxu0 %v1042
        %3643 = vmatprep.subr.mxu0 %v1047
        %3644 = vmatpush1.msra.mxu0 %v1046
        %3645 = vmatprep.subr.mxu0 %v1051
        %3646 = vmatpush1.msra.mxu0 %v1050
        %3647 = vmatprep.subr.mxu0 %v1055
        %3648 = vmatpush1.msra.mxu0 %v1054
        %3649 = vmatprep.subr.mxu0 %v1059
        %3650 = vmatpush1.msra.mxu0 %v1058
        %3651 = vmatprep.subr.mxu0 %v1063
        %3652 = vmatpush1.msra.mxu0 %v1062
        %3653 = vmatprep.subr.mxu0 %v1067
        %3654 = vmatpush1.msra.mxu0 %v1066
        %3655 = vmatprep.mubr.f32.mxu0 %v303
        %3656 = vmatmul.mubr.f32.gmra.mrb[0].mxu0 %v302
        %v3657 = vpop.f32.mrb[0].mxu0
        %v3658 = vadd.f32 %v3209, %v3657
        %v3659 = vpop.f32.mrb[0].mxu0
        %v3660 = vadd.f32 %v3211, %v3659
        %3661 = vmatprep.mubr.f32.mxu0 %v311
        %3662 = vmatmul.mubr.f32.gmra.mrb[0].mxu0 %v310
        %v3663 = vpop.f32.mrb[0].mxu0
        %v3664 = vadd.f32 %v3215, %v3663
        %v3665 = vpop.f32.mrb[0].mxu0
        %v3666 = vadd.f32 %v3217, %v3665
        %3667 = vmatprep.mubr.f32.mxu0 %v319
        %3668 = vmatmul.mubr.f32.gmra.mrb[0].mxu0 %v318
        %v3669 = vpop.f32.mrb[0].mxu0
        %v3670 = vadd.f32 %v3221, %v3669
        %v3671 = vpop.f32.mrb[0].mxu0
        %v3672 = vadd.f32 %v3223, %v3671
        %3673 = vmatprep.mubr.f32.mxu0 %v327
        %3674 = vmatmul.mubr.f32.gmra.mrb[0].mxu0 %v326
        %v3675 = vpop.f32.mrb[0].mxu0
        %v3676 = vadd.f32 %v3227, %v3675
        %v3677 = vpop.f32.mrb[0].mxu0
        %v3678 = vadd.f32 %v3229, %v3677
        %3679 = vmatprep.mubr.f32.mxu0 %v335
        %3680 = vmatmul.mubr.f32.gmra.mrb[0].mxu0 %v334
        %v3681 = vpop.f32.mrb[0].mxu0
        %v3682 = vadd.f32 %v3233, %v3681
        %v3683 = vpop.f32.mrb[0].mxu0
        %v3684 = vadd.f32 %v3235, %v3683
        %3685 = vmatprep.mubr.f32.mxu0 %v343
        %3686 = vmatmul.mubr.f32.gmra.mrb[0].mxu0 %v342
        %v3687 = vpop.f32.mrb[0].mxu0
        %v3688 = vadd.f32 %v3239, %v3687
        %v3689 = vpop.f32.mrb[0].mxu0
        %v3690 = vadd.f32 %v3241, %v3689
        %3691 = vmatprep.mubr.f32.mxu0 %v351
        %3692 = vmatmul.mubr.f32.gmra.mrb[0].mxu0 %v350
        %v3693 = vpop.f32.mrb[0].mxu0
        %v3694 = vadd.f32 %v3245, %v3693
        %v3695 = vpop.f32.mrb[0].mxu0
        %v3696 = vadd.f32 %v3247, %v3695
        %3697 = vmatprep.mubr.f32.mxu0 %v359
        %3698 = vmatmul.mubr.f32.gmra.mrb[0].mxu0 %v358
        %v3699 = vpop.f32.mrb[0].mxu0
        %v3700 = vadd.f32 %v3251, %v3699
        %v3701 = vpop.f32.mrb[0].mxu0
        %v3702 = vadd.f32 %v3253, %v3701
        %3703 = vmatprep.mubr.f32.mxu0 %v367
        %3704 = vmatmul.mubr.f32.gmra.mrb[0].mxu0 %v366
        %v3705 = vpop.f32.mrb[0].mxu0
        %v3706 = vadd.f32 %v3257, %v3705
        %v3707 = vpop.f32.mrb[0].mxu0
        %v3708 = vadd.f32 %v3259, %v3707
        %3709 = vmatprep.mubr.f32.mxu0 %v375
        %3710 = vmatmul.mubr.f32.gmra.mrb[0].mxu0 %v374
        %v3711 = vpop.f32.mrb[0].mxu0
        %v3712 = vadd.f32 %v3263, %v3711
        %v3713 = vpop.f32.mrb[0].mxu0
        %v3714 = vadd.f32 %v3265, %v3713
        %3715 = vmatprep.mubr.f32.mxu0 %v383
        %3716 = vmatmul.mubr.f32.gmra.mrb[0].mxu0 %v382
        %v3717 = vpop.f32.mrb[0].mxu0
        %v3718 = vadd.f32 %v3269, %v3717
        %v3719 = vpop.f32.mrb[0].mxu0
        %v3720 = vadd.f32 %v3271, %v3719
        %3721 = vmatprep.mubr.f32.mxu0 %v391
        %3722 = vmatmul.mubr.f32.gmra.mrb[0].mxu0 %v390
        %v3723 = vpop.f32.mrb[0].mxu0
        %v3724 = vadd.f32 %v3275, %v3723
        %v3725 = vpop.f32.mrb[0].mxu0
        %v3726 = vadd.f32 %v3277, %v3725
        %3727 = vmatprep.mubr.f32.mxu0 %v399
        %3728 = vmatmul.mubr.f32.gmra.mrb[0].mxu0 %v398
        %v3729 = vpop.f32.mrb[0].mxu0
        %v3730 = vadd.f32 %v3281, %v3729
        %v3731 = vpop.f32.mrb[0].mxu0
        %v3732 = vadd.f32 %v3283, %v3731
        %3733 = vmatprep.mubr.f32.mxu0 %v407
        %3734 = vmatmul.mubr.f32.gmra.mrb[0].mxu0 %v406
        %v3735 = vpop.f32.mrb[0].mxu0
        %v3736 = vadd.f32 %v3287, %v3735
        %v3737 = vpop.f32.mrb[0].mxu0
        %v3738 = vadd.f32 %v3289, %v3737
        %3739 = vmatprep.mubr.f32.mxu0 %v415
        %3740 = vmatmul.mubr.f32.gmra.mrb[0].mxu0 %v414
        %v3741 = vpop.f32.mrb[0].mxu0
        %v3742 = vadd.f32 %v3293, %v3741
        %v3743 = vpop.f32.mrb[0].mxu0
        %v3744 = vadd.f32 %v3295, %v3743
        %3745 = vmatprep.mubr.f32.mxu0 %v423
        %3746 = vmatmul.mubr.f32.gmra.mrb[0].mxu0 %v422
        %v3747 = vpop.f32.mrb[0].mxu0
        %v3748 = vadd.f32 %v3299, %v3747
        %v3749 = vpop.f32.mrb[0].mxu0
        %v3750 = vadd.f32 %v3301, %v3749
        %3751 = vmatprep.mubr.f32.mxu0 %v431
        %3752 = vmatmul.mubr.f32.gmra.mrb[0].mxu0 %v430
        %v3753 = vpop.f32.mrb[0].mxu0
        %v3754 = vadd.f32 %v3305, %v3753
        %v3755 = vpop.f32.mrb[0].mxu0
        %v3756 = vadd.f32 %v3307, %v3755
        %3757 = vmatprep.mubr.f32.mxu0 %v439
        %3758 = vmatmul.mubr.f32.gmra.mrb[0].mxu0 %v438
        %v3759 = vpop.f32.mrb[0].mxu0
        %v3760 = vadd.f32 %v3311, %v3759
        %v3761 = vpop.f32.mrb[0].mxu0
        %v3762 = vadd.f32 %v3313, %v3761
        %3763 = vmatprep.mubr.f32.mxu0 %v447
        %3764 = vmatmul.mubr.f32.gmra.mrb[0].mxu0 %v446
        %v3765 = vpop.f32.mrb[0].mxu0
        %v3766 = vadd.f32 %v3317, %v3765
        %v3767 = vpop.f32.mrb[0].mxu0
        %v3768 = vadd.f32 %v3319, %v3767
        %3769 = vmatprep.mubr.f32.mxu0 %v455
        %3770 = vmatmul.mubr.f32.gmra.mrb[0].mxu0 %v454
        %v3771 = vpop.f32.mrb[0].mxu0
        %v3772 = vadd.f32 %v3323, %v3771
        %v3773 = vpop.f32.mrb[0].mxu0
        %v3774 = vadd.f32 %v3325, %v3773
        %3775 = vmatprep.mubr.f32.mxu0 %v463
        %3776 = vmatmul.mubr.f32.gmra.mrb[0].mxu0 %v462
        %v3777 = vpop.f32.mrb[0].mxu0
        %v3778 = vadd.f32 %v3329, %v3777
        %v3779 = vpop.f32.mrb[0].mxu0
        %v3780 = vadd.f32 %v3331, %v3779
        %3781 = vmatprep.mubr.f32.mxu0 %v471
        %3782 = vmatmul.mubr.f32.gmra.mrb[0].mxu0 %v470
        %v3783 = vpop.f32.mrb[0].mxu0
        %v3784 = vadd.f32 %v3335, %v3783
        %v3785 = vpop.f32.mrb[0].mxu0
        %v3786 = vadd.f32 %v3337, %v3785
        %3787 = vmatprep.mubr.f32.mxu0 %v479
        %3788 = vmatmul.mubr.f32.gmra.mrb[0].mxu0 %v478
        %v3789 = vpop.f32.mrb[0].mxu0
        %v3790 = vadd.f32 %v3341, %v3789
        %v3791 = vpop.f32.mrb[0].mxu0
        %v3792 = vadd.f32 %v3343, %v3791
        %3793 = vmatprep.mubr.f32.mxu0 %v487
        %3794 = vmatmul.mubr.f32.gmra.mrb[0].mxu0 %v486
        %v3795 = vpop.f32.mrb[0].mxu0
        %v3796 = vadd.f32 %v3347, %v3795
        %v3797 = vpop.f32.mrb[0].mxu0
        %v3798 = vadd.f32 %v3349, %v3797
        %3799 = vmatprep.mubr.f32.mxu0 %v495
        %3800 = vmatmul.mubr.f32.gmra.mrb[0].mxu0 %v494
        %v3801 = vpop.f32.mrb[0].mxu0
        %v3802 = vadd.f32 %v3353, %v3801
        %v3803 = vpop.f32.mrb[0].mxu0
        %v3804 = vadd.f32 %v3355, %v3803
        %3805 = vmatprep.mubr.f32.mxu0 %v503
        %3806 = vmatmul.mubr.f32.gmra.mrb[0].mxu0 %v502
        %v3807 = vpop.f32.mrb[0].mxu0
        %v3808 = vadd.f32 %v3359, %v3807
        %v3809 = vpop.f32.mrb[0].mxu0
        %v3810 = vadd.f32 %v3361, %v3809
        %3811 = vmatprep.mubr.f32.mxu0 %v511
        %3812 = vmatmul.mubr.f32.gmra.mrb[0].mxu0 %v510
        %v3813 = vpop.f32.mrb[0].mxu0
        %v3814 = vadd.f32 %v3365, %v3813
        %v3815 = vpop.f32.mrb[0].mxu0
        %v3816 = vadd.f32 %v3367, %v3815
        %3817 = vmatprep.mubr.f32.mxu0 %v519
        %3818 = vmatmul.mubr.f32.gmra.mrb[0].mxu0 %v518
        %v3819 = vpop.f32.mrb[0].mxu0
        %v3820 = vadd.f32 %v3371, %v3819
        %v3821 = vpop.f32.mrb[0].mxu0
        %v3822 = vadd.f32 %v3373, %v3821
        %3823 = vmatprep.mubr.f32.mxu0 %v527
        %3824 = vmatmul.mubr.f32.gmra.mrb[0].mxu0 %v526
        %v3825 = vpop.f32.mrb[0].mxu0
        %v3826 = vadd.f32 %v3377, %v3825
        %v3827 = vpop.f32.mrb[0].mxu0
        %v3828 = vadd.f32 %v3379, %v3827
        %3829 = vmatprep.mubr.f32.mxu0 %v535
        %3830 = vmatmul.mubr.f32.gmra.mrb[0].mxu0 %v534
        %v3831 = vpop.f32.mrb[0].mxu0
        %v3832 = vadd.f32 %v3383, %v3831
        %v3833 = vpop.f32.mrb[0].mxu0
        %v3834 = vadd.f32 %v3385, %v3833
        %3835 = vmatprep.mubr.f32.mxu0 %v543
        %3836 = vmatmul.mubr.f32.gmra.mrb[0].mxu0 %v542
        %v3837 = vpop.f32.mrb[0].mxu0
        %v3838 = vadd.f32 %v3389, %v3837
        %v3839 = vpop.f32.mrb[0].mxu0
        %v3840 = vadd.f32 %v3391, %v3839
        %3841 = vmatprep.mubr.f32.mxu0 %v551
        %3842 = vmatmul.mubr.f32.gmra.mrb[0].mxu0 %v550
        %v3843 = vpop.f32.mrb[0].mxu0
        %v3844 = vadd.f32 %v3395, %v3843
        %v3845 = vpop.f32.mrb[0].mxu0
        %v3846 = vadd.f32 %v3397, %v3845
        %3847 = vmatprep.mubr.f32.mxu0 %v559
        %3848 = vmatmul.mubr.f32.gmra.mrb[0].mxu0 %v558
        %v3849 = vpop.f32.mrb[0].mxu0
        %v3850 = vadd.f32 %v3401, %v3849
        %v3851 = vpop.f32.mrb[0].mxu0
        %v3852 = vadd.f32 %v3403, %v3851
        %3853 = vmatprep.mubr.f32.mxu0 %v567
        %3854 = vmatmul.mubr.f32.gmra.mrb[0].mxu0 %v566
        %v3855 = vpop.f32.mrb[0].mxu0
        %v3856 = vadd.f32 %v3407, %v3855
        %v3857 = vpop.f32.mrb[0].mxu0
        %v3858 = vadd.f32 %v3409, %v3857
        %3859 = vmatprep.mubr.f32.mxu0 %v575
        %3860 = vmatmul.mubr.f32.gmra.mrb[0].mxu0 %v574
        %v3861 = vpop.f32.mrb[0].mxu0
        %v3862 = vadd.f32 %v3413, %v3861
        %v3863 = vpop.f32.mrb[0].mxu0
        %v3864 = vadd.f32 %v3415, %v3863
        %3865 = vmatprep.mubr.f32.mxu0 %v583
        %3866 = vmatmul.mubr.f32.gmra.mrb[0].mxu0 %v582
        %v3867 = vpop.f32.mrb[0].mxu0
        %v3868 = vadd.f32 %v3419, %v3867
        %v3869 = vpop.f32.mrb[0].mxu0
        %v3870 = vadd.f32 %v3421, %v3869
        %3871 = vmatprep.mubr.f32.mxu0 %v591
        %3872 = vmatmul.mubr.f32.gmra.mrb[0].mxu0 %v590
        %v3873 = vpop.f32.mrb[0].mxu0
        %v3874 = vadd.f32 %v3425, %v3873
        %v3875 = vpop.f32.mrb[0].mxu0
        %v3876 = vadd.f32 %v3427, %v3875
        %3877 = vmatprep.mubr.f32.mxu0 %v599
        %3878 = vmatmul.mubr.f32.gmra.mrb[0].mxu0 %v598
        %v3879 = vpop.f32.mrb[0].mxu0
        %v3880 = vadd.f32 %v3431, %v3879
        %v3881 = vpop.f32.mrb[0].mxu0
        %v3882 = vadd.f32 %v3433, %v3881
        %3883 = vmatprep.mubr.f32.mxu0 %v607
        %3884 = vmatmul.mubr.f32.gmra.mrb[0].mxu0 %v606
        %v3885 = vpop.f32.mrb[0].mxu0
        %v3886 = vadd.f32 %v3437, %v3885
        %v3887 = vpop.f32.mrb[0].mxu0
        %v3888 = vadd.f32 %v3439, %v3887
        %3889 = vmatprep.mubr.f32.mxu0 %v615
        %3890 = vmatmul.mubr.f32.gmra.mrb[0].mxu0 %v614
        %v3891 = vpop.f32.mrb[0].mxu0
        %v3892 = vadd.f32 %v3443, %v3891
        %v3893 = vpop.f32.mrb[0].mxu0
        %v3894 = vadd.f32 %v3445, %v3893
        %3895 = vmatprep.mubr.f32.mxu0 %v623
        %3896 = vmatmul.mubr.f32.gmra.mrb[0].mxu0 %v622
        %v3897 = vpop.f32.mrb[0].mxu0
        %v3898 = vadd.f32 %v3449, %v3897
        %v3899 = vpop.f32.mrb[0].mxu0
        %v3900 = vadd.f32 %v3451, %v3899
        %3901 = vmatprep.mubr.f32.mxu0 %v631
        %3902 = vmatmul.mubr.f32.gmra.mrb[0].mxu0 %v630
        %v3903 = vpop.f32.mrb[0].mxu0
        %v3904 = vadd.f32 %v3455, %v3903
        %v3905 = vpop.f32.mrb[0].mxu0
        %v3906 = vadd.f32 %v3457, %v3905
        %3907 = vmatprep.mubr.f32.mxu0 %v639
        %3908 = vmatmul.mubr.f32.gmra.mrb[0].mxu0 %v638
        %v3909 = vpop.f32.mrb[0].mxu0
        %v3910 = vadd.f32 %v3461, %v3909
        %v3911 = vpop.f32.mrb[0].mxu0
        %v3912 = vadd.f32 %v3463, %v3911
        %3913 = vmatprep.mubr.f32.mxu0 %v647
        %3914 = vmatmul.mubr.f32.gmra.mrb[0].mxu0 %v646
        %v3915 = vpop.f32.mrb[0].mxu0
        %v3916 = vadd.f32 %v3467, %v3915
        %v3917 = vpop.f32.mrb[0].mxu0
        %v3918 = vadd.f32 %v3469, %v3917
        %3919 = vmatprep.mubr.f32.mxu0 %v655
        %3920 = vmatmul.mubr.f32.gmra.mrb[0].mxu0 %v654
        %v3921 = vpop.f32.mrb[0].mxu0
        %v3922 = vadd.f32 %v3473, %v3921
        %v3923 = vpop.f32.mrb[0].mxu0
        %v3924 = vadd.f32 %v3475, %v3923
        %3925 = vmatprep.mubr.f32.mxu0 %v663
        %3926 = vmatmul.mubr.f32.gmra.mrb[0].mxu0 %v662
        %v3927 = vpop.f32.mrb[0].mxu0
        %v3928 = vadd.f32 %v3479, %v3927
        %v3929 = vpop.f32.mrb[0].mxu0
        %v3930 = vadd.f32 %v3481, %v3929
        %3931 = vmatprep.mubr.f32.mxu0 %v671
        %3932 = vmatmul.mubr.f32.gmra.mrb[0].mxu0 %v670
        %v3933 = vpop.f32.mrb[0].mxu0
        %v3934 = vadd.f32 %v3485, %v3933
        %v3935 = vpop.f32.mrb[0].mxu0
        %v3936 = vadd.f32 %v3487, %v3935
        %3937 = vmatprep.mubr.f32.mxu0 %v679
        %3938 = vmatmul.mubr.f32.gmra.mrb[0].mxu0 %v678
        %v3939 = vpop.f32.mrb[0].mxu0
        %v3940 = vadd.f32 %v3491, %v3939
        %v3941 = vpop.f32.mrb[0].mxu0
        %v3942 = vadd.f32 %v3493, %v3941
        %3943 = vmatprep.mubr.f32.mxu0 %v687
        %3944 = vmatmul.mubr.f32.gmra.mrb[0].mxu0 %v686
        %v3945 = vpop.f32.mrb[0].mxu0
        %v3946 = vadd.f32 %v3497, %v3945
        %v3947 = vpop.f32.mrb[0].mxu0
        %v3948 = vadd.f32 %v3499, %v3947
        %3949 = vmatprep.mubr.f32.mxu0 %v695
        %3950 = vmatmul.mubr.f32.gmra.mrb[0].mxu0 %v694
        %v3951 = vpop.f32.mrb[0].mxu0
        %v3952 = vadd.f32 %v3503, %v3951
        %v3953 = vpop.f32.mrb[0].mxu0
        %v3954 = vadd.f32 %v3505, %v3953
        %3955 = vmatprep.mubr.f32.mxu0 %v703
        %3956 = vmatmul.mubr.f32.gmra.mrb[0].mxu0 %v702
        %v3957 = vpop.f32.mrb[0].mxu0
        %v3958 = vadd.f32 %v3509, %v3957
        %v3959 = vpop.f32.mrb[0].mxu0
        %v3960 = vadd.f32 %v3511, %v3959
        %3961 = vmatprep.mubr.f32.mxu0 %v711
        %3962 = vmatmul.mubr.f32.gmra.mrb[0].mxu0 %v710
        %v3963 = vpop.f32.mrb[0].mxu0
        %v3964 = vadd.f32 %v3515, %v3963
        %v3965 = vpop.f32.mrb[0].mxu0
        %v3966 = vadd.f32 %v3517, %v3965
        %3967 = vmatprep.mubr.f32.mxu0 %v719
        %3968 = vmatmul.mubr.f32.gmra.mrb[0].mxu0 %v718
        %v3969 = vpop.f32.mrb[0].mxu0
        %v3970 = vadd.f32 %v3521, %v3969
        %v3971 = vpop.f32.mrb[0].mxu0
        %v3972 = vadd.f32 %v3523, %v3971
        %3973 = vmatprep.mubr.f32.mxu0 %v727
        %3974 = vmatmul.mubr.f32.gmra.mrb[0].mxu0 %v726
        %v3975 = vpop.f32.mrb[0].mxu0
        %v3976 = vadd.f32 %v3527, %v3975
        %v3977 = vpop.f32.mrb[0].mxu0
        %v3978 = vadd.f32 %v3529, %v3977
        %3979 = vmatprep.mubr.f32.mxu0 %v735
        %3980 = vmatmul.mubr.f32.gmra.mrb[0].mxu0 %v734
        %v3981 = vpop.f32.mrb[0].mxu0
        %v3982 = vadd.f32 %v3533, %v3981
        %v3983 = vpop.f32.mrb[0].mxu0
        %v3984 = vadd.f32 %v3535, %v3983
        %3985 = vmatprep.mubr.f32.mxu0 %v743
        %3986 = vmatmul.mubr.f32.gmra.mrb[0].mxu0 %v742
        %v3987 = vpop.f32.mrb[0].mxu0
        %v3988 = vadd.f32 %v3539, %v3987
        %v3989 = vpop.f32.mrb[0].mxu0
        %v3990 = vadd.f32 %v3541, %v3989
        %3991 = vmatprep.mubr.f32.mxu0 %v751
        %3992 = vmatmul.mubr.f32.gmra.mrb[0].mxu0 %v750
        %v3993 = vpop.f32.mrb[0].mxu0
        %v3994 = vadd.f32 %v3545, %v3993
        %v3995 = vpop.f32.mrb[0].mxu0
        %v3996 = vadd.f32 %v3547, %v3995
        %3997 = vmatprep.mubr.f32.mxu0 %v759
        %3998 = vmatmul.mubr.f32.gmra.mrb[0].mxu0 %v758
        %v3999 = vpop.f32.mrb[0].mxu0
        %v4000 = vadd.f32 %v3551, %v3999
        %v4001 = vpop.f32.mrb[0].mxu0
        %v4002 = vadd.f32 %v3553, %v4001
        %4003 = vmatprep.mubr.f32.mxu0 %v767
        %4004 = vmatmul.mubr.f32.gmra.mrb[0].mxu0 %v766
        %v4005 = vpop.f32.mrb[0].mxu0
        %v4006 = vadd.f32 %v3557, %v4005
        %v4007 = vpop.f32.mrb[0].mxu0
        %v4008 = vadd.f32 %v3559, %v4007
        %4009 = vmatprep.mubr.f32.mxu0 %v775
        %4010 = vmatmul.mubr.f32.gmra.mrb[0].mxu0 %v774
        %v4011 = vpop.f32.mrb[0].mxu0
        %v4012 = vadd.f32 %v3563, %v4011
        %v4013 = vpop.f32.mrb[0].mxu0
        %v4014 = vadd.f32 %v3565, %v4013
        %4015 = vmatprep.mubr.f32.mxu0 %v783
        %4016 = vmatmul.mubr.f32.gmra.mrb[0].mxu0 %v782
        %v4017 = vpop.f32.mrb[0].mxu0
        %v4018 = vadd.f32 %v3569, %v4017
        %v4019 = vpop.f32.mrb[0].mxu0
        %v4020 = vadd.f32 %v3571, %v4019
        %4021 = vmatprep.mubr.f32.mxu0 %v791
        %4022 = vmatmul.mubr.f32.gmra.mrb[0].mxu0 %v790
        %v4023 = vpop.f32.mrb[0].mxu0
        %v4024 = vadd.f32 %v3575, %v4023
        %v4025 = vpop.f32.mrb[0].mxu0
        %v4026 = vadd.f32 %v3577, %v4025
        %4027 = vmatprep.mubr.f32.mxu0 %v799
        %4028 = vmatmul.mubr.f32.gmra.mrb[0].mxu0 %v798
        %v4029 = vpop.f32.mrb[0].mxu0
        %v4030 = vadd.f32 %v3581, %v4029
        %v4031 = vpop.f32.mrb[0].mxu0
        %v4032 = vadd.f32 %v3583, %v4031
        %4033 = vmatprep.mubr.f32.mxu0 %v807
        %4034 = vmatmul.mubr.f32.gmra.mrb[0].mxu0 %v806
        %v4035 = vpop.f32.mrb[0].mxu0
        %v4036 = vadd.f32 %v3587, %v4035
        %v4037 = vpop.f32.mrb[0].mxu0
        %v4038 = vadd.f32 %v3589, %v4037
        %4039 = vdwg.mxu0
        %4040 = vmatprep.subr.mxu0 %v1071
        %4041 = vmatpush1.msra.mxu0 %v1070
        %4042 = vmatprep.subr.mxu0 %v1075
        %4043 = vmatpush1.msra.mxu0 %v1074
        %4044 = vmatprep.subr.mxu0 %v1079
        %4045 = vmatpush1.msra.mxu0 %v1078
        %4046 = vmatprep.subr.mxu0 %v1083
        %4047 = vmatpush1.msra.mxu0 %v1082
        %4048 = vmatprep.subr.mxu0 %v1087
        %4049 = vmatpush1.msra.mxu0 %v1086
        %4050 = vmatprep.subr.mxu0 %v1091
        %4051 = vmatpush1.msra.mxu0 %v1090
        %4052 = vmatprep.subr.mxu0 %v1095
        %4053 = vmatpush1.msra.mxu0 %v1094
        %4054 = vmatprep.subr.mxu0 %v1099
        %4055 = vmatpush1.msra.mxu0 %v1098
        %4056 = vmatprep.subr.mxu0 %v1103
        %4057 = vmatpush1.msra.mxu0 %v1102
        %4058 = vmatprep.subr.mxu0 %v1107
        %4059 = vmatpush1.msra.mxu0 %v1106
        %4060 = vmatprep.subr.mxu0 %v1111
        %4061 = vmatpush1.msra.mxu0 %v1110
        %4062 = vmatprep.subr.mxu0 %v1115
        %4063 = vmatpush1.msra.mxu0 %v1114
        %4064 = vmatprep.subr.mxu0 %v1119
        %4065 = vmatpush1.msra.mxu0 %v1118
        %4066 = vmatprep.subr.mxu0 %v1123
        %4067 = vmatpush1.msra.mxu0 %v1122
        %4068 = vmatprep.subr.mxu0 %v1127
        %4069 = vmatpush1.msra.mxu0 %v1126
        %4070 = vmatprep.subr.mxu0 %v1131
        %4071 = vmatpush1.msra.mxu0 %v1130
        %4072 = vmatprep.subr.mxu0 %v1135
        %4073 = vmatpush1.msra.mxu0 %v1134
        %4074 = vmatprep.subr.mxu0 %v1139
        %4075 = vmatpush1.msra.mxu0 %v1138
        %4076 = vmatprep.subr.mxu0 %v1143
        %4077 = vmatpush1.msra.mxu0 %v1142
        %4078 = vmatprep.subr.mxu0 %v1147
        %4079 = vmatpush1.msra.mxu0 %v1146
        %4080 = vmatprep.subr.mxu0 %v1151
        %4081 = vmatpush1.msra.mxu0 %v1150
        %4082 = vmatprep.subr.mxu0 %v1155
        %4083 = vmatpush1.msra.mxu0 %v1154
        %4084 = vmatprep.subr.mxu0 %v1159
        %4085 = vmatpush1.msra.mxu0 %v1158
        %4086 = vmatprep.subr.mxu0 %v1163
        %4087 = vmatpush1.msra.mxu0 %v1162
        %4088 = vmatprep.subr.mxu0 %v1167
        %4089 = vmatpush1.msra.mxu0 %v1166
        %4090 = vmatprep.subr.mxu0 %v1171
        %4091 = vmatpush1.msra.mxu0 %v1170
        %4092 = vmatprep.subr.mxu0 %v1175
        %4093 = vmatpush1.msra.mxu0 %v1174
        %4094 = vmatprep.subr.mxu0 %v1179
        %4095 = vmatpush1.msra.mxu0 %v1178
        %4096 = vmatprep.subr.mxu0 %v1183
        %4097 = vmatpush1.msra.mxu0 %v1182
        %4098 = vmatprep.subr.mxu0 %v1187
        %4099 = vmatpush1.msra.mxu0 %v1186
        %4100 = vmatprep.subr.mxu0 %v1191
        %4101 = vmatpush1.msra.mxu0 %v1190
        %4102 = vmatprep.subr.mxu0 %v1195
        %4103 = vmatpush1.msra.mxu0 %v1194
        %4104 = vmatprep.mubr.f32.mxu0 %v305
        %4105 = vmatmul.mubr.f32.gmra.mrb[0].mxu0 %v304
        %v4106 = vpop.f32.mrb[0].mxu0
        %v4107 = vadd.f32 %v3658, %v4106
        %v4108 = vpop.f32.mrb[0].mxu0
        %v4109 = vadd.f32 %v3660, %v4108
        %4110 = vmatprep.mubr.f32.mxu0 %v313
        %4111 = vmatmul.mubr.f32.gmra.mrb[0].mxu0 %v312
        %v4112 = vpop.f32.mrb[0].mxu0
        %v4113 = vadd.f32 %v3664, %v4112
        %v4114 = vpop.f32.mrb[0].mxu0
        %v4115 = vadd.f32 %v3666, %v4114
        %4116 = vmatprep.mubr.f32.mxu0 %v321
        %4117 = vmatmul.mubr.f32.gmra.mrb[0].mxu0 %v320
        %v4118 = vpop.f32.mrb[0].mxu0
        %v4119 = vadd.f32 %v3670, %v4118
        %v4120 = vpop.f32.mrb[0].mxu0
        %v4121 = vadd.f32 %v3672, %v4120
        %4122 = vmatprep.mubr.f32.mxu0 %v329
        %4123 = vmatmul.mubr.f32.gmra.mrb[0].mxu0 %v328
        %v4124 = vpop.f32.mrb[0].mxu0
        %v4125 = vadd.f32 %v3676, %v4124
        %v4126 = vpop.f32.mrb[0].mxu0
        %v4127 = vadd.f32 %v3678, %v4126
        %4128 = vmatprep.mubr.f32.mxu0 %v337
        %4129 = vmatmul.mubr.f32.gmra.mrb[0].mxu0 %v336
        %v4130 = vpop.f32.mrb[0].mxu0
        %v4131 = vadd.f32 %v3682, %v4130
        %v4132 = vpop.f32.mrb[0].mxu0
        %v4133 = vadd.f32 %v3684, %v4132
        %4134 = vmatprep.mubr.f32.mxu0 %v345
        %4135 = vmatmul.mubr.f32.gmra.mrb[0].mxu0 %v344
        %v4136 = vpop.f32.mrb[0].mxu0
        %v4137 = vadd.f32 %v3688, %v4136
        %v4138 = vpop.f32.mrb[0].mxu0
        %v4139 = vadd.f32 %v3690, %v4138
        %4140 = vmatprep.mubr.f32.mxu0 %v353
        %4141 = vmatmul.mubr.f32.gmra.mrb[0].mxu0 %v352
        %v4142 = vpop.f32.mrb[0].mxu0
        %v4143 = vadd.f32 %v3694, %v4142
        %v4144 = vpop.f32.mrb[0].mxu0
        %v4145 = vadd.f32 %v3696, %v4144
        %4146 = vmatprep.mubr.f32.mxu0 %v361
        %4147 = vmatmul.mubr.f32.gmra.mrb[0].mxu0 %v360
        %v4148 = vpop.f32.mrb[0].mxu0
        %v4149 = vadd.f32 %v3700, %v4148
        %v4150 = vpop.f32.mrb[0].mxu0
        %v4151 = vadd.f32 %v3702, %v4150
        %4152 = vmatprep.mubr.f32.mxu0 %v369
        %4153 = vmatmul.mubr.f32.gmra.mrb[0].mxu0 %v368
        %v4154 = vpop.f32.mrb[0].mxu0
        %v4155 = vadd.f32 %v3706, %v4154
        %v4156 = vpop.f32.mrb[0].mxu0
        %v4157 = vadd.f32 %v3708, %v4156
        %4158 = vmatprep.mubr.f32.mxu0 %v377
        %4159 = vmatmul.mubr.f32.gmra.mrb[0].mxu0 %v376
        %v4160 = vpop.f32.mrb[0].mxu0
        %v4161 = vadd.f32 %v3712, %v4160
        %v4162 = vpop.f32.mrb[0].mxu0
        %v4163 = vadd.f32 %v3714, %v4162
        %4164 = vmatprep.mubr.f32.mxu0 %v385
        %4165 = vmatmul.mubr.f32.gmra.mrb[0].mxu0 %v384
        %v4166 = vpop.f32.mrb[0].mxu0
        %v4167 = vadd.f32 %v3718, %v4166
        %v4168 = vpop.f32.mrb[0].mxu0
        %v4169 = vadd.f32 %v3720, %v4168
        %4170 = vmatprep.mubr.f32.mxu0 %v393
        %4171 = vmatmul.mubr.f32.gmra.mrb[0].mxu0 %v392
        %v4172 = vpop.f32.mrb[0].mxu0
        %v4173 = vadd.f32 %v3724, %v4172
        %v4174 = vpop.f32.mrb[0].mxu0
        %v4175 = vadd.f32 %v3726, %v4174
        %4176 = vmatprep.mubr.f32.mxu0 %v401
        %4177 = vmatmul.mubr.f32.gmra.mrb[0].mxu0 %v400
        %v4178 = vpop.f32.mrb[0].mxu0
        %v4179 = vadd.f32 %v3730, %v4178
        %v4180 = vpop.f32.mrb[0].mxu0
        %v4181 = vadd.f32 %v3732, %v4180
        %4182 = vmatprep.mubr.f32.mxu0 %v409
        %4183 = vmatmul.mubr.f32.gmra.mrb[0].mxu0 %v408
        %v4184 = vpop.f32.mrb[0].mxu0
        %v4185 = vadd.f32 %v3736, %v4184
        %v4186 = vpop.f32.mrb[0].mxu0
        %v4187 = vadd.f32 %v3738, %v4186
        %4188 = vmatprep.mubr.f32.mxu0 %v417
        %4189 = vmatmul.mubr.f32.gmra.mrb[0].mxu0 %v416
        %v4190 = vpop.f32.mrb[0].mxu0
        %v4191 = vadd.f32 %v3742, %v4190
        %v4192 = vpop.f32.mrb[0].mxu0
        %v4193 = vadd.f32 %v3744, %v4192
        %4194 = vmatprep.mubr.f32.mxu0 %v425
        %4195 = vmatmul.mubr.f32.gmra.mrb[0].mxu0 %v424
        %v4196 = vpop.f32.mrb[0].mxu0
        %v4197 = vadd.f32 %v3748, %v4196
        %v4198 = vpop.f32.mrb[0].mxu0
        %v4199 = vadd.f32 %v3750, %v4198
        %4200 = vmatprep.mubr.f32.mxu0 %v433
        %4201 = vmatmul.mubr.f32.gmra.mrb[0].mxu0 %v432
        %v4202 = vpop.f32.mrb[0].mxu0
        %v4203 = vadd.f32 %v3754, %v4202
        %v4204 = vpop.f32.mrb[0].mxu0
        %v4205 = vadd.f32 %v3756, %v4204
        %4206 = vmatprep.mubr.f32.mxu0 %v441
        %4207 = vmatmul.mubr.f32.gmra.mrb[0].mxu0 %v440
        %v4208 = vpop.f32.mrb[0].mxu0
        %v4209 = vadd.f32 %v3760, %v4208
        %v4210 = vpop.f32.mrb[0].mxu0
        %v4211 = vadd.f32 %v3762, %v4210
        %4212 = vmatprep.mubr.f32.mxu0 %v449
        %4213 = vmatmul.mubr.f32.gmra.mrb[0].mxu0 %v448
        %v4214 = vpop.f32.mrb[0].mxu0
        %v4215 = vadd.f32 %v3766, %v4214
        %v4216 = vpop.f32.mrb[0].mxu0
        %v4217 = vadd.f32 %v3768, %v4216
        %4218 = vmatprep.mubr.f32.mxu0 %v457
        %4219 = vmatmul.mubr.f32.gmra.mrb[0].mxu0 %v456
        %v4220 = vpop.f32.mrb[0].mxu0
        %v4221 = vadd.f32 %v3772, %v4220
        %v4222 = vpop.f32.mrb[0].mxu0
        %v4223 = vadd.f32 %v3774, %v4222
        %4224 = vmatprep.mubr.f32.mxu0 %v465
        %4225 = vmatmul.mubr.f32.gmra.mrb[0].mxu0 %v464
        %v4226 = vpop.f32.mrb[0].mxu0
        %v4227 = vadd.f32 %v3778, %v4226
        %v4228 = vpop.f32.mrb[0].mxu0
        %v4229 = vadd.f32 %v3780, %v4228
        %4230 = vmatprep.mubr.f32.mxu0 %v473
        %4231 = vmatmul.mubr.f32.gmra.mrb[0].mxu0 %v472
        %v4232 = vpop.f32.mrb[0].mxu0
        %v4233 = vadd.f32 %v3784, %v4232
        %v4234 = vpop.f32.mrb[0].mxu0
        %v4235 = vadd.f32 %v3786, %v4234
        %4236 = vmatprep.mubr.f32.mxu0 %v481
        %4237 = vmatmul.mubr.f32.gmra.mrb[0].mxu0 %v480
        %v4238 = vpop.f32.mrb[0].mxu0
        %v4239 = vadd.f32 %v3790, %v4238
        %v4240 = vpop.f32.mrb[0].mxu0
        %v4241 = vadd.f32 %v3792, %v4240
        %4242 = vmatprep.mubr.f32.mxu0 %v489
        %4243 = vmatmul.mubr.f32.gmra.mrb[0].mxu0 %v488
        %v4244 = vpop.f32.mrb[0].mxu0
        %v4245 = vadd.f32 %v3796, %v4244
        %v4246 = vpop.f32.mrb[0].mxu0
        %v4247 = vadd.f32 %v3798, %v4246
        %4248 = vmatprep.mubr.f32.mxu0 %v497
        %4249 = vmatmul.mubr.f32.gmra.mrb[0].mxu0 %v496
        %v4250 = vpop.f32.mrb[0].mxu0
        %v4251 = vadd.f32 %v3802, %v4250
        %v4252 = vpop.f32.mrb[0].mxu0
        %v4253 = vadd.f32 %v3804, %v4252
        %4254 = vmatprep.mubr.f32.mxu0 %v505
        %4255 = vmatmul.mubr.f32.gmra.mrb[0].mxu0 %v504
        %v4256 = vpop.f32.mrb[0].mxu0
        %v4257 = vadd.f32 %v3808, %v4256
        %v4258 = vpop.f32.mrb[0].mxu0
        %v4259 = vadd.f32 %v3810, %v4258
        %4260 = vmatprep.mubr.f32.mxu0 %v513
        %4261 = vmatmul.mubr.f32.gmra.mrb[0].mxu0 %v512
        %v4262 = vpop.f32.mrb[0].mxu0
        %v4263 = vadd.f32 %v3814, %v4262
        %v4264 = vpop.f32.mrb[0].mxu0
        %v4265 = vadd.f32 %v3816, %v4264
        %4266 = vmatprep.mubr.f32.mxu0 %v521
        %4267 = vmatmul.mubr.f32.gmra.mrb[0].mxu0 %v520
        %v4268 = vpop.f32.mrb[0].mxu0
        %v4269 = vadd.f32 %v3820, %v4268
        %v4270 = vpop.f32.mrb[0].mxu0
        %v4271 = vadd.f32 %v3822, %v4270
        %4272 = vmatprep.mubr.f32.mxu0 %v529
        %4273 = vmatmul.mubr.f32.gmra.mrb[0].mxu0 %v528
        %v4274 = vpop.f32.mrb[0].mxu0
        %v4275 = vadd.f32 %v3826, %v4274
        %v4276 = vpop.f32.mrb[0].mxu0
        %v4277 = vadd.f32 %v3828, %v4276
        %4278 = vmatprep.mubr.f32.mxu0 %v537
        %4279 = vmatmul.mubr.f32.gmra.mrb[0].mxu0 %v536
        %v4280 = vpop.f32.mrb[0].mxu0
        %v4281 = vadd.f32 %v3832, %v4280
        %v4282 = vpop.f32.mrb[0].mxu0
        %v4283 = vadd.f32 %v3834, %v4282
        %4284 = vmatprep.mubr.f32.mxu0 %v545
        %4285 = vmatmul.mubr.f32.gmra.mrb[0].mxu0 %v544
        %v4286 = vpop.f32.mrb[0].mxu0
        %v4287 = vadd.f32 %v3838, %v4286
        %v4288 = vpop.f32.mrb[0].mxu0
        %v4289 = vadd.f32 %v3840, %v4288
        %4290 = vmatprep.mubr.f32.mxu0 %v553
        %4291 = vmatmul.mubr.f32.gmra.mrb[0].mxu0 %v552
        %v4292 = vpop.f32.mrb[0].mxu0
        %v4293 = vadd.f32 %v3844, %v4292
        %v4294 = vpop.f32.mrb[0].mxu0
        %v4295 = vadd.f32 %v3846, %v4294
        %4296 = vmatprep.mubr.f32.mxu0 %v561
        %4297 = vmatmul.mubr.f32.gmra.mrb[0].mxu0 %v560
        %v4298 = vpop.f32.mrb[0].mxu0
        %v4299 = vadd.f32 %v3850, %v4298
        %v4300 = vpop.f32.mrb[0].mxu0
        %v4301 = vadd.f32 %v3852, %v4300
        %4302 = vmatprep.mubr.f32.mxu0 %v569
        %4303 = vmatmul.mubr.f32.gmra.mrb[0].mxu0 %v568
        %v4304 = vpop.f32.mrb[0].mxu0
        %v4305 = vadd.f32 %v3856, %v4304
        %v4306 = vpop.f32.mrb[0].mxu0
        %v4307 = vadd.f32 %v3858, %v4306
        %4308 = vmatprep.mubr.f32.mxu0 %v577
        %4309 = vmatmul.mubr.f32.gmra.mrb[0].mxu0 %v576
        %v4310 = vpop.f32.mrb[0].mxu0
        %v4311 = vadd.f32 %v3862, %v4310
        %v4312 = vpop.f32.mrb[0].mxu0
        %v4313 = vadd.f32 %v3864, %v4312
        %4314 = vmatprep.mubr.f32.mxu0 %v585
        %4315 = vmatmul.mubr.f32.gmra.mrb[0].mxu0 %v584
        %v4316 = vpop.f32.mrb[0].mxu0
        %v4317 = vadd.f32 %v3868, %v4316
        %v4318 = vpop.f32.mrb[0].mxu0
        %v4319 = vadd.f32 %v3870, %v4318
        %4320 = vmatprep.mubr.f32.mxu0 %v593
        %4321 = vmatmul.mubr.f32.gmra.mrb[0].mxu0 %v592
        %v4322 = vpop.f32.mrb[0].mxu0
        %v4323 = vadd.f32 %v3874, %v4322
        %v4324 = vpop.f32.mrb[0].mxu0
        %v4325 = vadd.f32 %v3876, %v4324
        %4326 = vmatprep.mubr.f32.mxu0 %v601
        %4327 = vmatmul.mubr.f32.gmra.mrb[0].mxu0 %v600
        %v4328 = vpop.f32.mrb[0].mxu0
        %v4329 = vadd.f32 %v3880, %v4328
        %v4330 = vpop.f32.mrb[0].mxu0
        %v4331 = vadd.f32 %v3882, %v4330
        %4332 = vmatprep.mubr.f32.mxu0 %v609
        %4333 = vmatmul.mubr.f32.gmra.mrb[0].mxu0 %v608
        %v4334 = vpop.f32.mrb[0].mxu0
        %v4335 = vadd.f32 %v3886, %v4334
        %v4336 = vpop.f32.mrb[0].mxu0
        %v4337 = vadd.f32 %v3888, %v4336
        %4338 = vmatprep.mubr.f32.mxu0 %v617
        %4339 = vmatmul.mubr.f32.gmra.mrb[0].mxu0 %v616
        %v4340 = vpop.f32.mrb[0].mxu0
        %v4341 = vadd.f32 %v3892, %v4340
        %v4342 = vpop.f32.mrb[0].mxu0
        %v4343 = vadd.f32 %v3894, %v4342
        %4344 = vmatprep.mubr.f32.mxu0 %v625
        %4345 = vmatmul.mubr.f32.gmra.mrb[0].mxu0 %v624
        %v4346 = vpop.f32.mrb[0].mxu0
        %v4347 = vadd.f32 %v3898, %v4346
        %v4348 = vpop.f32.mrb[0].mxu0
        %v4349 = vadd.f32 %v3900, %v4348
        %4350 = vmatprep.mubr.f32.mxu0 %v633
        %4351 = vmatmul.mubr.f32.gmra.mrb[0].mxu0 %v632
        %v4352 = vpop.f32.mrb[0].mxu0
        %v4353 = vadd.f32 %v3904, %v4352
        %v4354 = vpop.f32.mrb[0].mxu0
        %v4355 = vadd.f32 %v3906, %v4354
        %4356 = vmatprep.mubr.f32.mxu0 %v641
        %4357 = vmatmul.mubr.f32.gmra.mrb[0].mxu0 %v640
        %v4358 = vpop.f32.mrb[0].mxu0
        %v4359 = vadd.f32 %v3910, %v4358
        %v4360 = vpop.f32.mrb[0].mxu0
        %v4361 = vadd.f32 %v3912, %v4360
        %4362 = vmatprep.mubr.f32.mxu0 %v649
        %4363 = vmatmul.mubr.f32.gmra.mrb[0].mxu0 %v648
        %v4364 = vpop.f32.mrb[0].mxu0
        %v4365 = vadd.f32 %v3916, %v4364
        %v4366 = vpop.f32.mrb[0].mxu0
        %v4367 = vadd.f32 %v3918, %v4366
        %4368 = vmatprep.mubr.f32.mxu0 %v657
        %4369 = vmatmul.mubr.f32.gmra.mrb[0].mxu0 %v656
        %v4370 = vpop.f32.mrb[0].mxu0
        %v4371 = vadd.f32 %v3922, %v4370
        %v4372 = vpop.f32.mrb[0].mxu0
        %v4373 = vadd.f32 %v3924, %v4372
        %4374 = vmatprep.mubr.f32.mxu0 %v665
        %4375 = vmatmul.mubr.f32.gmra.mrb[0].mxu0 %v664
        %v4376 = vpop.f32.mrb[0].mxu0
        %v4377 = vadd.f32 %v3928, %v4376
        %v4378 = vpop.f32.mrb[0].mxu0
        %v4379 = vadd.f32 %v3930, %v4378
        %4380 = vmatprep.mubr.f32.mxu0 %v673
        %4381 = vmatmul.mubr.f32.gmra.mrb[0].mxu0 %v672
        %v4382 = vpop.f32.mrb[0].mxu0
        %v4383 = vadd.f32 %v3934, %v4382
        %v4384 = vpop.f32.mrb[0].mxu0
        %v4385 = vadd.f32 %v3936, %v4384
        %4386 = vmatprep.mubr.f32.mxu0 %v681
        %4387 = vmatmul.mubr.f32.gmra.mrb[0].mxu0 %v680
        %v4388 = vpop.f32.mrb[0].mxu0
        %v4389 = vadd.f32 %v3940, %v4388
        %v4390 = vpop.f32.mrb[0].mxu0
        %v4391 = vadd.f32 %v3942, %v4390
        %4392 = vmatprep.mubr.f32.mxu0 %v689
        %4393 = vmatmul.mubr.f32.gmra.mrb[0].mxu0 %v688
        %v4394 = vpop.f32.mrb[0].mxu0
        %v4395 = vadd.f32 %v3946, %v4394
        %v4396 = vpop.f32.mrb[0].mxu0
        %v4397 = vadd.f32 %v3948, %v4396
        %4398 = vmatprep.mubr.f32.mxu0 %v697
        %4399 = vmatmul.mubr.f32.gmra.mrb[0].mxu0 %v696
        %v4400 = vpop.f32.mrb[0].mxu0
        %v4401 = vadd.f32 %v3952, %v4400
        %v4402 = vpop.f32.mrb[0].mxu0
        %v4403 = vadd.f32 %v3954, %v4402
        %4404 = vmatprep.mubr.f32.mxu0 %v705
        %4405 = vmatmul.mubr.f32.gmra.mrb[0].mxu0 %v704
        %v4406 = vpop.f32.mrb[0].mxu0
        %v4407 = vadd.f32 %v3958, %v4406
        %v4408 = vpop.f32.mrb[0].mxu0
        %v4409 = vadd.f32 %v3960, %v4408
        %4410 = vmatprep.mubr.f32.mxu0 %v713
        %4411 = vmatmul.mubr.f32.gmra.mrb[0].mxu0 %v712
        %v4412 = vpop.f32.mrb[0].mxu0
        %v4413 = vadd.f32 %v3964, %v4412
        %v4414 = vpop.f32.mrb[0].mxu0
        %v4415 = vadd.f32 %v3966, %v4414
        %4416 = vmatprep.mubr.f32.mxu0 %v721
        %4417 = vmatmul.mubr.f32.gmra.mrb[0].mxu0 %v720
        %v4418 = vpop.f32.mrb[0].mxu0
        %v4419 = vadd.f32 %v3970, %v4418
        %v4420 = vpop.f32.mrb[0].mxu0
        %v4421 = vadd.f32 %v3972, %v4420
        %4422 = vmatprep.mubr.f32.mxu0 %v729
        %4423 = vmatmul.mubr.f32.gmra.mrb[0].mxu0 %v728
        %v4424 = vpop.f32.mrb[0].mxu0
        %v4425 = vadd.f32 %v3976, %v4424
        %v4426 = vpop.f32.mrb[0].mxu0
        %v4427 = vadd.f32 %v3978, %v4426
        %4428 = vmatprep.mubr.f32.mxu0 %v737
        %4429 = vmatmul.mubr.f32.gmra.mrb[0].mxu0 %v736
        %v4430 = vpop.f32.mrb[0].mxu0
        %v4431 = vadd.f32 %v3982, %v4430
        %v4432 = vpop.f32.mrb[0].mxu0
        %v4433 = vadd.f32 %v3984, %v4432
        %4434 = vmatprep.mubr.f32.mxu0 %v745
        %4435 = vmatmul.mubr.f32.gmra.mrb[0].mxu0 %v744
        %v4436 = vpop.f32.mrb[0].mxu0
        %v4437 = vadd.f32 %v3988, %v4436
        %v4438 = vpop.f32.mrb[0].mxu0
        %v4439 = vadd.f32 %v3990, %v4438
        %4440 = vmatprep.mubr.f32.mxu0 %v753
        %4441 = vmatmul.mubr.f32.gmra.mrb[0].mxu0 %v752
        %v4442 = vpop.f32.mrb[0].mxu0
        %v4443 = vadd.f32 %v3994, %v4442
        %v4444 = vpop.f32.mrb[0].mxu0
        %v4445 = vadd.f32 %v3996, %v4444
        %4446 = vmatprep.mubr.f32.mxu0 %v761
        %4447 = vmatmul.mubr.f32.gmra.mrb[0].mxu0 %v760
        %v4448 = vpop.f32.mrb[0].mxu0
        %v4449 = vadd.f32 %v4000, %v4448
        %v4450 = vpop.f32.mrb[0].mxu0
        %v4451 = vadd.f32 %v4002, %v4450
        %4452 = vmatprep.mubr.f32.mxu0 %v769
        %4453 = vmatmul.mubr.f32.gmra.mrb[0].mxu0 %v768
        %v4454 = vpop.f32.mrb[0].mxu0
        %v4455 = vadd.f32 %v4006, %v4454
        %v4456 = vpop.f32.mrb[0].mxu0
        %v4457 = vadd.f32 %v4008, %v4456
        %4458 = vmatprep.mubr.f32.mxu0 %v777
        %4459 = vmatmul.mubr.f32.gmra.mrb[0].mxu0 %v776
        %v4460 = vpop.f32.mrb[0].mxu0
        %v4461 = vadd.f32 %v4012, %v4460
        %v4462 = vpop.f32.mrb[0].mxu0
        %v4463 = vadd.f32 %v4014, %v4462
        %4464 = vmatprep.mubr.f32.mxu0 %v785
        %4465 = vmatmul.mubr.f32.gmra.mrb[0].mxu0 %v784
        %v4466 = vpop.f32.mrb[0].mxu0
        %v4467 = vadd.f32 %v4018, %v4466
        %v4468 = vpop.f32.mrb[0].mxu0
        %v4469 = vadd.f32 %v4020, %v4468
        %4470 = vmatprep.mubr.f32.mxu0 %v793
        %4471 = vmatmul.mubr.f32.gmra.mrb[0].mxu0 %v792
        %v4472 = vpop.f32.mrb[0].mxu0
        %v4473 = vadd.f32 %v4024, %v4472
        %v4474 = vpop.f32.mrb[0].mxu0
        %v4475 = vadd.f32 %v4026, %v4474
        %4476 = vmatprep.mubr.f32.mxu0 %v801
        %4477 = vmatmul.mubr.f32.gmra.mrb[0].mxu0 %v800
        %v4478 = vpop.f32.mrb[0].mxu0
        %v4479 = vadd.f32 %v4030, %v4478
        %v4480 = vpop.f32.mrb[0].mxu0
        %v4481 = vadd.f32 %v4032, %v4480
        %4482 = vmatprep.mubr.f32.mxu0 %v809
        %4483 = vmatmul.mubr.f32.gmra.mrb[0].mxu0 %v808
        %v4484 = vpop.f32.mrb[0].mxu0
        %v4485 = vadd.f32 %v4036, %v4484
        %v4486 = vpop.f32.mrb[0].mxu0
        %v4487 = vadd.f32 %v4038, %v4486
        %4488 = vdwg.mxu0
        %4489 = vmatprep.subr.mxu0 %v1199
        %4490 = vmatpush1.msra.mxu0 %v1198
        %4491 = vmatprep.subr.mxu0 %v1203
        %4492 = vmatpush1.msra.mxu0 %v1202
        %4493 = vmatprep.subr.mxu0 %v1207
        %4494 = vmatpush1.msra.mxu0 %v1206
        %4495 = vmatprep.subr.mxu0 %v1211
        %4496 = vmatpush1.msra.mxu0 %v1210
        %4497 = vmatprep.subr.mxu0 %v1215
        %4498 = vmatpush1.msra.mxu0 %v1214
        %4499 = vmatprep.subr.mxu0 %v1219
        %4500 = vmatpush1.msra.mxu0 %v1218
        %4501 = vmatprep.subr.mxu0 %v1223
        %4502 = vmatpush1.msra.mxu0 %v1222
        %4503 = vmatprep.subr.mxu0 %v1227
        %4504 = vmatpush1.msra.mxu0 %v1226
        %4505 = vmatprep.subr.mxu0 %v1231
        %4506 = vmatpush1.msra.mxu0 %v1230
        %4507 = vmatprep.subr.mxu0 %v1235
        %4508 = vmatpush1.msra.mxu0 %v1234
        %4509 = vmatprep.subr.mxu0 %v1239
        %4510 = vmatpush1.msra.mxu0 %v1238
        %4511 = vmatprep.subr.mxu0 %v1243
        %4512 = vmatpush1.msra.mxu0 %v1242
        %4513 = vmatprep.subr.mxu0 %v1247
        %4514 = vmatpush1.msra.mxu0 %v1246
        %4515 = vmatprep.subr.mxu0 %v1251
        %4516 = vmatpush1.msra.mxu0 %v1250
        %4517 = vmatprep.subr.mxu0 %v1255
        %4518 = vmatpush1.msra.mxu0 %v1254
        %4519 = vmatprep.subr.mxu0 %v1259
        %4520 = vmatpush1.msra.mxu0 %v1258
        %4521 = vmatprep.subr.mxu0 %v1263
        %4522 = vmatpush1.msra.mxu0 %v1262
        %4523 = vmatprep.subr.mxu0 %v1267
        %4524 = vmatpush1.msra.mxu0 %v1266
        %4525 = vmatprep.subr.mxu0 %v1271
        %4526 = vmatpush1.msra.mxu0 %v1270
        %4527 = vmatprep.subr.mxu0 %v1275
        %4528 = vmatpush1.msra.mxu0 %v1274
        %4529 = vmatprep.subr.mxu0 %v1279
        %4530 = vmatpush1.msra.mxu0 %v1278
        %4531 = vmatprep.subr.mxu0 %v1283
        %4532 = vmatpush1.msra.mxu0 %v1282
        %4533 = vmatprep.subr.mxu0 %v1287
        %4534 = vmatpush1.msra.mxu0 %v1286
        %4535 = vmatprep.subr.mxu0 %v1291
        %4536 = vmatpush1.msra.mxu0 %v1290
        %4537 = vmatprep.subr.mxu0 %v1295
        %4538 = vmatpush1.msra.mxu0 %v1294
        %4539 = vmatprep.subr.mxu0 %v1299
        %4540 = vmatpush1.msra.mxu0 %v1298
        %4541 = vmatprep.subr.mxu0 %v1303
        %4542 = vmatpush1.msra.mxu0 %v1302
        %4543 = vmatprep.subr.mxu0 %v1307
        %4544 = vmatpush1.msra.mxu0 %v1306
        %4545 = vmatprep.subr.mxu0 %v1311
        %4546 = vmatpush1.msra.mxu0 %v1310
        %4547 = vmatprep.subr.mxu0 %v1315
        %4548 = vmatpush1.msra.mxu0 %v1314
        %4549 = vmatprep.subr.mxu0 %v1319
        %4550 = vmatpush1.msra.mxu0 %v1318
        %4551 = vmatprep.subr.mxu0 %v1323
        %4552 = vmatpush1.msra.mxu0 %v1322
        %4553 = vmatprep.mubr.f32.mxu0 %v307
        %4554 = vmatmul.mubr.f32.gmra.mrb[0].mxu0 %v306
        %v4555 = vpop.f32.mrb[0].mxu0
        %v4556 = vadd.f32 %v4107, %v4555
        %v4557 = vpop.f32.mrb[0].mxu0
        %v4558 = vadd.f32 %v4109, %v4557
        %4559 = vmatprep.mubr.f32.mxu0 %v315
        %4560 = vmatmul.mubr.f32.gmra.mrb[0].mxu0 %v314
        %v4561 = vpop.f32.mrb[0].mxu0
        %v4562 = vadd.f32 %v4113, %v4561
        %v4563 = vpop.f32.mrb[0].mxu0
        %v4564 = vadd.f32 %v4115, %v4563
        %4565 = vmatprep.mubr.f32.mxu0 %v323
        %4566 = vmatmul.mubr.f32.gmra.mrb[0].mxu0 %v322
        %v4567 = vpop.f32.mrb[0].mxu0
        %v4568 = vadd.f32 %v4119, %v4567
        %v4569 = vpop.f32.mrb[0].mxu0
        %v4570 = vadd.f32 %v4121, %v4569
        %4571 = vmatprep.mubr.f32.mxu0 %v331
        %4572 = vmatmul.mubr.f32.gmra.mrb[0].mxu0 %v330
        %v4573 = vpop.f32.mrb[0].mxu0
        %v4574 = vadd.f32 %v4125, %v4573
        %v4575 = vpop.f32.mrb[0].mxu0
        %v4576 = vadd.f32 %v4127, %v4575
        %4577 = vmatprep.mubr.f32.mxu0 %v339
        %4578 = vmatmul.mubr.f32.gmra.mrb[0].mxu0 %v338
        %v4579 = vpop.f32.mrb[0].mxu0
        %v4580 = vadd.f32 %v4131, %v4579
        %v4581 = vpop.f32.mrb[0].mxu0
        %v4582 = vadd.f32 %v4133, %v4581
        %4583 = vmatprep.mubr.f32.mxu0 %v347
        %4584 = vmatmul.mubr.f32.gmra.mrb[0].mxu0 %v346
        %v4585 = vpop.f32.mrb[0].mxu0
        %v4586 = vadd.f32 %v4137, %v4585
        %v4587 = vpop.f32.mrb[0].mxu0
        %v4588 = vadd.f32 %v4139, %v4587
        %4589 = vmatprep.mubr.f32.mxu0 %v355
        %4590 = vmatmul.mubr.f32.gmra.mrb[0].mxu0 %v354
        %v4591 = vpop.f32.mrb[0].mxu0
        %v4592 = vadd.f32 %v4143, %v4591
        %v4593 = vpop.f32.mrb[0].mxu0
        %v4594 = vadd.f32 %v4145, %v4593
        %4595 = vmatprep.mubr.f32.mxu0 %v363
        %4596 = vmatmul.mubr.f32.gmra.mrb[0].mxu0 %v362
        %v4597 = vpop.f32.mrb[0].mxu0
        %v4598 = vadd.f32 %v4149, %v4597
        %v4599 = vpop.f32.mrb[0].mxu0
        %v4600 = vadd.f32 %v4151, %v4599
        %4601 = vmatprep.mubr.f32.mxu0 %v371
        %4602 = vmatmul.mubr.f32.gmra.mrb[0].mxu0 %v370
        %v4603 = vpop.f32.mrb[0].mxu0
        %v4604 = vadd.f32 %v4155, %v4603
        %v4605 = vpop.f32.mrb[0].mxu0
        %v4606 = vadd.f32 %v4157, %v4605
        %4607 = vmatprep.mubr.f32.mxu0 %v379
        %4608 = vmatmul.mubr.f32.gmra.mrb[0].mxu0 %v378
        %v4609 = vpop.f32.mrb[0].mxu0
        %v4610 = vadd.f32 %v4161, %v4609
        %v4611 = vpop.f32.mrb[0].mxu0
        %v4612 = vadd.f32 %v4163, %v4611
        %4613 = vmatprep.mubr.f32.mxu0 %v387
        %4614 = vmatmul.mubr.f32.gmra.mrb[0].mxu0 %v386
        %v4615 = vpop.f32.mrb[0].mxu0
        %v4616 = vadd.f32 %v4167, %v4615
        %v4617 = vpop.f32.mrb[0].mxu0
        %v4618 = vadd.f32 %v4169, %v4617
        %4619 = vmatprep.mubr.f32.mxu0 %v395
        %4620 = vmatmul.mubr.f32.gmra.mrb[0].mxu0 %v394
        %v4621 = vpop.f32.mrb[0].mxu0
        %v4622 = vadd.f32 %v4173, %v4621
        %v4623 = vpop.f32.mrb[0].mxu0
        %v4624 = vadd.f32 %v4175, %v4623
        %4625 = vmatprep.mubr.f32.mxu0 %v403
        %4626 = vmatmul.mubr.f32.gmra.mrb[0].mxu0 %v402
        %v4627 = vpop.f32.mrb[0].mxu0
        %v4628 = vadd.f32 %v4179, %v4627
        %v4629 = vpop.f32.mrb[0].mxu0
        %v4630 = vadd.f32 %v4181, %v4629
        %4631 = vmatprep.mubr.f32.mxu0 %v411
        %4632 = vmatmul.mubr.f32.gmra.mrb[0].mxu0 %v410
        %v4633 = vpop.f32.mrb[0].mxu0
        %v4634 = vadd.f32 %v4185, %v4633
        %v4635 = vpop.f32.mrb[0].mxu0
        %v4636 = vadd.f32 %v4187, %v4635
        %4637 = vmatprep.mubr.f32.mxu0 %v419
        %4638 = vmatmul.mubr.f32.gmra.mrb[0].mxu0 %v418
        %v4639 = vpop.f32.mrb[0].mxu0
        %v4640 = vadd.f32 %v4191, %v4639
        %v4641 = vpop.f32.mrb[0].mxu0
        %v4642 = vadd.f32 %v4193, %v4641
        %4643 = vmatprep.mubr.f32.mxu0 %v427
        %4644 = vmatmul.mubr.f32.gmra.mrb[0].mxu0 %v426
        %v4645 = vpop.f32.mrb[0].mxu0
        %v4646 = vadd.f32 %v4197, %v4645
        %v4647 = vpop.f32.mrb[0].mxu0
        %v4648 = vadd.f32 %v4199, %v4647
        %4649 = vmatprep.mubr.f32.mxu0 %v435
        %4650 = vmatmul.mubr.f32.gmra.mrb[0].mxu0 %v434
        %v4651 = vpop.f32.mrb[0].mxu0
        %v4652 = vadd.f32 %v4203, %v4651
        %v4653 = vpop.f32.mrb[0].mxu0
        %v4654 = vadd.f32 %v4205, %v4653
        %4655 = vmatprep.mubr.f32.mxu0 %v443
        %4656 = vmatmul.mubr.f32.gmra.mrb[0].mxu0 %v442
        %v4657 = vpop.f32.mrb[0].mxu0
        %v4658 = vadd.f32 %v4209, %v4657
        %v4659 = vpop.f32.mrb[0].mxu0
        %v4660 = vadd.f32 %v4211, %v4659
        %4661 = vmatprep.mubr.f32.mxu0 %v451
        %4662 = vmatmul.mubr.f32.gmra.mrb[0].mxu0 %v450
        %v4663 = vpop.f32.mrb[0].mxu0
        %v4664 = vadd.f32 %v4215, %v4663
        %v4665 = vpop.f32.mrb[0].mxu0
        %v4666 = vadd.f32 %v4217, %v4665
        %4667 = vmatprep.mubr.f32.mxu0 %v459
        %4668 = vmatmul.mubr.f32.gmra.mrb[0].mxu0 %v458
        %v4669 = vpop.f32.mrb[0].mxu0
        %v4670 = vadd.f32 %v4221, %v4669
        %v4671 = vpop.f32.mrb[0].mxu0
        %v4672 = vadd.f32 %v4223, %v4671
        %4673 = vmatprep.mubr.f32.mxu0 %v467
        %4674 = vmatmul.mubr.f32.gmra.mrb[0].mxu0 %v466
        %v4675 = vpop.f32.mrb[0].mxu0
        %v4676 = vadd.f32 %v4227, %v4675
        %v4677 = vpop.f32.mrb[0].mxu0
        %v4678 = vadd.f32 %v4229, %v4677
        %4679 = vmatprep.mubr.f32.mxu0 %v475
        %4680 = vmatmul.mubr.f32.gmra.mrb[0].mxu0 %v474
        %v4681 = vpop.f32.mrb[0].mxu0
        %v4682 = vadd.f32 %v4233, %v4681
        %v4683 = vpop.f32.mrb[0].mxu0
        %v4684 = vadd.f32 %v4235, %v4683
        %4685 = vmatprep.mubr.f32.mxu0 %v483
        %4686 = vmatmul.mubr.f32.gmra.mrb[0].mxu0 %v482
        %v4687 = vpop.f32.mrb[0].mxu0
        %v4688 = vadd.f32 %v4239, %v4687
        %v4689 = vpop.f32.mrb[0].mxu0
        %v4690 = vadd.f32 %v4241, %v4689
        %4691 = vmatprep.mubr.f32.mxu0 %v491
        %4692 = vmatmul.mubr.f32.gmra.mrb[0].mxu0 %v490
        %v4693 = vpop.f32.mrb[0].mxu0
        %v4694 = vadd.f32 %v4245, %v4693
        %v4695 = vpop.f32.mrb[0].mxu0
        %v4696 = vadd.f32 %v4247, %v4695
        %4697 = vmatprep.mubr.f32.mxu0 %v499
        %4698 = vmatmul.mubr.f32.gmra.mrb[0].mxu0 %v498
        %v4699 = vpop.f32.mrb[0].mxu0
        %v4700 = vadd.f32 %v4251, %v4699
        %v4701 = vpop.f32.mrb[0].mxu0
        %v4702 = vadd.f32 %v4253, %v4701
        %4703 = vmatprep.mubr.f32.mxu0 %v507
        %4704 = vmatmul.mubr.f32.gmra.mrb[0].mxu0 %v506
        %v4705 = vpop.f32.mrb[0].mxu0
        %v4706 = vadd.f32 %v4257, %v4705
        %v4707 = vpop.f32.mrb[0].mxu0
        %v4708 = vadd.f32 %v4259, %v4707
        %4709 = vmatprep.mubr.f32.mxu0 %v515
        %4710 = vmatmul.mubr.f32.gmra.mrb[0].mxu0 %v514
        %v4711 = vpop.f32.mrb[0].mxu0
        %v4712 = vadd.f32 %v4263, %v4711
        %v4713 = vpop.f32.mrb[0].mxu0
        %v4714 = vadd.f32 %v4265, %v4713
        %4715 = vmatprep.mubr.f32.mxu0 %v523
        %4716 = vmatmul.mubr.f32.gmra.mrb[0].mxu0 %v522
        %v4717 = vpop.f32.mrb[0].mxu0
        %v4718 = vadd.f32 %v4269, %v4717
        %v4719 = vpop.f32.mrb[0].mxu0
        %v4720 = vadd.f32 %v4271, %v4719
        %4721 = vmatprep.mubr.f32.mxu0 %v531
        %4722 = vmatmul.mubr.f32.gmra.mrb[0].mxu0 %v530
        %v4723 = vpop.f32.mrb[0].mxu0
        %v4724 = vadd.f32 %v4275, %v4723
        %v4725 = vpop.f32.mrb[0].mxu0
        %v4726 = vadd.f32 %v4277, %v4725
        %4727 = vmatprep.mubr.f32.mxu0 %v539
        %4728 = vmatmul.mubr.f32.gmra.mrb[0].mxu0 %v538
        %v4729 = vpop.f32.mrb[0].mxu0
        %v4730 = vadd.f32 %v4281, %v4729
        %v4731 = vpop.f32.mrb[0].mxu0
        %v4732 = vadd.f32 %v4283, %v4731
        %4733 = vmatprep.mubr.f32.mxu0 %v547
        %4734 = vmatmul.mubr.f32.gmra.mrb[0].mxu0 %v546
        %v4735 = vpop.f32.mrb[0].mxu0
        %v4736 = vadd.f32 %v4287, %v4735
        %v4737 = vpop.f32.mrb[0].mxu0
        %v4738 = vadd.f32 %v4289, %v4737
        %4739 = vmatprep.mubr.f32.mxu0 %v555
        %4740 = vmatmul.mubr.f32.gmra.mrb[0].mxu0 %v554
        %v4741 = vpop.f32.mrb[0].mxu0
        %v4742 = vadd.f32 %v4293, %v4741
        %v4743 = vpop.f32.mrb[0].mxu0
        %v4744 = vadd.f32 %v4295, %v4743
        %4745 = vmatprep.mubr.f32.mxu0 %v563
        %4746 = vmatmul.mubr.f32.gmra.mrb[0].mxu0 %v562
        %v4747 = vpop.f32.mrb[0].mxu0
        %v4748 = vadd.f32 %v4299, %v4747
        %v4749 = vpop.f32.mrb[0].mxu0
        %v4750 = vadd.f32 %v4301, %v4749
        %4751 = vmatprep.mubr.f32.mxu0 %v571
        %4752 = vmatmul.mubr.f32.gmra.mrb[0].mxu0 %v570
        %v4753 = vpop.f32.mrb[0].mxu0
        %v4754 = vadd.f32 %v4305, %v4753
        %v4755 = vpop.f32.mrb[0].mxu0
        %v4756 = vadd.f32 %v4307, %v4755
        %4757 = vmatprep.mubr.f32.mxu0 %v579
        %4758 = vmatmul.mubr.f32.gmra.mrb[0].mxu0 %v578
        %v4759 = vpop.f32.mrb[0].mxu0
        %v4760 = vadd.f32 %v4311, %v4759
        %v4761 = vpop.f32.mrb[0].mxu0
        %v4762 = vadd.f32 %v4313, %v4761
        %4763 = vmatprep.mubr.f32.mxu0 %v587
        %4764 = vmatmul.mubr.f32.gmra.mrb[0].mxu0 %v586
        %v4765 = vpop.f32.mrb[0].mxu0
        %v4766 = vadd.f32 %v4317, %v4765
        %v4767 = vpop.f32.mrb[0].mxu0
        %v4768 = vadd.f32 %v4319, %v4767
        %4769 = vmatprep.mubr.f32.mxu0 %v595
        %4770 = vmatmul.mubr.f32.gmra.mrb[0].mxu0 %v594
        %v4771 = vpop.f32.mrb[0].mxu0
        %v4772 = vadd.f32 %v4323, %v4771
        %v4773 = vpop.f32.mrb[0].mxu0
        %v4774 = vadd.f32 %v4325, %v4773
        %4775 = vmatprep.mubr.f32.mxu0 %v603
        %4776 = vmatmul.mubr.f32.gmra.mrb[0].mxu0 %v602
        %v4777 = vpop.f32.mrb[0].mxu0
        %v4778 = vadd.f32 %v4329, %v4777
        %v4779 = vpop.f32.mrb[0].mxu0
        %v4780 = vadd.f32 %v4331, %v4779
        %4781 = vmatprep.mubr.f32.mxu0 %v611
        %4782 = vmatmul.mubr.f32.gmra.mrb[0].mxu0 %v610
        %v4783 = vpop.f32.mrb[0].mxu0
        %v4784 = vadd.f32 %v4335, %v4783
        %v4785 = vpop.f32.mrb[0].mxu0
        %v4786 = vadd.f32 %v4337, %v4785
        %4787 = vmatprep.mubr.f32.mxu0 %v619
        %4788 = vmatmul.mubr.f32.gmra.mrb[0].mxu0 %v618
        %v4789 = vpop.f32.mrb[0].mxu0
        %v4790 = vadd.f32 %v4341, %v4789
        %v4791 = vpop.f32.mrb[0].mxu0
        %v4792 = vadd.f32 %v4343, %v4791
        %4793 = vmatprep.mubr.f32.mxu0 %v627
        %4794 = vmatmul.mubr.f32.gmra.mrb[0].mxu0 %v626
        %v4795 = vpop.f32.mrb[0].mxu0
        %v4796 = vadd.f32 %v4347, %v4795
        %v4797 = vpop.f32.mrb[0].mxu0
        %v4798 = vadd.f32 %v4349, %v4797
        %4799 = vmatprep.mubr.f32.mxu0 %v635
        %4800 = vmatmul.mubr.f32.gmra.mrb[0].mxu0 %v634
        %v4801 = vpop.f32.mrb[0].mxu0
        %v4802 = vadd.f32 %v4353, %v4801
        %v4803 = vpop.f32.mrb[0].mxu0
        %v4804 = vadd.f32 %v4355, %v4803
        %4805 = vmatprep.mubr.f32.mxu0 %v643
        %4806 = vmatmul.mubr.f32.gmra.mrb[0].mxu0 %v642
        %v4807 = vpop.f32.mrb[0].mxu0
        %v4808 = vadd.f32 %v4359, %v4807
        %v4809 = vpop.f32.mrb[0].mxu0
        %v4810 = vadd.f32 %v4361, %v4809
        %4811 = vmatprep.mubr.f32.mxu0 %v651
        %4812 = vmatmul.mubr.f32.gmra.mrb[0].mxu0 %v650
        %v4813 = vpop.f32.mrb[0].mxu0
        %v4814 = vadd.f32 %v4365, %v4813
        %v4815 = vpop.f32.mrb[0].mxu0
        %v4816 = vadd.f32 %v4367, %v4815
        %4817 = vmatprep.mubr.f32.mxu0 %v659
        %4818 = vmatmul.mubr.f32.gmra.mrb[0].mxu0 %v658
        %v4819 = vpop.f32.mrb[0].mxu0
        %v4820 = vadd.f32 %v4371, %v4819
        %v4821 = vpop.f32.mrb[0].mxu0
        %v4822 = vadd.f32 %v4373, %v4821
        %4823 = vmatprep.mubr.f32.mxu0 %v667
        %4824 = vmatmul.mubr.f32.gmra.mrb[0].mxu0 %v666
        %v4825 = vpop.f32.mrb[0].mxu0
        %v4826 = vadd.f32 %v4377, %v4825
        %v4827 = vpop.f32.mrb[0].mxu0
        %v4828 = vadd.f32 %v4379, %v4827
        %4829 = vmatprep.mubr.f32.mxu0 %v675
        %4830 = vmatmul.mubr.f32.gmra.mrb[0].mxu0 %v674
        %v4831 = vpop.f32.mrb[0].mxu0
        %v4832 = vadd.f32 %v4383, %v4831
        %v4833 = vpop.f32.mrb[0].mxu0
        %v4834 = vadd.f32 %v4385, %v4833
        %4835 = vmatprep.mubr.f32.mxu0 %v683
        %4836 = vmatmul.mubr.f32.gmra.mrb[0].mxu0 %v682
        %v4837 = vpop.f32.mrb[0].mxu0
        %v4838 = vadd.f32 %v4389, %v4837
        %v4839 = vpop.f32.mrb[0].mxu0
        %v4840 = vadd.f32 %v4391, %v4839
        %4841 = vmatprep.mubr.f32.mxu0 %v691
        %4842 = vmatmul.mubr.f32.gmra.mrb[0].mxu0 %v690
        %v4843 = vpop.f32.mrb[0].mxu0
        %v4844 = vadd.f32 %v4395, %v4843
        %v4845 = vpop.f32.mrb[0].mxu0
        %v4846 = vadd.f32 %v4397, %v4845
        %4847 = vmatprep.mubr.f32.mxu0 %v699
        %4848 = vmatmul.mubr.f32.gmra.mrb[0].mxu0 %v698
        %v4849 = vpop.f32.mrb[0].mxu0
        %v4850 = vadd.f32 %v4401, %v4849
        %v4851 = vpop.f32.mrb[0].mxu0
        %v4852 = vadd.f32 %v4403, %v4851
        %4853 = vmatprep.mubr.f32.mxu0 %v707
        %4854 = vmatmul.mubr.f32.gmra.mrb[0].mxu0 %v706
        %v4855 = vpop.f32.mrb[0].mxu0
        %v4856 = vadd.f32 %v4407, %v4855
        %v4857 = vpop.f32.mrb[0].mxu0
        %v4858 = vadd.f32 %v4409, %v4857
        %4859 = vmatprep.mubr.f32.mxu0 %v715
        %4860 = vmatmul.mubr.f32.gmra.mrb[0].mxu0 %v714
        %v4861 = vpop.f32.mrb[0].mxu0
        %v4862 = vadd.f32 %v4413, %v4861
        %v4863 = vpop.f32.mrb[0].mxu0
        %v4864 = vadd.f32 %v4415, %v4863
        %4865 = vmatprep.mubr.f32.mxu0 %v723
        %4866 = vmatmul.mubr.f32.gmra.mrb[0].mxu0 %v722
        %v4867 = vpop.f32.mrb[0].mxu0
        %v4868 = vadd.f32 %v4419, %v4867
        %v4869 = vpop.f32.mrb[0].mxu0
        %v4870 = vadd.f32 %v4421, %v4869
        %4871 = vmatprep.mubr.f32.mxu0 %v731
        %4872 = vmatmul.mubr.f32.gmra.mrb[0].mxu0 %v730
        %v4873 = vpop.f32.mrb[0].mxu0
        %v4874 = vadd.f32 %v4425, %v4873
        %v4875 = vpop.f32.mrb[0].mxu0
        %v4876 = vadd.f32 %v4427, %v4875
        %4877 = vmatprep.mubr.f32.mxu0 %v739
        %4878 = vmatmul.mubr.f32.gmra.mrb[0].mxu0 %v738
        %v4879 = vpop.f32.mrb[0].mxu0
        %v4880 = vadd.f32 %v4431, %v4879
        %v4881 = vpop.f32.mrb[0].mxu0
        %v4882 = vadd.f32 %v4433, %v4881
        %4883 = vmatprep.mubr.f32.mxu0 %v747
        %4884 = vmatmul.mubr.f32.gmra.mrb[0].mxu0 %v746
        %v4885 = vpop.f32.mrb[0].mxu0
        %v4886 = vadd.f32 %v4437, %v4885
        %v4887 = vpop.f32.mrb[0].mxu0
        %v4888 = vadd.f32 %v4439, %v4887
        %4889 = vmatprep.mubr.f32.mxu0 %v755
        %4890 = vmatmul.mubr.f32.gmra.mrb[0].mxu0 %v754
        %v4891 = vpop.f32.mrb[0].mxu0
        %v4892 = vadd.f32 %v4443, %v4891
        %v4893 = vpop.f32.mrb[0].mxu0
        %v4894 = vadd.f32 %v4445, %v4893
        %4895 = vmatprep.mubr.f32.mxu0 %v763
        %4896 = vmatmul.mubr.f32.gmra.mrb[0].mxu0 %v762
        %v4897 = vpop.f32.mrb[0].mxu0
        %v4898 = vadd.f32 %v4449, %v4897
        %v4899 = vpop.f32.mrb[0].mxu0
        %v4900 = vadd.f32 %v4451, %v4899
        %4901 = vmatprep.mubr.f32.mxu0 %v771
        %4902 = vmatmul.mubr.f32.gmra.mrb[0].mxu0 %v770
        %v4903 = vpop.f32.mrb[0].mxu0
        %v4904 = vadd.f32 %v4455, %v4903
        %v4905 = vpop.f32.mrb[0].mxu0
        %v4906 = vadd.f32 %v4457, %v4905
        %4907 = vmatprep.mubr.f32.mxu0 %v779
        %4908 = vmatmul.mubr.f32.gmra.mrb[0].mxu0 %v778
        %v4909 = vpop.f32.mrb[0].mxu0
        %v4910 = vadd.f32 %v4461, %v4909
        %v4911 = vpop.f32.mrb[0].mxu0
        %v4912 = vadd.f32 %v4463, %v4911
        %4913 = vmatprep.mubr.f32.mxu0 %v787
        %4914 = vmatmul.mubr.f32.gmra.mrb[0].mxu0 %v786
        %v4915 = vpop.f32.mrb[0].mxu0
        %v4916 = vadd.f32 %v4467, %v4915
        %v4917 = vpop.f32.mrb[0].mxu0
        %v4918 = vadd.f32 %v4469, %v4917
        %4919 = vmatprep.mubr.f32.mxu0 %v795
        %4920 = vmatmul.mubr.f32.gmra.mrb[0].mxu0 %v794
        %v4921 = vpop.f32.mrb[0].mxu0
        %v4922 = vadd.f32 %v4473, %v4921
        %v4923 = vpop.f32.mrb[0].mxu0
        %v4924 = vadd.f32 %v4475, %v4923
        %4925 = vmatprep.mubr.f32.mxu0 %v803
        %4926 = vmatmul.mubr.f32.gmra.mrb[0].mxu0 %v802
        %v4927 = vpop.f32.mrb[0].mxu0
        %v4928 = vadd.f32 %v4479, %v4927
        %v4929 = vpop.f32.mrb[0].mxu0
        %v4930 = vadd.f32 %v4481, %v4929
        %4931 = vmatprep.mubr.f32.mxu0 %v811
        %4932 = vmatmul.mubr.f32.gmra.mrb[0].mxu0 %v810
        %v4933 = vpop.f32.mrb[0].mxu0
        %v4934 = vadd.f32 %v4485, %v4933
        %v4935 = vpop.f32.mrb[0].mxu0
        %v4936 = vadd.f32 %v4487, %v4935
        %4937 = vdwg.mxu0
        %v4938 = vtanh.pop %v2760
        %v4939 = vtanh.pop %v2762
        %v4940 = vtanh.pop %v2766
        %v4941 = vtanh.pop %v2768
        %v4942 = vtanh.pop %v2772
        %v4943 = vtanh.pop %v2774
        %v4944 = vtanh.pop %v2778
        %v4945 = vtanh.pop %v2780
        %v4946 = vtanh.pop %v2784
        %v4947 = vtanh.pop %v2786
        %v4948 = vtanh.pop %v2790
        %v4949 = vtanh.pop %v2792
        %v4950 = vtanh.pop %v2796
        %v4951 = vtanh.pop %v2798
        %v4952 = vtanh.pop %v2802
        %v4953 = vtanh.pop %v2804
        %v4954 = vtanh.pop %v2808
        %v4955 = vtanh.pop %v2810
        %v4956 = vtanh.pop %v2814
        %v4957 = vtanh.pop %v2816
        %v4958 = vtanh.pop %v2820
        %v4959 = vtanh.pop %v2822
        %v4960 = vtanh.pop %v2826
        %v4961 = vtanh.pop %v2828
        %v4962 = vtanh.pop %v2832
        %v4963 = vtanh.pop %v2834
        %v4964 = vtanh.pop %v2838
        %v4965 = vtanh.pop %v2840
        %v4966 = vtanh.pop %v2844
        %v4967 = vtanh.pop %v2846
        %v4968 = vtanh.pop %v2850
        %v4969 = vtanh.pop %v2852
        %v4970 = vtanh.pop %v2856
        %v4971 = vtanh.pop %v2858
        %v4972 = vtanh.pop %v2862
        %v4973 = vtanh.pop %v2864
        %v4974 = vtanh.pop %v2868
        %v4975 = vtanh.pop %v2870
        %v4976 = vtanh.pop %v2874
        %v4977 = vtanh.pop %v2876
        %v4978 = vtanh.pop %v2880
        %v4979 = vtanh.pop %v2882
        %v4980 = vtanh.pop %v2886
        %v4981 = vtanh.pop %v2888
        %v4982 = vtanh.pop %v2892
        %v4983 = vtanh.pop %v2894
        %v4984 = vtanh.pop %v2898
        %v4985 = vtanh.pop %v2900
        %v4986 = vtanh.pop %v2904
        %v4987 = vtanh.pop %v2906
        %v4988 = vtanh.pop %v2910
        %v4989 = vtanh.pop %v2912
        %v4990 = vtanh.pop %v2916
        %v4991 = vtanh.pop %v2918
        %v4992 = vtanh.pop %v2922
        %v4993 = vtanh.pop %v2924
        %v4994 = vtanh.pop %v2928
        %v4995 = vtanh.pop %v2930
        %v4996 = vtanh.pop %v2934
        %v4997 = vtanh.pop %v2936
        %v4998 = vtanh.pop %v2940
        %v4999 = vtanh.pop %v2942
        %v5000 = vtanh.pop %v2946
        %v5001 = vtanh.pop %v2948
        %v5002 = vtanh.pop %v2952
        %v5003 = vtanh.pop %v2954
        %v5004 = vtanh.pop %v2958
        %v5005 = vtanh.pop %v2960
        %v5006 = vtanh.pop %v2964
        %v5007 = vtanh.pop %v2966
        %v5008 = vtanh.pop %v2970
        %v5009 = vtanh.pop %v2972
        %v5010 = vtanh.pop %v2976
        %v5011 = vtanh.pop %v2978
        %v5012 = vtanh.pop %v2982
        %v5013 = vtanh.pop %v2984
        %v5014 = vtanh.pop %v2988
        %v5015 = vtanh.pop %v2990
        %v5016 = vtanh.pop %v2994
        %v5017 = vtanh.pop %v2996
        %v5018 = vtanh.pop %v3000
        %v5019 = vtanh.pop %v3002
        %v5020 = vtanh.pop %v3006
        %v5021 = vtanh.pop %v3008
        %v5022 = vtanh.pop %v3012
        %v5023 = vtanh.pop %v3014
        %v5024 = vtanh.pop %v3018
        %v5025 = vtanh.pop %v3020
        %v5026 = vtanh.pop %v3024
        %v5027 = vtanh.pop %v3026
        %v5028 = vtanh.pop %v3030
        %v5029 = vtanh.pop %v3032
        %v5030 = vtanh.pop %v3036
        %v5031 = vtanh.pop %v3038
        %v5032 = vtanh.pop %v3042
        %v5033 = vtanh.pop %v3044
        %v5034 = vtanh.pop %v3048
        %v5035 = vtanh.pop %v3050
        %v5036 = vtanh.pop %v3054
        %v5037 = vtanh.pop %v3056
        %v5038 = vtanh.pop %v3060
        %v5039 = vtanh.pop %v3062
        %v5040 = vtanh.pop %v3066
        %v5041 = vtanh.pop %v3068
        %v5042 = vtanh.pop %v3072
        %v5043 = vtanh.pop %v3074
        %v5044 = vtanh.pop %v3078
        %v5045 = vtanh.pop %v3080
        %v5046 = vtanh.pop %v3084
        %v5047 = vtanh.pop %v3086
        %v5048 = vtanh.pop %v3090
        %v5049 = vtanh.pop %v3092
        %v5050 = vtanh.pop %v3096
        %v5051 = vtanh.pop %v3098
        %v5052 = vtanh.pop %v3102
        %v5053 = vtanh.pop %v3104
        %v5054 = vtanh.pop %v3108
        %v5055 = vtanh.pop %v3110
        %v5056 = vtanh.pop %v3114
        %v5057 = vtanh.pop %v3116
        %v5058 = vtanh.pop %v3120
        %v5059 = vtanh.pop %v3122
        %v5060 = vtanh.pop %v3126
        %v5061 = vtanh.pop %v3128
        %v5062 = vtanh.pop %v3132
        %v5063 = vtanh.pop %v3134
        %v5064 = vtanh.pop %v3138
        %v5065 = vtanh.pop %v3140
        %v5066 = vxor.u32 %v4556, 2147483648
        %v5067 = vxor.u32 %v4558, 2147483648
        %v5068 = vxor.u32 %v4562, 2147483648
        %v5069 = vxor.u32 %v4564, 2147483648
        %v5070 = vxor.u32 %v4568, 2147483648
        %v5071 = vxor.u32 %v4570, 2147483648
        %v5072 = vxor.u32 %v4574, 2147483648
        %v5073 = vxor.u32 %v4576, 2147483648
        %v5074 = vxor.u32 %v4580, 2147483648
        %v5075 = vxor.u32 %v4582, 2147483648
        %v5076 = vxor.u32 %v4586, 2147483648
        %v5077 = vxor.u32 %v4588, 2147483648
        %v5078 = vxor.u32 %v4592, 2147483648
        %v5079 = vxor.u32 %v4594, 2147483648
        %v5080 = vxor.u32 %v4598, 2147483648
        %v5081 = vxor.u32 %v4600, 2147483648
        %v5082 = vxor.u32 %v4604, 2147483648
        %v5083 = vxor.u32 %v4606, 2147483648
        %v5084 = vxor.u32 %v4610, 2147483648
        %v5085 = vxor.u32 %v4612, 2147483648
        %v5086 = vxor.u32 %v4616, 2147483648
        %v5087 = vxor.u32 %v4618, 2147483648
        %v5088 = vxor.u32 %v4622, 2147483648
        %v5089 = vxor.u32 %v4624, 2147483648
        %v5090 = vxor.u32 %v4628, 2147483648
        %v5091 = vxor.u32 %v4630, 2147483648
        %v5092 = vxor.u32 %v4634, 2147483648
        %v5093 = vxor.u32 %v4636, 2147483648
        %v5094 = vxor.u32 %v4640, 2147483648
        %v5095 = vxor.u32 %v4642, 2147483648
        %v5096 = vxor.u32 %v4646, 2147483648
        %v5097 = vxor.u32 %v4648, 2147483648
        %v5098 = vxor.u32 %v4652, 2147483648
        %v5099 = vxor.u32 %v4654, 2147483648
        %v5100 = vxor.u32 %v4658, 2147483648
        %v5101 = vxor.u32 %v4660, 2147483648
        %v5102 = vxor.u32 %v4664, 2147483648
        %v5103 = vxor.u32 %v4666, 2147483648
        %v5104 = vxor.u32 %v4670, 2147483648
        %v5105 = vxor.u32 %v4672, 2147483648
        %v5106 = vxor.u32 %v4676, 2147483648
        %v5107 = vxor.u32 %v4678, 2147483648
        %v5108 = vxor.u32 %v4682, 2147483648
        %v5109 = vxor.u32 %v4684, 2147483648
        %v5110 = vxor.u32 %v4688, 2147483648
        %v5111 = vxor.u32 %v4690, 2147483648
        %v5112 = vxor.u32 %v4694, 2147483648
        %v5113 = vxor.u32 %v4696, 2147483648
        %v5114 = vxor.u32 %v4700, 2147483648
        %v5115 = vxor.u32 %v4702, 2147483648
        %v5116 = vxor.u32 %v4706, 2147483648
        %v5117 = vxor.u32 %v4708, 2147483648
        %v5118 = vxor.u32 %v4712, 2147483648
        %v5119 = vxor.u32 %v4714, 2147483648
        %v5120 = vxor.u32 %v4718, 2147483648
        %v5121 = vxor.u32 %v4720, 2147483648
        %v5122 = vxor.u32 %v4724, 2147483648
        %v5123 = vxor.u32 %v4726, 2147483648
        %v5124 = vxor.u32 %v4730, 2147483648
        %v5125 = vxor.u32 %v4732, 2147483648
        %v5126 = vxor.u32 %v4736, 2147483648
        %v5127 = vxor.u32 %v4738, 2147483648
        %v5128 = vxor.u32 %v4742, 2147483648
        %v5129 = vxor.u32 %v4744, 2147483648
        %v5130 = vxor.u32 %v4748, 2147483648
        %v5131 = vxor.u32 %v4750, 2147483648
        %v5132 = vxor.u32 %v4754, 2147483648
        %v5133 = vxor.u32 %v4756, 2147483648
        %v5134 = vxor.u32 %v4760, 2147483648
        %v5135 = vxor.u32 %v4762, 2147483648
        %v5136 = vxor.u32 %v4766, 2147483648
        %v5137 = vxor.u32 %v4768, 2147483648
        %v5138 = vxor.u32 %v4772, 2147483648
        %v5139 = vxor.u32 %v4774, 2147483648
        %v5140 = vxor.u32 %v4778, 2147483648
        %v5141 = vxor.u32 %v4780, 2147483648
        %v5142 = vxor.u32 %v4784, 2147483648
        %v5143 = vxor.u32 %v4786, 2147483648
        %v5144 = vxor.u32 %v4790, 2147483648
        %v5145 = vxor.u32 %v4792, 2147483648
        %v5146 = vxor.u32 %v4796, 2147483648
        %v5147 = vxor.u32 %v4798, 2147483648
        %v5148 = vxor.u32 %v4802, 2147483648
        %v5149 = vxor.u32 %v4804, 2147483648
        %v5150 = vxor.u32 %v4808, 2147483648
        %v5151 = vxor.u32 %v4810, 2147483648
        %v5152 = vxor.u32 %v4814, 2147483648
        %v5153 = vxor.u32 %v4816, 2147483648
        %v5154 = vxor.u32 %v4820, 2147483648
        %v5155 = vxor.u32 %v4822, 2147483648
        %v5156 = vxor.u32 %v4826, 2147483648
        %v5157 = vxor.u32 %v4828, 2147483648
        %v5158 = vxor.u32 %v4832, 2147483648
        %v5159 = vxor.u32 %v4834, 2147483648
        %v5160 = vxor.u32 %v4838, 2147483648
        %v5161 = vxor.u32 %v4840, 2147483648
        %v5162 = vxor.u32 %v4844, 2147483648
        %v5163 = vxor.u32 %v4846, 2147483648
        %v5164 = vxor.u32 %v4850, 2147483648
        %v5165 = vxor.u32 %v4852, 2147483648
        %v5166 = vxor.u32 %v4856, 2147483648
        %v5167 = vxor.u32 %v4858, 2147483648
        %v5168 = vxor.u32 %v4862, 2147483648
        %v5169 = vxor.u32 %v4864, 2147483648
        %v5170 = vxor.u32 %v4868, 2147483648
        %v5171 = vxor.u32 %v4870, 2147483648
        %v5172 = vxor.u32 %v4874, 2147483648
        %v5173 = vxor.u32 %v4876, 2147483648
        %v5174 = vxor.u32 %v4880, 2147483648
        %v5175 = vxor.u32 %v4882, 2147483648
        %v5176 = vxor.u32 %v4886, 2147483648
        %v5177 = vxor.u32 %v4888, 2147483648
        %v5178 = vxor.u32 %v4892, 2147483648
        %v5179 = vxor.u32 %v4894, 2147483648
        %v5180 = vxor.u32 %v4898, 2147483648
        %v5181 = vxor.u32 %v4900, 2147483648
        %v5182 = vxor.u32 %v4904, 2147483648
        %v5183 = vxor.u32 %v4906, 2147483648
        %v5184 = vxor.u32 %v4910, 2147483648
        %v5185 = vxor.u32 %v4912, 2147483648
        %v5186 = vxor.u32 %v4916, 2147483648
        %v5187 = vxor.u32 %v4918, 2147483648
        %v5188 = vxor.u32 %v4922, 2147483648
        %v5189 = vxor.u32 %v4924, 2147483648
        %v5190 = vxor.u32 %v4928, 2147483648
        %v5191 = vxor.u32 %v4930, 2147483648
        %v5192 = vxor.u32 %v4934, 2147483648
        %v5193 = vxor.u32 %v4936, 2147483648
        %v5194 = vmul.f32 %v5066, 1.442695
        %v5195 = vpow.pop %v5194
        %v5196 = vmul.f32 %v5067, 1.442695
        %v5197 = vpow.pop %v5196
        %v5198 = vmul.f32 %v5068, 1.442695
        %v5199 = vpow.pop %v5198
        %v5200 = vmul.f32 %v5069, 1.442695
        %v5201 = vpow.pop %v5200
        %v5202 = vmul.f32 %v5070, 1.442695
        %v5203 = vpow.pop %v5202
        %v5204 = vmul.f32 %v5071, 1.442695
        %v5205 = vpow.pop %v5204
        %v5206 = vmul.f32 %v5072, 1.442695
        %v5207 = vpow.pop %v5206
        %v5208 = vmul.f32 %v5073, 1.442695
        %v5209 = vpow.pop %v5208
        %v5210 = vmul.f32 %v5074, 1.442695
        %v5211 = vpow.pop %v5210
        %v5212 = vmul.f32 %v5075, 1.442695
        %v5213 = vpow.pop %v5212
        %v5214 = vmul.f32 %v5076, 1.442695
        %v5215 = vpow.pop %v5214
        %v5216 = vmul.f32 %v5077, 1.442695
        %v5217 = vpow.pop %v5216
        %v5218 = vmul.f32 %v5078, 1.442695
        %v5219 = vpow.pop %v5218
        %v5220 = vmul.f32 %v5079, 1.442695
        %v5221 = vpow.pop %v5220
        %v5222 = vmul.f32 %v5080, 1.442695
        %v5223 = vpow.pop %v5222
        %v5224 = vmul.f32 %v5081, 1.442695
        %v5225 = vpow.pop %v5224
        %v5226 = vmul.f32 %v5082, 1.442695
        %v5227 = vpow.pop %v5226
        %v5228 = vmul.f32 %v5083, 1.442695
        %v5229 = vpow.pop %v5228
        %v5230 = vmul.f32 %v5084, 1.442695
        %v5231 = vpow.pop %v5230
        %v5232 = vmul.f32 %v5085, 1.442695
        %v5233 = vpow.pop %v5232
        %v5234 = vmul.f32 %v5086, 1.442695
        %v5235 = vpow.pop %v5234
        %v5236 = vmul.f32 %v5087, 1.442695
        %v5237 = vpow.pop %v5236
        %v5238 = vmul.f32 %v5088, 1.442695
        %v5239 = vpow.pop %v5238
        %v5240 = vmul.f32 %v5089, 1.442695
        %v5241 = vpow.pop %v5240
        %v5242 = vmul.f32 %v5090, 1.442695
        %v5243 = vpow.pop %v5242
        %v5244 = vmul.f32 %v5091, 1.442695
        %v5245 = vpow.pop %v5244
        %v5246 = vmul.f32 %v5092, 1.442695
        %v5247 = vpow.pop %v5246
        %v5248 = vmul.f32 %v5093, 1.442695
        %v5249 = vpow.pop %v5248
        %v5250 = vmul.f32 %v5094, 1.442695
        %v5251 = vpow.pop %v5250
        %v5252 = vmul.f32 %v5095, 1.442695
        %v5253 = vpow.pop %v5252
        %v5254 = vmul.f32 %v5096, 1.442695
        %v5255 = vpow.pop %v5254
        %v5256 = vmul.f32 %v5097, 1.442695
        %v5257 = vpow.pop %v5256
        %v5258 = vmul.f32 %v5098, 1.442695
        %v5259 = vpow.pop %v5258
        %v5260 = vmul.f32 %v5099, 1.442695
        %v5261 = vpow.pop %v5260
        %v5262 = vmul.f32 %v5100, 1.442695
        %v5263 = vpow.pop %v5262
        %v5264 = vmul.f32 %v5101, 1.442695
        %v5265 = vpow.pop %v5264
        %v5266 = vmul.f32 %v5102, 1.442695
        %v5267 = vpow.pop %v5266
        %v5268 = vmul.f32 %v5103, 1.442695
        %v5269 = vpow.pop %v5268
        %v5270 = vmul.f32 %v5104, 1.442695
        %v5271 = vpow.pop %v5270
        %v5272 = vmul.f32 %v5105, 1.442695
        %v5273 = vpow.pop %v5272
        %v5274 = vmul.f32 %v5106, 1.442695
        %v5275 = vpow.pop %v5274
        %v5276 = vmul.f32 %v5107, 1.442695
        %v5277 = vpow.pop %v5276
        %v5278 = vmul.f32 %v5108, 1.442695
        %v5279 = vpow.pop %v5278
        %v5280 = vmul.f32 %v5109, 1.442695
        %v5281 = vpow.pop %v5280
        %v5282 = vmul.f32 %v5110, 1.442695
        %v5283 = vpow.pop %v5282
        %v5284 = vmul.f32 %v5111, 1.442695
        %v5285 = vpow.pop %v5284
        %v5286 = vmul.f32 %v5112, 1.442695
        %v5287 = vpow.pop %v5286
        %v5288 = vmul.f32 %v5113, 1.442695
        %v5289 = vpow.pop %v5288
        %v5290 = vmul.f32 %v5114, 1.442695
        %v5291 = vpow.pop %v5290
        %v5292 = vmul.f32 %v5115, 1.442695
        %v5293 = vpow.pop %v5292
        %v5294 = vmul.f32 %v5116, 1.442695
        %v5295 = vpow.pop %v5294
        %v5296 = vmul.f32 %v5117, 1.442695
        %v5297 = vpow.pop %v5296
        %v5298 = vmul.f32 %v5118, 1.442695
        %v5299 = vpow.pop %v5298
        %v5300 = vmul.f32 %v5119, 1.442695
        %v5301 = vpow.pop %v5300
        %v5302 = vmul.f32 %v5120, 1.442695
        %v5303 = vpow.pop %v5302
        %v5304 = vmul.f32 %v5121, 1.442695
        %v5305 = vpow.pop %v5304
        %v5306 = vmul.f32 %v5122, 1.442695
        %v5307 = vpow.pop %v5306
        %v5308 = vmul.f32 %v5123, 1.442695
        %v5309 = vpow.pop %v5308
        %v5310 = vmul.f32 %v5124, 1.442695
        %v5311 = vpow.pop %v5310
        %v5312 = vmul.f32 %v5125, 1.442695
        %v5313 = vpow.pop %v5312
        %v5314 = vmul.f32 %v5126, 1.442695
        %v5315 = vpow.pop %v5314
        %v5316 = vmul.f32 %v5127, 1.442695
        %v5317 = vpow.pop %v5316
        %v5318 = vmul.f32 %v5128, 1.442695
        %v5319 = vpow.pop %v5318
        %v5320 = vmul.f32 %v5129, 1.442695
        %v5321 = vpow.pop %v5320
        %v5322 = vmul.f32 %v5130, 1.442695
        %v5323 = vpow.pop %v5322
        %v5324 = vmul.f32 %v5131, 1.442695
        %v5325 = vpow.pop %v5324
        %v5326 = vmul.f32 %v5132, 1.442695
        %v5327 = vpow.pop %v5326
        %v5328 = vmul.f32 %v5133, 1.442695
        %v5329 = vpow.pop %v5328
        %v5330 = vmul.f32 %v5134, 1.442695
        %v5331 = vpow.pop %v5330
        %v5332 = vmul.f32 %v5135, 1.442695
        %v5333 = vpow.pop %v5332
        %v5334 = vmul.f32 %v5136, 1.442695
        %v5335 = vpow.pop %v5334
        %v5336 = vmul.f32 %v5137, 1.442695
        %v5337 = vpow.pop %v5336
        %v5338 = vmul.f32 %v5138, 1.442695
        %v5339 = vpow.pop %v5338
        %v5340 = vmul.f32 %v5139, 1.442695
        %v5341 = vpow.pop %v5340
        %v5342 = vmul.f32 %v5140, 1.442695
        %v5343 = vpow.pop %v5342
        %v5344 = vmul.f32 %v5141, 1.442695
        %v5345 = vpow.pop %v5344
        %v5346 = vmul.f32 %v5142, 1.442695
        %v5347 = vpow.pop %v5346
        %v5348 = vmul.f32 %v5143, 1.442695
        %v5349 = vpow.pop %v5348
        %v5350 = vmul.f32 %v5144, 1.442695
        %v5351 = vpow.pop %v5350
        %v5352 = vmul.f32 %v5145, 1.442695
        %v5353 = vpow.pop %v5352
        %v5354 = vmul.f32 %v5146, 1.442695
        %v5355 = vpow.pop %v5354
        %v5356 = vmul.f32 %v5147, 1.442695
        %v5357 = vpow.pop %v5356
        %v5358 = vmul.f32 %v5148, 1.442695
        %v5359 = vpow.pop %v5358
        %v5360 = vmul.f32 %v5149, 1.442695
        %v5361 = vpow.pop %v5360
        %v5362 = vmul.f32 %v5150, 1.442695
        %v5363 = vpow.pop %v5362
        %v5364 = vmul.f32 %v5151, 1.442695
        %v5365 = vpow.pop %v5364
        %v5366 = vmul.f32 %v5152, 1.442695
        %v5367 = vpow.pop %v5366
        %v5368 = vmul.f32 %v5153, 1.442695
        %v5369 = vpow.pop %v5368
        %v5370 = vmul.f32 %v5154, 1.442695
        %v5371 = vpow.pop %v5370
        %v5372 = vmul.f32 %v5155, 1.442695
        %v5373 = vpow.pop %v5372
        %v5374 = vmul.f32 %v5156, 1.442695
        %v5375 = vpow.pop %v5374
        %v5376 = vmul.f32 %v5157, 1.442695
        %v5377 = vpow.pop %v5376
        %v5378 = vmul.f32 %v5158, 1.442695
        %v5379 = vpow.pop %v5378
        %v5380 = vmul.f32 %v5159, 1.442695
        %v5381 = vpow.pop %v5380
        %v5382 = vmul.f32 %v5160, 1.442695
        %v5383 = vpow.pop %v5382
        %v5384 = vmul.f32 %v5161, 1.442695
        %v5385 = vpow.pop %v5384
        %v5386 = vmul.f32 %v5162, 1.442695
        %v5387 = vpow.pop %v5386
        %v5388 = vmul.f32 %v5163, 1.442695
        %v5389 = vpow.pop %v5388
        %v5390 = vmul.f32 %v5164, 1.442695
        %v5391 = vpow.pop %v5390
        %v5392 = vmul.f32 %v5165, 1.442695
        %v5393 = vpow.pop %v5392
        %v5394 = vmul.f32 %v5166, 1.442695
        %v5395 = vpow.pop %v5394
        %v5396 = vmul.f32 %v5167, 1.442695
        %v5397 = vpow.pop %v5396
        %v5398 = vmul.f32 %v5168, 1.442695
        %v5399 = vpow.pop %v5398
        %v5400 = vmul.f32 %v5169, 1.442695
        %v5401 = vpow.pop %v5400
        %v5402 = vmul.f32 %v5170, 1.442695
        %v5403 = vpow.pop %v5402
        %v5404 = vmul.f32 %v5171, 1.442695
        %v5405 = vpow.pop %v5404
        %v5406 = vmul.f32 %v5172, 1.442695
        %v5407 = vpow.pop %v5406
        %v5408 = vmul.f32 %v5173, 1.442695
        %v5409 = vpow.pop %v5408
        %v5410 = vmul.f32 %v5174, 1.442695
        %v5411 = vpow.pop %v5410
        %v5412 = vmul.f32 %v5175, 1.442695
        %v5413 = vpow.pop %v5412
        %v5414 = vmul.f32 %v5176, 1.442695
        %v5415 = vpow.pop %v5414
        %v5416 = vmul.f32 %v5177, 1.442695
        %v5417 = vpow.pop %v5416
        %v5418 = vmul.f32 %v5178, 1.442695
        %v5419 = vpow.pop %v5418
        %v5420 = vmul.f32 %v5179, 1.442695
        %v5421 = vpow.pop %v5420
        %v5422 = vmul.f32 %v5180, 1.442695
        %v5423 = vpow.pop %v5422
        %v5424 = vmul.f32 %v5181, 1.442695
        %v5425 = vpow.pop %v5424
        %v5426 = vmul.f32 %v5182, 1.442695
        %v5427 = vpow.pop %v5426
        %v5428 = vmul.f32 %v5183, 1.442695
        %v5429 = vpow.pop %v5428
        %v5430 = vmul.f32 %v5184, 1.442695
        %v5431 = vpow.pop %v5430
        %v5432 = vmul.f32 %v5185, 1.442695
        %v5433 = vpow.pop %v5432
        %v5434 = vmul.f32 %v5186, 1.442695
        %v5435 = vpow.pop %v5434
        %v5436 = vmul.f32 %v5187, 1.442695
        %v5437 = vpow.pop %v5436
        %v5438 = vmul.f32 %v5188, 1.442695
        %v5439 = vpow.pop %v5438
        %v5440 = vmul.f32 %v5189, 1.442695
        %v5441 = vpow.pop %v5440
        %v5442 = vmul.f32 %v5190, 1.442695
        %v5443 = vpow.pop %v5442
        %v5444 = vmul.f32 %v5191, 1.442695
        %v5445 = vpow.pop %v5444
        %v5446 = vmul.f32 %v5192, 1.442695
        %v5447 = vpow.pop %v5446
        %v5448 = vmul.f32 %v5193, 1.442695
        %v5449 = vpow.pop %v5448
        %v5450 = vadd.f32 %v5195, 1.0
        %v5451 = vadd.f32 %v5197, 1.0
        %v5452 = vadd.f32 %v5199, 1.0
        %v5453 = vadd.f32 %v5201, 1.0
        %v5454 = vadd.f32 %v5203, 1.0
        %v5455 = vadd.f32 %v5205, 1.0
        %v5456 = vadd.f32 %v5207, 1.0
        %v5457 = vadd.f32 %v5209, 1.0
        %v5458 = vadd.f32 %v5211, 1.0
        %v5459 = vadd.f32 %v5213, 1.0
        %v5460 = vadd.f32 %v5215, 1.0
        %v5461 = vadd.f32 %v5217, 1.0
        %v5462 = vadd.f32 %v5219, 1.0
        %v5463 = vadd.f32 %v5221, 1.0
        %v5464 = vadd.f32 %v5223, 1.0
        %v5465 = vadd.f32 %v5225, 1.0
        %v5466 = vadd.f32 %v5227, 1.0
        %v5467 = vadd.f32 %v5229, 1.0
        %v5468 = vadd.f32 %v5231, 1.0
        %v5469 = vadd.f32 %v5233, 1.0
        %v5470 = vadd.f32 %v5235, 1.0
        %v5471 = vadd.f32 %v5237, 1.0
        %v5472 = vadd.f32 %v5239, 1.0
        %v5473 = vadd.f32 %v5241, 1.0
        %v5474 = vadd.f32 %v5243, 1.0
        %v5475 = vadd.f32 %v5245, 1.0
        %v5476 = vadd.f32 %v5247, 1.0
        %v5477 = vadd.f32 %v5249, 1.0
        %v5478 = vadd.f32 %v5251, 1.0
        %v5479 = vadd.f32 %v5253, 1.0
        %v5480 = vadd.f32 %v5255, 1.0
        %v5481 = vadd.f32 %v5257, 1.0
        %v5482 = vadd.f32 %v5259, 1.0
        %v5483 = vadd.f32 %v5261, 1.0
        %v5484 = vadd.f32 %v5263, 1.0
        %v5485 = vadd.f32 %v5265, 1.0
        %v5486 = vadd.f32 %v5267, 1.0
        %v5487 = vadd.f32 %v5269, 1.0
        %v5488 = vadd.f32 %v5271, 1.0
        %v5489 = vadd.f32 %v5273, 1.0
        %v5490 = vadd.f32 %v5275, 1.0
        %v5491 = vadd.f32 %v5277, 1.0
        %v5492 = vadd.f32 %v5279, 1.0
        %v5493 = vadd.f32 %v5281, 1.0
        %v5494 = vadd.f32 %v5283, 1.0
        %v5495 = vadd.f32 %v5285, 1.0
        %v5496 = vadd.f32 %v5287, 1.0
        %v5497 = vadd.f32 %v5289, 1.0
        %v5498 = vadd.f32 %v5291, 1.0
        %v5499 = vadd.f32 %v5293, 1.0
        %v5500 = vadd.f32 %v5295, 1.0
        %v5501 = vadd.f32 %v5297, 1.0
        %v5502 = vadd.f32 %v5299, 1.0
        %v5503 = vadd.f32 %v5301, 1.0
        %v5504 = vadd.f32 %v5303, 1.0
        %v5505 = vadd.f32 %v5305, 1.0
        %v5506 = vadd.f32 %v5307, 1.0
        %v5507 = vadd.f32 %v5309, 1.0
        %v5508 = vadd.f32 %v5311, 1.0
        %v5509 = vadd.f32 %v5313, 1.0
        %v5510 = vadd.f32 %v5315, 1.0
        %v5511 = vadd.f32 %v5317, 1.0
        %v5512 = vadd.f32 %v5319, 1.0
        %v5513 = vadd.f32 %v5321, 1.0
        %v5514 = vadd.f32 %v5323, 1.0
        %v5515 = vadd.f32 %v5325, 1.0
        %v5516 = vadd.f32 %v5327, 1.0
        %v5517 = vadd.f32 %v5329, 1.0
        %v5518 = vadd.f32 %v5331, 1.0
        %v5519 = vadd.f32 %v5333, 1.0
        %v5520 = vadd.f32 %v5335, 1.0
        %v5521 = vadd.f32 %v5337, 1.0
        %v5522 = vadd.f32 %v5339, 1.0
        %v5523 = vadd.f32 %v5341, 1.0
        %v5524 = vadd.f32 %v5343, 1.0
        %v5525 = vadd.f32 %v5345, 1.0
        %v5526 = vadd.f32 %v5347, 1.0
        %v5527 = vadd.f32 %v5349, 1.0
        %v5528 = vadd.f32 %v5351, 1.0
        %v5529 = vadd.f32 %v5353, 1.0
        %v5530 = vadd.f32 %v5355, 1.0
        %v5531 = vadd.f32 %v5357, 1.0
        %v5532 = vadd.f32 %v5359, 1.0
        %v5533 = vadd.f32 %v5361, 1.0
        %v5534 = vadd.f32 %v5363, 1.0
        %v5535 = vadd.f32 %v5365, 1.0
        %v5536 = vadd.f32 %v5367, 1.0
        %v5537 = vadd.f32 %v5369, 1.0
        %v5538 = vadd.f32 %v5371, 1.0
        %v5539 = vadd.f32 %v5373, 1.0
        %v5540 = vadd.f32 %v5375, 1.0
        %v5541 = vadd.f32 %v5377, 1.0
        %v5542 = vadd.f32 %v5379, 1.0
        %v5543 = vadd.f32 %v5381, 1.0
        %v5544 = vadd.f32 %v5383, 1.0
        %v5545 = vadd.f32 %v5385, 1.0
        %v5546 = vadd.f32 %v5387, 1.0
        %v5547 = vadd.f32 %v5389, 1.0
        %v5548 = vadd.f32 %v5391, 1.0
        %v5549 = vadd.f32 %v5393, 1.0
        %v5550 = vadd.f32 %v5395, 1.0
        %v5551 = vadd.f32 %v5397, 1.0
        %v5552 = vadd.f32 %v5399, 1.0
        %v5553 = vadd.f32 %v5401, 1.0
        %v5554 = vadd.f32 %v5403, 1.0
        %v5555 = vadd.f32 %v5405, 1.0
        %v5556 = vadd.f32 %v5407, 1.0
        %v5557 = vadd.f32 %v5409, 1.0
        %v5558 = vadd.f32 %v5411, 1.0
        %v5559 = vadd.f32 %v5413, 1.0
        %v5560 = vadd.f32 %v5415, 1.0
        %v5561 = vadd.f32 %v5417, 1.0
        %v5562 = vadd.f32 %v5419, 1.0
        %v5563 = vadd.f32 %v5421, 1.0
        %v5564 = vadd.f32 %v5423, 1.0
        %v5565 = vadd.f32 %v5425, 1.0
        %v5566 = vadd.f32 %v5427, 1.0
        %v5567 = vadd.f32 %v5429, 1.0
        %v5568 = vadd.f32 %v5431, 1.0
        %v5569 = vadd.f32 %v5433, 1.0
        %v5570 = vadd.f32 %v5435, 1.0
        %v5571 = vadd.f32 %v5437, 1.0
        %v5572 = vadd.f32 %v5439, 1.0
        %v5573 = vadd.f32 %v5441, 1.0
        %v5574 = vadd.f32 %v5443, 1.0
        %v5575 = vadd.f32 %v5445, 1.0
        %v5576 = vadd.f32 %v5447, 1.0
        %v5577 = vadd.f32 %v5449, 1.0
        %v5578 = vrcp.pop %v5450
        %v5579 = vmul.f32 1.0, %v5578
        %v5580 = vrcp.pop %v5451
        %v5581 = vmul.f32 1.0, %v5580
        %v5582 = vrcp.pop %v5452
        %v5583 = vmul.f32 1.0, %v5582
        %v5584 = vrcp.pop %v5453
        %v5585 = vmul.f32 1.0, %v5584
        %v5586 = vrcp.pop %v5454
        %v5587 = vmul.f32 1.0, %v5586
        %v5588 = vrcp.pop %v5455
        %v5589 = vmul.f32 1.0, %v5588
        %v5590 = vrcp.pop %v5456
        %v5591 = vmul.f32 1.0, %v5590
        %v5592 = vrcp.pop %v5457
        %v5593 = vmul.f32 1.0, %v5592
        %v5594 = vrcp.pop %v5458
        %v5595 = vmul.f32 1.0, %v5594
        %v5596 = vrcp.pop %v5459
        %v5597 = vmul.f32 1.0, %v5596
        %v5598 = vrcp.pop %v5460
        %v5599 = vmul.f32 1.0, %v5598
        %v5600 = vrcp.pop %v5461
        %v5601 = vmul.f32 1.0, %v5600
        %v5602 = vrcp.pop %v5462
        %v5603 = vmul.f32 1.0, %v5602
        %v5604 = vrcp.pop %v5463
        %v5605 = vmul.f32 1.0, %v5604
        %v5606 = vrcp.pop %v5464
        %v5607 = vmul.f32 1.0, %v5606
        %v5608 = vrcp.pop %v5465
        %v5609 = vmul.f32 1.0, %v5608
        %v5610 = vrcp.pop %v5466
        %v5611 = vmul.f32 1.0, %v5610
        %v5612 = vrcp.pop %v5467
        %v5613 = vmul.f32 1.0, %v5612
        %v5614 = vrcp.pop %v5468
        %v5615 = vmul.f32 1.0, %v5614
        %v5616 = vrcp.pop %v5469
        %v5617 = vmul.f32 1.0, %v5616
        %v5618 = vrcp.pop %v5470
        %v5619 = vmul.f32 1.0, %v5618
        %v5620 = vrcp.pop %v5471
        %v5621 = vmul.f32 1.0, %v5620
        %v5622 = vrcp.pop %v5472
        %v5623 = vmul.f32 1.0, %v5622
        %v5624 = vrcp.pop %v5473
        %v5625 = vmul.f32 1.0, %v5624
        %v5626 = vrcp.pop %v5474
        %v5627 = vmul.f32 1.0, %v5626
        %v5628 = vrcp.pop %v5475
        %v5629 = vmul.f32 1.0, %v5628
        %v5630 = vrcp.pop %v5476
        %v5631 = vmul.f32 1.0, %v5630
        %v5632 = vrcp.pop %v5477
        %v5633 = vmul.f32 1.0, %v5632
        %v5634 = vrcp.pop %v5478
        %v5635 = vmul.f32 1.0, %v5634
        %v5636 = vrcp.pop %v5479
        %v5637 = vmul.f32 1.0, %v5636
        %v5638 = vrcp.pop %v5480
        %v5639 = vmul.f32 1.0, %v5638
        %v5640 = vrcp.pop %v5481
        %v5641 = vmul.f32 1.0, %v5640
        %v5642 = vrcp.pop %v5482
        %v5643 = vmul.f32 1.0, %v5642
        %v5644 = vrcp.pop %v5483
        %v5645 = vmul.f32 1.0, %v5644
        %v5646 = vrcp.pop %v5484
        %v5647 = vmul.f32 1.0, %v5646
        %v5648 = vrcp.pop %v5485
        %v5649 = vmul.f32 1.0, %v5648
        %v5650 = vrcp.pop %v5486
        %v5651 = vmul.f32 1.0, %v5650
        %v5652 = vrcp.pop %v5487
        %v5653 = vmul.f32 1.0, %v5652
        %v5654 = vrcp.pop %v5488
        %v5655 = vmul.f32 1.0, %v5654
        %v5656 = vrcp.pop %v5489
        %v5657 = vmul.f32 1.0, %v5656
        %v5658 = vrcp.pop %v5490
        %v5659 = vmul.f32 1.0, %v5658
        %v5660 = vrcp.pop %v5491
        %v5661 = vmul.f32 1.0, %v5660
        %v5662 = vrcp.pop %v5492
        %v5663 = vmul.f32 1.0, %v5662
        %v5664 = vrcp.pop %v5493
        %v5665 = vmul.f32 1.0, %v5664
        %v5666 = vrcp.pop %v5494
        %v5667 = vmul.f32 1.0, %v5666
        %v5668 = vrcp.pop %v5495
        %v5669 = vmul.f32 1.0, %v5668
        %v5670 = vrcp.pop %v5496
        %v5671 = vmul.f32 1.0, %v5670
        %v5672 = vrcp.pop %v5497
        %v5673 = vmul.f32 1.0, %v5672
        %v5674 = vrcp.pop %v5498
        %v5675 = vmul.f32 1.0, %v5674
        %v5676 = vrcp.pop %v5499
        %v5677 = vmul.f32 1.0, %v5676
        %v5678 = vrcp.pop %v5500
        %v5679 = vmul.f32 1.0, %v5678
        %v5680 = vrcp.pop %v5501
        %v5681 = vmul.f32 1.0, %v5680
        %v5682 = vrcp.pop %v5502
        %v5683 = vmul.f32 1.0, %v5682
        %v5684 = vrcp.pop %v5503
        %v5685 = vmul.f32 1.0, %v5684
        %v5686 = vrcp.pop %v5504
        %v5687 = vmul.f32 1.0, %v5686
        %v5688 = vrcp.pop %v5505
        %v5689 = vmul.f32 1.0, %v5688
        %v5690 = vrcp.pop %v5506
        %v5691 = vmul.f32 1.0, %v5690
        %v5692 = vrcp.pop %v5507
        %v5693 = vmul.f32 1.0, %v5692
        %v5694 = vrcp.pop %v5508
        %v5695 = vmul.f32 1.0, %v5694
        %v5696 = vrcp.pop %v5509
        %v5697 = vmul.f32 1.0, %v5696
        %v5698 = vrcp.pop %v5510
        %v5699 = vmul.f32 1.0, %v5698
        %v5700 = vrcp.pop %v5511
        %v5701 = vmul.f32 1.0, %v5700
        %v5702 = vrcp.pop %v5512
        %v5703 = vmul.f32 1.0, %v5702
        %v5704 = vrcp.pop %v5513
        %v5705 = vmul.f32 1.0, %v5704
        %v5706 = vrcp.pop %v5514
        %v5707 = vmul.f32 1.0, %v5706
        %v5708 = vrcp.pop %v5515
        %v5709 = vmul.f32 1.0, %v5708
        %v5710 = vrcp.pop %v5516
        %v5711 = vmul.f32 1.0, %v5710
        %v5712 = vrcp.pop %v5517
        %v5713 = vmul.f32 1.0, %v5712
        %v5714 = vrcp.pop %v5518
        %v5715 = vmul.f32 1.0, %v5714
        %v5716 = vrcp.pop %v5519
        %v5717 = vmul.f32 1.0, %v5716
        %v5718 = vrcp.pop %v5520
        %v5719 = vmul.f32 1.0, %v5718
        %v5720 = vrcp.pop %v5521
        %v5721 = vmul.f32 1.0, %v5720
        %v5722 = vrcp.pop %v5522
        %v5723 = vmul.f32 1.0, %v5722
        %v5724 = vrcp.pop %v5523
        %v5725 = vmul.f32 1.0, %v5724
        %v5726 = vrcp.pop %v5524
        %v5727 = vmul.f32 1.0, %v5726
        %v5728 = vrcp.pop %v5525
        %v5729 = vmul.f32 1.0, %v5728
        %v5730 = vrcp.pop %v5526
        %v5731 = vmul.f32 1.0, %v5730
        %v5732 = vrcp.pop %v5527
        %v5733 = vmul.f32 1.0, %v5732
        %v5734 = vrcp.pop %v5528
        %v5735 = vmul.f32 1.0, %v5734
        %v5736 = vrcp.pop %v5529
        %v5737 = vmul.f32 1.0, %v5736
        %v5738 = vrcp.pop %v5530
        %v5739 = vmul.f32 1.0, %v5738
        %v5740 = vrcp.pop %v5531
        %v5741 = vmul.f32 1.0, %v5740
        %v5742 = vrcp.pop %v5532
        %v5743 = vmul.f32 1.0, %v5742
        %v5744 = vrcp.pop %v5533
        %v5745 = vmul.f32 1.0, %v5744
        %v5746 = vrcp.pop %v5534
        %v5747 = vmul.f32 1.0, %v5746
        %v5748 = vrcp.pop %v5535
        %v5749 = vmul.f32 1.0, %v5748
        %v5750 = vrcp.pop %v5536
        %v5751 = vmul.f32 1.0, %v5750
        %v5752 = vrcp.pop %v5537
        %v5753 = vmul.f32 1.0, %v5752
        %v5754 = vrcp.pop %v5538
        %v5755 = vmul.f32 1.0, %v5754
        %v5756 = vrcp.pop %v5539
        %v5757 = vmul.f32 1.0, %v5756
        %v5758 = vrcp.pop %v5540
        %v5759 = vmul.f32 1.0, %v5758
        %v5760 = vrcp.pop %v5541
        %v5761 = vmul.f32 1.0, %v5760
        %v5762 = vrcp.pop %v5542
        %v5763 = vmul.f32 1.0, %v5762
        %v5764 = vrcp.pop %v5543
        %v5765 = vmul.f32 1.0, %v5764
        %v5766 = vrcp.pop %v5544
        %v5767 = vmul.f32 1.0, %v5766
        %v5768 = vrcp.pop %v5545
        %v5769 = vmul.f32 1.0, %v5768
        %v5770 = vrcp.pop %v5546
        %v5771 = vmul.f32 1.0, %v5770
        %v5772 = vrcp.pop %v5547
        %v5773 = vmul.f32 1.0, %v5772
        %v5774 = vrcp.pop %v5548
        %v5775 = vmul.f32 1.0, %v5774
        %v5776 = vrcp.pop %v5549
        %v5777 = vmul.f32 1.0, %v5776
        %v5778 = vrcp.pop %v5550
        %v5779 = vmul.f32 1.0, %v5778
        %v5780 = vrcp.pop %v5551
        %v5781 = vmul.f32 1.0, %v5780
        %v5782 = vrcp.pop %v5552
        %v5783 = vmul.f32 1.0, %v5782
        %v5784 = vrcp.pop %v5553
        %v5785 = vmul.f32 1.0, %v5784
        %v5786 = vrcp.pop %v5554
        %v5787 = vmul.f32 1.0, %v5786
        %v5788 = vrcp.pop %v5555
        %v5789 = vmul.f32 1.0, %v5788
        %v5790 = vrcp.pop %v5556
        %v5791 = vmul.f32 1.0, %v5790
        %v5792 = vrcp.pop %v5557
        %v5793 = vmul.f32 1.0, %v5792
        %v5794 = vrcp.pop %v5558
        %v5795 = vmul.f32 1.0, %v5794
        %v5796 = vrcp.pop %v5559
        %v5797 = vmul.f32 1.0, %v5796
        %v5798 = vrcp.pop %v5560
        %v5799 = vmul.f32 1.0, %v5798
        %v5800 = vrcp.pop %v5561
        %v5801 = vmul.f32 1.0, %v5800
        %v5802 = vrcp.pop %v5562
        %v5803 = vmul.f32 1.0, %v5802
        %v5804 = vrcp.pop %v5563
        %v5805 = vmul.f32 1.0, %v5804
        %v5806 = vrcp.pop %v5564
        %v5807 = vmul.f32 1.0, %v5806
        %v5808 = vrcp.pop %v5565
        %v5809 = vmul.f32 1.0, %v5808
        %v5810 = vrcp.pop %v5566
        %v5811 = vmul.f32 1.0, %v5810
        %v5812 = vrcp.pop %v5567
        %v5813 = vmul.f32 1.0, %v5812
        %v5814 = vrcp.pop %v5568
        %v5815 = vmul.f32 1.0, %v5814
        %v5816 = vrcp.pop %v5569
        %v5817 = vmul.f32 1.0, %v5816
        %v5818 = vrcp.pop %v5570
        %v5819 = vmul.f32 1.0, %v5818
        %v5820 = vrcp.pop %v5571
        %v5821 = vmul.f32 1.0, %v5820
        %v5822 = vrcp.pop %v5572
        %v5823 = vmul.f32 1.0, %v5822
        %v5824 = vrcp.pop %v5573
        %v5825 = vmul.f32 1.0, %v5824
        %v5826 = vrcp.pop %v5574
        %v5827 = vmul.f32 1.0, %v5826
        %v5828 = vrcp.pop %v5575
        %v5829 = vmul.f32 1.0, %v5828
        %v5830 = vrcp.pop %v5576
        %v5831 = vmul.f32 1.0, %v5830
        %v5832 = vrcp.pop %v5577
        %v5833 = vmul.f32 1.0, %v5832
        %v5834 = vmul.f32 %v4938, %v5579
        %v5835 = vmul.f32 %v4939, %v5581
        %v5836 = vmul.f32 %v4940, %v5583
        %v5837 = vmul.f32 %v4941, %v5585
        %v5838 = vmul.f32 %v4942, %v5587
        %v5839 = vmul.f32 %v4943, %v5589
        %v5840 = vmul.f32 %v4944, %v5591
        %v5841 = vmul.f32 %v4945, %v5593
        %v5842 = vmul.f32 %v4946, %v5595
        %v5843 = vmul.f32 %v4947, %v5597
        %v5844 = vmul.f32 %v4948, %v5599
        %v5845 = vmul.f32 %v4949, %v5601
        %v5846 = vmul.f32 %v4950, %v5603
        %v5847 = vmul.f32 %v4951, %v5605
        %v5848 = vmul.f32 %v4952, %v5607
        %v5849 = vmul.f32 %v4953, %v5609
        %v5850 = vmul.f32 %v4954, %v5611
        %v5851 = vmul.f32 %v4955, %v5613
        %v5852 = vmul.f32 %v4956, %v5615
        %v5853 = vmul.f32 %v4957, %v5617
        %v5854 = vmul.f32 %v4958, %v5619
        %v5855 = vmul.f32 %v4959, %v5621
        %v5856 = vmul.f32 %v4960, %v5623
        %v5857 = vmul.f32 %v4961, %v5625
        %v5858 = vmul.f32 %v4962, %v5627
        %v5859 = vmul.f32 %v4963, %v5629
        %v5860 = vmul.f32 %v4964, %v5631
        %v5861 = vmul.f32 %v4965, %v5633
        %v5862 = vmul.f32 %v4966, %v5635
        %v5863 = vmul.f32 %v4967, %v5637
        %v5864 = vmul.f32 %v4968, %v5639
        %v5865 = vmul.f32 %v4969, %v5641
        %v5866 = vmul.f32 %v4970, %v5643
        %v5867 = vmul.f32 %v4971, %v5645
        %v5868 = vmul.f32 %v4972, %v5647
        %v5869 = vmul.f32 %v4973, %v5649
        %v5870 = vmul.f32 %v4974, %v5651
        %v5871 = vmul.f32 %v4975, %v5653
        %v5872 = vmul.f32 %v4976, %v5655
        %v5873 = vmul.f32 %v4977, %v5657
        %v5874 = vmul.f32 %v4978, %v5659
        %v5875 = vmul.f32 %v4979, %v5661
        %v5876 = vmul.f32 %v4980, %v5663
        %v5877 = vmul.f32 %v4981, %v5665
        %v5878 = vmul.f32 %v4982, %v5667
        %v5879 = vmul.f32 %v4983, %v5669
        %v5880 = vmul.f32 %v4984, %v5671
        %v5881 = vmul.f32 %v4985, %v5673
        %v5882 = vmul.f32 %v4986, %v5675
        %v5883 = vmul.f32 %v4987, %v5677
        %v5884 = vmul.f32 %v4988, %v5679
        %v5885 = vmul.f32 %v4989, %v5681
        %v5886 = vmul.f32 %v4990, %v5683
        %v5887 = vmul.f32 %v4991, %v5685
        %v5888 = vmul.f32 %v4992, %v5687
        %v5889 = vmul.f32 %v4993, %v5689
        %v5890 = vmul.f32 %v4994, %v5691
        %v5891 = vmul.f32 %v4995, %v5693
        %v5892 = vmul.f32 %v4996, %v5695
        %v5893 = vmul.f32 %v4997, %v5697
        %v5894 = vmul.f32 %v4998, %v5699
        %v5895 = vmul.f32 %v4999, %v5701
        %v5896 = vmul.f32 %v5000, %v5703
        %v5897 = vmul.f32 %v5001, %v5705
        %v5898 = vmul.f32 %v5002, %v5707
        %v5899 = vmul.f32 %v5003, %v5709
        %v5900 = vmul.f32 %v5004, %v5711
        %v5901 = vmul.f32 %v5005, %v5713
        %v5902 = vmul.f32 %v5006, %v5715
        %v5903 = vmul.f32 %v5007, %v5717
        %v5904 = vmul.f32 %v5008, %v5719
        %v5905 = vmul.f32 %v5009, %v5721
        %v5906 = vmul.f32 %v5010, %v5723
        %v5907 = vmul.f32 %v5011, %v5725
        %v5908 = vmul.f32 %v5012, %v5727
        %v5909 = vmul.f32 %v5013, %v5729
        %v5910 = vmul.f32 %v5014, %v5731
        %v5911 = vmul.f32 %v5015, %v5733
        %v5912 = vmul.f32 %v5016, %v5735
        %v5913 = vmul.f32 %v5017, %v5737
        %v5914 = vmul.f32 %v5018, %v5739
        %v5915 = vmul.f32 %v5019, %v5741
        %v5916 = vmul.f32 %v5020, %v5743
        %v5917 = vmul.f32 %v5021, %v5745
        %v5918 = vmul.f32 %v5022, %v5747
        %v5919 = vmul.f32 %v5023, %v5749
        %v5920 = vmul.f32 %v5024, %v5751
        %v5921 = vmul.f32 %v5025, %v5753
        %v5922 = vmul.f32 %v5026, %v5755
        %v5923 = vmul.f32 %v5027, %v5757
        %v5924 = vmul.f32 %v5028, %v5759
        %v5925 = vmul.f32 %v5029, %v5761
        %v5926 = vmul.f32 %v5030, %v5763
        %v5927 = vmul.f32 %v5031, %v5765
        %v5928 = vmul.f32 %v5032, %v5767
        %v5929 = vmul.f32 %v5033, %v5769
        %v5930 = vmul.f32 %v5034, %v5771
        %v5931 = vmul.f32 %v5035, %v5773
        %v5932 = vmul.f32 %v5036, %v5775
        %v5933 = vmul.f32 %v5037, %v5777
        %v5934 = vmul.f32 %v5038, %v5779
        %v5935 = vmul.f32 %v5039, %v5781
        %v5936 = vmul.f32 %v5040, %v5783
        %v5937 = vmul.f32 %v5041, %v5785
        %v5938 = vmul.f32 %v5042, %v5787
        %v5939 = vmul.f32 %v5043, %v5789
        %v5940 = vmul.f32 %v5044, %v5791
        %v5941 = vmul.f32 %v5045, %v5793
        %v5942 = vmul.f32 %v5046, %v5795
        %v5943 = vmul.f32 %v5047, %v5797
        %v5944 = vmul.f32 %v5048, %v5799
        %v5945 = vmul.f32 %v5049, %v5801
        %v5946 = vmul.f32 %v5050, %v5803
        %v5947 = vmul.f32 %v5051, %v5805
        %v5948 = vmul.f32 %v5052, %v5807
        %v5949 = vmul.f32 %v5053, %v5809
        %v5950 = vmul.f32 %v5054, %v5811
        %v5951 = vmul.f32 %v5055, %v5813
        %v5952 = vmul.f32 %v5056, %v5815
        %v5953 = vmul.f32 %v5057, %v5817
        %v5954 = vmul.f32 %v5058, %v5819
        %v5955 = vmul.f32 %v5059, %v5821
        %v5956 = vmul.f32 %v5060, %v5823
        %v5957 = vmul.f32 %v5061, %v5825
        %v5958 = vmul.f32 %v5062, %v5827
        %v5959 = vmul.f32 %v5063, %v5829
        %v5960 = vmul.f32 %v5064, %v5831
        %v5961 = vmul.f32 %v5065, %v5833
        %v5962 = vld [vmem:[#allocation8] sm:$0xff]
        %v5963 = vld [vmem:[#allocation8 + $0x8] sm:$0xff]
        %v5964 = vld [vmem:[#allocation8 + $0x10] sm:$0xff]
        %v5965 = vld [vmem:[#allocation8 + $0x18] sm:$0xff]
        %v5966 = vld [vmem:[#allocation8 + $0x20] sm:$0xff]
        %v5967 = vld [vmem:[#allocation8 + $0x28] sm:$0xff]
        %v5968 = vld [vmem:[#allocation8 + $0x30] sm:$0xff]
        %v5969 = vld [vmem:[#allocation8 + $0x38] sm:$0xff]
        %v5970 = vld [vmem:[#allocation8 + $0x40] sm:$0xff]
        %v5971 = vld [vmem:[#allocation8 + $0x48] sm:$0xff]
        %v5972 = vld [vmem:[#allocation8 + $0x50] sm:$0xff]
        %v5973 = vld [vmem:[#allocation8 + $0x58] sm:$0xff]
        %v5974 = vld [vmem:[#allocation8 + $0x60] sm:$0xff]
        %v5975 = vld [vmem:[#allocation8 + $0x68] sm:$0xff]
        %v5976 = vld [vmem:[#allocation8 + $0x70] sm:$0xff]
        %v5977 = vld [vmem:[#allocation8 + $0x78] sm:$0xff]
        %v5978 = vld [vmem:[#allocation8 + $0x80] sm:$0xff]
        %v5979 = vld [vmem:[#allocation8 + $0x88] sm:$0xff]
        %v5980 = vld [vmem:[#allocation8 + $0x90] sm:$0xff]
        %v5981 = vld [vmem:[#allocation8 + $0x98] sm:$0xff]
        %v5982 = vld [vmem:[#allocation8 + $0xa0] sm:$0xff]
        %v5983 = vld [vmem:[#allocation8 + $0xa8] sm:$0xff]
        %v5984 = vld [vmem:[#allocation8 + $0xb0] sm:$0xff]
        %v5985 = vld [vmem:[#allocation8 + $0xb8] sm:$0xff]
        %v5986 = vld [vmem:[#allocation8 + $0xc0] sm:$0xff]
        %v5987 = vld [vmem:[#allocation8 + $0xc8] sm:$0xff]
        %v5988 = vld [vmem:[#allocation8 + $0xd0] sm:$0xff]
        %v5989 = vld [vmem:[#allocation8 + $0xd8] sm:$0xff]
        %v5990 = vld [vmem:[#allocation8 + $0xe0] sm:$0xff]
        %v5991 = vld [vmem:[#allocation8 + $0xe8] sm:$0xff]
        %v5992 = vld [vmem:[#allocation8 + $0xf0] sm:$0xff]
        %v5993 = vld [vmem:[#allocation8 + $0xf8] sm:$0xff]
        %v5994 = vld [vmem:[#allocation10] sm:$0x1]
        %v5996 = vlaneseq
        %v5997 = vshrl.u32 %v5996, 7
        %v5998 = vsub.s32 0, %v5997
        %v5999 = vrot.slane %v5994, %v5998
        %6001 = vmatprep.subr.mxu0 0.0
        %6002 = vmatpush1.msra.mxu0 %v5962
        %6003 = vmatprep.subr.mxu0 0.0
        %6004 = vmatpush1.msra.mxu0 %v5963
        %6005 = vmatprep.subr.mxu0 0.0
        %6006 = vmatpush1.msra.mxu0 %v5964
        %6007 = vmatprep.subr.mxu0 0.0
        %6008 = vmatpush1.msra.mxu0 %v5965
        %6009 = vmatprep.subr.mxu0 0.0
        %6010 = vmatpush1.msra.mxu0 %v5966
        %6011 = vmatprep.subr.mxu0 0.0
        %6012 = vmatpush1.msra.mxu0 %v5967
        %6013 = vmatprep.subr.mxu0 0.0
        %6014 = vmatpush1.msra.mxu0 %v5968
        %6015 = vmatprep.subr.mxu0 0.0
        %6016 = vmatpush1.msra.mxu0 %v5969
        %6017 = vmatprep.subr.mxu0 0.0
        %6018 = vmatpush1.msra.mxu0 %v5970
        %6019 = vmatprep.subr.mxu0 0.0
        %6020 = vmatpush1.msra.mxu0 %v5971
        %6021 = vmatprep.subr.mxu0 0.0
        %6022 = vmatpush1.msra.mxu0 %v5972
        %6023 = vmatprep.subr.mxu0 0.0
        %6024 = vmatpush1.msra.mxu0 %v5973
        %6025 = vmatprep.subr.mxu0 0.0
        %6026 = vmatpush1.msra.mxu0 %v5974
        %6027 = vmatprep.subr.mxu0 0.0
        %6028 = vmatpush1.msra.mxu0 %v5975
        %6029 = vmatprep.subr.mxu0 0.0
        %6030 = vmatpush1.msra.mxu0 %v5976
        %6031 = vmatprep.subr.mxu0 0.0
        %6032 = vmatpush1.msra.mxu0 %v5977
        %6033 = vmatprep.subr.mxu0 0.0
        %6034 = vmatpush1.msra.mxu0 %v5978
        %6035 = vmatprep.subr.mxu0 0.0
        %6036 = vmatpush1.msra.mxu0 %v5979
        %6037 = vmatprep.subr.mxu0 0.0
        %6038 = vmatpush1.msra.mxu0 %v5980
        %6039 = vmatprep.subr.mxu0 0.0
        %6040 = vmatpush1.msra.mxu0 %v5981
        %6041 = vmatprep.subr.mxu0 0.0
        %6042 = vmatpush1.msra.mxu0 %v5982
        %6043 = vmatprep.subr.mxu0 0.0
        %6044 = vmatpush1.msra.mxu0 %v5983
        %6045 = vmatprep.subr.mxu0 0.0
        %6046 = vmatpush1.msra.mxu0 %v5984
        %6047 = vmatprep.subr.mxu0 0.0
        %6048 = vmatpush1.msra.mxu0 %v5985
        %6049 = vmatprep.subr.mxu0 0.0
        %6050 = vmatpush1.msra.mxu0 %v5986
        %6051 = vmatprep.subr.mxu0 0.0
        %6052 = vmatpush1.msra.mxu0 %v5987
        %6053 = vmatprep.subr.mxu0 0.0
        %6054 = vmatpush1.msra.mxu0 %v5988
        %6055 = vmatprep.subr.mxu0 0.0
        %6056 = vmatpush1.msra.mxu0 %v5989
        %6057 = vmatprep.subr.mxu0 0.0
        %6058 = vmatpush1.msra.mxu0 %v5990
        %6059 = vmatprep.subr.mxu0 0.0
        %6060 = vmatpush1.msra.mxu0 %v5991
        %6061 = vmatprep.subr.mxu0 0.0
        %6062 = vmatpush1.msra.mxu0 %v5992
        %6063 = vmatprep.subr.mxu0 0.0
        %6064 = vmatpush1.msra.mxu0 %v5993
        %6065 = vmatprep.mubr.f32.mxu0 %v5835
        %6066 = vmatmul.mubr.f32.gmra.mrb[0].mxu0 %v5834
        %v6067 = vpop.f32.mrb[0].mxu0
        %v6068 = vadd.f32 %v5999, %v6067
        %v6069 = vpop.f32.mrb[0].mxu0
        %6070 = vmatprep.mubr.f32.mxu0 %v5837
        %6071 = vmatmul.mubr.f32.gmra.mrb[0].mxu0 %v5836
        %v6072 = vpop.f32.mrb[0].mxu0
        %v6073 = vadd.f32 %v5999, %v6072
        %v6074 = vpop.f32.mrb[0].mxu0
        %6075 = vmatprep.mubr.f32.mxu0 %v5839
        %6076 = vmatmul.mubr.f32.gmra.mrb[0].mxu0 %v5838
        %v6077 = vpop.f32.mrb[0].mxu0
        %v6078 = vadd.f32 %v5999, %v6077
        %v6079 = vpop.f32.mrb[0].mxu0
        %6080 = vmatprep.mubr.f32.mxu0 %v5841
        %6081 = vmatmul.mubr.f32.gmra.mrb[0].mxu0 %v5840
        %v6082 = vpop.f32.mrb[0].mxu0
        %v6083 = vadd.f32 %v5999, %v6082
        %v6084 = vpop.f32.mrb[0].mxu0
        %6085 = vmatprep.mubr.f32.mxu0 %v5843
        %6086 = vmatmul.mubr.f32.gmra.mrb[0].mxu0 %v5842
        %v6087 = vpop.f32.mrb[0].mxu0
        %v6088 = vadd.f32 %v5999, %v6087
        %v6089 = vpop.f32.mrb[0].mxu0
        %6090 = vmatprep.mubr.f32.mxu0 %v5845
        %6091 = vmatmul.mubr.f32.gmra.mrb[0].mxu0 %v5844
        %v6092 = vpop.f32.mrb[0].mxu0
        %v6093 = vadd.f32 %v5999, %v6092
        %v6094 = vpop.f32.mrb[0].mxu0
        %6095 = vmatprep.mubr.f32.mxu0 %v5847
        %6096 = vmatmul.mubr.f32.gmra.mrb[0].mxu0 %v5846
        %v6097 = vpop.f32.mrb[0].mxu0
        %v6098 = vadd.f32 %v5999, %v6097
        %v6099 = vpop.f32.mrb[0].mxu0
        %6100 = vmatprep.mubr.f32.mxu0 %v5849
        %6101 = vmatmul.mubr.f32.gmra.mrb[0].mxu0 %v5848
        %v6102 = vpop.f32.mrb[0].mxu0
        %v6103 = vadd.f32 %v5999, %v6102
        %v6104 = vpop.f32.mrb[0].mxu0
        %6105 = vmatprep.mubr.f32.mxu0 %v5851
        %6106 = vmatmul.mubr.f32.gmra.mrb[0].mxu0 %v5850
        %v6107 = vpop.f32.mrb[0].mxu0
        %v6108 = vadd.f32 %v5999, %v6107
        %v6109 = vpop.f32.mrb[0].mxu0
        %6110 = vmatprep.mubr.f32.mxu0 %v5853
        %6111 = vmatmul.mubr.f32.gmra.mrb[0].mxu0 %v5852
        %v6112 = vpop.f32.mrb[0].mxu0
        %v6113 = vadd.f32 %v5999, %v6112
        %v6114 = vpop.f32.mrb[0].mxu0
        %6115 = vmatprep.mubr.f32.mxu0 %v5855
        %6116 = vmatmul.mubr.f32.gmra.mrb[0].mxu0 %v5854
        %v6117 = vpop.f32.mrb[0].mxu0
        %v6118 = vadd.f32 %v5999, %v6117
        %v6119 = vpop.f32.mrb[0].mxu0
        %6120 = vmatprep.mubr.f32.mxu0 %v5857
        %6121 = vmatmul.mubr.f32.gmra.mrb[0].mxu0 %v5856
        %v6122 = vpop.f32.mrb[0].mxu0
        %v6123 = vadd.f32 %v5999, %v6122
        %v6124 = vpop.f32.mrb[0].mxu0
        %6125 = vmatprep.mubr.f32.mxu0 %v5859
        %6126 = vmatmul.mubr.f32.gmra.mrb[0].mxu0 %v5858
        %v6127 = vpop.f32.mrb[0].mxu0
        %v6128 = vadd.f32 %v5999, %v6127
        %v6129 = vpop.f32.mrb[0].mxu0
        %6130 = vmatprep.mubr.f32.mxu0 %v5861
        %6131 = vmatmul.mubr.f32.gmra.mrb[0].mxu0 %v5860
        %v6132 = vpop.f32.mrb[0].mxu0
        %v6133 = vadd.f32 %v5999, %v6132
        %v6134 = vpop.f32.mrb[0].mxu0
        %6135 = vmatprep.mubr.f32.mxu0 %v5863
        %6136 = vmatmul.mubr.f32.gmra.mrb[0].mxu0 %v5862
        %v6137 = vpop.f32.mrb[0].mxu0
        %v6138 = vadd.f32 %v5999, %v6137
        %v6139 = vpop.f32.mrb[0].mxu0
        %6140 = vmatprep.mubr.f32.mxu0 %v5865
        %6141 = vmatmul.mubr.f32.gmra.mrb[0].mxu0 %v5864
        %v6142 = vpop.f32.mrb[0].mxu0
        %v6143 = vadd.f32 %v5999, %v6142
        %v6144 = vpop.f32.mrb[0].mxu0
        %6145 = vmatprep.mubr.f32.mxu0 %v5867
        %6146 = vmatmul.mubr.f32.gmra.mrb[0].mxu0 %v5866
        %v6147 = vpop.f32.mrb[0].mxu0
        %v6148 = vadd.f32 %v5999, %v6147
        %v6149 = vpop.f32.mrb[0].mxu0
        %6150 = vmatprep.mubr.f32.mxu0 %v5869
        %6151 = vmatmul.mubr.f32.gmra.mrb[0].mxu0 %v5868
        %v6152 = vpop.f32.mrb[0].mxu0
        %v6153 = vadd.f32 %v5999, %v6152
        %v6154 = vpop.f32.mrb[0].mxu0
        %6155 = vmatprep.mubr.f32.mxu0 %v5871
        %6156 = vmatmul.mubr.f32.gmra.mrb[0].mxu0 %v5870
        %v6157 = vpop.f32.mrb[0].mxu0
        %v6158 = vadd.f32 %v5999, %v6157
        %v6159 = vpop.f32.mrb[0].mxu0
        %6160 = vmatprep.mubr.f32.mxu0 %v5873
        %6161 = vmatmul.mubr.f32.gmra.mrb[0].mxu0 %v5872
        %v6162 = vpop.f32.mrb[0].mxu0
        %v6163 = vadd.f32 %v5999, %v6162
        %v6164 = vpop.f32.mrb[0].mxu0
        %6165 = vmatprep.mubr.f32.mxu0 %v5875
        %6166 = vmatmul.mubr.f32.gmra.mrb[0].mxu0 %v5874
        %v6167 = vpop.f32.mrb[0].mxu0
        %v6168 = vadd.f32 %v5999, %v6167
        %v6169 = vpop.f32.mrb[0].mxu0
        %6170 = vmatprep.mubr.f32.mxu0 %v5877
        %6171 = vmatmul.mubr.f32.gmra.mrb[0].mxu0 %v5876
        %v6172 = vpop.f32.mrb[0].mxu0
        %v6173 = vadd.f32 %v5999, %v6172
        %v6174 = vpop.f32.mrb[0].mxu0
        %6175 = vmatprep.mubr.f32.mxu0 %v5879
        %6176 = vmatmul.mubr.f32.gmra.mrb[0].mxu0 %v5878
        %v6177 = vpop.f32.mrb[0].mxu0
        %v6178 = vadd.f32 %v5999, %v6177
        %v6179 = vpop.f32.mrb[0].mxu0
        %6180 = vmatprep.mubr.f32.mxu0 %v5881
        %6181 = vmatmul.mubr.f32.gmra.mrb[0].mxu0 %v5880
        %v6182 = vpop.f32.mrb[0].mxu0
        %v6183 = vadd.f32 %v5999, %v6182
        %v6184 = vpop.f32.mrb[0].mxu0
        %6185 = vmatprep.mubr.f32.mxu0 %v5883
        %6186 = vmatmul.mubr.f32.gmra.mrb[0].mxu0 %v5882
        %v6187 = vpop.f32.mrb[0].mxu0
        %v6188 = vadd.f32 %v5999, %v6187
        %v6189 = vpop.f32.mrb[0].mxu0
        %6190 = vmatprep.mubr.f32.mxu0 %v5885
        %6191 = vmatmul.mubr.f32.gmra.mrb[0].mxu0 %v5884
        %v6192 = vpop.f32.mrb[0].mxu0
        %v6193 = vadd.f32 %v5999, %v6192
        %v6194 = vpop.f32.mrb[0].mxu0
        %6195 = vmatprep.mubr.f32.mxu0 %v5887
        %6196 = vmatmul.mubr.f32.gmra.mrb[0].mxu0 %v5886
        %v6197 = vpop.f32.mrb[0].mxu0
        %v6198 = vadd.f32 %v5999, %v6197
        %v6199 = vpop.f32.mrb[0].mxu0
        %6200 = vmatprep.mubr.f32.mxu0 %v5889
        %6201 = vmatmul.mubr.f32.gmra.mrb[0].mxu0 %v5888
        %v6202 = vpop.f32.mrb[0].mxu0
        %v6203 = vadd.f32 %v5999, %v6202
        %v6204 = vpop.f32.mrb[0].mxu0
        %6205 = vmatprep.mubr.f32.mxu0 %v5891
        %6206 = vmatmul.mubr.f32.gmra.mrb[0].mxu0 %v5890
        %v6207 = vpop.f32.mrb[0].mxu0
        %v6208 = vadd.f32 %v5999, %v6207
        %v6209 = vpop.f32.mrb[0].mxu0
        %6210 = vmatprep.mubr.f32.mxu0 %v5893
        %6211 = vmatmul.mubr.f32.gmra.mrb[0].mxu0 %v5892
        %v6212 = vpop.f32.mrb[0].mxu0
        %v6213 = vadd.f32 %v5999, %v6212
        %v6214 = vpop.f32.mrb[0].mxu0
        %6215 = vmatprep.mubr.f32.mxu0 %v5895
        %6216 = vmatmul.mubr.f32.gmra.mrb[0].mxu0 %v5894
        %v6217 = vpop.f32.mrb[0].mxu0
        %v6218 = vadd.f32 %v5999, %v6217
        %v6219 = vpop.f32.mrb[0].mxu0
        %6220 = vmatprep.mubr.f32.mxu0 %v5897
        %6221 = vmatmul.mubr.f32.gmra.mrb[0].mxu0 %v5896
        %v6222 = vpop.f32.mrb[0].mxu0
        %v6223 = vadd.f32 %v5999, %v6222
        %v6224 = vpop.f32.mrb[0].mxu0
        %6225 = vmatprep.mubr.f32.mxu0 %v5899
        %6226 = vmatmul.mubr.f32.gmra.mrb[0].mxu0 %v5898
        %v6227 = vpop.f32.mrb[0].mxu0
        %v6228 = vadd.f32 %v5999, %v6227
        %v6229 = vpop.f32.mrb[0].mxu0
        %6230 = vmatprep.mubr.f32.mxu0 %v5901
        %6231 = vmatmul.mubr.f32.gmra.mrb[0].mxu0 %v5900
        %v6232 = vpop.f32.mrb[0].mxu0
        %v6233 = vadd.f32 %v5999, %v6232
        %v6234 = vpop.f32.mrb[0].mxu0
        %6235 = vmatprep.mubr.f32.mxu0 %v5903
        %6236 = vmatmul.mubr.f32.gmra.mrb[0].mxu0 %v5902
        %v6237 = vpop.f32.mrb[0].mxu0
        %v6238 = vadd.f32 %v5999, %v6237
        %v6239 = vpop.f32.mrb[0].mxu0
        %6240 = vmatprep.mubr.f32.mxu0 %v5905
        %6241 = vmatmul.mubr.f32.gmra.mrb[0].mxu0 %v5904
        %v6242 = vpop.f32.mrb[0].mxu0
        %v6243 = vadd.f32 %v5999, %v6242
        %v6244 = vpop.f32.mrb[0].mxu0
        %6245 = vmatprep.mubr.f32.mxu0 %v5907
        %6246 = vmatmul.mubr.f32.gmra.mrb[0].mxu0 %v5906
        %v6247 = vpop.f32.mrb[0].mxu0
        %v6248 = vadd.f32 %v5999, %v6247
        %v6249 = vpop.f32.mrb[0].mxu0
        %6250 = vmatprep.mubr.f32.mxu0 %v5909
        %6251 = vmatmul.mubr.f32.gmra.mrb[0].mxu0 %v5908
        %v6252 = vpop.f32.mrb[0].mxu0
        %v6253 = vadd.f32 %v5999, %v6252
        %v6254 = vpop.f32.mrb[0].mxu0
        %6255 = vmatprep.mubr.f32.mxu0 %v5911
        %6256 = vmatmul.mubr.f32.gmra.mrb[0].mxu0 %v5910
        %v6257 = vpop.f32.mrb[0].mxu0
        %v6258 = vadd.f32 %v5999, %v6257
        %v6259 = vpop.f32.mrb[0].mxu0
        %6260 = vmatprep.mubr.f32.mxu0 %v5913
        %6261 = vmatmul.mubr.f32.gmra.mrb[0].mxu0 %v5912
        %v6262 = vpop.f32.mrb[0].mxu0
        %v6263 = vadd.f32 %v5999, %v6262
        %v6264 = vpop.f32.mrb[0].mxu0
        %6265 = vmatprep.mubr.f32.mxu0 %v5915
        %6266 = vmatmul.mubr.f32.gmra.mrb[0].mxu0 %v5914
        %v6267 = vpop.f32.mrb[0].mxu0
        %v6268 = vadd.f32 %v5999, %v6267
        %v6269 = vpop.f32.mrb[0].mxu0
        %6270 = vmatprep.mubr.f32.mxu0 %v5917
        %6271 = vmatmul.mubr.f32.gmra.mrb[0].mxu0 %v5916
        %v6272 = vpop.f32.mrb[0].mxu0
        %v6273 = vadd.f32 %v5999, %v6272
        %v6274 = vpop.f32.mrb[0].mxu0
        %6275 = vmatprep.mubr.f32.mxu0 %v5919
        %6276 = vmatmul.mubr.f32.gmra.mrb[0].mxu0 %v5918
        %v6277 = vpop.f32.mrb[0].mxu0
        %v6278 = vadd.f32 %v5999, %v6277
        %v6279 = vpop.f32.mrb[0].mxu0
        %6280 = vmatprep.mubr.f32.mxu0 %v5921
        %6281 = vmatmul.mubr.f32.gmra.mrb[0].mxu0 %v5920
        %v6282 = vpop.f32.mrb[0].mxu0
        %v6283 = vadd.f32 %v5999, %v6282
        %v6284 = vpop.f32.mrb[0].mxu0
        %6285 = vmatprep.mubr.f32.mxu0 %v5923
        %6286 = vmatmul.mubr.f32.gmra.mrb[0].mxu0 %v5922
        %v6287 = vpop.f32.mrb[0].mxu0
        %v6288 = vadd.f32 %v5999, %v6287
        %v6289 = vpop.f32.mrb[0].mxu0
        %6290 = vmatprep.mubr.f32.mxu0 %v5925
        %6291 = vmatmul.mubr.f32.gmra.mrb[0].mxu0 %v5924
        %v6292 = vpop.f32.mrb[0].mxu0
        %v6293 = vadd.f32 %v5999, %v6292
        %v6294 = vpop.f32.mrb[0].mxu0
        %6295 = vmatprep.mubr.f32.mxu0 %v5927
        %6296 = vmatmul.mubr.f32.gmra.mrb[0].mxu0 %v5926
        %v6297 = vpop.f32.mrb[0].mxu0
        %v6298 = vadd.f32 %v5999, %v6297
        %v6299 = vpop.f32.mrb[0].mxu0
        %6300 = vmatprep.mubr.f32.mxu0 %v5929
        %6301 = vmatmul.mubr.f32.gmra.mrb[0].mxu0 %v5928
        %v6302 = vpop.f32.mrb[0].mxu0
        %v6303 = vadd.f32 %v5999, %v6302
        %v6304 = vpop.f32.mrb[0].mxu0
        %6305 = vmatprep.mubr.f32.mxu0 %v5931
        %6306 = vmatmul.mubr.f32.gmra.mrb[0].mxu0 %v5930
        %v6307 = vpop.f32.mrb[0].mxu0
        %v6308 = vadd.f32 %v5999, %v6307
        %v6309 = vpop.f32.mrb[0].mxu0
        %6310 = vmatprep.mubr.f32.mxu0 %v5933
        %6311 = vmatmul.mubr.f32.gmra.mrb[0].mxu0 %v5932
        %v6312 = vpop.f32.mrb[0].mxu0
        %v6313 = vadd.f32 %v5999, %v6312
        %v6314 = vpop.f32.mrb[0].mxu0
        %6315 = vmatprep.mubr.f32.mxu0 %v5935
        %6316 = vmatmul.mubr.f32.gmra.mrb[0].mxu0 %v5934
        %v6317 = vpop.f32.mrb[0].mxu0
        %v6318 = vadd.f32 %v5999, %v6317
        %v6319 = vpop.f32.mrb[0].mxu0
        %6320 = vmatprep.mubr.f32.mxu0 %v5937
        %6321 = vmatmul.mubr.f32.gmra.mrb[0].mxu0 %v5936
        %v6322 = vpop.f32.mrb[0].mxu0
        %v6323 = vadd.f32 %v5999, %v6322
        %v6324 = vpop.f32.mrb[0].mxu0
        %6325 = vmatprep.mubr.f32.mxu0 %v5939
        %6326 = vmatmul.mubr.f32.gmra.mrb[0].mxu0 %v5938
        %v6327 = vpop.f32.mrb[0].mxu0
        %v6328 = vadd.f32 %v5999, %v6327
        %v6329 = vpop.f32.mrb[0].mxu0
        %6330 = vmatprep.mubr.f32.mxu0 %v5941
        %6331 = vmatmul.mubr.f32.gmra.mrb[0].mxu0 %v5940
        %v6332 = vpop.f32.mrb[0].mxu0
        %v6333 = vadd.f32 %v5999, %v6332
        %v6334 = vpop.f32.mrb[0].mxu0
        %6335 = vmatprep.mubr.f32.mxu0 %v5943
        %6336 = vmatmul.mubr.f32.gmra.mrb[0].mxu0 %v5942
        %v6337 = vpop.f32.mrb[0].mxu0
        %v6338 = vadd.f32 %v5999, %v6337
        %v6339 = vpop.f32.mrb[0].mxu0
        %6340 = vmatprep.mubr.f32.mxu0 %v5945
        %6341 = vmatmul.mubr.f32.gmra.mrb[0].mxu0 %v5944
        %v6342 = vpop.f32.mrb[0].mxu0
        %v6343 = vadd.f32 %v5999, %v6342
        %v6344 = vpop.f32.mrb[0].mxu0
        %6345 = vmatprep.mubr.f32.mxu0 %v5947
        %6346 = vmatmul.mubr.f32.gmra.mrb[0].mxu0 %v5946
        %v6347 = vpop.f32.mrb[0].mxu0
        %v6348 = vadd.f32 %v5999, %v6347
        %v6349 = vpop.f32.mrb[0].mxu0
        %6350 = vmatprep.mubr.f32.mxu0 %v5949
        %6351 = vmatmul.mubr.f32.gmra.mrb[0].mxu0 %v5948
        %v6352 = vpop.f32.mrb[0].mxu0
        %v6353 = vadd.f32 %v5999, %v6352
        %v6354 = vpop.f32.mrb[0].mxu0
        %6355 = vmatprep.mubr.f32.mxu0 %v5951
        %6356 = vmatmul.mubr.f32.gmra.mrb[0].mxu0 %v5950
        %v6357 = vpop.f32.mrb[0].mxu0
        %v6358 = vadd.f32 %v5999, %v6357
        %v6359 = vpop.f32.mrb[0].mxu0
        %6360 = vmatprep.mubr.f32.mxu0 %v5953
        %6361 = vmatmul.mubr.f32.gmra.mrb[0].mxu0 %v5952
        %v6362 = vpop.f32.mrb[0].mxu0
        %v6363 = vadd.f32 %v5999, %v6362
        %v6364 = vpop.f32.mrb[0].mxu0
        %6365 = vmatprep.mubr.f32.mxu0 %v5955
        %6366 = vmatmul.mubr.f32.gmra.mrb[0].mxu0 %v5954
        %v6367 = vpop.f32.mrb[0].mxu0
        %v6368 = vadd.f32 %v5999, %v6367
        %v6369 = vpop.f32.mrb[0].mxu0
        %6370 = vmatprep.mubr.f32.mxu0 %v5957
        %6371 = vmatmul.mubr.f32.gmra.mrb[0].mxu0 %v5956
        %v6372 = vpop.f32.mrb[0].mxu0
        %v6373 = vadd.f32 %v5999, %v6372
        %v6374 = vpop.f32.mrb[0].mxu0
        %6375 = vmatprep.mubr.f32.mxu0 %v5959
        %6376 = vmatmul.mubr.f32.gmra.mrb[0].mxu0 %v5958
        %v6377 = vpop.f32.mrb[0].mxu0
        %v6378 = vadd.f32 %v5999, %v6377
        %v6379 = vpop.f32.mrb[0].mxu0
        %6380 = vmatprep.mubr.f32.mxu0 %v5961
        %6381 = vmatmul.mubr.f32.gmra.mrb[0].mxu0 %v5960
        %v6382 = vpop.f32.mrb[0].mxu0
        %v6383 = vadd.f32 %v5999, %v6382
        %v6384 = vpop.f32.mrb[0].mxu0
        %6385 = vdwg.mxu0
        %6386 = vst [vmem:[%s297] sm:$0xff] %v6068
        %6387 = vst [vmem:[%s297 + $0x8] sm:$0xff] %v6073
        %6388 = vst [vmem:[%s297 + $0x10] sm:$0xff] %v6078
        %6389 = vst [vmem:[%s297 + $0x18] sm:$0xff] %v6083
        %6390 = vst [vmem:[%s297 + $0x20] sm:$0xff] %v6088
        %6391 = vst [vmem:[%s297 + $0x28] sm:$0xff] %v6093
        %6392 = vst [vmem:[%s297 + $0x30] sm:$0xff] %v6098
        %6393 = vst [vmem:[%s297 + $0x38] sm:$0xff] %v6103
        %6394 = vst [vmem:[%s297 + $0x40] sm:$0xff] %v6108
        %6395 = vst [vmem:[%s297 + $0x48] sm:$0xff] %v6113
        %6396 = vst [vmem:[%s297 + $0x50] sm:$0xff] %v6118
        %6397 = vst [vmem:[%s297 + $0x58] sm:$0xff] %v6123
        %6398 = vst [vmem:[%s297 + $0x60] sm:$0xff] %v6128
        %6399 = vst [vmem:[%s297 + $0x68] sm:$0xff] %v6133
        %6400 = vst [vmem:[%s297 + $0x70] sm:$0xff] %v6138
        %6401 = vst [vmem:[%s297 + $0x78] sm:$0xff] %v6143
        %6402 = vst [vmem:[%s297 + $0x80] sm:$0xff] %v6148
        %6403 = vst [vmem:[%s297 + $0x88] sm:$0xff] %v6153
        %6404 = vst [vmem:[%s297 + $0x90] sm:$0xff] %v6158
        %6405 = vst [vmem:[%s297 + $0x98] sm:$0xff] %v6163
        %6406 = vst [vmem:[%s297 + $0xa0] sm:$0xff] %v6168
        %6407 = vst [vmem:[%s297 + $0xa8] sm:$0xff] %v6173
        %6408 = vst [vmem:[%s297 + $0xb0] sm:$0xff] %v6178
        %6409 = vst [vmem:[%s297 + $0xb8] sm:$0xff] %v6183
        %6410 = vst [vmem:[%s297 + $0xc0] sm:$0xff] %v6188
        %6411 = vst [vmem:[%s297 + $0xc8] sm:$0xff] %v6193
        %6412 = vst [vmem:[%s297 + $0xd0] sm:$0xff] %v6198
        %6413 = vst [vmem:[%s297 + $0xd8] sm:$0xff] %v6203
        %6414 = vst [vmem:[%s297 + $0xe0] sm:$0xff] %v6208
        %6415 = vst [vmem:[%s297 + $0xe8] sm:$0xff] %v6213
        %6416 = vst [vmem:[%s297 + $0xf0] sm:$0xff] %v6218
        %6417 = vst [vmem:[%s297 + $0xf8] sm:$0xff] %v6223
        %6418 = vst [vmem:[%s297 + $0x100] sm:$0xff] %v6228
        %6419 = vst [vmem:[%s297 + $0x108] sm:$0xff] %v6233
        %6420 = vst [vmem:[%s297 + $0x110] sm:$0xff] %v6238
        %6421 = vst [vmem:[%s297 + $0x118] sm:$0xff] %v6243
        %6422 = vst [vmem:[%s297 + $0x120] sm:$0xff] %v6248
        %6423 = vst [vmem:[%s297 + $0x128] sm:$0xff] %v6253
        %6424 = vst [vmem:[%s297 + $0x130] sm:$0xff] %v6258
        %6425 = vst [vmem:[%s297 + $0x138] sm:$0xff] %v6263
        %6426 = vst [vmem:[%s297 + $0x140] sm:$0xff] %v6268
        %6427 = vst [vmem:[%s297 + $0x148] sm:$0xff] %v6273
        %6428 = vst [vmem:[%s297 + $0x150] sm:$0xff] %v6278
        %6429 = vst [vmem:[%s297 + $0x158] sm:$0xff] %v6283
        %6430 = vst [vmem:[%s297 + $0x160] sm:$0xff] %v6288
        %6431 = vst [vmem:[%s297 + $0x168] sm:$0xff] %v6293
        %6432 = vst [vmem:[%s297 + $0x170] sm:$0xff] %v6298
        %6433 = vst [vmem:[%s297 + $0x178] sm:$0xff] %v6303
        %6434 = vst [vmem:[%s297 + $0x180] sm:$0xff] %v6308
        %6435 = vst [vmem:[%s297 + $0x188] sm:$0xff] %v6313
        %6436 = vst [vmem:[%s297 + $0x190] sm:$0xff] %v6318
        %6437 = vst [vmem:[%s297 + $0x198] sm:$0xff] %v6323
        %6438 = vst [vmem:[%s297 + $0x1a0] sm:$0xff] %v6328
        %6439 = vst [vmem:[%s297 + $0x1a8] sm:$0xff] %v6333
        %6440 = vst [vmem:[%s297 + $0x1b0] sm:$0xff] %v6338
        %6441 = vst [vmem:[%s297 + $0x1b8] sm:$0xff] %v6343
        %6442 = vst [vmem:[%s297 + $0x1c0] sm:$0xff] %v6348
        %6443 = vst [vmem:[%s297 + $0x1c8] sm:$0xff] %v6353
        %6444 = vst [vmem:[%s297 + $0x1d0] sm:$0xff] %v6358
        %6445 = vst [vmem:[%s297 + $0x1d8] sm:$0xff] %v6363
        %6446 = vst [vmem:[%s297 + $0x1e0] sm:$0xff] %v6368
        %6447 = vst [vmem:[%s297 + $0x1e8] sm:$0xff] %v6373
        %6448 = vst [vmem:[%s297 + $0x1f0] sm:$0xff] %v6378
        %6449 = vst [vmem:[%s297 + $0x1f8] sm:$0xff] %v6383
        %s6450 = sand.u32 %s142, 1
        %s6451 = scalar_lea.sflag [#allocation4], %s6450
        %s6452 = sand.u32 %s142, 1
        %s6453 = smul.addr %s6452, 512
        %s6454 = scalar_lea.vmem [#allocation11], %s6453
        // Predicated region
        $region61: #{tpu_custom_call.1} parent=39 // pred_check
          %p6455 = pneg %p152
        $region62: #{tpu_custom_call.1} parent=39 // pred_check_branch
          %6457 = sbr.rel (%p6455) target = $region64
        $region63: #{tpu_custom_call.1} parent=39 // pred_region
          %s6458 = smul.u32 64, %s24
          %s6460 = ssub.s32 8192, 8192
          %6461 = vsyncadd %s6451, %s6460
          %s6462 = smul.addr %s6458, 128
          %s6463 = scalar_lea.hbm %s5, %s6462
          %s6464 = sshll.u32 %s6454, 4
          %s6465 = int_to_ptr.vmem [resolvable:$true] %s6464
          %6470 = dma.vmem_to_hbm [thread:$0]  %s6465, 8192, %s6463, %s6451, 128, 128, 8
        $region64: #{tpu_custom_call.1} parent=39 // pred_fallthru
          _
      $region40: #{tpu_custom_call.1} parent=5 // pred_fallthru
        _
      %p6471 = scmp.le.s32.totalorder 2, %s19
      // Predicated region
      $region65: #{tpu_custom_call.1} parent=5 // pred_check
        %p6472 = pneg %p6471
      $region66: #{tpu_custom_call.1} parent=5 // pred_check_branch
        %6474 = sbr.rel (%p6472) target = $region68
      $region67: #{tpu_custom_call.1} parent=5 // pred_region
        %s6475 = ssub.s32 %s19, 2
        // Predicated region
        $region69: #{tpu_custom_call.1} parent=67 // pred_check
          %p6476 = pneg %p158
        $region70: #{tpu_custom_call.1} parent=67 // pred_check_branch
          %6478 = sbr.rel (%p6476) target = $region72
        $region71: #{tpu_custom_call.1} parent=67 // pred_region
          %s6479 = sand.u32 %s143, 1
          %s6480 = scalar_lea.sflag [#allocation4], %s6479
          %s6481 = sand.u32 %s143, 1
          %s6482 = smul.addr %s6481, 512
          %s6483 = scalar_lea.vmem [#allocation11], %s6482
          %6484 = dma.done %s6480, 8192
        $region72: #{tpu_custom_call.1} parent=67 // pred_fallthru
          _
      $region68: #{tpu_custom_call.1} parent=5 // pred_fallthru
        _
    $region6: #{tpu_custom_call.1} parent=1 // loop_footer
      %s23 = sadd.s32 1, %s19
    $region7: #{tpu_custom_call.1} parent=1 // loop_footer_branch
      %18 = sbr.rel target = $region3
    $region8: #{tpu_custom_call.1} parent=1 // loop_exit
      _
    %6485 = vsyncpa [#allocation3], 1
    %s6486 = scalar_lea.sflag [#allocation3], 1
    %6487 = vsyncpa %s6486, 1
    %6488 = vsyncpa [#allocation6], 1
    %6489 = vsyncpa [#allocation9], 1
    %6490 = vsyncpa [#allocation4], 1
    %s6491 = scalar_lea.sflag [#allocation4], 1
    %6492 = vsyncpa %s6491, 1

</llo_original>
